<compile_context>
chip_gen: v7x
topology: tpu7x:2x2x1
jax: 0.10.0
libtpu: 0.0.40
codegen_flags: <defaults>
</compile_context>

<pallas_src>
import jax
import jax.numpy as jnp
from jax.experimental import pallas as pl
from jax.experimental.pallas import tpu as pltpu

# --------------------------- model / layout constants ------------------------

K = 5              # conv kernel size (both convs)
C1_OUT = 10        # conv1 out channels (stored un-padded: true 10 channels)
C2_OUT = 20        # conv2 out channels
C2_PAD = 32        # conv2 out channels padded to 32 lanes -> fc1 K = 16*32 = 512
N_HIDDEN = 50      # fc1 width
H_PAD = 128        # fc1 width padded (intermediate only, never hits HBM)
N_CLASSES = 10     # fc2 width
OUT_PAD = 128      # logits padded to 128 lanes for a lane-dense output store

KP1 = 32           # conv1 GEMM contraction: 25  -> 32  (folded into patch build)
KP2 = 256          # conv2 GEMM contraction: 250 -> 256 (folded into patch build)

BT_CONV1 = 16      # images per conv1 grid step (~12 MB VMEM incl. double buffers)
BT_CONV2 = 32      # images per conv2 grid step (~5 MB VMEM)
TM_MLP = 512       # MLP row tile (~3 MB VMEM)

MATMUL_DTYPE = jnp.float32   # set to jnp.bfloat16 on v6e/v7x to halve DMA bytes
                             # (accumulation stays f32); f32 keeps exact torch parity.


def _round_up(n, m):
    return ((n + m - 1) // m) * m


# ------------------------------- Pallas kernels -------------------------------

def _conv_pool_relu_kernel(p_ref, w_ref, b_ref, o_ref):
    """Fused conv-as-GEMM + bias + 2x2 max-pool + ReLU for a tile of BT images.

    p_ref : (BT, 4*PH*PW, Kp)  im2col patches; per image the rows are the four
                               pool sub-grids [(dh,dw)=(0,0),(0,1),(1,0),(1,1)],
                               each in (ph, pw) raster order; cols (kh, kw, c),
                               zero-padded to Kp.
    w_ref : (Kp, N)            GEMM weight (VMEM-resident across the grid).
    b_ref : (1, N)             bias.
    o_ref : (BT, PH*PW, N)     relu(maxpool2(conv)), channels-last.
    """
    bt, phw, n = o_ref.shape
    kp = w_ref.shape[0]

    # One long MXU stream: (BT*4*PH*PW, Kp) x (Kp, N).  The reshape is a free
    # leading-dim merge (4*PH*PW is a multiple of 8 sublanes).
    p = p_ref[...].reshape(bt * 4 * phw, kp)
    y = jnp.dot(p, w_ref[...], preferred_element_type=jnp.float32)

    # 2x2 max-pool == max over the four pool-sub-grid chunks (major-dim slices,
    # free).  Bias is a per-channel constant, so adding it after the max is
    # equivalent to torch's conv-bias-then-pool.
    y = y.reshape(bt, 4, phw, n)
    m = jnp.maximum(jnp.maximum(y[:, 0], y[:, 1]), jnp.maximum(y[:, 2], y[:, 3]))
    o_ref[...] = jnp.maximum(m + b_ref[...], 0.0)


def _mlp_kernel(x_ref, w1_ref, b1_ref, w2_ref, b2_ref, o_ref):
    """fc2(dropout(relu(fc1(x)))), dropout == identity (eval mode).
    Widths are zero-padded (512 -> 128 -> 128); padded columns stay exactly 0."""
    h = jnp.dot(x_ref[...], w1_ref[...],
                preferred_element_type=jnp.float32) + b1_ref[...]
    h = jnp.maximum(h, 0.0)
    # TODO(synk): training-mode F.dropout not implemented (eval-mode identity).
    o_ref[...] = jnp.dot(h.astype(w2_ref.dtype), w2_ref[...],
                         preferred_element_type=jnp.float32) + b2_ref[...]


# ------------------------------ glue / wrappers --------------------------------

def _im2col_pooled(a, k, kp):
    """Patch matrix for a valid kxk conv followed by 2x2/2 max pool.

    a: (B, H, W, C) channels-last.  Returns (patches, (PH, PW)):
    patches (B, 4*PH*PW, kp) with row order (dh, dw, ph, pw) -- the four members
    of each pool window form four leading row-chunks so the pool becomes a
    chunk max in the kernel -- and col order (kh, kw, c), zero-padded to kp
    inside the same materialization (no separate jnp.pad of the full tensor)."""
    B, H, W, C = a.shape
    OH, OW = H - k + 1, W - k + 1
    PH, PW = OH // 2, OW // 2
    taps = [a[:, kh:kh + OH, kw:kw + OW, :] for kh in range(k) for kw in range(k)]
    p = jnp.stack(taps, axis=3).reshape(B, OH, OW, k * k * C)
    if kp > k * k * C:   # fold the contraction pad into the patch construction
        p = jnp.concatenate(
            [p, jnp.zeros((B, OH, OW, kp - k * k * C), p.dtype)], axis=-1)
    p = p.reshape(B, PH, 2, PW, 2, kp)
    p = p.transpose(0, 2, 4, 1, 3, 5)            # (B, dh, dw, PH, PW, kp)
    return p.reshape(B, 4 * PH * PW, kp), (PH, PW)


def conv_pool_relu_pallas(a, wg, bg, k, bt):
    """relu(max_pool2(conv(a))) as one fused Pallas GEMM per tile of bt images.

    a : (B, H, W, Cin) channels-last.
    wg: (Kp, N) padded GEMM weight; bg: (1, N) bias.
    Returns (B, PH, PW, N) channels-last."""
    B = a.shape[0]
    kp, n_out = wg.shape
    p, (PH, PW) = _im2col_pooled(a, k, kp)
    p = p.astype(MATMUL_DTYPE)
    phw = PH * PW
    bt = min(bt, B)

    out = pl.pallas_call(
        _conv_pool_relu_kernel,
        out_shape=jax.ShapeDtypeStruct((B, phw, n_out), jnp.float32),
        grid=(pl.cdiv(B, bt),),
        in_specs=[
            pl.BlockSpec((bt, 4 * phw, kp), lambda i: (i, 0, 0)),
            pl.BlockSpec((kp, n_out), lambda i: (0, 0)),     # resident across grid
            pl.BlockSpec((1, n_out), lambda i: (0, 0)),
        ],
        out_specs=pl.BlockSpec((bt, phw, n_out), lambda i: (i, 0, 0)),
        compiler_params=pltpu.CompilerParams(dimension_semantics=("parallel",)),
    )(p, wg, bg)
    return out.reshape(B, PH, PW, n_out)


def mlp_pallas(x, w1, b1, w2, b2, tm=TM_MLP):
    """fc2(relu(fc1(x))) on padded operands; grid over M row-tiles."""
    B, kin = x.shape
    h1 = w1.shape[1]
    n2 = w2.shape[1]
    tm = min(tm, B)
    return pl.pallas_call(
        _mlp_kernel,
        out_shape=jax.ShapeDtypeStruct((B, n2), jnp.float32),
        grid=(pl.cdiv(B, tm),),
        in_specs=[
            pl.BlockSpec((tm, kin), lambda i: (i, 0)),
            pl.BlockSpec((kin, h1), lambda i: (0, 0)),        # resident
            pl.BlockSpec((1, h1), lambda i: (0, 0)),
            pl.BlockSpec((h1, n2), lambda i: (0, 0)),
            pl.BlockSpec((1, n2), lambda i: (0, 0)),
        ],
        out_specs=pl.BlockSpec((tm, n2), lambda i: (i, 0)),
        compiler_params=pltpu.CompilerParams(dimension_semantics=("parallel",)),
    )(x.astype(MATMUL_DTYPE), w1, b1, w2, b2)


# --------------------------- parameter preparation -----------------------------

def init_params(key):
    """PyTorch-layout parameters of CNNMnist."""
    ks = jax.random.split(key, 8)
    scale = 0.05
    return {
        "conv1_w": scale * jax.random.normal(ks[0], (C1_OUT, 1, K, K), jnp.float32),
        "conv1_b": scale * jax.random.normal(ks[1], (C1_OUT,), jnp.float32),
        "conv2_w": scale * jax.random.normal(ks[2], (C2_OUT, C1_OUT, K, K), jnp.float32),
        "conv2_b": scale * jax.random.normal(ks[3], (C2_OUT,), jnp.float32),
        "fc1_w": scale * jax.random.normal(ks[4], (N_HIDDEN, 320), jnp.float32),
        "fc1_b": scale * jax.random.normal(ks[5], (N_HIDDEN,), jnp.float32),
        "fc2_w": scale * jax.random.normal(ks[6], (N_CLASSES, N_HIDDEN), jnp.float32),
        "fc2_b": scale * jax.random.normal(ks[7], (N_CLASSES,), jnp.float32),
    }


def _conv_gemm_params(w, b, cin_a, kp, cout_pad):
    """torch conv weight (Cout, Cin, K, K) -> GEMM weight (kp, cout_pad) with row
    order (kh, kw, c) over the activation's cin_a channels, plus bias (1, cout_pad)."""
    cout, cin, k, _ = w.shape
    core = jnp.zeros((k * k, cin_a, cout_pad), jnp.float32)
    core = core.at[:, :cin, :cout].set(
        jnp.transpose(w, (2, 3, 1, 0)).reshape(k * k, cin, cout))
    wg = jnp.zeros((kp, cout_pad), jnp.float32).at[:k * k * cin_a, :].set(
        core.reshape(k * k * cin_a, cout_pad))
    bg = jnp.zeros((1, cout_pad), jnp.float32).at[0, :cout].set(b)
    return wg.astype(MATMUL_DTYPE), bg


def prepare_params(params):
    """One-time conversion into padded GEMM-ready operands.  fc1 columns are
    permuted from torch's NCHW flatten (c*16 + s) to our channel-last padded
    flatten (s*32 + c)."""
    c1w, c1b = _conv_gemm_params(params["conv1_w"], params["conv1_b"], 1, KP1, C1_OUT)
    c2w, c2b = _conv_gemm_params(params["conv2_w"], params["conv2_b"], C1_OUT, KP2, C2_PAD)

    n_hidden, n_feat = params["fc1_w"].shape
    s2 = n_feat // C2_OUT                                     # 4*4 spatial positions
    f1 = params["fc1_w"].reshape(n_hidden, C2_OUT, s2)        # (j, c, s)
    w1 = jnp.zeros((s2, C2_PAD, H_PAD), jnp.float32)
    w1 = w1.at[:, :C2_OUT, :n_hidden].set(jnp.transpose(f1, (2, 1, 0)))
    w1 = w1.reshape(s2 * C2_PAD, H_PAD).astype(MATMUL_DTYPE)  # (512, 128)
    b1 = jnp.zeros((1, H_PAD), jnp.float32).at[0, :n_hidden].set(params["fc1_b"])

    w2 = jnp.zeros((H_PAD, OUT_PAD), jnp.float32).at[:n_hidden, :N_CLASSES].set(
        params["fc2_w"].T).astype(MATMUL_DTYPE)
    b2 = jnp.zeros((1, OUT_PAD), jnp.float32).at[0, :N_CLASSES].set(params["fc2_b"])

    return {"c1w": c1w, "c1b": c1b, "c2w": c2w, "c2b": c2b,
            "w1": w1, "b1": b1, "w2": w2, "b2": b2}


# --------------------------------- full forward ---------------------------------

def cnn_mnist_forward(x, prep):
    """x: (B, 1, 28, 28) NCHW float32 -> logits (B, 10)."""
    B = x.shape[0]
    a = jnp.transpose(x, (0, 2, 3, 1))                                   # (B,28,28,1)
    # x = relu(max_pool2d(conv1(x), 2))
    a = conv_pool_relu_pallas(a, prep["c1w"], prep["c1b"], K, BT_CONV1)  # (B,12,12,10)
    # x = relu(max_pool2d(conv2_drop(conv2(x)), 2)); Dropout2d == identity (eval)
    a = conv_pool_relu_pallas(a, prep["c2w"], prep["c2b"], K, BT_CONV2)  # (B,4,4,32)
    # flatten stays channel-last + lane-padded; fc1 columns were permuted at init.
    x_flat = a.reshape(B, -1)                                            # (B, 512)
    logits = mlp_pallas(x_flat, prep["w1"], prep["b1"], prep["w2"], prep["b2"])
    return logits[:, :N_CLASSES]


# ---------------------------- pure-JAX (XLA) reference ---------------------------

def _pool2_relu_ref(y):  # y: (B, C, H, W)
    m = jnp.maximum(jnp.maximum(y[:, :, 0::2, 0::2], y[:, :, 0::2, 1::2]),
                    jnp.maximum(y[:, :, 1::2, 0::2], y[:, :, 1::2, 1::2]))
    return jnp.maximum(m, 0.0)


def cnn_mnist_reference(x, params):
    dn = ("NCHW", "OIHW", "NCHW")
    y = jax.lax.conv_general_dilated(x, params["conv1_w"], (1, 1), "VALID",
                                     dimension_numbers=dn)
    y = _pool2_relu_ref(y + params["conv1_b"][None, :, None, None])
    y = jax.lax.conv_general_dilated(y, params["conv2_w"], (1, 1), "VALID",
                                     dimension_numbers=dn)
    y = _pool2_relu_ref(y + params["conv2_b"][None, :, None, None])
    y = y.reshape(y.shape[0], -1)
    y = jnp.maximum(y @ params["fc1_w"].T + params["fc1_b"], 0.0)
    return y @ params["fc2_w"].T + params["fc2_b"]


if __name__ == "__main__":
    key = jax.random.PRNGKey(0)
    pkey, xkey = jax.random.split(key)
    params = init_params(pkey)
    prep = prepare_params(params)

    # MNIST-shaped input (28x28 required so the flatten is 320 features).
    x = jax.random.normal(xkey, (8, 1, 28, 28), jnp.float32)

    logits = jax.block_until_ready(jax.jit(cnn_mnist_forward)(x, prep))
    assert logits.shape == (8, N_CLASSES) and logits.dtype == jnp.float32

    ref = jax.block_until_ready(jax.jit(cnn_mnist_reference)(x, params))
    err = float(jnp.max(jnp.abs(logits - ref)))
    assert err < 1e-3, f"Pallas forward mismatch vs XLA reference: {err}"
    print("KERNEL_OK")
</pallas_src>

<mosaic_0001>
module attributes {stable_mosaic.version = 11 : i64} {
  func.func @_conv_pool_relu_kernel(%arg0: i32, %arg1: memref<8x576x32xf32, #tpu.memory_space<vmem>>, %arg2: memref<32x10xf32, #tpu.memory_space<vmem>>, %arg3: memref<1x10xf32, #tpu.memory_space<vmem>>, %arg4: memref<8x144x10xf32, #tpu.memory_space<vmem>>) attributes {dimension_semantics = [#tpu.dimension_semantics<parallel>], iteration_bounds = array<i64: 1>, scalar_prefetch = 0 : i64, scratch_operands = 0 : i64, tpu.core_type = #tpu.core_type<tc>, window_params = [{transform_indices = @transform_0, window_bounds = array<i64: 8, 576, 32>}, {pipeline_mode = #tpu.pipeline_mode<synchronous>, transform_indices = @transform_1, window_bounds = array<i64: 32, 10>}, {pipeline_mode = #tpu.pipeline_mode<synchronous>, transform_indices = @transform_2, window_bounds = array<i64: 1, 10>}, {transform_indices = @transform_3, window_bounds = array<i64: 8, 144, 10>}]} {
    %c0 = arith.constant 0 : index
    %c0_0 = arith.constant 0 : index
    %c0_1 = arith.constant 0 : index
    %0 = vector.load %arg1[%c0, %c0_0, %c0_1] : memref<8x576x32xf32, #tpu.memory_space<vmem>>, vector<8x576x32xf32>
    %1 = vector.shape_cast %0 : vector<8x576x32xf32> to vector<4608x32xf32>
    %c0_2 = arith.constant 0 : index
    %c0_3 = arith.constant 0 : index
    %2 = vector.load %arg2[%c0_2, %c0_3] : memref<32x10xf32, #tpu.memory_space<vmem>>, vector<32x10xf32>
    %cst = arith.constant dense<0.000000e+00> : vector<4608x10xf32>
    %3 = tpu.matmul %1, %2, %cst {dimension_numbers = #tpu.dot_dimension_numbers<[1], [0], [0], [1], [0, 0, 1, 1], [], []>} : vector<4608x32xf32>, vector<32x10xf32>, vector<4608x10xf32> -> vector<4608x10xf32>
    %4 = vector.shape_cast %3 : vector<4608x10xf32> to vector<8x4x144x10xf32>
    %5 = vector.extract_strided_slice %4 {offsets = [0, 0, 0, 0], sizes = [8, 1, 144, 10], strides = [1, 1, 1, 1]} : vector<8x4x144x10xf32> to vector<8x1x144x10xf32>
    %6 = vector.shape_cast %5 : vector<8x1x144x10xf32> to vector<8x144x10xf32>
    %7 = vector.extract_strided_slice %4 {offsets = [0, 1, 0, 0], sizes = [8, 1, 144, 10], strides = [1, 1, 1, 1]} : vector<8x4x144x10xf32> to vector<8x1x144x10xf32>
    %8 = vector.shape_cast %7 : vector<8x1x144x10xf32> to vector<8x144x10xf32>
    %9 = arith.maximumf %6, %8 : vector<8x144x10xf32>
    %10 = vector.extract_strided_slice %4 {offsets = [0, 2, 0, 0], sizes = [8, 1, 144, 10], strides = [1, 1, 1, 1]} : vector<8x4x144x10xf32> to vector<8x1x144x10xf32>
    %11 = vector.shape_cast %10 : vector<8x1x144x10xf32> to vector<8x144x10xf32>
    %12 = vector.extract_strided_slice %4 {offsets = [0, 3, 0, 0], sizes = [8, 1, 144, 10], strides = [1, 1, 1, 1]} : vector<8x4x144x10xf32> to vector<8x1x144x10xf32>
    %13 = vector.shape_cast %12 : vector<8x1x144x10xf32> to vector<8x144x10xf32>
    %14 = arith.maximumf %11, %13 : vector<8x144x10xf32>
    %15 = arith.maximumf %9, %14 : vector<8x144x10xf32>
    %c0_4 = arith.constant 0 : index
    %c0_5 = arith.constant 0 : index
    %16 = vector.load %arg3[%c0_4, %c0_5] : memref<1x10xf32, #tpu.memory_space<vmem>>, vector<1x10xf32>
    %17 = vector.shape_cast %16 : vector<1x10xf32> to vector<1x1x10xf32>
    %18 = vector.broadcast %17 : vector<1x1x10xf32> to vector<8x144x10xf32>
    %19 = arith.addf %15, %18 : vector<8x144x10xf32>
    %cst_6 = arith.constant 0.000000e+00 : f32
    %20 = vector.broadcast %cst_6 : f32 to vector<8x144x10xf32>
    %21 = arith.maximumf %19, %20 : vector<8x144x10xf32>
    %c0_7 = arith.constant 0 : index
    %c0_8 = arith.constant 0 : index
    %c0_9 = arith.constant 0 : index
    %22 = vector.load %arg4[%c0_7, %c0_8, %c0_9] : memref<8x144x10xf32, #tpu.memory_space<vmem>>, vector<8x144x10xf32>
    tpu.vector_store %arg4[%c0_7, %c0_8, %c0_9], %21 {strides = array<i32>} : memref<8x144x10xf32, #tpu.memory_space<vmem>>, vector<8x144x10xf32>,
    return
  }
  func.func @transform_0(%arg0: i32) -> (i32, i32, i32) {
    %c0_i32 = arith.constant 0 : i32
    %c0_i32_0 = arith.constant 0 : i32
    %c0_i32_1 = arith.constant 0 : i32
    return %arg0, %c0_i32, %c0_i32_0 : i32, i32, i32
  }
  func.func @transform_1(%arg0: i32) -> (i32, i32) {
    %c0_i32 = arith.constant 0 : i32
    %c0_i32_0 = arith.constant 0 : i32
    %c0_i32_1 = arith.constant 0 : i32
    return %c0_i32, %c0_i32_0 : i32, i32
  }
  func.func @transform_2(%arg0: i32) -> (i32, i32) {
    %c0_i32 = arith.constant 0 : i32
    %c0_i32_0 = arith.constant 0 : i32
    %c0_i32_1 = arith.constant 0 : i32
    return %c0_i32, %c0_i32_0 : i32, i32
  }
  func.func @transform_3(%arg0: i32) -> (i32, i32, i32) {
    %c0_i32 = arith.constant 0 : i32
    %c0_i32_0 = arith.constant 0 : i32
    %c0_i32_1 = arith.constant 0 : i32
    return %arg0, %c0_i32, %c0_i32_0 : i32, i32, i32
  }
}

module attributes {stable_mosaic.version = 11 : i64} {
  func.func @_mlp_kernel(%arg0: i32, %arg1: memref<8x512xf32, #tpu.memory_space<vmem>>, %arg2: memref<512x128xf32, #tpu.memory_space<vmem>>, %arg3: memref<1x128xf32, #tpu.memory_space<vmem>>, %arg4: memref<128x128xf32, #tpu.memory_space<vmem>>, %arg5: memref<1x128xf32, #tpu.memory_space<vmem>>, %arg6: memref<8x128xf32, #tpu.memory_space<vmem>>) attributes {dimension_semantics = [#tpu.dimension_semantics<parallel>], iteration_bounds = array<i64: 1>, scalar_prefetch = 0 : i64, scratch_operands = 0 : i64, tpu.core_type = #tpu.core_type<tc>, window_params = [{transform_indices = @transform_0, window_bounds = array<i64: 8, 512>}, {pipeline_mode = #tpu.pipeline_mode<synchronous>, transform_indices = @transform_1, window_bounds = array<i64: 512, 128>}, {pipeline_mode = #tpu.pipeline_mode<synchronous>, transform_indices = @transform_2, window_bounds = array<i64: 1, 128>}, {pipeline_mode = #tpu.pipeline_mode<synchronous>, transform_indices = @transform_3, window_bounds = array<i64: 128, 128>}, {pipeline_mode = #tpu.pipeline_mode<synchronous>, transform_indices = @transform_4, window_bounds = array<i64: 1, 128>}, {transform_indices = @transform_5, window_bounds = array<i64: 8, 128>}]} {
    %c0 = arith.constant 0 : index
    %c0_0 = arith.constant 0 : index
    %0 = vector.load %arg1[%c0, %c0_0] : memref<8x512xf32, #tpu.memory_space<vmem>>, vector<8x512xf32>
    %c0_1 = arith.constant 0 : index
    %c0_2 = arith.constant 0 : index
    %1 = vector.load %arg2[%c0_1, %c0_2] : memref<512x128xf32, #tpu.memory_space<vmem>>, vector<512x128xf32>
    %cst = arith.constant dense<0.000000e+00> : vector<8x128xf32>
    %2 = tpu.matmul %0, %1, %cst {dimension_numbers = #tpu.dot_dimension_numbers<[1], [0], [0], [1], [0, 0, 1, 1], [], []>} : vector<8x512xf32>, vector<512x128xf32>, vector<8x128xf32> -> vector<8x128xf32>
    %c0_3 = arith.constant 0 : index
    %c0_4 = arith.constant 0 : index
    %3 = vector.load %arg3[%c0_3, %c0_4] : memref<1x128xf32, #tpu.memory_space<vmem>>, vector<1x128xf32>
    %4 = vector.broadcast %3 : vector<1x128xf32> to vector<8x128xf32>
    %5 = arith.addf %2, %4 : vector<8x128xf32>
    %cst_5 = arith.constant 0.000000e+00 : f32
    %6 = vector.broadcast %cst_5 : f32 to vector<8x128xf32>
    %7 = arith.maximumf %5, %6 : vector<8x128xf32>
    %c0_6 = arith.constant 0 : index
    %c0_7 = arith.constant 0 : index
    %8 = vector.load %arg4[%c0_6, %c0_7] : memref<128x128xf32, #tpu.memory_space<vmem>>, vector<128x128xf32>
    %cst_8 = arith.constant dense<0.000000e+00> : vector<8x128xf32>
    %9 = tpu.matmul %7, %8, %cst_8 {dimension_numbers = #tpu.dot_dimension_numbers<[1], [0], [0], [1], [0, 0, 1, 1], [], []>} : vector<8x128xf32>, vector<128x128xf32>, vector<8x128xf32> -> vector<8x128xf32>
    %c0_9 = arith.constant 0 : index
    %c0_10 = arith.constant 0 : index
    %10 = vector.load %arg5[%c0_9, %c0_10] : memref<1x128xf32, #tpu.memory_space<vmem>>, vector<1x128xf32>
    %11 = vector.broadcast %10 : vector<1x128xf32> to vector<8x128xf32>
    %12 = arith.addf %9, %11 : vector<8x128xf32>
    %c0_11 = arith.constant 0 : index
    %c0_12 = arith.constant 0 : index
    %13 = vector.load %arg6[%c0_11, %c0_12] : memref<8x128xf32, #tpu.memory_space<vmem>>, vector<8x128xf32>
    tpu.vector_store %arg6[%c0_11, %c0_12], %12 {strides = array<i32>} : memref<8x128xf32, #tpu.memory_space<vmem>>, vector<8x128xf32>,
    return
  }
  func.func @transform_0(%arg0: i32) -> (i32, i32) {
    %c0_i32 = arith.constant 0 : i32
    %c0_i32_0 = arith.constant 0 : i32
    return %arg0, %c0_i32 : i32, i32
  }
  func.func @transform_1(%arg0: i32) -> (i32, i32) {
    %c0_i32 = arith.constant 0 : i32
    %c0_i32_0 = arith.constant 0 : i32
    %c0_i32_1 = arith.constant 0 : i32
    return %c0_i32, %c0_i32_0 : i32, i32
  }
  func.func @transform_2(%arg0: i32) -> (i32, i32) {
    %c0_i32 = arith.constant 0 : i32
    %c0_i32_0 = arith.constant 0 : i32
    %c0_i32_1 = arith.constant 0 : i32
    return %c0_i32, %c0_i32_0 : i32, i32
  }
  func.func @transform_3(%arg0: i32) -> (i32, i32) {
    %c0_i32 = arith.constant 0 : i32
    %c0_i32_0 = arith.constant 0 : i32
    %c0_i32_1 = arith.constant 0 : i32
    return %c0_i32, %c0_i32_0 : i32, i32
  }
  func.func @transform_4(%arg0: i32) -> (i32, i32) {
    %c0_i32 = arith.constant 0 : i32
    %c0_i32_0 = arith.constant 0 : i32
    %c0_i32_1 = arith.constant 0 : i32
    return %c0_i32, %c0_i32_0 : i32, i32
  }
  func.func @transform_5(%arg0: i32) -> (i32, i32) {
    %c0_i32 = arith.constant 0 : i32
    %c0_i32_0 = arith.constant 0 : i32
    return %arg0, %c0_i32 : i32, i32
  }
}

module attributes {stable_mosaic.version = 11 : i64} {
  func.func @_conv_pool_relu_kernel(%arg0: i32, %arg1: memref<8x64x256xf32, #tpu.memory_space<vmem>>, %arg2: memref<256x32xf32, #tpu.memory_space<vmem>>, %arg3: memref<1x32xf32, #tpu.memory_space<vmem>>, %arg4: memref<8x16x32xf32, #tpu.memory_space<vmem>>) attributes {dimension_semantics = [#tpu.dimension_semantics<parallel>], iteration_bounds = array<i64: 1>, scalar_prefetch = 0 : i64, scratch_operands = 0 : i64, tpu.core_type = #tpu.core_type<tc>, window_params = [{transform_indices = @transform_0, window_bounds = array<i64: 8, 64, 256>}, {pipeline_mode = #tpu.pipeline_mode<synchronous>, transform_indices = @transform_1, window_bounds = array<i64: 256, 32>}, {pipeline_mode = #tpu.pipeline_mode<synchronous>, transform_indices = @transform_2, window_bounds = array<i64: 1, 32>}, {transform_indices = @transform_3, window_bounds = array<i64: 8, 16, 32>}]} {
    %c0 = arith.constant 0 : index
    %c0_0 = arith.constant 0 : index
    %c0_1 = arith.constant 0 : index
    %0 = vector.load %arg1[%c0, %c0_0, %c0_1] : memref<8x64x256xf32, #tpu.memory_space<vmem>>, vector<8x64x256xf32>
    %1 = vector.shape_cast %0 : vector<8x64x256xf32> to vector<512x256xf32>
    %c0_2 = arith.constant 0 : index
    %c0_3 = arith.constant 0 : index
    %2 = vector.load %arg2[%c0_2, %c0_3] : memref<256x32xf32, #tpu.memory_space<vmem>>, vector<256x32xf32>
    %cst = arith.constant dense<0.000000e+00> : vector<512x32xf32>
    %3 = tpu.matmul %1, %2, %cst {dimension_numbers = #tpu.dot_dimension_numbers<[1], [0], [0], [1], [0, 0, 1, 1], [], []>} : vector<512x256xf32>, vector<256x32xf32>, vector<512x32xf32> -> vector<512x32xf32>
    %4 = vector.shape_cast %3 : vector<512x32xf32> to vector<8x4x16x32xf32>
    %5 = vector.extract_strided_slice %4 {offsets = [0, 0, 0, 0], sizes = [8, 1, 16, 32], strides = [1, 1, 1, 1]} : vector<8x4x16x32xf32> to vector<8x1x16x32xf32>
    %6 = vector.shape_cast %5 : vector<8x1x16x32xf32> to vector<8x16x32xf32>
    %7 = vector.extract_strided_slice %4 {offsets = [0, 1, 0, 0], sizes = [8, 1, 16, 32], strides = [1, 1, 1, 1]} : vector<8x4x16x32xf32> to vector<8x1x16x32xf32>
    %8 = vector.shape_cast %7 : vector<8x1x16x32xf32> to vector<8x16x32xf32>
    %9 = arith.maximumf %6, %8 : vector<8x16x32xf32>
    %10 = vector.extract_strided_slice %4 {offsets = [0, 2, 0, 0], sizes = [8, 1, 16, 32], strides = [1, 1, 1, 1]} : vector<8x4x16x32xf32> to vector<8x1x16x32xf32>
    %11 = vector.shape_cast %10 : vector<8x1x16x32xf32> to vector<8x16x32xf32>
    %12 = vector.extract_strided_slice %4 {offsets = [0, 3, 0, 0], sizes = [8, 1, 16, 32], strides = [1, 1, 1, 1]} : vector<8x4x16x32xf32> to vector<8x1x16x32xf32>
    %13 = vector.shape_cast %12 : vector<8x1x16x32xf32> to vector<8x16x32xf32>
    %14 = arith.maximumf %11, %13 : vector<8x16x32xf32>
    %15 = arith.maximumf %9, %14 : vector<8x16x32xf32>
    %c0_4 = arith.constant 0 : index
    %c0_5 = arith.constant 0 : index
    %16 = vector.load %arg3[%c0_4, %c0_5] : memref<1x32xf32, #tpu.memory_space<vmem>>, vector<1x32xf32>
    %17 = vector.shape_cast %16 : vector<1x32xf32> to vector<1x1x32xf32>
    %18 = vector.broadcast %17 : vector<1x1x32xf32> to vector<8x16x32xf32>
    %19 = arith.addf %15, %18 : vector<8x16x32xf32>
    %cst_6 = arith.constant 0.000000e+00 : f32
    %20 = vector.broadcast %cst_6 : f32 to vector<8x16x32xf32>
    %21 = arith.maximumf %19, %20 : vector<8x16x32xf32>
    %c0_7 = arith.constant 0 : index
    %c0_8 = arith.constant 0 : index
    %c0_9 = arith.constant 0 : index
    %22 = vector.load %arg4[%c0_7, %c0_8, %c0_9] : memref<8x16x32xf32, #tpu.memory_space<vmem>>, vector<8x16x32xf32>
    tpu.vector_store %arg4[%c0_7, %c0_8, %c0_9], %21 {strides = array<i32>} : memref<8x16x32xf32, #tpu.memory_space<vmem>>, vector<8x16x32xf32>,
    return
  }
  func.func @transform_0(%arg0: i32) -> (i32, i32, i32) {
    %c0_i32 = arith.constant 0 : i32
    %c0_i32_0 = arith.constant 0 : i32
    %c0_i32_1 = arith.constant 0 : i32
    return %arg0, %c0_i32, %c0_i32_0 : i32, i32, i32
  }
  func.func @transform_1(%arg0: i32) -> (i32, i32) {
    %c0_i32 = arith.constant 0 : i32
    %c0_i32_0 = arith.constant 0 : i32
    %c0_i32_1 = arith.constant 0 : i32
    return %c0_i32, %c0_i32_0 : i32, i32
  }
  func.func @transform_2(%arg0: i32) -> (i32, i32) {
    %c0_i32 = arith.constant 0 : i32
    %c0_i32_0 = arith.constant 0 : i32
    %c0_i32_1 = arith.constant 0 : i32
    return %c0_i32, %c0_i32_0 : i32, i32
  }
  func.func @transform_3(%arg0: i32) -> (i32, i32, i32) {
    %c0_i32 = arith.constant 0 : i32
    %c0_i32_0 = arith.constant 0 : i32
    %c0_i32_1 = arith.constant 0 : i32
    return %arg0, %c0_i32, %c0_i32_0 : i32, i32, i32
  }
}

</mosaic_0001>

<llo_original>
// kernel: cnn_mnist_forward.3
$region0: #{cnn_mnist_forward.3}
  #allocation0 [shape = 'u32[]', space=smem, size = 0x4, offset = 0x4, fixed_abs, tag = 'smem constant byte address 0x4 - core index']
  #allocation1 [shape = 'u32[144,128]{1,0:T(1,128)}', space=vmem, size = 0x12000, scoped, tag = 'internal scratch']
  %s0 = inlined_call_operand.vmem [shape: f32[8,576,32], index: 0, kind: input, shape index: {}]
  %s1 = inlined_call_operand.vmem [shape: f32[32,10], index: 1, kind: input, shape index: {}]
  %s2 = inlined_call_operand.vmem [shape: f32[1,10], index: 2, kind: input, shape index: {}]
  %s3 = inlined_call_operand.vmem [shape: f32[8,144,10], index: 3, kind: output, shape index: {}]
  %s4 = sld [smem:[#allocation0]]
  $region22: #{cnn_mnist_forward.3} parent=0
    _
  %s6 = ssub.s32 1, %s4
  %s7 = scalar_select 0, %s6, %s4
  // Predicated region
  $region2: #{cnn_mnist_forward.3} parent=0 // pred_check
    _
  $region3: #{cnn_mnist_forward.3} parent=0 // pred_check_branch
    %9 = sbr.rel (0) target = $region5
  $region4: #{cnn_mnist_forward.3} parent=0 // pred_region
    _
  $region5: #{cnn_mnist_forward.3} parent=0 // pred_fallthru
    _
  // Predicated region
  $region6: #{cnn_mnist_forward.3} parent=0 // pred_check
    _
  $region7: #{cnn_mnist_forward.3} parent=0 // pred_check_branch
    %11 = sbr.rel (0) target = $region9
  $region8: #{cnn_mnist_forward.3} parent=0 // pred_region
    _
  $region9: #{cnn_mnist_forward.3} parent=0 // pred_fallthru
    _
  // Predicated region
  $region10: #{cnn_mnist_forward.3} parent=0 // pred_check
    _
  $region11: #{cnn_mnist_forward.3} parent=0 // pred_check_branch
    %13 = sbr.rel (0) target = $region13
  $region12: #{cnn_mnist_forward.3} parent=0 // pred_region
    _
  $region13: #{cnn_mnist_forward.3} parent=0 // pred_fallthru
    _
  %v14 = vld [vmem:[%s0] sm:$0xff]
  %v15 = vld [vmem:[%s0 + $0x8] sm:$0xff]
  %v16 = vld [vmem:[%s0 + $0x10] sm:$0xff]
  %v17 = vld [vmem:[%s0 + $0x18] sm:$0xff]
  %v18 = vld [vmem:[%s0 + $0x20] sm:$0xff]
  %v19 = vld [vmem:[%s0 + $0x28] sm:$0xff]
  %v20 = vld [vmem:[%s0 + $0x30] sm:$0xff]
  %v21 = vld [vmem:[%s0 + $0x38] sm:$0xff]
  %v22 = vld [vmem:[%s0 + $0x40] sm:$0xff]
  %v23 = vld [vmem:[%s0 + $0x48] sm:$0xff]
  %v24 = vld [vmem:[%s0 + $0x50] sm:$0xff]
  %v25 = vld [vmem:[%s0 + $0x58] sm:$0xff]
  %v26 = vld [vmem:[%s0 + $0x60] sm:$0xff]
  %v27 = vld [vmem:[%s0 + $0x68] sm:$0xff]
  %v28 = vld [vmem:[%s0 + $0x70] sm:$0xff]
  %v29 = vld [vmem:[%s0 + $0x78] sm:$0xff]
  %v30 = vld [vmem:[%s0 + $0x80] sm:$0xff]
  %v31 = vld [vmem:[%s0 + $0x88] sm:$0xff]
  %v32 = vld [vmem:[%s0 + $0x90] sm:$0xff]
  %v33 = vld [vmem:[%s0 + $0x98] sm:$0xff]
  %v34 = vld [vmem:[%s0 + $0xa0] sm:$0xff]
  %v35 = vld [vmem:[%s0 + $0xa8] sm:$0xff]
  %v36 = vld [vmem:[%s0 + $0xb0] sm:$0xff]
  %v37 = vld [vmem:[%s0 + $0xb8] sm:$0xff]
  %v38 = vld [vmem:[%s0 + $0xc0] sm:$0xff]
  %v39 = vld [vmem:[%s0 + $0xc8] sm:$0xff]
  %v40 = vld [vmem:[%s0 + $0xd0] sm:$0xff]
  %v41 = vld [vmem:[%s0 + $0xd8] sm:$0xff]
  %v42 = vld [vmem:[%s0 + $0xe0] sm:$0xff]
  %v43 = vld [vmem:[%s0 + $0xe8] sm:$0xff]
  %v44 = vld [vmem:[%s0 + $0xf0] sm:$0xff]
  %v45 = vld [vmem:[%s0 + $0xf8] sm:$0xff]
  %v46 = vld [vmem:[%s0 + $0x100] sm:$0xff]
  %v47 = vld [vmem:[%s0 + $0x108] sm:$0xff]
  %v48 = vld [vmem:[%s0 + $0x110] sm:$0xff]
  %v49 = vld [vmem:[%s0 + $0x118] sm:$0xff]
  %v50 = vld [vmem:[%s0 + $0x120] sm:$0xff]
  %v51 = vld [vmem:[%s0 + $0x128] sm:$0xff]
  %v52 = vld [vmem:[%s0 + $0x130] sm:$0xff]
  %v53 = vld [vmem:[%s0 + $0x138] sm:$0xff]
  %v54 = vld [vmem:[%s0 + $0x140] sm:$0xff]
  %v55 = vld [vmem:[%s0 + $0x148] sm:$0xff]
  %v56 = vld [vmem:[%s0 + $0x150] sm:$0xff]
  %v57 = vld [vmem:[%s0 + $0x158] sm:$0xff]
  %v58 = vld [vmem:[%s0 + $0x160] sm:$0xff]
  %v59 = vld [vmem:[%s0 + $0x168] sm:$0xff]
  %v60 = vld [vmem:[%s0 + $0x170] sm:$0xff]
  %v61 = vld [vmem:[%s0 + $0x178] sm:$0xff]
  %v62 = vld [vmem:[%s0 + $0x180] sm:$0xff]
  %v63 = vld [vmem:[%s0 + $0x188] sm:$0xff]
  %v64 = vld [vmem:[%s0 + $0x190] sm:$0xff]
  %v65 = vld [vmem:[%s0 + $0x198] sm:$0xff]
  %v66 = vld [vmem:[%s0 + $0x1a0] sm:$0xff]
  %v67 = vld [vmem:[%s0 + $0x1a8] sm:$0xff]
  %v68 = vld [vmem:[%s0 + $0x1b0] sm:$0xff]
  %v69 = vld [vmem:[%s0 + $0x1b8] sm:$0xff]
  %v70 = vld [vmem:[%s0 + $0x1c0] sm:$0xff]
  %v71 = vld [vmem:[%s0 + $0x1c8] sm:$0xff]
  %v72 = vld [vmem:[%s0 + $0x1d0] sm:$0xff]
  %v73 = vld [vmem:[%s0 + $0x1d8] sm:$0xff]
  %v74 = vld [vmem:[%s0 + $0x1e0] sm:$0xff]
  %v75 = vld [vmem:[%s0 + $0x1e8] sm:$0xff]
  %v76 = vld [vmem:[%s0 + $0x1f0] sm:$0xff]
  %v77 = vld [vmem:[%s0 + $0x1f8] sm:$0xff]
  %v78 = vld [vmem:[%s0 + $0x200] sm:$0xff]
  %v79 = vld [vmem:[%s0 + $0x208] sm:$0xff]
  %v80 = vld [vmem:[%s0 + $0x210] sm:$0xff]
  %v81 = vld [vmem:[%s0 + $0x218] sm:$0xff]
  %v82 = vld [vmem:[%s0 + $0x220] sm:$0xff]
  %v83 = vld [vmem:[%s0 + $0x228] sm:$0xff]
  %v84 = vld [vmem:[%s0 + $0x230] sm:$0xff]
  %v85 = vld [vmem:[%s0 + $0x238] sm:$0xff]
  %v86 = vld [vmem:[%s0 + $0x240] sm:$0xff]
  %v87 = vld [vmem:[%s0 + $0x248] sm:$0xff]
  %v88 = vld [vmem:[%s0 + $0x250] sm:$0xff]
  %v89 = vld [vmem:[%s0 + $0x258] sm:$0xff]
  %v90 = vld [vmem:[%s0 + $0x260] sm:$0xff]
  %v91 = vld [vmem:[%s0 + $0x268] sm:$0xff]
  %v92 = vld [vmem:[%s0 + $0x270] sm:$0xff]
  %v93 = vld [vmem:[%s0 + $0x278] sm:$0xff]
  %v94 = vld [vmem:[%s0 + $0x280] sm:$0xff]
  %v95 = vld [vmem:[%s0 + $0x288] sm:$0xff]
  %v96 = vld [vmem:[%s0 + $0x290] sm:$0xff]
  %v97 = vld [vmem:[%s0 + $0x298] sm:$0xff]
  %v98 = vld [vmem:[%s0 + $0x2a0] sm:$0xff]
  %v99 = vld [vmem:[%s0 + $0x2a8] sm:$0xff]
  %v100 = vld [vmem:[%s0 + $0x2b0] sm:$0xff]
  %v101 = vld [vmem:[%s0 + $0x2b8] sm:$0xff]
  %v102 = vld [vmem:[%s0 + $0x2c0] sm:$0xff]
  %v103 = vld [vmem:[%s0 + $0x2c8] sm:$0xff]
  %v104 = vld [vmem:[%s0 + $0x2d0] sm:$0xff]
  %v105 = vld [vmem:[%s0 + $0x2d8] sm:$0xff]
  %v106 = vld [vmem:[%s0 + $0x2e0] sm:$0xff]
  %v107 = vld [vmem:[%s0 + $0x2e8] sm:$0xff]
  %v108 = vld [vmem:[%s0 + $0x2f0] sm:$0xff]
  %v109 = vld [vmem:[%s0 + $0x2f8] sm:$0xff]
  %v110 = vld [vmem:[%s0 + $0x300] sm:$0xff]
  %v111 = vld [vmem:[%s0 + $0x308] sm:$0xff]
  %v112 = vld [vmem:[%s0 + $0x310] sm:$0xff]
  %v113 = vld [vmem:[%s0 + $0x318] sm:$0xff]
  %v114 = vld [vmem:[%s0 + $0x320] sm:$0xff]
  %v115 = vld [vmem:[%s0 + $0x328] sm:$0xff]
  %v116 = vld [vmem:[%s0 + $0x330] sm:$0xff]
  %v117 = vld [vmem:[%s0 + $0x338] sm:$0xff]
  %v118 = vld [vmem:[%s0 + $0x340] sm:$0xff]
  %v119 = vld [vmem:[%s0 + $0x348] sm:$0xff]
  %v120 = vld [vmem:[%s0 + $0x350] sm:$0xff]
  %v121 = vld [vmem:[%s0 + $0x358] sm:$0xff]
  %v122 = vld [vmem:[%s0 + $0x360] sm:$0xff]
  %v123 = vld [vmem:[%s0 + $0x368] sm:$0xff]
  %v124 = vld [vmem:[%s0 + $0x370] sm:$0xff]
  %v125 = vld [vmem:[%s0 + $0x378] sm:$0xff]
  %v126 = vld [vmem:[%s0 + $0x380] sm:$0xff]
  %v127 = vld [vmem:[%s0 + $0x388] sm:$0xff]
  %v128 = vld [vmem:[%s0 + $0x390] sm:$0xff]
  %v129 = vld [vmem:[%s0 + $0x398] sm:$0xff]
  %v130 = vld [vmem:[%s0 + $0x3a0] sm:$0xff]
  %v131 = vld [vmem:[%s0 + $0x3a8] sm:$0xff]
  %v132 = vld [vmem:[%s0 + $0x3b0] sm:$0xff]
  %v133 = vld [vmem:[%s0 + $0x3b8] sm:$0xff]
  %v134 = vld [vmem:[%s0 + $0x3c0] sm:$0xff]
  %v135 = vld [vmem:[%s0 + $0x3c8] sm:$0xff]
  %v136 = vld [vmem:[%s0 + $0x3d0] sm:$0xff]
  %v137 = vld [vmem:[%s0 + $0x3d8] sm:$0xff]
  %v138 = vld [vmem:[%s0 + $0x3e0] sm:$0xff]
  %v139 = vld [vmem:[%s0 + $0x3e8] sm:$0xff]
  %v140 = vld [vmem:[%s0 + $0x3f0] sm:$0xff]
  %v141 = vld [vmem:[%s0 + $0x3f8] sm:$0xff]
  %v142 = vld [vmem:[%s0 + $0x400] sm:$0xff]
  %v143 = vld [vmem:[%s0 + $0x408] sm:$0xff]
  %v144 = vld [vmem:[%s0 + $0x410] sm:$0xff]
  %v145 = vld [vmem:[%s0 + $0x418] sm:$0xff]
  %v146 = vld [vmem:[%s0 + $0x420] sm:$0xff]
  %v147 = vld [vmem:[%s0 + $0x428] sm:$0xff]
  %v148 = vld [vmem:[%s0 + $0x430] sm:$0xff]
  %v149 = vld [vmem:[%s0 + $0x438] sm:$0xff]
  %v150 = vld [vmem:[%s0 + $0x440] sm:$0xff]
  %v151 = vld [vmem:[%s0 + $0x448] sm:$0xff]
  %v152 = vld [vmem:[%s0 + $0x450] sm:$0xff]
  %v153 = vld [vmem:[%s0 + $0x458] sm:$0xff]
  %v154 = vld [vmem:[%s0 + $0x460] sm:$0xff]
  %v155 = vld [vmem:[%s0 + $0x468] sm:$0xff]
  %v156 = vld [vmem:[%s0 + $0x470] sm:$0xff]
  %v157 = vld [vmem:[%s0 + $0x478] sm:$0xff]
  %v158 = vld [vmem:[%s0 + $0x480] sm:$0xff]
  %v159 = vld [vmem:[%s0 + $0x488] sm:$0xff]
  %v160 = vld [vmem:[%s0 + $0x490] sm:$0xff]
  %v161 = vld [vmem:[%s0 + $0x498] sm:$0xff]
  %v162 = vld [vmem:[%s0 + $0x4a0] sm:$0xff]
  %v163 = vld [vmem:[%s0 + $0x4a8] sm:$0xff]
  %v164 = vld [vmem:[%s0 + $0x4b0] sm:$0xff]
  %v165 = vld [vmem:[%s0 + $0x4b8] sm:$0xff]
  %v166 = vld [vmem:[%s0 + $0x4c0] sm:$0xff]
  %v167 = vld [vmem:[%s0 + $0x4c8] sm:$0xff]
  %v168 = vld [vmem:[%s0 + $0x4d0] sm:$0xff]
  %v169 = vld [vmem:[%s0 + $0x4d8] sm:$0xff]
  %v170 = vld [vmem:[%s0 + $0x4e0] sm:$0xff]
  %v171 = vld [vmem:[%s0 + $0x4e8] sm:$0xff]
  %v172 = vld [vmem:[%s0 + $0x4f0] sm:$0xff]
  %v173 = vld [vmem:[%s0 + $0x4f8] sm:$0xff]
  %v174 = vld [vmem:[%s0 + $0x500] sm:$0xff]
  %v175 = vld [vmem:[%s0 + $0x508] sm:$0xff]
  %v176 = vld [vmem:[%s0 + $0x510] sm:$0xff]
  %v177 = vld [vmem:[%s0 + $0x518] sm:$0xff]
  %v178 = vld [vmem:[%s0 + $0x520] sm:$0xff]
  %v179 = vld [vmem:[%s0 + $0x528] sm:$0xff]
  %v180 = vld [vmem:[%s0 + $0x530] sm:$0xff]
  %v181 = vld [vmem:[%s0 + $0x538] sm:$0xff]
  %v182 = vld [vmem:[%s0 + $0x540] sm:$0xff]
  %v183 = vld [vmem:[%s0 + $0x548] sm:$0xff]
  %v184 = vld [vmem:[%s0 + $0x550] sm:$0xff]
  %v185 = vld [vmem:[%s0 + $0x558] sm:$0xff]
  %v186 = vld [vmem:[%s0 + $0x560] sm:$0xff]
  %v187 = vld [vmem:[%s0 + $0x568] sm:$0xff]
  %v188 = vld [vmem:[%s0 + $0x570] sm:$0xff]
  %v189 = vld [vmem:[%s0 + $0x578] sm:$0xff]
  %v190 = vld [vmem:[%s0 + $0x580] sm:$0xff]
  %v191 = vld [vmem:[%s0 + $0x588] sm:$0xff]
  %v192 = vld [vmem:[%s0 + $0x590] sm:$0xff]
  %v193 = vld [vmem:[%s0 + $0x598] sm:$0xff]
  %v194 = vld [vmem:[%s0 + $0x5a0] sm:$0xff]
  %v195 = vld [vmem:[%s0 + $0x5a8] sm:$0xff]
  %v196 = vld [vmem:[%s0 + $0x5b0] sm:$0xff]
  %v197 = vld [vmem:[%s0 + $0x5b8] sm:$0xff]
  %v198 = vld [vmem:[%s0 + $0x5c0] sm:$0xff]
  %v199 = vld [vmem:[%s0 + $0x5c8] sm:$0xff]
  %v200 = vld [vmem:[%s0 + $0x5d0] sm:$0xff]
  %v201 = vld [vmem:[%s0 + $0x5d8] sm:$0xff]
  %v202 = vld [vmem:[%s0 + $0x5e0] sm:$0xff]
  %v203 = vld [vmem:[%s0 + $0x5e8] sm:$0xff]
  %v204 = vld [vmem:[%s0 + $0x5f0] sm:$0xff]
  %v205 = vld [vmem:[%s0 + $0x5f8] sm:$0xff]
  %v206 = vld [vmem:[%s0 + $0x600] sm:$0xff]
  %v207 = vld [vmem:[%s0 + $0x608] sm:$0xff]
  %v208 = vld [vmem:[%s0 + $0x610] sm:$0xff]
  %v209 = vld [vmem:[%s0 + $0x618] sm:$0xff]
  %v210 = vld [vmem:[%s0 + $0x620] sm:$0xff]
  %v211 = vld [vmem:[%s0 + $0x628] sm:$0xff]
  %v212 = vld [vmem:[%s0 + $0x630] sm:$0xff]
  %v213 = vld [vmem:[%s0 + $0x638] sm:$0xff]
  %v214 = vld [vmem:[%s0 + $0x640] sm:$0xff]
  %v215 = vld [vmem:[%s0 + $0x648] sm:$0xff]
  %v216 = vld [vmem:[%s0 + $0x650] sm:$0xff]
  %v217 = vld [vmem:[%s0 + $0x658] sm:$0xff]
  %v218 = vld [vmem:[%s0 + $0x660] sm:$0xff]
  %v219 = vld [vmem:[%s0 + $0x668] sm:$0xff]
  %v220 = vld [vmem:[%s0 + $0x670] sm:$0xff]
  %v221 = vld [vmem:[%s0 + $0x678] sm:$0xff]
  %v222 = vld [vmem:[%s0 + $0x680] sm:$0xff]
  %v223 = vld [vmem:[%s0 + $0x688] sm:$0xff]
  %v224 = vld [vmem:[%s0 + $0x690] sm:$0xff]
  %v225 = vld [vmem:[%s0 + $0x698] sm:$0xff]
  %v226 = vld [vmem:[%s0 + $0x6a0] sm:$0xff]
  %v227 = vld [vmem:[%s0 + $0x6a8] sm:$0xff]
  %v228 = vld [vmem:[%s0 + $0x6b0] sm:$0xff]
  %v229 = vld [vmem:[%s0 + $0x6b8] sm:$0xff]
  %v230 = vld [vmem:[%s0 + $0x6c0] sm:$0xff]
  %v231 = vld [vmem:[%s0 + $0x6c8] sm:$0xff]
  %v232 = vld [vmem:[%s0 + $0x6d0] sm:$0xff]
  %v233 = vld [vmem:[%s0 + $0x6d8] sm:$0xff]
  %v234 = vld [vmem:[%s0 + $0x6e0] sm:$0xff]
  %v235 = vld [vmem:[%s0 + $0x6e8] sm:$0xff]
  %v236 = vld [vmem:[%s0 + $0x6f0] sm:$0xff]
  %v237 = vld [vmem:[%s0 + $0x6f8] sm:$0xff]
  %v238 = vld [vmem:[%s0 + $0x700] sm:$0xff]
  %v239 = vld [vmem:[%s0 + $0x708] sm:$0xff]
  %v240 = vld [vmem:[%s0 + $0x710] sm:$0xff]
  %v241 = vld [vmem:[%s0 + $0x718] sm:$0xff]
  %v242 = vld [vmem:[%s0 + $0x720] sm:$0xff]
  %v243 = vld [vmem:[%s0 + $0x728] sm:$0xff]
  %v244 = vld [vmem:[%s0 + $0x730] sm:$0xff]
  %v245 = vld [vmem:[%s0 + $0x738] sm:$0xff]
  %v246 = vld [vmem:[%s0 + $0x740] sm:$0xff]
  %v247 = vld [vmem:[%s0 + $0x748] sm:$0xff]
  %v248 = vld [vmem:[%s0 + $0x750] sm:$0xff]
  %v249 = vld [vmem:[%s0 + $0x758] sm:$0xff]
  %v250 = vld [vmem:[%s0 + $0x760] sm:$0xff]
  %v251 = vld [vmem:[%s0 + $0x768] sm:$0xff]
  %v252 = vld [vmem:[%s0 + $0x770] sm:$0xff]
  %v253 = vld [vmem:[%s0 + $0x778] sm:$0xff]
  %v254 = vld [vmem:[%s0 + $0x780] sm:$0xff]
  %v255 = vld [vmem:[%s0 + $0x788] sm:$0xff]
  %v256 = vld [vmem:[%s0 + $0x790] sm:$0xff]
  %v257 = vld [vmem:[%s0 + $0x798] sm:$0xff]
  %v258 = vld [vmem:[%s0 + $0x7a0] sm:$0xff]
  %v259 = vld [vmem:[%s0 + $0x7a8] sm:$0xff]
  %v260 = vld [vmem:[%s0 + $0x7b0] sm:$0xff]
  %v261 = vld [vmem:[%s0 + $0x7b8] sm:$0xff]
  %v262 = vld [vmem:[%s0 + $0x7c0] sm:$0xff]
  %v263 = vld [vmem:[%s0 + $0x7c8] sm:$0xff]
  %v264 = vld [vmem:[%s0 + $0x7d0] sm:$0xff]
  %v265 = vld [vmem:[%s0 + $0x7d8] sm:$0xff]
  %v266 = vld [vmem:[%s0 + $0x7e0] sm:$0xff]
  %v267 = vld [vmem:[%s0 + $0x7e8] sm:$0xff]
  %v268 = vld [vmem:[%s0 + $0x7f0] sm:$0xff]
  %v269 = vld [vmem:[%s0 + $0x7f8] sm:$0xff]
  %v270 = vld [vmem:[%s0 + $0x800] sm:$0xff]
  %v271 = vld [vmem:[%s0 + $0x808] sm:$0xff]
  %v272 = vld [vmem:[%s0 + $0x810] sm:$0xff]
  %v273 = vld [vmem:[%s0 + $0x818] sm:$0xff]
  %v274 = vld [vmem:[%s0 + $0x820] sm:$0xff]
  %v275 = vld [vmem:[%s0 + $0x828] sm:$0xff]
  %v276 = vld [vmem:[%s0 + $0x830] sm:$0xff]
  %v277 = vld [vmem:[%s0 + $0x838] sm:$0xff]
  %v278 = vld [vmem:[%s0 + $0x840] sm:$0xff]
  %v279 = vld [vmem:[%s0 + $0x848] sm:$0xff]
  %v280 = vld [vmem:[%s0 + $0x850] sm:$0xff]
  %v281 = vld [vmem:[%s0 + $0x858] sm:$0xff]
  %v282 = vld [vmem:[%s0 + $0x860] sm:$0xff]
  %v283 = vld [vmem:[%s0 + $0x868] sm:$0xff]
  %v284 = vld [vmem:[%s0 + $0x870] sm:$0xff]
  %v285 = vld [vmem:[%s0 + $0x878] sm:$0xff]
  %v286 = vld [vmem:[%s0 + $0x880] sm:$0xff]
  %v287 = vld [vmem:[%s0 + $0x888] sm:$0xff]
  %v288 = vld [vmem:[%s0 + $0x890] sm:$0xff]
  %v289 = vld [vmem:[%s0 + $0x898] sm:$0xff]
  %v290 = vld [vmem:[%s0 + $0x8a0] sm:$0xff]
  %v291 = vld [vmem:[%s0 + $0x8a8] sm:$0xff]
  %v292 = vld [vmem:[%s0 + $0x8b0] sm:$0xff]
  %v293 = vld [vmem:[%s0 + $0x8b8] sm:$0xff]
  %v294 = vld [vmem:[%s0 + $0x8c0] sm:$0xff]
  %v295 = vld [vmem:[%s0 + $0x8c8] sm:$0xff]
  %v296 = vld [vmem:[%s0 + $0x8d0] sm:$0xff]
  %v297 = vld [vmem:[%s0 + $0x8d8] sm:$0xff]
  %v298 = vld [vmem:[%s0 + $0x8e0] sm:$0xff]
  %v299 = vld [vmem:[%s0 + $0x8e8] sm:$0xff]
  %v300 = vld [vmem:[%s0 + $0x8f0] sm:$0xff]
  %v301 = vld [vmem:[%s0 + $0x8f8] sm:$0xff]
  %v302 = vld [vmem:[%s0 + $0x900] sm:$0xff]
  %v303 = vld [vmem:[%s0 + $0x908] sm:$0xff]
  %v304 = vld [vmem:[%s0 + $0x910] sm:$0xff]
  %v305 = vld [vmem:[%s0 + $0x918] sm:$0xff]
  %v306 = vld [vmem:[%s0 + $0x920] sm:$0xff]
  %v307 = vld [vmem:[%s0 + $0x928] sm:$0xff]
  %v308 = vld [vmem:[%s0 + $0x930] sm:$0xff]
  %v309 = vld [vmem:[%s0 + $0x938] sm:$0xff]
  %v310 = vld [vmem:[%s0 + $0x940] sm:$0xff]
  %v311 = vld [vmem:[%s0 + $0x948] sm:$0xff]
  %v312 = vld [vmem:[%s0 + $0x950] sm:$0xff]
  %v313 = vld [vmem:[%s0 + $0x958] sm:$0xff]
  %v314 = vld [vmem:[%s0 + $0x960] sm:$0xff]
  %v315 = vld [vmem:[%s0 + $0x968] sm:$0xff]
  %v316 = vld [vmem:[%s0 + $0x970] sm:$0xff]
  %v317 = vld [vmem:[%s0 + $0x978] sm:$0xff]
  %v318 = vld [vmem:[%s0 + $0x980] sm:$0xff]
  %v319 = vld [vmem:[%s0 + $0x988] sm:$0xff]
  %v320 = vld [vmem:[%s0 + $0x990] sm:$0xff]
  %v321 = vld [vmem:[%s0 + $0x998] sm:$0xff]
  %v322 = vld [vmem:[%s0 + $0x9a0] sm:$0xff]
  %v323 = vld [vmem:[%s0 + $0x9a8] sm:$0xff]
  %v324 = vld [vmem:[%s0 + $0x9b0] sm:$0xff]
  %v325 = vld [vmem:[%s0 + $0x9b8] sm:$0xff]
  %v326 = vld [vmem:[%s0 + $0x9c0] sm:$0xff]
  %v327 = vld [vmem:[%s0 + $0x9c8] sm:$0xff]
  %v328 = vld [vmem:[%s0 + $0x9d0] sm:$0xff]
  %v329 = vld [vmem:[%s0 + $0x9d8] sm:$0xff]
  %v330 = vld [vmem:[%s0 + $0x9e0] sm:$0xff]
  %v331 = vld [vmem:[%s0 + $0x9e8] sm:$0xff]
  %v332 = vld [vmem:[%s0 + $0x9f0] sm:$0xff]
  %v333 = vld [vmem:[%s0 + $0x9f8] sm:$0xff]
  %v334 = vld [vmem:[%s0 + $0xa00] sm:$0xff]
  %v335 = vld [vmem:[%s0 + $0xa08] sm:$0xff]
  %v336 = vld [vmem:[%s0 + $0xa10] sm:$0xff]
  %v337 = vld [vmem:[%s0 + $0xa18] sm:$0xff]
  %v338 = vld [vmem:[%s0 + $0xa20] sm:$0xff]
  %v339 = vld [vmem:[%s0 + $0xa28] sm:$0xff]
  %v340 = vld [vmem:[%s0 + $0xa30] sm:$0xff]
  %v341 = vld [vmem:[%s0 + $0xa38] sm:$0xff]
  %v342 = vld [vmem:[%s0 + $0xa40] sm:$0xff]
  %v343 = vld [vmem:[%s0 + $0xa48] sm:$0xff]
  %v344 = vld [vmem:[%s0 + $0xa50] sm:$0xff]
  %v345 = vld [vmem:[%s0 + $0xa58] sm:$0xff]
  %v346 = vld [vmem:[%s0 + $0xa60] sm:$0xff]
  %v347 = vld [vmem:[%s0 + $0xa68] sm:$0xff]
  %v348 = vld [vmem:[%s0 + $0xa70] sm:$0xff]
  %v349 = vld [vmem:[%s0 + $0xa78] sm:$0xff]
  %v350 = vld [vmem:[%s0 + $0xa80] sm:$0xff]
  %v351 = vld [vmem:[%s0 + $0xa88] sm:$0xff]
  %v352 = vld [vmem:[%s0 + $0xa90] sm:$0xff]
  %v353 = vld [vmem:[%s0 + $0xa98] sm:$0xff]
  %v354 = vld [vmem:[%s0 + $0xaa0] sm:$0xff]
  %v355 = vld [vmem:[%s0 + $0xaa8] sm:$0xff]
  %v356 = vld [vmem:[%s0 + $0xab0] sm:$0xff]
  %v357 = vld [vmem:[%s0 + $0xab8] sm:$0xff]
  %v358 = vld [vmem:[%s0 + $0xac0] sm:$0xff]
  %v359 = vld [vmem:[%s0 + $0xac8] sm:$0xff]
  %v360 = vld [vmem:[%s0 + $0xad0] sm:$0xff]
  %v361 = vld [vmem:[%s0 + $0xad8] sm:$0xff]
  %v362 = vld [vmem:[%s0 + $0xae0] sm:$0xff]
  %v363 = vld [vmem:[%s0 + $0xae8] sm:$0xff]
  %v364 = vld [vmem:[%s0 + $0xaf0] sm:$0xff]
  %v365 = vld [vmem:[%s0 + $0xaf8] sm:$0xff]
  %v366 = vld [vmem:[%s0 + $0xb00] sm:$0xff]
  %v367 = vld [vmem:[%s0 + $0xb08] sm:$0xff]
  %v368 = vld [vmem:[%s0 + $0xb10] sm:$0xff]
  %v369 = vld [vmem:[%s0 + $0xb18] sm:$0xff]
  %v370 = vld [vmem:[%s0 + $0xb20] sm:$0xff]
  %v371 = vld [vmem:[%s0 + $0xb28] sm:$0xff]
  %v372 = vld [vmem:[%s0 + $0xb30] sm:$0xff]
  %v373 = vld [vmem:[%s0 + $0xb38] sm:$0xff]
  %v374 = vld [vmem:[%s0 + $0xb40] sm:$0xff]
  %v375 = vld [vmem:[%s0 + $0xb48] sm:$0xff]
  %v376 = vld [vmem:[%s0 + $0xb50] sm:$0xff]
  %v377 = vld [vmem:[%s0 + $0xb58] sm:$0xff]
  %v378 = vld [vmem:[%s0 + $0xb60] sm:$0xff]
  %v379 = vld [vmem:[%s0 + $0xb68] sm:$0xff]
  %v380 = vld [vmem:[%s0 + $0xb70] sm:$0xff]
  %v381 = vld [vmem:[%s0 + $0xb78] sm:$0xff]
  %v382 = vld [vmem:[%s0 + $0xb80] sm:$0xff]
  %v383 = vld [vmem:[%s0 + $0xb88] sm:$0xff]
  %v384 = vld [vmem:[%s0 + $0xb90] sm:$0xff]
  %v385 = vld [vmem:[%s0 + $0xb98] sm:$0xff]
  %v386 = vld [vmem:[%s0 + $0xba0] sm:$0xff]
  %v387 = vld [vmem:[%s0 + $0xba8] sm:$0xff]
  %v388 = vld [vmem:[%s0 + $0xbb0] sm:$0xff]
  %v389 = vld [vmem:[%s0 + $0xbb8] sm:$0xff]
  %v390 = vld [vmem:[%s0 + $0xbc0] sm:$0xff]
  %v391 = vld [vmem:[%s0 + $0xbc8] sm:$0xff]
  %v392 = vld [vmem:[%s0 + $0xbd0] sm:$0xff]
  %v393 = vld [vmem:[%s0 + $0xbd8] sm:$0xff]
  %v394 = vld [vmem:[%s0 + $0xbe0] sm:$0xff]
  %v395 = vld [vmem:[%s0 + $0xbe8] sm:$0xff]
  %v396 = vld [vmem:[%s0 + $0xbf0] sm:$0xff]
  %v397 = vld [vmem:[%s0 + $0xbf8] sm:$0xff]
  %v398 = vld [vmem:[%s0 + $0xc00] sm:$0xff]
  %v399 = vld [vmem:[%s0 + $0xc08] sm:$0xff]
  %v400 = vld [vmem:[%s0 + $0xc10] sm:$0xff]
  %v401 = vld [vmem:[%s0 + $0xc18] sm:$0xff]
  %v402 = vld [vmem:[%s0 + $0xc20] sm:$0xff]
  %v403 = vld [vmem:[%s0 + $0xc28] sm:$0xff]
  %v404 = vld [vmem:[%s0 + $0xc30] sm:$0xff]
  %v405 = vld [vmem:[%s0 + $0xc38] sm:$0xff]
  %v406 = vld [vmem:[%s0 + $0xc40] sm:$0xff]
  %v407 = vld [vmem:[%s0 + $0xc48] sm:$0xff]
  %v408 = vld [vmem:[%s0 + $0xc50] sm:$0xff]
  %v409 = vld [vmem:[%s0 + $0xc58] sm:$0xff]
  %v410 = vld [vmem:[%s0 + $0xc60] sm:$0xff]
  %v411 = vld [vmem:[%s0 + $0xc68] sm:$0xff]
  %v412 = vld [vmem:[%s0 + $0xc70] sm:$0xff]
  %v413 = vld [vmem:[%s0 + $0xc78] sm:$0xff]
  %v414 = vld [vmem:[%s0 + $0xc80] sm:$0xff]
  %v415 = vld [vmem:[%s0 + $0xc88] sm:$0xff]
  %v416 = vld [vmem:[%s0 + $0xc90] sm:$0xff]
  %v417 = vld [vmem:[%s0 + $0xc98] sm:$0xff]
  %v418 = vld [vmem:[%s0 + $0xca0] sm:$0xff]
  %v419 = vld [vmem:[%s0 + $0xca8] sm:$0xff]
  %v420 = vld [vmem:[%s0 + $0xcb0] sm:$0xff]
  %v421 = vld [vmem:[%s0 + $0xcb8] sm:$0xff]
  %v422 = vld [vmem:[%s0 + $0xcc0] sm:$0xff]
  %v423 = vld [vmem:[%s0 + $0xcc8] sm:$0xff]
  %v424 = vld [vmem:[%s0 + $0xcd0] sm:$0xff]
  %v425 = vld [vmem:[%s0 + $0xcd8] sm:$0xff]
  %v426 = vld [vmem:[%s0 + $0xce0] sm:$0xff]
  %v427 = vld [vmem:[%s0 + $0xce8] sm:$0xff]
  %v428 = vld [vmem:[%s0 + $0xcf0] sm:$0xff]
  %v429 = vld [vmem:[%s0 + $0xcf8] sm:$0xff]
  %v430 = vld [vmem:[%s0 + $0xd00] sm:$0xff]
  %v431 = vld [vmem:[%s0 + $0xd08] sm:$0xff]
  %v432 = vld [vmem:[%s0 + $0xd10] sm:$0xff]
  %v433 = vld [vmem:[%s0 + $0xd18] sm:$0xff]
  %v434 = vld [vmem:[%s0 + $0xd20] sm:$0xff]
  %v435 = vld [vmem:[%s0 + $0xd28] sm:$0xff]
  %v436 = vld [vmem:[%s0 + $0xd30] sm:$0xff]
  %v437 = vld [vmem:[%s0 + $0xd38] sm:$0xff]
  %v438 = vld [vmem:[%s0 + $0xd40] sm:$0xff]
  %v439 = vld [vmem:[%s0 + $0xd48] sm:$0xff]
  %v440 = vld [vmem:[%s0 + $0xd50] sm:$0xff]
  %v441 = vld [vmem:[%s0 + $0xd58] sm:$0xff]
  %v442 = vld [vmem:[%s0 + $0xd60] sm:$0xff]
  %v443 = vld [vmem:[%s0 + $0xd68] sm:$0xff]
  %v444 = vld [vmem:[%s0 + $0xd70] sm:$0xff]
  %v445 = vld [vmem:[%s0 + $0xd78] sm:$0xff]
  %v446 = vld [vmem:[%s0 + $0xd80] sm:$0xff]
  %v447 = vld [vmem:[%s0 + $0xd88] sm:$0xff]
  %v448 = vld [vmem:[%s0 + $0xd90] sm:$0xff]
  %v449 = vld [vmem:[%s0 + $0xd98] sm:$0xff]
  %v450 = vld [vmem:[%s0 + $0xda0] sm:$0xff]
  %v451 = vld [vmem:[%s0 + $0xda8] sm:$0xff]
  %v452 = vld [vmem:[%s0 + $0xdb0] sm:$0xff]
  %v453 = vld [vmem:[%s0 + $0xdb8] sm:$0xff]
  %v454 = vld [vmem:[%s0 + $0xdc0] sm:$0xff]
  %v455 = vld [vmem:[%s0 + $0xdc8] sm:$0xff]
  %v456 = vld [vmem:[%s0 + $0xdd0] sm:$0xff]
  %v457 = vld [vmem:[%s0 + $0xdd8] sm:$0xff]
  %v458 = vld [vmem:[%s0 + $0xde0] sm:$0xff]
  %v459 = vld [vmem:[%s0 + $0xde8] sm:$0xff]
  %v460 = vld [vmem:[%s0 + $0xdf0] sm:$0xff]
  %v461 = vld [vmem:[%s0 + $0xdf8] sm:$0xff]
  %v462 = vld [vmem:[%s0 + $0xe00] sm:$0xff]
  %v463 = vld [vmem:[%s0 + $0xe08] sm:$0xff]
  %v464 = vld [vmem:[%s0 + $0xe10] sm:$0xff]
  %v465 = vld [vmem:[%s0 + $0xe18] sm:$0xff]
  %v466 = vld [vmem:[%s0 + $0xe20] sm:$0xff]
  %v467 = vld [vmem:[%s0 + $0xe28] sm:$0xff]
  %v468 = vld [vmem:[%s0 + $0xe30] sm:$0xff]
  %v469 = vld [vmem:[%s0 + $0xe38] sm:$0xff]
  %v470 = vld [vmem:[%s0 + $0xe40] sm:$0xff]
  %v471 = vld [vmem:[%s0 + $0xe48] sm:$0xff]
  %v472 = vld [vmem:[%s0 + $0xe50] sm:$0xff]
  %v473 = vld [vmem:[%s0 + $0xe58] sm:$0xff]
  %v474 = vld [vmem:[%s0 + $0xe60] sm:$0xff]
  %v475 = vld [vmem:[%s0 + $0xe68] sm:$0xff]
  %v476 = vld [vmem:[%s0 + $0xe70] sm:$0xff]
  %v477 = vld [vmem:[%s0 + $0xe78] sm:$0xff]
  %v478 = vld [vmem:[%s0 + $0xe80] sm:$0xff]
  %v479 = vld [vmem:[%s0 + $0xe88] sm:$0xff]
  %v480 = vld [vmem:[%s0 + $0xe90] sm:$0xff]
  %v481 = vld [vmem:[%s0 + $0xe98] sm:$0xff]
  %v482 = vld [vmem:[%s0 + $0xea0] sm:$0xff]
  %v483 = vld [vmem:[%s0 + $0xea8] sm:$0xff]
  %v484 = vld [vmem:[%s0 + $0xeb0] sm:$0xff]
  %v485 = vld [vmem:[%s0 + $0xeb8] sm:$0xff]
  %v486 = vld [vmem:[%s0 + $0xec0] sm:$0xff]
  %v487 = vld [vmem:[%s0 + $0xec8] sm:$0xff]
  %v488 = vld [vmem:[%s0 + $0xed0] sm:$0xff]
  %v489 = vld [vmem:[%s0 + $0xed8] sm:$0xff]
  %v490 = vld [vmem:[%s0 + $0xee0] sm:$0xff]
  %v491 = vld [vmem:[%s0 + $0xee8] sm:$0xff]
  %v492 = vld [vmem:[%s0 + $0xef0] sm:$0xff]
  %v493 = vld [vmem:[%s0 + $0xef8] sm:$0xff]
  %v494 = vld [vmem:[%s0 + $0xf00] sm:$0xff]
  %v495 = vld [vmem:[%s0 + $0xf08] sm:$0xff]
  %v496 = vld [vmem:[%s0 + $0xf10] sm:$0xff]
  %v497 = vld [vmem:[%s0 + $0xf18] sm:$0xff]
  %v498 = vld [vmem:[%s0 + $0xf20] sm:$0xff]
  %v499 = vld [vmem:[%s0 + $0xf28] sm:$0xff]
  %v500 = vld [vmem:[%s0 + $0xf30] sm:$0xff]
  %v501 = vld [vmem:[%s0 + $0xf38] sm:$0xff]
  %v502 = vld [vmem:[%s0 + $0xf40] sm:$0xff]
  %v503 = vld [vmem:[%s0 + $0xf48] sm:$0xff]
  %v504 = vld [vmem:[%s0 + $0xf50] sm:$0xff]
  %v505 = vld [vmem:[%s0 + $0xf58] sm:$0xff]
  %v506 = vld [vmem:[%s0 + $0xf60] sm:$0xff]
  %v507 = vld [vmem:[%s0 + $0xf68] sm:$0xff]
  %v508 = vld [vmem:[%s0 + $0xf70] sm:$0xff]
  %v509 = vld [vmem:[%s0 + $0xf78] sm:$0xff]
  %v510 = vld [vmem:[%s0 + $0xf80] sm:$0xff]
  %v511 = vld [vmem:[%s0 + $0xf88] sm:$0xff]
  %v512 = vld [vmem:[%s0 + $0xf90] sm:$0xff]
  %v513 = vld [vmem:[%s0 + $0xf98] sm:$0xff]
  %v514 = vld [vmem:[%s0 + $0xfa0] sm:$0xff]
  %v515 = vld [vmem:[%s0 + $0xfa8] sm:$0xff]
  %v516 = vld [vmem:[%s0 + $0xfb0] sm:$0xff]
  %v517 = vld [vmem:[%s0 + $0xfb8] sm:$0xff]
  %v518 = vld [vmem:[%s0 + $0xfc0] sm:$0xff]
  %v519 = vld [vmem:[%s0 + $0xfc8] sm:$0xff]
  %v520 = vld [vmem:[%s0 + $0xfd0] sm:$0xff]
  %v521 = vld [vmem:[%s0 + $0xfd8] sm:$0xff]
  %v522 = vld [vmem:[%s0 + $0xfe0] sm:$0xff]
  %v523 = vld [vmem:[%s0 + $0xfe8] sm:$0xff]
  %v524 = vld [vmem:[%s0 + $0xff0] sm:$0xff]
  %v525 = vld [vmem:[%s0 + $0xff8] sm:$0xff]
  %v526 = vld [vmem:[%s0 + $0x1000] sm:$0xff]
  %v527 = vld [vmem:[%s0 + $0x1008] sm:$0xff]
  %v528 = vld [vmem:[%s0 + $0x1010] sm:$0xff]
  %v529 = vld [vmem:[%s0 + $0x1018] sm:$0xff]
  %v530 = vld [vmem:[%s0 + $0x1020] sm:$0xff]
  %v531 = vld [vmem:[%s0 + $0x1028] sm:$0xff]
  %v532 = vld [vmem:[%s0 + $0x1030] sm:$0xff]
  %v533 = vld [vmem:[%s0 + $0x1038] sm:$0xff]
  %v534 = vld [vmem:[%s0 + $0x1040] sm:$0xff]
  %v535 = vld [vmem:[%s0 + $0x1048] sm:$0xff]
  %v536 = vld [vmem:[%s0 + $0x1050] sm:$0xff]
  %v537 = vld [vmem:[%s0 + $0x1058] sm:$0xff]
  %v538 = vld [vmem:[%s0 + $0x1060] sm:$0xff]
  %v539 = vld [vmem:[%s0 + $0x1068] sm:$0xff]
  %v540 = vld [vmem:[%s0 + $0x1070] sm:$0xff]
  %v541 = vld [vmem:[%s0 + $0x1078] sm:$0xff]
  %v542 = vld [vmem:[%s0 + $0x1080] sm:$0xff]
  %v543 = vld [vmem:[%s0 + $0x1088] sm:$0xff]
  %v544 = vld [vmem:[%s0 + $0x1090] sm:$0xff]
  %v545 = vld [vmem:[%s0 + $0x1098] sm:$0xff]
  %v546 = vld [vmem:[%s0 + $0x10a0] sm:$0xff]
  %v547 = vld [vmem:[%s0 + $0x10a8] sm:$0xff]
  %v548 = vld [vmem:[%s0 + $0x10b0] sm:$0xff]
  %v549 = vld [vmem:[%s0 + $0x10b8] sm:$0xff]
  %v550 = vld [vmem:[%s0 + $0x10c0] sm:$0xff]
  %v551 = vld [vmem:[%s0 + $0x10c8] sm:$0xff]
  %v552 = vld [vmem:[%s0 + $0x10d0] sm:$0xff]
  %v553 = vld [vmem:[%s0 + $0x10d8] sm:$0xff]
  %v554 = vld [vmem:[%s0 + $0x10e0] sm:$0xff]
  %v555 = vld [vmem:[%s0 + $0x10e8] sm:$0xff]
  %v556 = vld [vmem:[%s0 + $0x10f0] sm:$0xff]
  %v557 = vld [vmem:[%s0 + $0x10f8] sm:$0xff]
  %v558 = vld [vmem:[%s0 + $0x1100] sm:$0xff]
  %v559 = vld [vmem:[%s0 + $0x1108] sm:$0xff]
  %v560 = vld [vmem:[%s0 + $0x1110] sm:$0xff]
  %v561 = vld [vmem:[%s0 + $0x1118] sm:$0xff]
  %v562 = vld [vmem:[%s0 + $0x1120] sm:$0xff]
  %v563 = vld [vmem:[%s0 + $0x1128] sm:$0xff]
  %v564 = vld [vmem:[%s0 + $0x1130] sm:$0xff]
  %v565 = vld [vmem:[%s0 + $0x1138] sm:$0xff]
  %v566 = vld [vmem:[%s0 + $0x1140] sm:$0xff]
  %v567 = vld [vmem:[%s0 + $0x1148] sm:$0xff]
  %v568 = vld [vmem:[%s0 + $0x1150] sm:$0xff]
  %v569 = vld [vmem:[%s0 + $0x1158] sm:$0xff]
  %v570 = vld [vmem:[%s0 + $0x1160] sm:$0xff]
  %v571 = vld [vmem:[%s0 + $0x1168] sm:$0xff]
  %v572 = vld [vmem:[%s0 + $0x1170] sm:$0xff]
  %v573 = vld [vmem:[%s0 + $0x1178] sm:$0xff]
  %v574 = vld [vmem:[%s0 + $0x1180] sm:$0xff]
  %v575 = vld [vmem:[%s0 + $0x1188] sm:$0xff]
  %v576 = vld [vmem:[%s0 + $0x1190] sm:$0xff]
  %v577 = vld [vmem:[%s0 + $0x1198] sm:$0xff]
  %v578 = vld [vmem:[%s0 + $0x11a0] sm:$0xff]
  %v579 = vld [vmem:[%s0 + $0x11a8] sm:$0xff]
  %v580 = vld [vmem:[%s0 + $0x11b0] sm:$0xff]
  %v581 = vld [vmem:[%s0 + $0x11b8] sm:$0xff]
  %v582 = vld [vmem:[%s0 + $0x11c0] sm:$0xff]
  %v583 = vld [vmem:[%s0 + $0x11c8] sm:$0xff]
  %v584 = vld [vmem:[%s0 + $0x11d0] sm:$0xff]
  %v585 = vld [vmem:[%s0 + $0x11d8] sm:$0xff]
  %v586 = vld [vmem:[%s0 + $0x11e0] sm:$0xff]
  %v587 = vld [vmem:[%s0 + $0x11e8] sm:$0xff]
  %v588 = vld [vmem:[%s0 + $0x11f0] sm:$0xff]
  %v589 = vld [vmem:[%s0 + $0x11f8] sm:$0xff]
  %v590 = vld [vmem:[%s1] sm:$0xff]
  %v591 = vld [vmem:[%s1 + $0x8] sm:$0xff]
  %v592 = vld [vmem:[%s1 + $0x10] sm:$0xff]
  %v593 = vld [vmem:[%s1 + $0x18] sm:$0xff]
  %vm594 = vcmask 261120
  %v596 = vsel %vm594, %v14, 0
  %v599 = vsel %vm594, %v15, 0
  %v602 = vsel %vm594, %v16, 0
  %v605 = vsel %vm594, %v17, 0
  %v608 = vsel %vm594, %v18, 0
  %v611 = vsel %vm594, %v19, 0
  %v614 = vsel %vm594, %v20, 0
  %v617 = vsel %vm594, %v21, 0
  %v620 = vsel %vm594, %v22, 0
  %v623 = vsel %vm594, %v23, 0
  %v626 = vsel %vm594, %v24, 0
  %v629 = vsel %vm594, %v25, 0
  %v632 = vsel %vm594, %v26, 0
  %v635 = vsel %vm594, %v27, 0
  %v638 = vsel %vm594, %v28, 0
  %v641 = vsel %vm594, %v29, 0
  %v644 = vsel %vm594, %v30, 0
  %v647 = vsel %vm594, %v31, 0
  %v650 = vsel %vm594, %v32, 0
  %v653 = vsel %vm594, %v33, 0
  %v656 = vsel %vm594, %v34, 0
  %v659 = vsel %vm594, %v35, 0
  %v662 = vsel %vm594, %v36, 0
  %v665 = vsel %vm594, %v37, 0
  %v668 = vsel %vm594, %v38, 0
  %v671 = vsel %vm594, %v39, 0
  %v674 = vsel %vm594, %v40, 0
  %v677 = vsel %vm594, %v41, 0
  %v680 = vsel %vm594, %v42, 0
  %v683 = vsel %vm594, %v43, 0
  %v686 = vsel %vm594, %v44, 0
  %v689 = vsel %vm594, %v45, 0
  %v692 = vsel %vm594, %v46, 0
  %v695 = vsel %vm594, %v47, 0
  %v698 = vsel %vm594, %v48, 0
  %v701 = vsel %vm594, %v49, 0
  %v704 = vsel %vm594, %v50, 0
  %v707 = vsel %vm594, %v51, 0
  %v710 = vsel %vm594, %v52, 0
  %v713 = vsel %vm594, %v53, 0
  %v716 = vsel %vm594, %v54, 0
  %v719 = vsel %vm594, %v55, 0
  %v722 = vsel %vm594, %v56, 0
  %v725 = vsel %vm594, %v57, 0
  %v728 = vsel %vm594, %v58, 0
  %v731 = vsel %vm594, %v59, 0
  %v734 = vsel %vm594, %v60, 0
  %v737 = vsel %vm594, %v61, 0
  %v740 = vsel %vm594, %v62, 0
  %v743 = vsel %vm594, %v63, 0
  %v746 = vsel %vm594, %v64, 0
  %v749 = vsel %vm594, %v65, 0
  %v752 = vsel %vm594, %v66, 0
  %v755 = vsel %vm594, %v67, 0
  %v758 = vsel %vm594, %v68, 0
  %v761 = vsel %vm594, %v69, 0
  %v764 = vsel %vm594, %v70, 0
  %v767 = vsel %vm594, %v71, 0
  %v770 = vsel %vm594, %v72, 0
  %v773 = vsel %vm594, %v73, 0
  %v776 = vsel %vm594, %v74, 0
  %v779 = vsel %vm594, %v75, 0
  %v782 = vsel %vm594, %v76, 0
  %v785 = vsel %vm594, %v77, 0
  %v788 = vsel %vm594, %v78, 0
  %v791 = vsel %vm594, %v79, 0
  %v794 = vsel %vm594, %v80, 0
  %v797 = vsel %vm594, %v81, 0
  %v800 = vsel %vm594, %v82, 0
  %v803 = vsel %vm594, %v83, 0
  %v806 = vsel %vm594, %v84, 0
  %v809 = vsel %vm594, %v85, 0
  %v812 = vsel %vm594, %v86, 0
  %v815 = vsel %vm594, %v87, 0
  %v818 = vsel %vm594, %v88, 0
  %v821 = vsel %vm594, %v89, 0
  %v824 = vsel %vm594, %v90, 0
  %v827 = vsel %vm594, %v91, 0
  %v830 = vsel %vm594, %v92, 0
  %v833 = vsel %vm594, %v93, 0
  %v836 = vsel %vm594, %v94, 0
  %v839 = vsel %vm594, %v95, 0
  %v842 = vsel %vm594, %v96, 0
  %v845 = vsel %vm594, %v97, 0
  %v848 = vsel %vm594, %v98, 0
  %v851 = vsel %vm594, %v99, 0
  %v854 = vsel %vm594, %v100, 0
  %v857 = vsel %vm594, %v101, 0
  %v860 = vsel %vm594, %v102, 0
  %v863 = vsel %vm594, %v103, 0
  %v866 = vsel %vm594, %v104, 0
  %v869 = vsel %vm594, %v105, 0
  %v872 = vsel %vm594, %v106, 0
  %v875 = vsel %vm594, %v107, 0
  %v878 = vsel %vm594, %v108, 0
  %v881 = vsel %vm594, %v109, 0
  %v884 = vsel %vm594, %v110, 0
  %v887 = vsel %vm594, %v111, 0
  %v890 = vsel %vm594, %v112, 0
  %v893 = vsel %vm594, %v113, 0
  %v896 = vsel %vm594, %v114, 0
  %v899 = vsel %vm594, %v115, 0
  %v902 = vsel %vm594, %v116, 0
  %v905 = vsel %vm594, %v117, 0
  %v908 = vsel %vm594, %v118, 0
  %v911 = vsel %vm594, %v119, 0
  %v914 = vsel %vm594, %v120, 0
  %v917 = vsel %vm594, %v121, 0
  %v920 = vsel %vm594, %v122, 0
  %v923 = vsel %vm594, %v123, 0
  %v926 = vsel %vm594, %v124, 0
  %v929 = vsel %vm594, %v125, 0
  %v932 = vsel %vm594, %v126, 0
  %v935 = vsel %vm594, %v127, 0
  %v938 = vsel %vm594, %v128, 0
  %v941 = vsel %vm594, %v129, 0
  %v944 = vsel %vm594, %v130, 0
  %v947 = vsel %vm594, %v131, 0
  %v950 = vsel %vm594, %v132, 0
  %v953 = vsel %vm594, %v133, 0
  %v956 = vsel %vm594, %v134, 0
  %v959 = vsel %vm594, %v135, 0
  %v962 = vsel %vm594, %v136, 0
  %v965 = vsel %vm594, %v137, 0
  %v968 = vsel %vm594, %v138, 0
  %v971 = vsel %vm594, %v139, 0
  %v974 = vsel %vm594, %v140, 0
  %v977 = vsel %vm594, %v141, 0
  %v980 = vsel %vm594, %v142, 0
  %v983 = vsel %vm594, %v143, 0
  %v986 = vsel %vm594, %v144, 0
  %v989 = vsel %vm594, %v145, 0
  %v992 = vsel %vm594, %v146, 0
  %v995 = vsel %vm594, %v147, 0
  %v998 = vsel %vm594, %v148, 0
  %v1001 = vsel %vm594, %v149, 0
  %v1004 = vsel %vm594, %v150, 0
  %v1007 = vsel %vm594, %v151, 0
  %v1010 = vsel %vm594, %v152, 0
  %v1013 = vsel %vm594, %v153, 0
  %v1016 = vsel %vm594, %v154, 0
  %v1019 = vsel %vm594, %v155, 0
  %v1022 = vsel %vm594, %v156, 0
  %v1025 = vsel %vm594, %v157, 0
  %v1028 = vsel %vm594, %v158, 0
  %v1031 = vsel %vm594, %v159, 0
  %v1034 = vsel %vm594, %v160, 0
  %v1037 = vsel %vm594, %v161, 0
  %v1040 = vsel %vm594, %v162, 0
  %v1043 = vsel %vm594, %v163, 0
  %v1046 = vsel %vm594, %v164, 0
  %v1049 = vsel %vm594, %v165, 0
  %v1052 = vsel %vm594, %v166, 0
  %v1055 = vsel %vm594, %v167, 0
  %v1058 = vsel %vm594, %v168, 0
  %v1061 = vsel %vm594, %v169, 0
  %v1064 = vsel %vm594, %v170, 0
  %v1067 = vsel %vm594, %v171, 0
  %v1070 = vsel %vm594, %v172, 0
  %v1073 = vsel %vm594, %v173, 0
  %v1076 = vsel %vm594, %v174, 0
  %v1079 = vsel %vm594, %v175, 0
  %v1082 = vsel %vm594, %v176, 0
  %v1085 = vsel %vm594, %v177, 0
  %v1088 = vsel %vm594, %v178, 0
  %v1091 = vsel %vm594, %v179, 0
  %v1094 = vsel %vm594, %v180, 0
  %v1097 = vsel %vm594, %v181, 0
  %v1100 = vsel %vm594, %v182, 0
  %v1103 = vsel %vm594, %v183, 0
  %v1106 = vsel %vm594, %v184, 0
  %v1109 = vsel %vm594, %v185, 0
  %v1112 = vsel %vm594, %v186, 0
  %v1115 = vsel %vm594, %v187, 0
  %v1118 = vsel %vm594, %v188, 0
  %v1121 = vsel %vm594, %v189, 0
  %v1124 = vsel %vm594, %v190, 0
  %v1127 = vsel %vm594, %v191, 0
  %v1130 = vsel %vm594, %v192, 0
  %v1133 = vsel %vm594, %v193, 0
  %v1136 = vsel %vm594, %v194, 0
  %v1139 = vsel %vm594, %v195, 0
  %v1142 = vsel %vm594, %v196, 0
  %v1145 = vsel %vm594, %v197, 0
  %v1148 = vsel %vm594, %v198, 0
  %v1151 = vsel %vm594, %v199, 0
  %v1154 = vsel %vm594, %v200, 0
  %v1157 = vsel %vm594, %v201, 0
  %v1160 = vsel %vm594, %v202, 0
  %v1163 = vsel %vm594, %v203, 0
  %v1166 = vsel %vm594, %v204, 0
  %v1169 = vsel %vm594, %v205, 0
  %v1172 = vsel %vm594, %v206, 0
  %v1175 = vsel %vm594, %v207, 0
  %v1178 = vsel %vm594, %v208, 0
  %v1181 = vsel %vm594, %v209, 0
  %v1184 = vsel %vm594, %v210, 0
  %v1187 = vsel %vm594, %v211, 0
  %v1190 = vsel %vm594, %v212, 0
  %v1193 = vsel %vm594, %v213, 0
  %v1196 = vsel %vm594, %v214, 0
  %v1199 = vsel %vm594, %v215, 0
  %v1202 = vsel %vm594, %v216, 0
  %v1205 = vsel %vm594, %v217, 0
  %v1208 = vsel %vm594, %v218, 0
  %v1211 = vsel %vm594, %v219, 0
  %v1214 = vsel %vm594, %v220, 0
  %v1217 = vsel %vm594, %v221, 0
  %v1220 = vsel %vm594, %v222, 0
  %v1223 = vsel %vm594, %v223, 0
  %v1226 = vsel %vm594, %v224, 0
  %v1229 = vsel %vm594, %v225, 0
  %v1232 = vsel %vm594, %v226, 0
  %v1235 = vsel %vm594, %v227, 0
  %v1238 = vsel %vm594, %v228, 0
  %v1241 = vsel %vm594, %v229, 0
  %v1244 = vsel %vm594, %v230, 0
  %v1247 = vsel %vm594, %v231, 0
  %v1250 = vsel %vm594, %v232, 0
  %v1253 = vsel %vm594, %v233, 0
  %v1256 = vsel %vm594, %v234, 0
  %v1259 = vsel %vm594, %v235, 0
  %v1262 = vsel %vm594, %v236, 0
  %v1265 = vsel %vm594, %v237, 0
  %v1268 = vsel %vm594, %v238, 0
  %v1271 = vsel %vm594, %v239, 0
  %v1274 = vsel %vm594, %v240, 0
  %v1277 = vsel %vm594, %v241, 0
  %v1280 = vsel %vm594, %v242, 0
  %v1283 = vsel %vm594, %v243, 0
  %v1286 = vsel %vm594, %v244, 0
  %v1289 = vsel %vm594, %v245, 0
  %v1292 = vsel %vm594, %v246, 0
  %v1295 = vsel %vm594, %v247, 0
  %v1298 = vsel %vm594, %v248, 0
  %v1301 = vsel %vm594, %v249, 0
  %v1304 = vsel %vm594, %v250, 0
  %v1307 = vsel %vm594, %v251, 0
  %v1310 = vsel %vm594, %v252, 0
  %v1313 = vsel %vm594, %v253, 0
  %v1316 = vsel %vm594, %v254, 0
  %v1319 = vsel %vm594, %v255, 0
  %v1322 = vsel %vm594, %v256, 0
  %v1325 = vsel %vm594, %v257, 0
  %v1328 = vsel %vm594, %v258, 0
  %v1331 = vsel %vm594, %v259, 0
  %v1334 = vsel %vm594, %v260, 0
  %v1337 = vsel %vm594, %v261, 0
  %v1340 = vsel %vm594, %v262, 0
  %v1343 = vsel %vm594, %v263, 0
  %v1346 = vsel %vm594, %v264, 0
  %v1349 = vsel %vm594, %v265, 0
  %v1352 = vsel %vm594, %v266, 0
  %v1355 = vsel %vm594, %v267, 0
  %v1358 = vsel %vm594, %v268, 0
  %v1361 = vsel %vm594, %v269, 0
  %v1364 = vsel %vm594, %v270, 0
  %v1367 = vsel %vm594, %v271, 0
  %v1370 = vsel %vm594, %v272, 0
  %v1373 = vsel %vm594, %v273, 0
  %v1376 = vsel %vm594, %v274, 0
  %v1379 = vsel %vm594, %v275, 0
  %v1382 = vsel %vm594, %v276, 0
  %v1385 = vsel %vm594, %v277, 0
  %v1388 = vsel %vm594, %v278, 0
  %v1391 = vsel %vm594, %v279, 0
  %v1394 = vsel %vm594, %v280, 0
  %v1397 = vsel %vm594, %v281, 0
  %v1400 = vsel %vm594, %v282, 0
  %v1403 = vsel %vm594, %v283, 0
  %v1406 = vsel %vm594, %v284, 0
  %v1409 = vsel %vm594, %v285, 0
  %v1412 = vsel %vm594, %v286, 0
  %v1415 = vsel %vm594, %v287, 0
  %v1418 = vsel %vm594, %v288, 0
  %v1421 = vsel %vm594, %v289, 0
  %v1424 = vsel %vm594, %v290, 0
  %v1427 = vsel %vm594, %v291, 0
  %v1430 = vsel %vm594, %v292, 0
  %v1433 = vsel %vm594, %v293, 0
  %v1436 = vsel %vm594, %v294, 0
  %v1439 = vsel %vm594, %v295, 0
  %v1442 = vsel %vm594, %v296, 0
  %v1445 = vsel %vm594, %v297, 0
  %v1448 = vsel %vm594, %v298, 0
  %v1451 = vsel %vm594, %v299, 0
  %v1454 = vsel %vm594, %v300, 0
  %v1457 = vsel %vm594, %v301, 0
  %v1460 = vsel %vm594, %v302, 0
  %v1463 = vsel %vm594, %v303, 0
  %v1466 = vsel %vm594, %v304, 0
  %v1469 = vsel %vm594, %v305, 0
  %v1472 = vsel %vm594, %v306, 0
  %v1475 = vsel %vm594, %v307, 0
  %v1478 = vsel %vm594, %v308, 0
  %v1481 = vsel %vm594, %v309, 0
  %v1484 = vsel %vm594, %v310, 0
  %v1487 = vsel %vm594, %v311, 0
  %v1490 = vsel %vm594, %v312, 0
  %v1493 = vsel %vm594, %v313, 0
  %v1496 = vsel %vm594, %v314, 0
  %v1499 = vsel %vm594, %v315, 0
  %v1502 = vsel %vm594, %v316, 0
  %v1505 = vsel %vm594, %v317, 0
  %v1508 = vsel %vm594, %v318, 0
  %v1511 = vsel %vm594, %v319, 0
  %v1514 = vsel %vm594, %v320, 0
  %v1517 = vsel %vm594, %v321, 0
  %v1520 = vsel %vm594, %v322, 0
  %v1523 = vsel %vm594, %v323, 0
  %v1526 = vsel %vm594, %v324, 0
  %v1529 = vsel %vm594, %v325, 0
  %v1532 = vsel %vm594, %v326, 0
  %v1535 = vsel %vm594, %v327, 0
  %v1538 = vsel %vm594, %v328, 0
  %v1541 = vsel %vm594, %v329, 0
  %v1544 = vsel %vm594, %v330, 0
  %v1547 = vsel %vm594, %v331, 0
  %v1550 = vsel %vm594, %v332, 0
  %v1553 = vsel %vm594, %v333, 0
  %v1556 = vsel %vm594, %v334, 0
  %v1559 = vsel %vm594, %v335, 0
  %v1562 = vsel %vm594, %v336, 0
  %v1565 = vsel %vm594, %v337, 0
  %v1568 = vsel %vm594, %v338, 0
  %v1571 = vsel %vm594, %v339, 0
  %v1574 = vsel %vm594, %v340, 0
  %v1577 = vsel %vm594, %v341, 0
  %v1580 = vsel %vm594, %v342, 0
  %v1583 = vsel %vm594, %v343, 0
  %v1586 = vsel %vm594, %v344, 0
  %v1589 = vsel %vm594, %v345, 0
  %v1592 = vsel %vm594, %v346, 0
  %v1595 = vsel %vm594, %v347, 0
  %v1598 = vsel %vm594, %v348, 0
  %v1601 = vsel %vm594, %v349, 0
  %v1604 = vsel %vm594, %v350, 0
  %v1607 = vsel %vm594, %v351, 0
  %v1610 = vsel %vm594, %v352, 0
  %v1613 = vsel %vm594, %v353, 0
  %v1616 = vsel %vm594, %v354, 0
  %v1619 = vsel %vm594, %v355, 0
  %v1622 = vsel %vm594, %v356, 0
  %v1625 = vsel %vm594, %v357, 0
  %v1628 = vsel %vm594, %v358, 0
  %v1631 = vsel %vm594, %v359, 0
  %v1634 = vsel %vm594, %v360, 0
  %v1637 = vsel %vm594, %v361, 0
  %v1640 = vsel %vm594, %v362, 0
  %v1643 = vsel %vm594, %v363, 0
  %v1646 = vsel %vm594, %v364, 0
  %v1649 = vsel %vm594, %v365, 0
  %v1652 = vsel %vm594, %v366, 0
  %v1655 = vsel %vm594, %v367, 0
  %v1658 = vsel %vm594, %v368, 0
  %v1661 = vsel %vm594, %v369, 0
  %v1664 = vsel %vm594, %v370, 0
  %v1667 = vsel %vm594, %v371, 0
  %v1670 = vsel %vm594, %v372, 0
  %v1673 = vsel %vm594, %v373, 0
  %v1676 = vsel %vm594, %v374, 0
  %v1679 = vsel %vm594, %v375, 0
  %v1682 = vsel %vm594, %v376, 0
  %v1685 = vsel %vm594, %v377, 0
  %v1688 = vsel %vm594, %v378, 0
  %v1691 = vsel %vm594, %v379, 0
  %v1694 = vsel %vm594, %v380, 0
  %v1697 = vsel %vm594, %v381, 0
  %v1700 = vsel %vm594, %v382, 0
  %v1703 = vsel %vm594, %v383, 0
  %v1706 = vsel %vm594, %v384, 0
  %v1709 = vsel %vm594, %v385, 0
  %v1712 = vsel %vm594, %v386, 0
  %v1715 = vsel %vm594, %v387, 0
  %v1718 = vsel %vm594, %v388, 0
  %v1721 = vsel %vm594, %v389, 0
  %v1724 = vsel %vm594, %v390, 0
  %v1727 = vsel %vm594, %v391, 0
  %v1730 = vsel %vm594, %v392, 0
  %v1733 = vsel %vm594, %v393, 0
  %v1736 = vsel %vm594, %v394, 0
  %v1739 = vsel %vm594, %v395, 0
  %v1742 = vsel %vm594, %v396, 0
  %v1745 = vsel %vm594, %v397, 0
  %v1748 = vsel %vm594, %v398, 0
  %v1751 = vsel %vm594, %v399, 0
  %v1754 = vsel %vm594, %v400, 0
  %v1757 = vsel %vm594, %v401, 0
  %v1760 = vsel %vm594, %v402, 0
  %v1763 = vsel %vm594, %v403, 0
  %v1766 = vsel %vm594, %v404, 0
  %v1769 = vsel %vm594, %v405, 0
  %v1772 = vsel %vm594, %v406, 0
  %v1775 = vsel %vm594, %v407, 0
  %v1778 = vsel %vm594, %v408, 0
  %v1781 = vsel %vm594, %v409, 0
  %v1784 = vsel %vm594, %v410, 0
  %v1787 = vsel %vm594, %v411, 0
  %v1790 = vsel %vm594, %v412, 0
  %v1793 = vsel %vm594, %v413, 0
  %v1796 = vsel %vm594, %v414, 0
  %v1799 = vsel %vm594, %v415, 0
  %v1802 = vsel %vm594, %v416, 0
  %v1805 = vsel %vm594, %v417, 0
  %v1808 = vsel %vm594, %v418, 0
  %v1811 = vsel %vm594, %v419, 0
  %v1814 = vsel %vm594, %v420, 0
  %v1817 = vsel %vm594, %v421, 0
  %v1820 = vsel %vm594, %v422, 0
  %v1823 = vsel %vm594, %v423, 0
  %v1826 = vsel %vm594, %v424, 0
  %v1829 = vsel %vm594, %v425, 0
  %v1832 = vsel %vm594, %v426, 0
  %v1835 = vsel %vm594, %v427, 0
  %v1838 = vsel %vm594, %v428, 0
  %v1841 = vsel %vm594, %v429, 0
  %v1844 = vsel %vm594, %v430, 0
  %v1847 = vsel %vm594, %v431, 0
  %v1850 = vsel %vm594, %v432, 0
  %v1853 = vsel %vm594, %v433, 0
  %v1856 = vsel %vm594, %v434, 0
  %v1859 = vsel %vm594, %v435, 0
  %v1862 = vsel %vm594, %v436, 0
  %v1865 = vsel %vm594, %v437, 0
  %v1868 = vsel %vm594, %v438, 0
  %v1871 = vsel %vm594, %v439, 0
  %v1874 = vsel %vm594, %v440, 0
  %v1877 = vsel %vm594, %v441, 0
  %v1880 = vsel %vm594, %v442, 0
  %v1883 = vsel %vm594, %v443, 0
  %v1886 = vsel %vm594, %v444, 0
  %v1889 = vsel %vm594, %v445, 0
  %v1892 = vsel %vm594, %v446, 0
  %v1895 = vsel %vm594, %v447, 0
  %v1898 = vsel %vm594, %v448, 0
  %v1901 = vsel %vm594, %v449, 0
  %v1904 = vsel %vm594, %v450, 0
  %v1907 = vsel %vm594, %v451, 0
  %v1910 = vsel %vm594, %v452, 0
  %v1913 = vsel %vm594, %v453, 0
  %v1916 = vsel %vm594, %v454, 0
  %v1919 = vsel %vm594, %v455, 0
  %v1922 = vsel %vm594, %v456, 0
  %v1925 = vsel %vm594, %v457, 0
  %v1928 = vsel %vm594, %v458, 0
  %v1931 = vsel %vm594, %v459, 0
  %v1934 = vsel %vm594, %v460, 0
  %v1937 = vsel %vm594, %v461, 0
  %v1940 = vsel %vm594, %v462, 0
  %v1943 = vsel %vm594, %v463, 0
  %v1946 = vsel %vm594, %v464, 0
  %v1949 = vsel %vm594, %v465, 0
  %v1952 = vsel %vm594, %v466, 0
  %v1955 = vsel %vm594, %v467, 0
  %v1958 = vsel %vm594, %v468, 0
  %v1961 = vsel %vm594, %v469, 0
  %v1964 = vsel %vm594, %v470, 0
  %v1967 = vsel %vm594, %v471, 0
  %v1970 = vsel %vm594, %v472, 0
  %v1973 = vsel %vm594, %v473, 0
  %v1976 = vsel %vm594, %v474, 0
  %v1979 = vsel %vm594, %v475, 0
  %v1982 = vsel %vm594, %v476, 0
  %v1985 = vsel %vm594, %v477, 0
  %v1988 = vsel %vm594, %v478, 0
  %v1991 = vsel %vm594, %v479, 0
  %v1994 = vsel %vm594, %v480, 0
  %v1997 = vsel %vm594, %v481, 0
  %v2000 = vsel %vm594, %v482, 0
  %v2003 = vsel %vm594, %v483, 0
  %v2006 = vsel %vm594, %v484, 0
  %v2009 = vsel %vm594, %v485, 0
  %v2012 = vsel %vm594, %v486, 0
  %v2015 = vsel %vm594, %v487, 0
  %v2018 = vsel %vm594, %v488, 0
  %v2021 = vsel %vm594, %v489, 0
  %v2024 = vsel %vm594, %v490, 0
  %v2027 = vsel %vm594, %v491, 0
  %v2030 = vsel %vm594, %v492, 0
  %v2033 = vsel %vm594, %v493, 0
  %v2036 = vsel %vm594, %v494, 0
  %v2039 = vsel %vm594, %v495, 0
  %v2042 = vsel %vm594, %v496, 0
  %v2045 = vsel %vm594, %v497, 0
  %v2048 = vsel %vm594, %v498, 0
  %v2051 = vsel %vm594, %v499, 0
  %v2054 = vsel %vm594, %v500, 0
  %v2057 = vsel %vm594, %v501, 0
  %v2060 = vsel %vm594, %v502, 0
  %v2063 = vsel %vm594, %v503, 0
  %v2066 = vsel %vm594, %v504, 0
  %v2069 = vsel %vm594, %v505, 0
  %v2072 = vsel %vm594, %v506, 0
  %v2075 = vsel %vm594, %v507, 0
  %v2078 = vsel %vm594, %v508, 0
  %v2081 = vsel %vm594, %v509, 0
  %v2084 = vsel %vm594, %v510, 0
  %v2087 = vsel %vm594, %v511, 0
  %v2090 = vsel %vm594, %v512, 0
  %v2093 = vsel %vm594, %v513, 0
  %v2096 = vsel %vm594, %v514, 0
  %v2099 = vsel %vm594, %v515, 0
  %v2102 = vsel %vm594, %v516, 0
  %v2105 = vsel %vm594, %v517, 0
  %v2108 = vsel %vm594, %v518, 0
  %v2111 = vsel %vm594, %v519, 0
  %v2114 = vsel %vm594, %v520, 0
  %v2117 = vsel %vm594, %v521, 0
  %v2120 = vsel %vm594, %v522, 0
  %v2123 = vsel %vm594, %v523, 0
  %v2126 = vsel %vm594, %v524, 0
  %v2129 = vsel %vm594, %v525, 0
  %v2132 = vsel %vm594, %v526, 0
  %v2135 = vsel %vm594, %v527, 0
  %v2138 = vsel %vm594, %v528, 0
  %v2141 = vsel %vm594, %v529, 0
  %v2144 = vsel %vm594, %v530, 0
  %v2147 = vsel %vm594, %v531, 0
  %v2150 = vsel %vm594, %v532, 0
  %v2153 = vsel %vm594, %v533, 0
  %v2156 = vsel %vm594, %v534, 0
  %v2159 = vsel %vm594, %v535, 0
  %v2162 = vsel %vm594, %v536, 0
  %v2165 = vsel %vm594, %v537, 0
  %v2168 = vsel %vm594, %v538, 0
  %v2171 = vsel %vm594, %v539, 0
  %v2174 = vsel %vm594, %v540, 0
  %v2177 = vsel %vm594, %v541, 0
  %v2180 = vsel %vm594, %v542, 0
  %v2183 = vsel %vm594, %v543, 0
  %v2186 = vsel %vm594, %v544, 0
  %v2189 = vsel %vm594, %v545, 0
  %v2192 = vsel %vm594, %v546, 0
  %v2195 = vsel %vm594, %v547, 0
  %v2198 = vsel %vm594, %v548, 0
  %v2201 = vsel %vm594, %v549, 0
  %v2204 = vsel %vm594, %v550, 0
  %v2207 = vsel %vm594, %v551, 0
  %v2210 = vsel %vm594, %v552, 0
  %v2213 = vsel %vm594, %v553, 0
  %v2216 = vsel %vm594, %v554, 0
  %v2219 = vsel %vm594, %v555, 0
  %v2222 = vsel %vm594, %v556, 0
  %v2225 = vsel %vm594, %v557, 0
  %v2228 = vsel %vm594, %v558, 0
  %v2231 = vsel %vm594, %v559, 0
  %v2234 = vsel %vm594, %v560, 0
  %v2237 = vsel %vm594, %v561, 0
  %v2240 = vsel %vm594, %v562, 0
  %v2243 = vsel %vm594, %v563, 0
  %v2246 = vsel %vm594, %v564, 0
  %v2249 = vsel %vm594, %v565, 0
  %v2252 = vsel %vm594, %v566, 0
  %v2255 = vsel %vm594, %v567, 0
  %v2258 = vsel %vm594, %v568, 0
  %v2261 = vsel %vm594, %v569, 0
  %v2264 = vsel %vm594, %v570, 0
  %v2267 = vsel %vm594, %v571, 0
  %v2270 = vsel %vm594, %v572, 0
  %v2273 = vsel %vm594, %v573, 0
  %v2276 = vsel %vm594, %v574, 0
  %v2279 = vsel %vm594, %v575, 0
  %v2282 = vsel %vm594, %v576, 0
  %v2285 = vsel %vm594, %v577, 0
  %v2288 = vsel %vm594, %v578, 0
  %v2291 = vsel %vm594, %v579, 0
  %v2294 = vsel %vm594, %v580, 0
  %v2297 = vsel %vm594, %v581, 0
  %v2300 = vsel %vm594, %v582, 0
  %v2303 = vsel %vm594, %v583, 0
  %v2306 = vsel %vm594, %v584, 0
  %v2309 = vsel %vm594, %v585, 0
  %v2312 = vsel %vm594, %v586, 0
  %v2315 = vsel %vm594, %v587, 0
  %v2318 = vsel %vm594, %v588, 0
  %v2321 = vsel %vm594, %v589, 0
  %2323 = vmatprep.subr.mxu0 0.0
  %2324 = vmatpush1.msra.mxu0 %v590
  %2325 = vmatprep.subr.mxu0 0.0
  %2326 = vmatpush1.msra.mxu0 %v591
  %2327 = vmatprep.subr.mxu0 0.0
  %2328 = vmatpush1.msra.mxu0 %v592
  %2329 = vmatprep.subr.mxu0 0.0
  %2330 = vmatpush1.msra.mxu0 %v593
  %2331 = vmatprep.subr.mxu0 0.0
  %2332 = vmatpush1.msra.mxu0 0.0
  %2333 = vmatprep.subr.mxu0 0.0
  %2334 = vmatpush1.msra.mxu0 0.0
  %2335 = vmatprep.subr.mxu0 0.0
  %2336 = vmatpush1.msra.mxu0 0.0
  %2337 = vmatprep.subr.mxu0 0.0
  %2338 = vmatpush1.msra.mxu0 0.0
  %2339 = vmatprep.subr.mxu0 0.0
  %2340 = vmatpush1.msra.mxu0 0.0
  %2341 = vmatprep.subr.mxu0 0.0
  %2342 = vmatpush1.msra.mxu0 0.0
  %2343 = vmatprep.subr.mxu0 0.0
  %2344 = vmatpush1.msra.mxu0 0.0
  %2345 = vmatprep.subr.mxu0 0.0
  %2346 = vmatpush1.msra.mxu0 0.0
  %2347 = vmatprep.subr.mxu0 0.0
  %2348 = vmatpush1.msra.mxu0 0.0
  %2349 = vmatprep.subr.mxu0 0.0
  %2350 = vmatpush1.msra.mxu0 0.0
  %2351 = vmatprep.subr.mxu0 0.0
  %2352 = vmatpush1.msra.mxu0 0.0
  %2353 = vmatprep.subr.mxu0 0.0
  %2354 = vmatpush1.msra.mxu0 0.0
  %2355 = vmatprep.subr.mxu0 0.0
  %2356 = vmatpush1.msra.mxu0 0.0
  %2357 = vmatprep.subr.mxu0 0.0
  %2358 = vmatpush1.msra.mxu0 0.0
  %2359 = vmatprep.subr.mxu0 0.0
  %2360 = vmatpush1.msra.mxu0 0.0
  %2361 = vmatprep.subr.mxu0 0.0
  %2362 = vmatpush1.msra.mxu0 0.0
  %2363 = vmatprep.subr.mxu0 0.0
  %2364 = vmatpush1.msra.mxu0 0.0
  %2365 = vmatprep.subr.mxu0 0.0
  %2366 = vmatpush1.msra.mxu0 0.0
  %2367 = vmatprep.subr.mxu0 0.0
  %2368 = vmatpush1.msra.mxu0 0.0
  %2369 = vmatprep.subr.mxu0 0.0
  %2370 = vmatpush1.msra.mxu0 0.0
  %2371 = vmatprep.subr.mxu0 0.0
  %2372 = vmatpush1.msra.mxu0 0.0
  %2373 = vmatprep.subr.mxu0 0.0
  %2374 = vmatpush1.msra.mxu0 0.0
  %2375 = vmatprep.subr.mxu0 0.0
  %2376 = vmatpush1.msra.mxu0 0.0
  %2377 = vmatprep.subr.mxu0 0.0
  %2378 = vmatpush1.msra.mxu0 0.0
  %2379 = vmatprep.subr.mxu0 0.0
  %2380 = vmatpush1.msra.mxu0 0.0
  %2381 = vmatprep.subr.mxu0 0.0
  %2382 = vmatpush1.msra.mxu0 0.0
  %2383 = vmatprep.subr.mxu0 0.0
  %2384 = vmatpush1.msra.mxu0 0.0
  %2385 = vmatprep.subr.mxu0 0.0
  %2386 = vmatpush1.msra.mxu0 0.0
  %2387 = vmatprep.mubr.f32.mxu0 0.0
  %2388 = vmatmul.mubr.f32.gmra.mrb[0].mxu0 %v596
  %v2389 = vpop.f32.mrb[0].mxu0
  %v2390 = vadd.f32 0.0, %v2389
  %v2391 = vpop.f32.mrb[0].mxu0
  %2392 = vmatprep.mubr.f32.mxu0 0.0
  %2393 = vmatmul.mubr.f32.gmra.mrb[0].mxu0 %v599
  %v2394 = vpop.f32.mrb[0].mxu0
  %v2395 = vadd.f32 0.0, %v2394
  %v2396 = vpop.f32.mrb[0].mxu0
  %2397 = vmatprep.mubr.f32.mxu0 0.0
  %2398 = vmatmul.mubr.f32.gmra.mrb[0].mxu0 %v602
  %v2399 = vpop.f32.mrb[0].mxu0
  %v2400 = vadd.f32 0.0, %v2399
  %v2401 = vpop.f32.mrb[0].mxu0
  %2402 = vmatprep.mubr.f32.mxu0 0.0
  %2403 = vmatmul.mubr.f32.gmra.mrb[0].mxu0 %v605
  %v2404 = vpop.f32.mrb[0].mxu0
  %v2405 = vadd.f32 0.0, %v2404
  %v2406 = vpop.f32.mrb[0].mxu0
  %2407 = vmatprep.mubr.f32.mxu0 0.0
  %2408 = vmatmul.mubr.f32.gmra.mrb[0].mxu0 %v608
  %v2409 = vpop.f32.mrb[0].mxu0
  %v2410 = vadd.f32 0.0, %v2409
  %v2411 = vpop.f32.mrb[0].mxu0
  %2412 = vmatprep.mubr.f32.mxu0 0.0
  %2413 = vmatmul.mubr.f32.gmra.mrb[0].mxu0 %v611
  %v2414 = vpop.f32.mrb[0].mxu0
  %v2415 = vadd.f32 0.0, %v2414
  %v2416 = vpop.f32.mrb[0].mxu0
  %2417 = vmatprep.mubr.f32.mxu0 0.0
  %2418 = vmatmul.mubr.f32.gmra.mrb[0].mxu0 %v614
  %v2419 = vpop.f32.mrb[0].mxu0
  %v2420 = vadd.f32 0.0, %v2419
  %v2421 = vpop.f32.mrb[0].mxu0
  %2422 = vmatprep.mubr.f32.mxu0 0.0
  %2423 = vmatmul.mubr.f32.gmra.mrb[0].mxu0 %v617
  %v2424 = vpop.f32.mrb[0].mxu0
  %v2425 = vadd.f32 0.0, %v2424
  %v2426 = vpop.f32.mrb[0].mxu0
  %2427 = vmatprep.mubr.f32.mxu0 0.0
  %2428 = vmatmul.mubr.f32.gmra.mrb[0].mxu0 %v620
  %v2429 = vpop.f32.mrb[0].mxu0
  %v2430 = vadd.f32 0.0, %v2429
  %v2431 = vpop.f32.mrb[0].mxu0
  %2432 = vmatprep.mubr.f32.mxu0 0.0
  %2433 = vmatmul.mubr.f32.gmra.mrb[0].mxu0 %v623
  %v2434 = vpop.f32.mrb[0].mxu0
  %v2435 = vadd.f32 0.0, %v2434
  %v2436 = vpop.f32.mrb[0].mxu0
  %2437 = vmatprep.mubr.f32.mxu0 0.0
  %2438 = vmatmul.mubr.f32.gmra.mrb[0].mxu0 %v626
  %v2439 = vpop.f32.mrb[0].mxu0
  %v2440 = vadd.f32 0.0, %v2439
  %v2441 = vpop.f32.mrb[0].mxu0
  %2442 = vmatprep.mubr.f32.mxu0 0.0
  %2443 = vmatmul.mubr.f32.gmra.mrb[0].mxu0 %v629
  %v2444 = vpop.f32.mrb[0].mxu0
  %v2445 = vadd.f32 0.0, %v2444
  %v2446 = vpop.f32.mrb[0].mxu0
  %2447 = vmatprep.mubr.f32.mxu0 0.0
  %2448 = vmatmul.mubr.f32.gmra.mrb[0].mxu0 %v632
  %v2449 = vpop.f32.mrb[0].mxu0
  %v2450 = vadd.f32 0.0, %v2449
  %v2451 = vpop.f32.mrb[0].mxu0
  %2452 = vmatprep.mubr.f32.mxu0 0.0
  %2453 = vmatmul.mubr.f32.gmra.mrb[0].mxu0 %v635
  %v2454 = vpop.f32.mrb[0].mxu0
  %v2455 = vadd.f32 0.0, %v2454
  %v2456 = vpop.f32.mrb[0].mxu0
  %2457 = vmatprep.mubr.f32.mxu0 0.0
  %2458 = vmatmul.mubr.f32.gmra.mrb[0].mxu0 %v638
  %v2459 = vpop.f32.mrb[0].mxu0
  %v2460 = vadd.f32 0.0, %v2459
  %v2461 = vpop.f32.mrb[0].mxu0
  %2462 = vmatprep.mubr.f32.mxu0 0.0
  %2463 = vmatmul.mubr.f32.gmra.mrb[0].mxu0 %v641
  %v2464 = vpop.f32.mrb[0].mxu0
  %v2465 = vadd.f32 0.0, %v2464
  %v2466 = vpop.f32.mrb[0].mxu0
  %2467 = vmatprep.mubr.f32.mxu0 0.0
  %2468 = vmatmul.mubr.f32.gmra.mrb[0].mxu0 %v644
  %v2469 = vpop.f32.mrb[0].mxu0
  %v2470 = vadd.f32 0.0, %v2469
  %v2471 = vpop.f32.mrb[0].mxu0
  %2472 = vmatprep.mubr.f32.mxu0 0.0
  %2473 = vmatmul.mubr.f32.gmra.mrb[0].mxu0 %v647
  %v2474 = vpop.f32.mrb[0].mxu0
  %v2475 = vadd.f32 0.0, %v2474
  %v2476 = vpop.f32.mrb[0].mxu0
  %2477 = vmatprep.mubr.f32.mxu0 0.0
  %2478 = vmatmul.mubr.f32.gmra.mrb[0].mxu0 %v650
  %v2479 = vpop.f32.mrb[0].mxu0
  %v2480 = vadd.f32 0.0, %v2479
  %v2481 = vpop.f32.mrb[0].mxu0
  %2482 = vmatprep.mubr.f32.mxu0 0.0
  %2483 = vmatmul.mubr.f32.gmra.mrb[0].mxu0 %v653
  %v2484 = vpop.f32.mrb[0].mxu0
  %v2485 = vadd.f32 0.0, %v2484
  %v2486 = vpop.f32.mrb[0].mxu0
  %2487 = vmatprep.mubr.f32.mxu0 0.0
  %2488 = vmatmul.mubr.f32.gmra.mrb[0].mxu0 %v656
  %v2489 = vpop.f32.mrb[0].mxu0
  %v2490 = vadd.f32 0.0, %v2489
  %v2491 = vpop.f32.mrb[0].mxu0
  %2492 = vmatprep.mubr.f32.mxu0 0.0
  %2493 = vmatmul.mubr.f32.gmra.mrb[0].mxu0 %v659
  %v2494 = vpop.f32.mrb[0].mxu0
  %v2495 = vadd.f32 0.0, %v2494
  %v2496 = vpop.f32.mrb[0].mxu0
  %2497 = vmatprep.mubr.f32.mxu0 0.0
  %2498 = vmatmul.mubr.f32.gmra.mrb[0].mxu0 %v662
  %v2499 = vpop.f32.mrb[0].mxu0
  %v2500 = vadd.f32 0.0, %v2499
  %v2501 = vpop.f32.mrb[0].mxu0
  %2502 = vmatprep.mubr.f32.mxu0 0.0
  %2503 = vmatmul.mubr.f32.gmra.mrb[0].mxu0 %v665
  %v2504 = vpop.f32.mrb[0].mxu0
  %v2505 = vadd.f32 0.0, %v2504
  %v2506 = vpop.f32.mrb[0].mxu0
  %2507 = vmatprep.mubr.f32.mxu0 0.0
  %2508 = vmatmul.mubr.f32.gmra.mrb[0].mxu0 %v668
  %v2509 = vpop.f32.mrb[0].mxu0
  %v2510 = vadd.f32 0.0, %v2509
  %v2511 = vpop.f32.mrb[0].mxu0
  %2512 = vmatprep.mubr.f32.mxu0 0.0
  %2513 = vmatmul.mubr.f32.gmra.mrb[0].mxu0 %v671
  %v2514 = vpop.f32.mrb[0].mxu0
  %v2515 = vadd.f32 0.0, %v2514
  %v2516 = vpop.f32.mrb[0].mxu0
  %2517 = vmatprep.mubr.f32.mxu0 0.0
  %2518 = vmatmul.mubr.f32.gmra.mrb[0].mxu0 %v674
  %v2519 = vpop.f32.mrb[0].mxu0
  %v2520 = vadd.f32 0.0, %v2519
  %v2521 = vpop.f32.mrb[0].mxu0
  %2522 = vmatprep.mubr.f32.mxu0 0.0
  %2523 = vmatmul.mubr.f32.gmra.mrb[0].mxu0 %v677
  %v2524 = vpop.f32.mrb[0].mxu0
  %v2525 = vadd.f32 0.0, %v2524
  %v2526 = vpop.f32.mrb[0].mxu0
  %2527 = vmatprep.mubr.f32.mxu0 0.0
  %2528 = vmatmul.mubr.f32.gmra.mrb[0].mxu0 %v680
  %v2529 = vpop.f32.mrb[0].mxu0
  %v2530 = vadd.f32 0.0, %v2529
  %v2531 = vpop.f32.mrb[0].mxu0
  %2532 = vmatprep.mubr.f32.mxu0 0.0
  %2533 = vmatmul.mubr.f32.gmra.mrb[0].mxu0 %v683
  %v2534 = vpop.f32.mrb[0].mxu0
  %v2535 = vadd.f32 0.0, %v2534
  %v2536 = vpop.f32.mrb[0].mxu0
  %2537 = vmatprep.mubr.f32.mxu0 0.0
  %2538 = vmatmul.mubr.f32.gmra.mrb[0].mxu0 %v686
  %v2539 = vpop.f32.mrb[0].mxu0
  %v2540 = vadd.f32 0.0, %v2539
  %v2541 = vpop.f32.mrb[0].mxu0
  %2542 = vmatprep.mubr.f32.mxu0 0.0
  %2543 = vmatmul.mubr.f32.gmra.mrb[0].mxu0 %v689
  %v2544 = vpop.f32.mrb[0].mxu0
  %v2545 = vadd.f32 0.0, %v2544
  %v2546 = vpop.f32.mrb[0].mxu0
  %2547 = vmatprep.mubr.f32.mxu0 0.0
  %2548 = vmatmul.mubr.f32.gmra.mrb[0].mxu0 %v692
  %v2549 = vpop.f32.mrb[0].mxu0
  %v2550 = vadd.f32 0.0, %v2549
  %v2551 = vpop.f32.mrb[0].mxu0
  %2552 = vmatprep.mubr.f32.mxu0 0.0
  %2553 = vmatmul.mubr.f32.gmra.mrb[0].mxu0 %v695
  %v2554 = vpop.f32.mrb[0].mxu0
  %v2555 = vadd.f32 0.0, %v2554
  %v2556 = vpop.f32.mrb[0].mxu0
  %2557 = vmatprep.mubr.f32.mxu0 0.0
  %2558 = vmatmul.mubr.f32.gmra.mrb[0].mxu0 %v698
  %v2559 = vpop.f32.mrb[0].mxu0
  %v2560 = vadd.f32 0.0, %v2559
  %v2561 = vpop.f32.mrb[0].mxu0
  %2562 = vmatprep.mubr.f32.mxu0 0.0
  %2563 = vmatmul.mubr.f32.gmra.mrb[0].mxu0 %v701
  %v2564 = vpop.f32.mrb[0].mxu0
  %v2565 = vadd.f32 0.0, %v2564
  %v2566 = vpop.f32.mrb[0].mxu0
  %2567 = vmatprep.mubr.f32.mxu0 0.0
  %2568 = vmatmul.mubr.f32.gmra.mrb[0].mxu0 %v704
  %v2569 = vpop.f32.mrb[0].mxu0
  %v2570 = vadd.f32 0.0, %v2569
  %v2571 = vpop.f32.mrb[0].mxu0
  %2572 = vmatprep.mubr.f32.mxu0 0.0
  %2573 = vmatmul.mubr.f32.gmra.mrb[0].mxu0 %v707
  %v2574 = vpop.f32.mrb[0].mxu0
  %v2575 = vadd.f32 0.0, %v2574
  %v2576 = vpop.f32.mrb[0].mxu0
  %2577 = vmatprep.mubr.f32.mxu0 0.0
  %2578 = vmatmul.mubr.f32.gmra.mrb[0].mxu0 %v710
  %v2579 = vpop.f32.mrb[0].mxu0
  %v2580 = vadd.f32 0.0, %v2579
  %v2581 = vpop.f32.mrb[0].mxu0
  %2582 = vmatprep.mubr.f32.mxu0 0.0
  %2583 = vmatmul.mubr.f32.gmra.mrb[0].mxu0 %v713
  %v2584 = vpop.f32.mrb[0].mxu0
  %v2585 = vadd.f32 0.0, %v2584
  %v2586 = vpop.f32.mrb[0].mxu0
  %2587 = vmatprep.mubr.f32.mxu0 0.0
  %2588 = vmatmul.mubr.f32.gmra.mrb[0].mxu0 %v716
  %v2589 = vpop.f32.mrb[0].mxu0
  %v2590 = vadd.f32 0.0, %v2589
  %v2591 = vpop.f32.mrb[0].mxu0
  %2592 = vmatprep.mubr.f32.mxu0 0.0
  %2593 = vmatmul.mubr.f32.gmra.mrb[0].mxu0 %v719
  %v2594 = vpop.f32.mrb[0].mxu0
  %v2595 = vadd.f32 0.0, %v2594
  %v2596 = vpop.f32.mrb[0].mxu0
  %2597 = vmatprep.mubr.f32.mxu0 0.0
  %2598 = vmatmul.mubr.f32.gmra.mrb[0].mxu0 %v722
  %v2599 = vpop.f32.mrb[0].mxu0
  %v2600 = vadd.f32 0.0, %v2599
  %v2601 = vpop.f32.mrb[0].mxu0
  %2602 = vmatprep.mubr.f32.mxu0 0.0
  %2603 = vmatmul.mubr.f32.gmra.mrb[0].mxu0 %v725
  %v2604 = vpop.f32.mrb[0].mxu0
  %v2605 = vadd.f32 0.0, %v2604
  %v2606 = vpop.f32.mrb[0].mxu0
  %2607 = vmatprep.mubr.f32.mxu0 0.0
  %2608 = vmatmul.mubr.f32.gmra.mrb[0].mxu0 %v728
  %v2609 = vpop.f32.mrb[0].mxu0
  %v2610 = vadd.f32 0.0, %v2609
  %v2611 = vpop.f32.mrb[0].mxu0
  %2612 = vmatprep.mubr.f32.mxu0 0.0
  %2613 = vmatmul.mubr.f32.gmra.mrb[0].mxu0 %v731
  %v2614 = vpop.f32.mrb[0].mxu0
  %v2615 = vadd.f32 0.0, %v2614
  %v2616 = vpop.f32.mrb[0].mxu0
  %2617 = vmatprep.mubr.f32.mxu0 0.0
  %2618 = vmatmul.mubr.f32.gmra.mrb[0].mxu0 %v734
  %v2619 = vpop.f32.mrb[0].mxu0
  %v2620 = vadd.f32 0.0, %v2619
  %v2621 = vpop.f32.mrb[0].mxu0
  %2622 = vmatprep.mubr.f32.mxu0 0.0
  %2623 = vmatmul.mubr.f32.gmra.mrb[0].mxu0 %v737
  %v2624 = vpop.f32.mrb[0].mxu0
  %v2625 = vadd.f32 0.0, %v2624
  %v2626 = vpop.f32.mrb[0].mxu0
  %2627 = vmatprep.mubr.f32.mxu0 0.0
  %2628 = vmatmul.mubr.f32.gmra.mrb[0].mxu0 %v740
  %v2629 = vpop.f32.mrb[0].mxu0
  %v2630 = vadd.f32 0.0, %v2629
  %v2631 = vpop.f32.mrb[0].mxu0
  %2632 = vmatprep.mubr.f32.mxu0 0.0
  %2633 = vmatmul.mubr.f32.gmra.mrb[0].mxu0 %v743
  %v2634 = vpop.f32.mrb[0].mxu0
  %v2635 = vadd.f32 0.0, %v2634
  %v2636 = vpop.f32.mrb[0].mxu0
  %2637 = vmatprep.mubr.f32.mxu0 0.0
  %2638 = vmatmul.mubr.f32.gmra.mrb[0].mxu0 %v746
  %v2639 = vpop.f32.mrb[0].mxu0
  %v2640 = vadd.f32 0.0, %v2639
  %v2641 = vpop.f32.mrb[0].mxu0
  %2642 = vmatprep.mubr.f32.mxu0 0.0
  %2643 = vmatmul.mubr.f32.gmra.mrb[0].mxu0 %v749
  %v2644 = vpop.f32.mrb[0].mxu0
  %v2645 = vadd.f32 0.0, %v2644
  %v2646 = vpop.f32.mrb[0].mxu0
  %2647 = vmatprep.mubr.f32.mxu0 0.0
  %2648 = vmatmul.mubr.f32.gmra.mrb[0].mxu0 %v752
  %v2649 = vpop.f32.mrb[0].mxu0
  %v2650 = vadd.f32 0.0, %v2649
  %v2651 = vpop.f32.mrb[0].mxu0
  %2652 = vmatprep.mubr.f32.mxu0 0.0
  %2653 = vmatmul.mubr.f32.gmra.mrb[0].mxu0 %v755
  %v2654 = vpop.f32.mrb[0].mxu0
  %v2655 = vadd.f32 0.0, %v2654
  %v2656 = vpop.f32.mrb[0].mxu0
  %2657 = vmatprep.mubr.f32.mxu0 0.0
  %2658 = vmatmul.mubr.f32.gmra.mrb[0].mxu0 %v758
  %v2659 = vpop.f32.mrb[0].mxu0
  %v2660 = vadd.f32 0.0, %v2659
  %v2661 = vpop.f32.mrb[0].mxu0
  %2662 = vmatprep.mubr.f32.mxu0 0.0
  %2663 = vmatmul.mubr.f32.gmra.mrb[0].mxu0 %v761
  %v2664 = vpop.f32.mrb[0].mxu0
  %v2665 = vadd.f32 0.0, %v2664
  %v2666 = vpop.f32.mrb[0].mxu0
  %2667 = vmatprep.mubr.f32.mxu0 0.0
  %2668 = vmatmul.mubr.f32.gmra.mrb[0].mxu0 %v764
  %v2669 = vpop.f32.mrb[0].mxu0
  %v2670 = vadd.f32 0.0, %v2669
  %v2671 = vpop.f32.mrb[0].mxu0
  %2672 = vmatprep.mubr.f32.mxu0 0.0
  %2673 = vmatmul.mubr.f32.gmra.mrb[0].mxu0 %v767
  %v2674 = vpop.f32.mrb[0].mxu0
  %v2675 = vadd.f32 0.0, %v2674
  %v2676 = vpop.f32.mrb[0].mxu0
  %2677 = vmatprep.mubr.f32.mxu0 0.0
  %2678 = vmatmul.mubr.f32.gmra.mrb[0].mxu0 %v770
  %v2679 = vpop.f32.mrb[0].mxu0
  %v2680 = vadd.f32 0.0, %v2679
  %v2681 = vpop.f32.mrb[0].mxu0
  %2682 = vmatprep.mubr.f32.mxu0 0.0
  %2683 = vmatmul.mubr.f32.gmra.mrb[0].mxu0 %v773
  %v2684 = vpop.f32.mrb[0].mxu0
  %v2685 = vadd.f32 0.0, %v2684
  %v2686 = vpop.f32.mrb[0].mxu0
  %2687 = vmatprep.mubr.f32.mxu0 0.0
  %2688 = vmatmul.mubr.f32.gmra.mrb[0].mxu0 %v776
  %v2689 = vpop.f32.mrb[0].mxu0
  %v2690 = vadd.f32 0.0, %v2689
  %v2691 = vpop.f32.mrb[0].mxu0
  %2692 = vmatprep.mubr.f32.mxu0 0.0
  %2693 = vmatmul.mubr.f32.gmra.mrb[0].mxu0 %v779
  %v2694 = vpop.f32.mrb[0].mxu0
  %v2695 = vadd.f32 0.0, %v2694
  %v2696 = vpop.f32.mrb[0].mxu0
  %2697 = vmatprep.mubr.f32.mxu0 0.0
  %2698 = vmatmul.mubr.f32.gmra.mrb[0].mxu0 %v782
  %v2699 = vpop.f32.mrb[0].mxu0
  %v2700 = vadd.f32 0.0, %v2699
  %v2701 = vpop.f32.mrb[0].mxu0
  %2702 = vmatprep.mubr.f32.mxu0 0.0
  %2703 = vmatmul.mubr.f32.gmra.mrb[0].mxu0 %v785
  %v2704 = vpop.f32.mrb[0].mxu0
  %v2705 = vadd.f32 0.0, %v2704
  %v2706 = vpop.f32.mrb[0].mxu0
  %2707 = vmatprep.mubr.f32.mxu0 0.0
  %2708 = vmatmul.mubr.f32.gmra.mrb[0].mxu0 %v788
  %v2709 = vpop.f32.mrb[0].mxu0
  %v2710 = vadd.f32 0.0, %v2709
  %v2711 = vpop.f32.mrb[0].mxu0
  %2712 = vmatprep.mubr.f32.mxu0 0.0
  %2713 = vmatmul.mubr.f32.gmra.mrb[0].mxu0 %v791
  %v2714 = vpop.f32.mrb[0].mxu0
  %v2715 = vadd.f32 0.0, %v2714
  %v2716 = vpop.f32.mrb[0].mxu0
  %2717 = vmatprep.mubr.f32.mxu0 0.0
  %2718 = vmatmul.mubr.f32.gmra.mrb[0].mxu0 %v794
  %v2719 = vpop.f32.mrb[0].mxu0
  %v2720 = vadd.f32 0.0, %v2719
  %v2721 = vpop.f32.mrb[0].mxu0
  %2722 = vmatprep.mubr.f32.mxu0 0.0
  %2723 = vmatmul.mubr.f32.gmra.mrb[0].mxu0 %v797
  %v2724 = vpop.f32.mrb[0].mxu0
  %v2725 = vadd.f32 0.0, %v2724
  %v2726 = vpop.f32.mrb[0].mxu0
  %2727 = vmatprep.mubr.f32.mxu0 0.0
  %2728 = vmatmul.mubr.f32.gmra.mrb[0].mxu0 %v800
  %v2729 = vpop.f32.mrb[0].mxu0
  %v2730 = vadd.f32 0.0, %v2729
  %v2731 = vpop.f32.mrb[0].mxu0
  %2732 = vmatprep.mubr.f32.mxu0 0.0
  %2733 = vmatmul.mubr.f32.gmra.mrb[0].mxu0 %v803
  %v2734 = vpop.f32.mrb[0].mxu0
  %v2735 = vadd.f32 0.0, %v2734
  %v2736 = vpop.f32.mrb[0].mxu0
  %2737 = vmatprep.mubr.f32.mxu0 0.0
  %2738 = vmatmul.mubr.f32.gmra.mrb[0].mxu0 %v806
  %v2739 = vpop.f32.mrb[0].mxu0
  %v2740 = vadd.f32 0.0, %v2739
  %v2741 = vpop.f32.mrb[0].mxu0
  %2742 = vmatprep.mubr.f32.mxu0 0.0
  %2743 = vmatmul.mubr.f32.gmra.mrb[0].mxu0 %v809
  %v2744 = vpop.f32.mrb[0].mxu0
  %v2745 = vadd.f32 0.0, %v2744
  %v2746 = vpop.f32.mrb[0].mxu0
  %2747 = vmatprep.mubr.f32.mxu0 0.0
  %2748 = vmatmul.mubr.f32.gmra.mrb[0].mxu0 %v812
  %v2749 = vpop.f32.mrb[0].mxu0
  %v2750 = vadd.f32 0.0, %v2749
  %v2751 = vpop.f32.mrb[0].mxu0
  %2752 = vmatprep.mubr.f32.mxu0 0.0
  %2753 = vmatmul.mubr.f32.gmra.mrb[0].mxu0 %v815
  %v2754 = vpop.f32.mrb[0].mxu0
  %v2755 = vadd.f32 0.0, %v2754
  %v2756 = vpop.f32.mrb[0].mxu0
  %2757 = vmatprep.mubr.f32.mxu0 0.0
  %2758 = vmatmul.mubr.f32.gmra.mrb[0].mxu0 %v818
  %v2759 = vpop.f32.mrb[0].mxu0
  %v2760 = vadd.f32 0.0, %v2759
  %v2761 = vpop.f32.mrb[0].mxu0
  %2762 = vmatprep.mubr.f32.mxu0 0.0
  %2763 = vmatmul.mubr.f32.gmra.mrb[0].mxu0 %v821
  %v2764 = vpop.f32.mrb[0].mxu0
  %v2765 = vadd.f32 0.0, %v2764
  %v2766 = vpop.f32.mrb[0].mxu0
  %2767 = vmatprep.mubr.f32.mxu0 0.0
  %2768 = vmatmul.mubr.f32.gmra.mrb[0].mxu0 %v824
  %v2769 = vpop.f32.mrb[0].mxu0
  %v2770 = vadd.f32 0.0, %v2769
  %v2771 = vpop.f32.mrb[0].mxu0
  %2772 = vmatprep.mubr.f32.mxu0 0.0
  %2773 = vmatmul.mubr.f32.gmra.mrb[0].mxu0 %v827
  %v2774 = vpop.f32.mrb[0].mxu0
  %v2775 = vadd.f32 0.0, %v2774
  %v2776 = vpop.f32.mrb[0].mxu0
  %2777 = vmatprep.mubr.f32.mxu0 0.0
  %2778 = vmatmul.mubr.f32.gmra.mrb[0].mxu0 %v830
  %v2779 = vpop.f32.mrb[0].mxu0
  %v2780 = vadd.f32 0.0, %v2779
  %v2781 = vpop.f32.mrb[0].mxu0
  %2782 = vmatprep.mubr.f32.mxu0 0.0
  %2783 = vmatmul.mubr.f32.gmra.mrb[0].mxu0 %v833
  %v2784 = vpop.f32.mrb[0].mxu0
  %v2785 = vadd.f32 0.0, %v2784
  %v2786 = vpop.f32.mrb[0].mxu0
  %2787 = vmatprep.mubr.f32.mxu0 0.0
  %2788 = vmatmul.mubr.f32.gmra.mrb[0].mxu0 %v836
  %v2789 = vpop.f32.mrb[0].mxu0
  %v2790 = vadd.f32 0.0, %v2789
  %v2791 = vpop.f32.mrb[0].mxu0
  %2792 = vmatprep.mubr.f32.mxu0 0.0
  %2793 = vmatmul.mubr.f32.gmra.mrb[0].mxu0 %v839
  %v2794 = vpop.f32.mrb[0].mxu0
  %v2795 = vadd.f32 0.0, %v2794
  %v2796 = vpop.f32.mrb[0].mxu0
  %2797 = vmatprep.mubr.f32.mxu0 0.0
  %2798 = vmatmul.mubr.f32.gmra.mrb[0].mxu0 %v842
  %v2799 = vpop.f32.mrb[0].mxu0
  %v2800 = vadd.f32 0.0, %v2799
  %v2801 = vpop.f32.mrb[0].mxu0
  %2802 = vmatprep.mubr.f32.mxu0 0.0
  %2803 = vmatmul.mubr.f32.gmra.mrb[0].mxu0 %v845
  %v2804 = vpop.f32.mrb[0].mxu0
  %v2805 = vadd.f32 0.0, %v2804
  %v2806 = vpop.f32.mrb[0].mxu0
  %2807 = vmatprep.mubr.f32.mxu0 0.0
  %2808 = vmatmul.mubr.f32.gmra.mrb[0].mxu0 %v848
  %v2809 = vpop.f32.mrb[0].mxu0
  %v2810 = vadd.f32 0.0, %v2809
  %v2811 = vpop.f32.mrb[0].mxu0
  %2812 = vmatprep.mubr.f32.mxu0 0.0
  %2813 = vmatmul.mubr.f32.gmra.mrb[0].mxu0 %v851
  %v2814 = vpop.f32.mrb[0].mxu0
  %v2815 = vadd.f32 0.0, %v2814
  %v2816 = vpop.f32.mrb[0].mxu0
  %2817 = vmatprep.mubr.f32.mxu0 0.0
  %2818 = vmatmul.mubr.f32.gmra.mrb[0].mxu0 %v854
  %v2819 = vpop.f32.mrb[0].mxu0
  %v2820 = vadd.f32 0.0, %v2819
  %v2821 = vpop.f32.mrb[0].mxu0
  %2822 = vmatprep.mubr.f32.mxu0 0.0
  %2823 = vmatmul.mubr.f32.gmra.mrb[0].mxu0 %v857
  %v2824 = vpop.f32.mrb[0].mxu0
  %v2825 = vadd.f32 0.0, %v2824
  %v2826 = vpop.f32.mrb[0].mxu0
  %2827 = vmatprep.mubr.f32.mxu0 0.0
  %2828 = vmatmul.mubr.f32.gmra.mrb[0].mxu0 %v860
  %v2829 = vpop.f32.mrb[0].mxu0
  %v2830 = vadd.f32 0.0, %v2829
  %v2831 = vpop.f32.mrb[0].mxu0
  %2832 = vmatprep.mubr.f32.mxu0 0.0
  %2833 = vmatmul.mubr.f32.gmra.mrb[0].mxu0 %v863
  %v2834 = vpop.f32.mrb[0].mxu0
  %v2835 = vadd.f32 0.0, %v2834
  %v2836 = vpop.f32.mrb[0].mxu0
  %2837 = vmatprep.mubr.f32.mxu0 0.0
  %2838 = vmatmul.mubr.f32.gmra.mrb[0].mxu0 %v866
  %v2839 = vpop.f32.mrb[0].mxu0
  %v2840 = vadd.f32 0.0, %v2839
  %v2841 = vpop.f32.mrb[0].mxu0
  %2842 = vmatprep.mubr.f32.mxu0 0.0
  %2843 = vmatmul.mubr.f32.gmra.mrb[0].mxu0 %v869
  %v2844 = vpop.f32.mrb[0].mxu0
  %v2845 = vadd.f32 0.0, %v2844
  %v2846 = vpop.f32.mrb[0].mxu0
  %2847 = vmatprep.mubr.f32.mxu0 0.0
  %2848 = vmatmul.mubr.f32.gmra.mrb[0].mxu0 %v872
  %v2849 = vpop.f32.mrb[0].mxu0
  %v2850 = vadd.f32 0.0, %v2849
  %v2851 = vpop.f32.mrb[0].mxu0
  %2852 = vmatprep.mubr.f32.mxu0 0.0
  %2853 = vmatmul.mubr.f32.gmra.mrb[0].mxu0 %v875
  %v2854 = vpop.f32.mrb[0].mxu0
  %v2855 = vadd.f32 0.0, %v2854
  %v2856 = vpop.f32.mrb[0].mxu0
  %2857 = vmatprep.mubr.f32.mxu0 0.0
  %2858 = vmatmul.mubr.f32.gmra.mrb[0].mxu0 %v878
  %v2859 = vpop.f32.mrb[0].mxu0
  %v2860 = vadd.f32 0.0, %v2859
  %v2861 = vpop.f32.mrb[0].mxu0
  %2862 = vmatprep.mubr.f32.mxu0 0.0
  %2863 = vmatmul.mubr.f32.gmra.mrb[0].mxu0 %v881
  %v2864 = vpop.f32.mrb[0].mxu0
  %v2865 = vadd.f32 0.0, %v2864
  %v2866 = vpop.f32.mrb[0].mxu0
  %2867 = vmatprep.mubr.f32.mxu0 0.0
  %2868 = vmatmul.mubr.f32.gmra.mrb[0].mxu0 %v884
  %v2869 = vpop.f32.mrb[0].mxu0
  %v2870 = vadd.f32 0.0, %v2869
  %v2871 = vpop.f32.mrb[0].mxu0
  %2872 = vmatprep.mubr.f32.mxu0 0.0
  %2873 = vmatmul.mubr.f32.gmra.mrb[0].mxu0 %v887
  %v2874 = vpop.f32.mrb[0].mxu0
  %v2875 = vadd.f32 0.0, %v2874
  %v2876 = vpop.f32.mrb[0].mxu0
  %2877 = vmatprep.mubr.f32.mxu0 0.0
  %2878 = vmatmul.mubr.f32.gmra.mrb[0].mxu0 %v890
  %v2879 = vpop.f32.mrb[0].mxu0
  %v2880 = vadd.f32 0.0, %v2879
  %v2881 = vpop.f32.mrb[0].mxu0
  %2882 = vmatprep.mubr.f32.mxu0 0.0
  %2883 = vmatmul.mubr.f32.gmra.mrb[0].mxu0 %v893
  %v2884 = vpop.f32.mrb[0].mxu0
  %v2885 = vadd.f32 0.0, %v2884
  %v2886 = vpop.f32.mrb[0].mxu0
  %2887 = vmatprep.mubr.f32.mxu0 0.0
  %2888 = vmatmul.mubr.f32.gmra.mrb[0].mxu0 %v896
  %v2889 = vpop.f32.mrb[0].mxu0
  %v2890 = vadd.f32 0.0, %v2889
  %v2891 = vpop.f32.mrb[0].mxu0
  %2892 = vmatprep.mubr.f32.mxu0 0.0
  %2893 = vmatmul.mubr.f32.gmra.mrb[0].mxu0 %v899
  %v2894 = vpop.f32.mrb[0].mxu0
  %v2895 = vadd.f32 0.0, %v2894
  %v2896 = vpop.f32.mrb[0].mxu0
  %2897 = vmatprep.mubr.f32.mxu0 0.0
  %2898 = vmatmul.mubr.f32.gmra.mrb[0].mxu0 %v902
  %v2899 = vpop.f32.mrb[0].mxu0
  %v2900 = vadd.f32 0.0, %v2899
  %v2901 = vpop.f32.mrb[0].mxu0
  %2902 = vmatprep.mubr.f32.mxu0 0.0
  %2903 = vmatmul.mubr.f32.gmra.mrb[0].mxu0 %v905
  %v2904 = vpop.f32.mrb[0].mxu0
  %v2905 = vadd.f32 0.0, %v2904
  %v2906 = vpop.f32.mrb[0].mxu0
  %2907 = vmatprep.mubr.f32.mxu0 0.0
  %2908 = vmatmul.mubr.f32.gmra.mrb[0].mxu0 %v908
  %v2909 = vpop.f32.mrb[0].mxu0
  %v2910 = vadd.f32 0.0, %v2909
  %v2911 = vpop.f32.mrb[0].mxu0
  %2912 = vmatprep.mubr.f32.mxu0 0.0
  %2913 = vmatmul.mubr.f32.gmra.mrb[0].mxu0 %v911
  %v2914 = vpop.f32.mrb[0].mxu0
  %v2915 = vadd.f32 0.0, %v2914
  %v2916 = vpop.f32.mrb[0].mxu0
  %2917 = vmatprep.mubr.f32.mxu0 0.0
  %2918 = vmatmul.mubr.f32.gmra.mrb[0].mxu0 %v914
  %v2919 = vpop.f32.mrb[0].mxu0
  %v2920 = vadd.f32 0.0, %v2919
  %v2921 = vpop.f32.mrb[0].mxu0
  %2922 = vmatprep.mubr.f32.mxu0 0.0
  %2923 = vmatmul.mubr.f32.gmra.mrb[0].mxu0 %v917
  %v2924 = vpop.f32.mrb[0].mxu0
  %v2925 = vadd.f32 0.0, %v2924
  %v2926 = vpop.f32.mrb[0].mxu0
  %2927 = vmatprep.mubr.f32.mxu0 0.0
  %2928 = vmatmul.mubr.f32.gmra.mrb[0].mxu0 %v920
  %v2929 = vpop.f32.mrb[0].mxu0
  %v2930 = vadd.f32 0.0, %v2929
  %v2931 = vpop.f32.mrb[0].mxu0
  %2932 = vmatprep.mubr.f32.mxu0 0.0
  %2933 = vmatmul.mubr.f32.gmra.mrb[0].mxu0 %v923
  %v2934 = vpop.f32.mrb[0].mxu0
  %v2935 = vadd.f32 0.0, %v2934
  %v2936 = vpop.f32.mrb[0].mxu0
  %2937 = vmatprep.mubr.f32.mxu0 0.0
  %2938 = vmatmul.mubr.f32.gmra.mrb[0].mxu0 %v926
  %v2939 = vpop.f32.mrb[0].mxu0
  %v2940 = vadd.f32 0.0, %v2939
  %v2941 = vpop.f32.mrb[0].mxu0
  %2942 = vmatprep.mubr.f32.mxu0 0.0
  %2943 = vmatmul.mubr.f32.gmra.mrb[0].mxu0 %v929
  %v2944 = vpop.f32.mrb[0].mxu0
  %v2945 = vadd.f32 0.0, %v2944
  %v2946 = vpop.f32.mrb[0].mxu0
  %2947 = vmatprep.mubr.f32.mxu0 0.0
  %2948 = vmatmul.mubr.f32.gmra.mrb[0].mxu0 %v932
  %v2949 = vpop.f32.mrb[0].mxu0
  %v2950 = vadd.f32 0.0, %v2949
  %v2951 = vpop.f32.mrb[0].mxu0
  %2952 = vmatprep.mubr.f32.mxu0 0.0
  %2953 = vmatmul.mubr.f32.gmra.mrb[0].mxu0 %v935
  %v2954 = vpop.f32.mrb[0].mxu0
  %v2955 = vadd.f32 0.0, %v2954
  %v2956 = vpop.f32.mrb[0].mxu0
  %2957 = vmatprep.mubr.f32.mxu0 0.0
  %2958 = vmatmul.mubr.f32.gmra.mrb[0].mxu0 %v938
  %v2959 = vpop.f32.mrb[0].mxu0
  %v2960 = vadd.f32 0.0, %v2959
  %v2961 = vpop.f32.mrb[0].mxu0
  %2962 = vmatprep.mubr.f32.mxu0 0.0
  %2963 = vmatmul.mubr.f32.gmra.mrb[0].mxu0 %v941
  %v2964 = vpop.f32.mrb[0].mxu0
  %v2965 = vadd.f32 0.0, %v2964
  %v2966 = vpop.f32.mrb[0].mxu0
  %2967 = vmatprep.mubr.f32.mxu0 0.0
  %2968 = vmatmul.mubr.f32.gmra.mrb[0].mxu0 %v944
  %v2969 = vpop.f32.mrb[0].mxu0
  %v2970 = vadd.f32 0.0, %v2969
  %v2971 = vpop.f32.mrb[0].mxu0
  %2972 = vmatprep.mubr.f32.mxu0 0.0
  %2973 = vmatmul.mubr.f32.gmra.mrb[0].mxu0 %v947
  %v2974 = vpop.f32.mrb[0].mxu0
  %v2975 = vadd.f32 0.0, %v2974
  %v2976 = vpop.f32.mrb[0].mxu0
  %2977 = vmatprep.mubr.f32.mxu0 0.0
  %2978 = vmatmul.mubr.f32.gmra.mrb[0].mxu0 %v950
  %v2979 = vpop.f32.mrb[0].mxu0
  %v2980 = vadd.f32 0.0, %v2979
  %v2981 = vpop.f32.mrb[0].mxu0
  %2982 = vmatprep.mubr.f32.mxu0 0.0
  %2983 = vmatmul.mubr.f32.gmra.mrb[0].mxu0 %v953
  %v2984 = vpop.f32.mrb[0].mxu0
  %v2985 = vadd.f32 0.0, %v2984
  %v2986 = vpop.f32.mrb[0].mxu0
  %2987 = vmatprep.mubr.f32.mxu0 0.0
  %2988 = vmatmul.mubr.f32.gmra.mrb[0].mxu0 %v956
  %v2989 = vpop.f32.mrb[0].mxu0
  %v2990 = vadd.f32 0.0, %v2989
  %v2991 = vpop.f32.mrb[0].mxu0
  %2992 = vmatprep.mubr.f32.mxu0 0.0
  %2993 = vmatmul.mubr.f32.gmra.mrb[0].mxu0 %v959
  %v2994 = vpop.f32.mrb[0].mxu0
  %v2995 = vadd.f32 0.0, %v2994
  %v2996 = vpop.f32.mrb[0].mxu0
  %2997 = vmatprep.mubr.f32.mxu0 0.0
  %2998 = vmatmul.mubr.f32.gmra.mrb[0].mxu0 %v962
  %v2999 = vpop.f32.mrb[0].mxu0
  %v3000 = vadd.f32 0.0, %v2999
  %v3001 = vpop.f32.mrb[0].mxu0
  %3002 = vmatprep.mubr.f32.mxu0 0.0
  %3003 = vmatmul.mubr.f32.gmra.mrb[0].mxu0 %v965
  %v3004 = vpop.f32.mrb[0].mxu0
  %v3005 = vadd.f32 0.0, %v3004
  %v3006 = vpop.f32.mrb[0].mxu0
  %3007 = vmatprep.mubr.f32.mxu0 0.0
  %3008 = vmatmul.mubr.f32.gmra.mrb[0].mxu0 %v968
  %v3009 = vpop.f32.mrb[0].mxu0
  %v3010 = vadd.f32 0.0, %v3009
  %v3011 = vpop.f32.mrb[0].mxu0
  %3012 = vmatprep.mubr.f32.mxu0 0.0
  %3013 = vmatmul.mubr.f32.gmra.mrb[0].mxu0 %v971
  %v3014 = vpop.f32.mrb[0].mxu0
  %v3015 = vadd.f32 0.0, %v3014
  %v3016 = vpop.f32.mrb[0].mxu0
  %3017 = vmatprep.mubr.f32.mxu0 0.0
  %3018 = vmatmul.mubr.f32.gmra.mrb[0].mxu0 %v974
  %v3019 = vpop.f32.mrb[0].mxu0
  %v3020 = vadd.f32 0.0, %v3019
  %v3021 = vpop.f32.mrb[0].mxu0
  %3022 = vmatprep.mubr.f32.mxu0 0.0
  %3023 = vmatmul.mubr.f32.gmra.mrb[0].mxu0 %v977
  %v3024 = vpop.f32.mrb[0].mxu0
  %v3025 = vadd.f32 0.0, %v3024
  %v3026 = vpop.f32.mrb[0].mxu0
  %3027 = vmatprep.mubr.f32.mxu0 0.0
  %3028 = vmatmul.mubr.f32.gmra.mrb[0].mxu0 %v980
  %v3029 = vpop.f32.mrb[0].mxu0
  %v3030 = vadd.f32 0.0, %v3029
  %v3031 = vpop.f32.mrb[0].mxu0
  %3032 = vmatprep.mubr.f32.mxu0 0.0
  %3033 = vmatmul.mubr.f32.gmra.mrb[0].mxu0 %v983
  %v3034 = vpop.f32.mrb[0].mxu0
  %v3035 = vadd.f32 0.0, %v3034
  %v3036 = vpop.f32.mrb[0].mxu0
  %3037 = vmatprep.mubr.f32.mxu0 0.0
  %3038 = vmatmul.mubr.f32.gmra.mrb[0].mxu0 %v986
  %v3039 = vpop.f32.mrb[0].mxu0
  %v3040 = vadd.f32 0.0, %v3039
  %v3041 = vpop.f32.mrb[0].mxu0
  %3042 = vmatprep.mubr.f32.mxu0 0.0
  %3043 = vmatmul.mubr.f32.gmra.mrb[0].mxu0 %v989
  %v3044 = vpop.f32.mrb[0].mxu0
  %v3045 = vadd.f32 0.0, %v3044
  %v3046 = vpop.f32.mrb[0].mxu0
  %3047 = vmatprep.mubr.f32.mxu0 0.0
  %3048 = vmatmul.mubr.f32.gmra.mrb[0].mxu0 %v992
  %v3049 = vpop.f32.mrb[0].mxu0
  %v3050 = vadd.f32 0.0, %v3049
  %v3051 = vpop.f32.mrb[0].mxu0
  %3052 = vmatprep.mubr.f32.mxu0 0.0
  %3053 = vmatmul.mubr.f32.gmra.mrb[0].mxu0 %v995
  %v3054 = vpop.f32.mrb[0].mxu0
  %v3055 = vadd.f32 0.0, %v3054
  %v3056 = vpop.f32.mrb[0].mxu0
  %3057 = vmatprep.mubr.f32.mxu0 0.0
  %3058 = vmatmul.mubr.f32.gmra.mrb[0].mxu0 %v998
  %v3059 = vpop.f32.mrb[0].mxu0
  %v3060 = vadd.f32 0.0, %v3059
  %v3061 = vpop.f32.mrb[0].mxu0
  %3062 = vmatprep.mubr.f32.mxu0 0.0
  %3063 = vmatmul.mubr.f32.gmra.mrb[0].mxu0 %v1001
  %v3064 = vpop.f32.mrb[0].mxu0
  %v3065 = vadd.f32 0.0, %v3064
  %v3066 = vpop.f32.mrb[0].mxu0
  %3067 = vmatprep.mubr.f32.mxu0 0.0
  %3068 = vmatmul.mubr.f32.gmra.mrb[0].mxu0 %v1004
  %v3069 = vpop.f32.mrb[0].mxu0
  %v3070 = vadd.f32 0.0, %v3069
  %v3071 = vpop.f32.mrb[0].mxu0
  %3072 = vmatprep.mubr.f32.mxu0 0.0
  %3073 = vmatmul.mubr.f32.gmra.mrb[0].mxu0 %v1007
  %v3074 = vpop.f32.mrb[0].mxu0
  %v3075 = vadd.f32 0.0, %v3074
  %v3076 = vpop.f32.mrb[0].mxu0
  %3077 = vmatprep.mubr.f32.mxu0 0.0
  %3078 = vmatmul.mubr.f32.gmra.mrb[0].mxu0 %v1010
  %v3079 = vpop.f32.mrb[0].mxu0
  %v3080 = vadd.f32 0.0, %v3079
  %v3081 = vpop.f32.mrb[0].mxu0
  %3082 = vmatprep.mubr.f32.mxu0 0.0
  %3083 = vmatmul.mubr.f32.gmra.mrb[0].mxu0 %v1013
  %v3084 = vpop.f32.mrb[0].mxu0
  %v3085 = vadd.f32 0.0, %v3084
  %v3086 = vpop.f32.mrb[0].mxu0
  %3087 = vmatprep.mubr.f32.mxu0 0.0
  %3088 = vmatmul.mubr.f32.gmra.mrb[0].mxu0 %v1016
  %v3089 = vpop.f32.mrb[0].mxu0
  %v3090 = vadd.f32 0.0, %v3089
  %v3091 = vpop.f32.mrb[0].mxu0
  %3092 = vmatprep.mubr.f32.mxu0 0.0
  %3093 = vmatmul.mubr.f32.gmra.mrb[0].mxu0 %v1019
  %v3094 = vpop.f32.mrb[0].mxu0
  %v3095 = vadd.f32 0.0, %v3094
  %v3096 = vpop.f32.mrb[0].mxu0
  %3097 = vmatprep.mubr.f32.mxu0 0.0
  %3098 = vmatmul.mubr.f32.gmra.mrb[0].mxu0 %v1022
  %v3099 = vpop.f32.mrb[0].mxu0
  %v3100 = vadd.f32 0.0, %v3099
  %v3101 = vpop.f32.mrb[0].mxu0
  %3102 = vmatprep.mubr.f32.mxu0 0.0
  %3103 = vmatmul.mubr.f32.gmra.mrb[0].mxu0 %v1025
  %v3104 = vpop.f32.mrb[0].mxu0
  %v3105 = vadd.f32 0.0, %v3104
  %v3106 = vpop.f32.mrb[0].mxu0
  %3107 = vmatprep.mubr.f32.mxu0 0.0
  %3108 = vmatmul.mubr.f32.gmra.mrb[0].mxu0 %v1028
  %v3109 = vpop.f32.mrb[0].mxu0
  %v3110 = vadd.f32 0.0, %v3109
  %v3111 = vpop.f32.mrb[0].mxu0
  %3112 = vmatprep.mubr.f32.mxu0 0.0
  %3113 = vmatmul.mubr.f32.gmra.mrb[0].mxu0 %v1031
  %v3114 = vpop.f32.mrb[0].mxu0
  %v3115 = vadd.f32 0.0, %v3114
  %v3116 = vpop.f32.mrb[0].mxu0
  %3117 = vmatprep.mubr.f32.mxu0 0.0
  %3118 = vmatmul.mubr.f32.gmra.mrb[0].mxu0 %v1034
  %v3119 = vpop.f32.mrb[0].mxu0
  %v3120 = vadd.f32 0.0, %v3119
  %v3121 = vpop.f32.mrb[0].mxu0
  %3122 = vmatprep.mubr.f32.mxu0 0.0
  %3123 = vmatmul.mubr.f32.gmra.mrb[0].mxu0 %v1037
  %v3124 = vpop.f32.mrb[0].mxu0
  %v3125 = vadd.f32 0.0, %v3124
  %v3126 = vpop.f32.mrb[0].mxu0
  %3127 = vmatprep.mubr.f32.mxu0 0.0
  %3128 = vmatmul.mubr.f32.gmra.mrb[0].mxu0 %v1040
  %v3129 = vpop.f32.mrb[0].mxu0
  %v3130 = vadd.f32 0.0, %v3129
  %v3131 = vpop.f32.mrb[0].mxu0
  %3132 = vmatprep.mubr.f32.mxu0 0.0
  %3133 = vmatmul.mubr.f32.gmra.mrb[0].mxu0 %v1043
  %v3134 = vpop.f32.mrb[0].mxu0
  %v3135 = vadd.f32 0.0, %v3134
  %v3136 = vpop.f32.mrb[0].mxu0
  %3137 = vmatprep.mubr.f32.mxu0 0.0
  %3138 = vmatmul.mubr.f32.gmra.mrb[0].mxu0 %v1046
  %v3139 = vpop.f32.mrb[0].mxu0
  %v3140 = vadd.f32 0.0, %v3139
  %v3141 = vpop.f32.mrb[0].mxu0
  %3142 = vmatprep.mubr.f32.mxu0 0.0
  %3143 = vmatmul.mubr.f32.gmra.mrb[0].mxu0 %v1049
  %v3144 = vpop.f32.mrb[0].mxu0
  %v3145 = vadd.f32 0.0, %v3144
  %v3146 = vpop.f32.mrb[0].mxu0
  %3147 = vmatprep.mubr.f32.mxu0 0.0
  %3148 = vmatmul.mubr.f32.gmra.mrb[0].mxu0 %v1052
  %v3149 = vpop.f32.mrb[0].mxu0
  %v3150 = vadd.f32 0.0, %v3149
  %v3151 = vpop.f32.mrb[0].mxu0
  %3152 = vmatprep.mubr.f32.mxu0 0.0
  %3153 = vmatmul.mubr.f32.gmra.mrb[0].mxu0 %v1055
  %v3154 = vpop.f32.mrb[0].mxu0
  %v3155 = vadd.f32 0.0, %v3154
  %v3156 = vpop.f32.mrb[0].mxu0
  %3157 = vmatprep.mubr.f32.mxu0 0.0
  %3158 = vmatmul.mubr.f32.gmra.mrb[0].mxu0 %v1058
  %v3159 = vpop.f32.mrb[0].mxu0
  %v3160 = vadd.f32 0.0, %v3159
  %v3161 = vpop.f32.mrb[0].mxu0
  %3162 = vmatprep.mubr.f32.mxu0 0.0
  %3163 = vmatmul.mubr.f32.gmra.mrb[0].mxu0 %v1061
  %v3164 = vpop.f32.mrb[0].mxu0
  %v3165 = vadd.f32 0.0, %v3164
  %v3166 = vpop.f32.mrb[0].mxu0
  %3167 = vmatprep.mubr.f32.mxu0 0.0
  %3168 = vmatmul.mubr.f32.gmra.mrb[0].mxu0 %v1064
  %v3169 = vpop.f32.mrb[0].mxu0
  %v3170 = vadd.f32 0.0, %v3169
  %v3171 = vpop.f32.mrb[0].mxu0
  %3172 = vmatprep.mubr.f32.mxu0 0.0
  %3173 = vmatmul.mubr.f32.gmra.mrb[0].mxu0 %v1067
  %v3174 = vpop.f32.mrb[0].mxu0
  %v3175 = vadd.f32 0.0, %v3174
  %v3176 = vpop.f32.mrb[0].mxu0
  %3177 = vmatprep.mubr.f32.mxu0 0.0
  %3178 = vmatmul.mubr.f32.gmra.mrb[0].mxu0 %v1070
  %v3179 = vpop.f32.mrb[0].mxu0
  %v3180 = vadd.f32 0.0, %v3179
  %v3181 = vpop.f32.mrb[0].mxu0
  %3182 = vmatprep.mubr.f32.mxu0 0.0
  %3183 = vmatmul.mubr.f32.gmra.mrb[0].mxu0 %v1073
  %v3184 = vpop.f32.mrb[0].mxu0
  %v3185 = vadd.f32 0.0, %v3184
  %v3186 = vpop.f32.mrb[0].mxu0
  %3187 = vmatprep.mubr.f32.mxu0 0.0
  %3188 = vmatmul.mubr.f32.gmra.mrb[0].mxu0 %v1076
  %v3189 = vpop.f32.mrb[0].mxu0
  %v3190 = vadd.f32 0.0, %v3189
  %v3191 = vpop.f32.mrb[0].mxu0
  %3192 = vmatprep.mubr.f32.mxu0 0.0
  %3193 = vmatmul.mubr.f32.gmra.mrb[0].mxu0 %v1079
  %v3194 = vpop.f32.mrb[0].mxu0
  %v3195 = vadd.f32 0.0, %v3194
  %v3196 = vpop.f32.mrb[0].mxu0
  %3197 = vmatprep.mubr.f32.mxu0 0.0
  %3198 = vmatmul.mubr.f32.gmra.mrb[0].mxu0 %v1082
  %v3199 = vpop.f32.mrb[0].mxu0
  %v3200 = vadd.f32 0.0, %v3199
  %v3201 = vpop.f32.mrb[0].mxu0
  %3202 = vmatprep.mubr.f32.mxu0 0.0
  %3203 = vmatmul.mubr.f32.gmra.mrb[0].mxu0 %v1085
  %v3204 = vpop.f32.mrb[0].mxu0
  %v3205 = vadd.f32 0.0, %v3204
  %v3206 = vpop.f32.mrb[0].mxu0
  %3207 = vmatprep.mubr.f32.mxu0 0.0
  %3208 = vmatmul.mubr.f32.gmra.mrb[0].mxu0 %v1088
  %v3209 = vpop.f32.mrb[0].mxu0
  %v3210 = vadd.f32 0.0, %v3209
  %v3211 = vpop.f32.mrb[0].mxu0
  %3212 = vmatprep.mubr.f32.mxu0 0.0
  %3213 = vmatmul.mubr.f32.gmra.mrb[0].mxu0 %v1091
  %v3214 = vpop.f32.mrb[0].mxu0
  %v3215 = vadd.f32 0.0, %v3214
  %v3216 = vpop.f32.mrb[0].mxu0
  %3217 = vmatprep.mubr.f32.mxu0 0.0
  %3218 = vmatmul.mubr.f32.gmra.mrb[0].mxu0 %v1094
  %v3219 = vpop.f32.mrb[0].mxu0
  %v3220 = vadd.f32 0.0, %v3219
  %v3221 = vpop.f32.mrb[0].mxu0
  %3222 = vmatprep.mubr.f32.mxu0 0.0
  %3223 = vmatmul.mubr.f32.gmra.mrb[0].mxu0 %v1097
  %v3224 = vpop.f32.mrb[0].mxu0
  %v3225 = vadd.f32 0.0, %v3224
  %v3226 = vpop.f32.mrb[0].mxu0
  %3227 = vmatprep.mubr.f32.mxu0 0.0
  %3228 = vmatmul.mubr.f32.gmra.mrb[0].mxu0 %v1100
  %v3229 = vpop.f32.mrb[0].mxu0
  %v3230 = vadd.f32 0.0, %v3229
  %v3231 = vpop.f32.mrb[0].mxu0
  %3232 = vmatprep.mubr.f32.mxu0 0.0
  %3233 = vmatmul.mubr.f32.gmra.mrb[0].mxu0 %v1103
  %v3234 = vpop.f32.mrb[0].mxu0
  %v3235 = vadd.f32 0.0, %v3234
  %v3236 = vpop.f32.mrb[0].mxu0
  %3237 = vmatprep.mubr.f32.mxu0 0.0
  %3238 = vmatmul.mubr.f32.gmra.mrb[0].mxu0 %v1106
  %v3239 = vpop.f32.mrb[0].mxu0
  %v3240 = vadd.f32 0.0, %v3239
  %v3241 = vpop.f32.mrb[0].mxu0
  %3242 = vmatprep.mubr.f32.mxu0 0.0
  %3243 = vmatmul.mubr.f32.gmra.mrb[0].mxu0 %v1109
  %v3244 = vpop.f32.mrb[0].mxu0
  %v3245 = vadd.f32 0.0, %v3244
  %v3246 = vpop.f32.mrb[0].mxu0
  %3247 = vmatprep.mubr.f32.mxu0 0.0
  %3248 = vmatmul.mubr.f32.gmra.mrb[0].mxu0 %v1112
  %v3249 = vpop.f32.mrb[0].mxu0
  %v3250 = vadd.f32 0.0, %v3249
  %v3251 = vpop.f32.mrb[0].mxu0
  %3252 = vmatprep.mubr.f32.mxu0 0.0
  %3253 = vmatmul.mubr.f32.gmra.mrb[0].mxu0 %v1115
  %v3254 = vpop.f32.mrb[0].mxu0
  %v3255 = vadd.f32 0.0, %v3254
  %v3256 = vpop.f32.mrb[0].mxu0
  %3257 = vmatprep.mubr.f32.mxu0 0.0
  %3258 = vmatmul.mubr.f32.gmra.mrb[0].mxu0 %v1118
  %v3259 = vpop.f32.mrb[0].mxu0
  %v3260 = vadd.f32 0.0, %v3259
  %v3261 = vpop.f32.mrb[0].mxu0
  %3262 = vmatprep.mubr.f32.mxu0 0.0
  %3263 = vmatmul.mubr.f32.gmra.mrb[0].mxu0 %v1121
  %v3264 = vpop.f32.mrb[0].mxu0
  %v3265 = vadd.f32 0.0, %v3264
  %v3266 = vpop.f32.mrb[0].mxu0
  %3267 = vmatprep.mubr.f32.mxu0 0.0
  %3268 = vmatmul.mubr.f32.gmra.mrb[0].mxu0 %v1124
  %v3269 = vpop.f32.mrb[0].mxu0
  %v3270 = vadd.f32 0.0, %v3269
  %v3271 = vpop.f32.mrb[0].mxu0
  %3272 = vmatprep.mubr.f32.mxu0 0.0
  %3273 = vmatmul.mubr.f32.gmra.mrb[0].mxu0 %v1127
  %v3274 = vpop.f32.mrb[0].mxu0
  %v3275 = vadd.f32 0.0, %v3274
  %v3276 = vpop.f32.mrb[0].mxu0
  %3277 = vmatprep.mubr.f32.mxu0 0.0
  %3278 = vmatmul.mubr.f32.gmra.mrb[0].mxu0 %v1130
  %v3279 = vpop.f32.mrb[0].mxu0
  %v3280 = vadd.f32 0.0, %v3279
  %v3281 = vpop.f32.mrb[0].mxu0
  %3282 = vmatprep.mubr.f32.mxu0 0.0
  %3283 = vmatmul.mubr.f32.gmra.mrb[0].mxu0 %v1133
  %v3284 = vpop.f32.mrb[0].mxu0
  %v3285 = vadd.f32 0.0, %v3284
  %v3286 = vpop.f32.mrb[0].mxu0
  %3287 = vmatprep.mubr.f32.mxu0 0.0
  %3288 = vmatmul.mubr.f32.gmra.mrb[0].mxu0 %v1136
  %v3289 = vpop.f32.mrb[0].mxu0
  %v3290 = vadd.f32 0.0, %v3289
  %v3291 = vpop.f32.mrb[0].mxu0
  %3292 = vmatprep.mubr.f32.mxu0 0.0
  %3293 = vmatmul.mubr.f32.gmra.mrb[0].mxu0 %v1139
  %v3294 = vpop.f32.mrb[0].mxu0
  %v3295 = vadd.f32 0.0, %v3294
  %v3296 = vpop.f32.mrb[0].mxu0
  %3297 = vmatprep.mubr.f32.mxu0 0.0
  %3298 = vmatmul.mubr.f32.gmra.mrb[0].mxu0 %v1142
  %v3299 = vpop.f32.mrb[0].mxu0
  %v3300 = vadd.f32 0.0, %v3299
  %v3301 = vpop.f32.mrb[0].mxu0
  %3302 = vmatprep.mubr.f32.mxu0 0.0
  %3303 = vmatmul.mubr.f32.gmra.mrb[0].mxu0 %v1145
  %v3304 = vpop.f32.mrb[0].mxu0
  %v3305 = vadd.f32 0.0, %v3304
  %v3306 = vpop.f32.mrb[0].mxu0
  %3307 = vmatprep.mubr.f32.mxu0 0.0
  %3308 = vmatmul.mubr.f32.gmra.mrb[0].mxu0 %v1148
  %v3309 = vpop.f32.mrb[0].mxu0
  %v3310 = vadd.f32 0.0, %v3309
  %v3311 = vpop.f32.mrb[0].mxu0
  %3312 = vmatprep.mubr.f32.mxu0 0.0
  %3313 = vmatmul.mubr.f32.gmra.mrb[0].mxu0 %v1151
  %v3314 = vpop.f32.mrb[0].mxu0
  %v3315 = vadd.f32 0.0, %v3314
  %v3316 = vpop.f32.mrb[0].mxu0
  %3317 = vmatprep.mubr.f32.mxu0 0.0
  %3318 = vmatmul.mubr.f32.gmra.mrb[0].mxu0 %v1154
  %v3319 = vpop.f32.mrb[0].mxu0
  %v3320 = vadd.f32 0.0, %v3319
  %v3321 = vpop.f32.mrb[0].mxu0
  %3322 = vmatprep.mubr.f32.mxu0 0.0
  %3323 = vmatmul.mubr.f32.gmra.mrb[0].mxu0 %v1157
  %v3324 = vpop.f32.mrb[0].mxu0
  %v3325 = vadd.f32 0.0, %v3324
  %v3326 = vpop.f32.mrb[0].mxu0
  %3327 = vmatprep.mubr.f32.mxu0 0.0
  %3328 = vmatmul.mubr.f32.gmra.mrb[0].mxu0 %v1160
  %v3329 = vpop.f32.mrb[0].mxu0
  %v3330 = vadd.f32 0.0, %v3329
  %v3331 = vpop.f32.mrb[0].mxu0
  %3332 = vmatprep.mubr.f32.mxu0 0.0
  %3333 = vmatmul.mubr.f32.gmra.mrb[0].mxu0 %v1163
  %v3334 = vpop.f32.mrb[0].mxu0
  %v3335 = vadd.f32 0.0, %v3334
  %v3336 = vpop.f32.mrb[0].mxu0
  %3337 = vmatprep.mubr.f32.mxu0 0.0
  %3338 = vmatmul.mubr.f32.gmra.mrb[0].mxu0 %v1166
  %v3339 = vpop.f32.mrb[0].mxu0
  %v3340 = vadd.f32 0.0, %v3339
  %v3341 = vpop.f32.mrb[0].mxu0
  %3342 = vmatprep.mubr.f32.mxu0 0.0
  %3343 = vmatmul.mubr.f32.gmra.mrb[0].mxu0 %v1169
  %v3344 = vpop.f32.mrb[0].mxu0
  %v3345 = vadd.f32 0.0, %v3344
  %v3346 = vpop.f32.mrb[0].mxu0
  %3347 = vmatprep.mubr.f32.mxu0 0.0
  %3348 = vmatmul.mubr.f32.gmra.mrb[0].mxu0 %v1172
  %v3349 = vpop.f32.mrb[0].mxu0
  %v3350 = vadd.f32 0.0, %v3349
  %v3351 = vpop.f32.mrb[0].mxu0
  %3352 = vmatprep.mubr.f32.mxu0 0.0
  %3353 = vmatmul.mubr.f32.gmra.mrb[0].mxu0 %v1175
  %v3354 = vpop.f32.mrb[0].mxu0
  %v3355 = vadd.f32 0.0, %v3354
  %v3356 = vpop.f32.mrb[0].mxu0
  %3357 = vmatprep.mubr.f32.mxu0 0.0
  %3358 = vmatmul.mubr.f32.gmra.mrb[0].mxu0 %v1178
  %v3359 = vpop.f32.mrb[0].mxu0
  %v3360 = vadd.f32 0.0, %v3359
  %v3361 = vpop.f32.mrb[0].mxu0
  %3362 = vmatprep.mubr.f32.mxu0 0.0
  %3363 = vmatmul.mubr.f32.gmra.mrb[0].mxu0 %v1181
  %v3364 = vpop.f32.mrb[0].mxu0
  %v3365 = vadd.f32 0.0, %v3364
  %v3366 = vpop.f32.mrb[0].mxu0
  %3367 = vmatprep.mubr.f32.mxu0 0.0
  %3368 = vmatmul.mubr.f32.gmra.mrb[0].mxu0 %v1184
  %v3369 = vpop.f32.mrb[0].mxu0
  %v3370 = vadd.f32 0.0, %v3369
  %v3371 = vpop.f32.mrb[0].mxu0
  %3372 = vmatprep.mubr.f32.mxu0 0.0
  %3373 = vmatmul.mubr.f32.gmra.mrb[0].mxu0 %v1187
  %v3374 = vpop.f32.mrb[0].mxu0
  %v3375 = vadd.f32 0.0, %v3374
  %v3376 = vpop.f32.mrb[0].mxu0
  %3377 = vmatprep.mubr.f32.mxu0 0.0
  %3378 = vmatmul.mubr.f32.gmra.mrb[0].mxu0 %v1190
  %v3379 = vpop.f32.mrb[0].mxu0
  %v3380 = vadd.f32 0.0, %v3379
  %v3381 = vpop.f32.mrb[0].mxu0
  %3382 = vmatprep.mubr.f32.mxu0 0.0
  %3383 = vmatmul.mubr.f32.gmra.mrb[0].mxu0 %v1193
  %v3384 = vpop.f32.mrb[0].mxu0
  %v3385 = vadd.f32 0.0, %v3384
  %v3386 = vpop.f32.mrb[0].mxu0
  %3387 = vmatprep.mubr.f32.mxu0 0.0
  %3388 = vmatmul.mubr.f32.gmra.mrb[0].mxu0 %v1196
  %v3389 = vpop.f32.mrb[0].mxu0
  %v3390 = vadd.f32 0.0, %v3389
  %v3391 = vpop.f32.mrb[0].mxu0
  %3392 = vmatprep.mubr.f32.mxu0 0.0
  %3393 = vmatmul.mubr.f32.gmra.mrb[0].mxu0 %v1199
  %v3394 = vpop.f32.mrb[0].mxu0
  %v3395 = vadd.f32 0.0, %v3394
  %v3396 = vpop.f32.mrb[0].mxu0
  %3397 = vmatprep.mubr.f32.mxu0 0.0
  %3398 = vmatmul.mubr.f32.gmra.mrb[0].mxu0 %v1202
  %v3399 = vpop.f32.mrb[0].mxu0
  %v3400 = vadd.f32 0.0, %v3399
  %v3401 = vpop.f32.mrb[0].mxu0
  %3402 = vmatprep.mubr.f32.mxu0 0.0
  %3403 = vmatmul.mubr.f32.gmra.mrb[0].mxu0 %v1205
  %v3404 = vpop.f32.mrb[0].mxu0
  %v3405 = vadd.f32 0.0, %v3404
  %v3406 = vpop.f32.mrb[0].mxu0
  %3407 = vmatprep.mubr.f32.mxu0 0.0
  %3408 = vmatmul.mubr.f32.gmra.mrb[0].mxu0 %v1208
  %v3409 = vpop.f32.mrb[0].mxu0
  %v3410 = vadd.f32 0.0, %v3409
  %v3411 = vpop.f32.mrb[0].mxu0
  %3412 = vmatprep.mubr.f32.mxu0 0.0
  %3413 = vmatmul.mubr.f32.gmra.mrb[0].mxu0 %v1211
  %v3414 = vpop.f32.mrb[0].mxu0
  %v3415 = vadd.f32 0.0, %v3414
  %v3416 = vpop.f32.mrb[0].mxu0
  %3417 = vmatprep.mubr.f32.mxu0 0.0
  %3418 = vmatmul.mubr.f32.gmra.mrb[0].mxu0 %v1214
  %v3419 = vpop.f32.mrb[0].mxu0
  %v3420 = vadd.f32 0.0, %v3419
  %v3421 = vpop.f32.mrb[0].mxu0
  %3422 = vmatprep.mubr.f32.mxu0 0.0
  %3423 = vmatmul.mubr.f32.gmra.mrb[0].mxu0 %v1217
  %v3424 = vpop.f32.mrb[0].mxu0
  %v3425 = vadd.f32 0.0, %v3424
  %v3426 = vpop.f32.mrb[0].mxu0
  %3427 = vmatprep.mubr.f32.mxu0 0.0
  %3428 = vmatmul.mubr.f32.gmra.mrb[0].mxu0 %v1220
  %v3429 = vpop.f32.mrb[0].mxu0
  %v3430 = vadd.f32 0.0, %v3429
  %v3431 = vpop.f32.mrb[0].mxu0
  %3432 = vmatprep.mubr.f32.mxu0 0.0
  %3433 = vmatmul.mubr.f32.gmra.mrb[0].mxu0 %v1223
  %v3434 = vpop.f32.mrb[0].mxu0
  %v3435 = vadd.f32 0.0, %v3434
  %v3436 = vpop.f32.mrb[0].mxu0
  %3437 = vmatprep.mubr.f32.mxu0 0.0
  %3438 = vmatmul.mubr.f32.gmra.mrb[0].mxu0 %v1226
  %v3439 = vpop.f32.mrb[0].mxu0
  %v3440 = vadd.f32 0.0, %v3439
  %v3441 = vpop.f32.mrb[0].mxu0
  %3442 = vmatprep.mubr.f32.mxu0 0.0
  %3443 = vmatmul.mubr.f32.gmra.mrb[0].mxu0 %v1229
  %v3444 = vpop.f32.mrb[0].mxu0
  %v3445 = vadd.f32 0.0, %v3444
  %v3446 = vpop.f32.mrb[0].mxu0
  %3447 = vmatprep.mubr.f32.mxu0 0.0
  %3448 = vmatmul.mubr.f32.gmra.mrb[0].mxu0 %v1232
  %v3449 = vpop.f32.mrb[0].mxu0
  %v3450 = vadd.f32 0.0, %v3449
  %v3451 = vpop.f32.mrb[0].mxu0
  %3452 = vmatprep.mubr.f32.mxu0 0.0
  %3453 = vmatmul.mubr.f32.gmra.mrb[0].mxu0 %v1235
  %v3454 = vpop.f32.mrb[0].mxu0
  %v3455 = vadd.f32 0.0, %v3454
  %v3456 = vpop.f32.mrb[0].mxu0
  %3457 = vmatprep.mubr.f32.mxu0 0.0
  %3458 = vmatmul.mubr.f32.gmra.mrb[0].mxu0 %v1238
  %v3459 = vpop.f32.mrb[0].mxu0
  %v3460 = vadd.f32 0.0, %v3459
  %v3461 = vpop.f32.mrb[0].mxu0
  %3462 = vmatprep.mubr.f32.mxu0 0.0
  %3463 = vmatmul.mubr.f32.gmra.mrb[0].mxu0 %v1241
  %v3464 = vpop.f32.mrb[0].mxu0
  %v3465 = vadd.f32 0.0, %v3464
  %v3466 = vpop.f32.mrb[0].mxu0
  %3467 = vmatprep.mubr.f32.mxu0 0.0
  %3468 = vmatmul.mubr.f32.gmra.mrb[0].mxu0 %v1244
  %v3469 = vpop.f32.mrb[0].mxu0
  %v3470 = vadd.f32 0.0, %v3469
  %v3471 = vpop.f32.mrb[0].mxu0
  %3472 = vmatprep.mubr.f32.mxu0 0.0
  %3473 = vmatmul.mubr.f32.gmra.mrb[0].mxu0 %v1247
  %v3474 = vpop.f32.mrb[0].mxu0
  %v3475 = vadd.f32 0.0, %v3474
  %v3476 = vpop.f32.mrb[0].mxu0
  %3477 = vmatprep.mubr.f32.mxu0 0.0
  %3478 = vmatmul.mubr.f32.gmra.mrb[0].mxu0 %v1250
  %v3479 = vpop.f32.mrb[0].mxu0
  %v3480 = vadd.f32 0.0, %v3479
  %v3481 = vpop.f32.mrb[0].mxu0
  %3482 = vmatprep.mubr.f32.mxu0 0.0
  %3483 = vmatmul.mubr.f32.gmra.mrb[0].mxu0 %v1253
  %v3484 = vpop.f32.mrb[0].mxu0
  %v3485 = vadd.f32 0.0, %v3484
  %v3486 = vpop.f32.mrb[0].mxu0
  %3487 = vmatprep.mubr.f32.mxu0 0.0
  %3488 = vmatmul.mubr.f32.gmra.mrb[0].mxu0 %v1256
  %v3489 = vpop.f32.mrb[0].mxu0
  %v3490 = vadd.f32 0.0, %v3489
  %v3491 = vpop.f32.mrb[0].mxu0
  %3492 = vmatprep.mubr.f32.mxu0 0.0
  %3493 = vmatmul.mubr.f32.gmra.mrb[0].mxu0 %v1259
  %v3494 = vpop.f32.mrb[0].mxu0
  %v3495 = vadd.f32 0.0, %v3494
  %v3496 = vpop.f32.mrb[0].mxu0
  %3497 = vmatprep.mubr.f32.mxu0 0.0
  %3498 = vmatmul.mubr.f32.gmra.mrb[0].mxu0 %v1262
  %v3499 = vpop.f32.mrb[0].mxu0
  %v3500 = vadd.f32 0.0, %v3499
  %v3501 = vpop.f32.mrb[0].mxu0
  %3502 = vmatprep.mubr.f32.mxu0 0.0
  %3503 = vmatmul.mubr.f32.gmra.mrb[0].mxu0 %v1265
  %v3504 = vpop.f32.mrb[0].mxu0
  %v3505 = vadd.f32 0.0, %v3504
  %v3506 = vpop.f32.mrb[0].mxu0
  %3507 = vmatprep.mubr.f32.mxu0 0.0
  %3508 = vmatmul.mubr.f32.gmra.mrb[0].mxu0 %v1268
  %v3509 = vpop.f32.mrb[0].mxu0
  %v3510 = vadd.f32 0.0, %v3509
  %v3511 = vpop.f32.mrb[0].mxu0
  %3512 = vmatprep.mubr.f32.mxu0 0.0
  %3513 = vmatmul.mubr.f32.gmra.mrb[0].mxu0 %v1271
  %v3514 = vpop.f32.mrb[0].mxu0
  %v3515 = vadd.f32 0.0, %v3514
  %v3516 = vpop.f32.mrb[0].mxu0
  %3517 = vmatprep.mubr.f32.mxu0 0.0
  %3518 = vmatmul.mubr.f32.gmra.mrb[0].mxu0 %v1274
  %v3519 = vpop.f32.mrb[0].mxu0
  %v3520 = vadd.f32 0.0, %v3519
  %v3521 = vpop.f32.mrb[0].mxu0
  %3522 = vmatprep.mubr.f32.mxu0 0.0
  %3523 = vmatmul.mubr.f32.gmra.mrb[0].mxu0 %v1277
  %v3524 = vpop.f32.mrb[0].mxu0
  %v3525 = vadd.f32 0.0, %v3524
  %v3526 = vpop.f32.mrb[0].mxu0
  %3527 = vmatprep.mubr.f32.mxu0 0.0
  %3528 = vmatmul.mubr.f32.gmra.mrb[0].mxu0 %v1280
  %v3529 = vpop.f32.mrb[0].mxu0
  %v3530 = vadd.f32 0.0, %v3529
  %v3531 = vpop.f32.mrb[0].mxu0
  %3532 = vmatprep.mubr.f32.mxu0 0.0
  %3533 = vmatmul.mubr.f32.gmra.mrb[0].mxu0 %v1283
  %v3534 = vpop.f32.mrb[0].mxu0
  %v3535 = vadd.f32 0.0, %v3534
  %v3536 = vpop.f32.mrb[0].mxu0
  %3537 = vmatprep.mubr.f32.mxu0 0.0
  %3538 = vmatmul.mubr.f32.gmra.mrb[0].mxu0 %v1286
  %v3539 = vpop.f32.mrb[0].mxu0
  %v3540 = vadd.f32 0.0, %v3539
  %v3541 = vpop.f32.mrb[0].mxu0
  %3542 = vmatprep.mubr.f32.mxu0 0.0
  %3543 = vmatmul.mubr.f32.gmra.mrb[0].mxu0 %v1289
  %v3544 = vpop.f32.mrb[0].mxu0
  %v3545 = vadd.f32 0.0, %v3544
  %v3546 = vpop.f32.mrb[0].mxu0
  %3547 = vmatprep.mubr.f32.mxu0 0.0
  %3548 = vmatmul.mubr.f32.gmra.mrb[0].mxu0 %v1292
  %v3549 = vpop.f32.mrb[0].mxu0
  %v3550 = vadd.f32 0.0, %v3549
  %v3551 = vpop.f32.mrb[0].mxu0
  %3552 = vmatprep.mubr.f32.mxu0 0.0
  %3553 = vmatmul.mubr.f32.gmra.mrb[0].mxu0 %v1295
  %v3554 = vpop.f32.mrb[0].mxu0
  %v3555 = vadd.f32 0.0, %v3554
  %v3556 = vpop.f32.mrb[0].mxu0
  %3557 = vmatprep.mubr.f32.mxu0 0.0
  %3558 = vmatmul.mubr.f32.gmra.mrb[0].mxu0 %v1298
  %v3559 = vpop.f32.mrb[0].mxu0
  %v3560 = vadd.f32 0.0, %v3559
  %v3561 = vpop.f32.mrb[0].mxu0
  %3562 = vmatprep.mubr.f32.mxu0 0.0
  %3563 = vmatmul.mubr.f32.gmra.mrb[0].mxu0 %v1301
  %v3564 = vpop.f32.mrb[0].mxu0
  %v3565 = vadd.f32 0.0, %v3564
  %v3566 = vpop.f32.mrb[0].mxu0
  %3567 = vmatprep.mubr.f32.mxu0 0.0
  %3568 = vmatmul.mubr.f32.gmra.mrb[0].mxu0 %v1304
  %v3569 = vpop.f32.mrb[0].mxu0
  %v3570 = vadd.f32 0.0, %v3569
  %v3571 = vpop.f32.mrb[0].mxu0
  %3572 = vmatprep.mubr.f32.mxu0 0.0
  %3573 = vmatmul.mubr.f32.gmra.mrb[0].mxu0 %v1307
  %v3574 = vpop.f32.mrb[0].mxu0
  %v3575 = vadd.f32 0.0, %v3574
  %v3576 = vpop.f32.mrb[0].mxu0
  %3577 = vmatprep.mubr.f32.mxu0 0.0
  %3578 = vmatmul.mubr.f32.gmra.mrb[0].mxu0 %v1310
  %v3579 = vpop.f32.mrb[0].mxu0
  %v3580 = vadd.f32 0.0, %v3579
  %v3581 = vpop.f32.mrb[0].mxu0
  %3582 = vmatprep.mubr.f32.mxu0 0.0
  %3583 = vmatmul.mubr.f32.gmra.mrb[0].mxu0 %v1313
  %v3584 = vpop.f32.mrb[0].mxu0
  %v3585 = vadd.f32 0.0, %v3584
  %v3586 = vpop.f32.mrb[0].mxu0
  %3587 = vmatprep.mubr.f32.mxu0 0.0
  %3588 = vmatmul.mubr.f32.gmra.mrb[0].mxu0 %v1316
  %v3589 = vpop.f32.mrb[0].mxu0
  %v3590 = vadd.f32 0.0, %v3589
  %v3591 = vpop.f32.mrb[0].mxu0
  %3592 = vmatprep.mubr.f32.mxu0 0.0
  %3593 = vmatmul.mubr.f32.gmra.mrb[0].mxu0 %v1319
  %v3594 = vpop.f32.mrb[0].mxu0
  %v3595 = vadd.f32 0.0, %v3594
  %v3596 = vpop.f32.mrb[0].mxu0
  %3597 = vmatprep.mubr.f32.mxu0 0.0
  %3598 = vmatmul.mubr.f32.gmra.mrb[0].mxu0 %v1322
  %v3599 = vpop.f32.mrb[0].mxu0
  %v3600 = vadd.f32 0.0, %v3599
  %v3601 = vpop.f32.mrb[0].mxu0
  %3602 = vmatprep.mubr.f32.mxu0 0.0
  %3603 = vmatmul.mubr.f32.gmra.mrb[0].mxu0 %v1325
  %v3604 = vpop.f32.mrb[0].mxu0
  %v3605 = vadd.f32 0.0, %v3604
  %v3606 = vpop.f32.mrb[0].mxu0
  %3607 = vmatprep.mubr.f32.mxu0 0.0
  %3608 = vmatmul.mubr.f32.gmra.mrb[0].mxu0 %v1328
  %v3609 = vpop.f32.mrb[0].mxu0
  %v3610 = vadd.f32 0.0, %v3609
  %v3611 = vpop.f32.mrb[0].mxu0
  %3612 = vmatprep.mubr.f32.mxu0 0.0
  %3613 = vmatmul.mubr.f32.gmra.mrb[0].mxu0 %v1331
  %v3614 = vpop.f32.mrb[0].mxu0
  %v3615 = vadd.f32 0.0, %v3614
  %v3616 = vpop.f32.mrb[0].mxu0
  %3617 = vmatprep.mubr.f32.mxu0 0.0
  %3618 = vmatmul.mubr.f32.gmra.mrb[0].mxu0 %v1334
  %v3619 = vpop.f32.mrb[0].mxu0
  %v3620 = vadd.f32 0.0, %v3619
  %v3621 = vpop.f32.mrb[0].mxu0
  %3622 = vmatprep.mubr.f32.mxu0 0.0
  %3623 = vmatmul.mubr.f32.gmra.mrb[0].mxu0 %v1337
  %v3624 = vpop.f32.mrb[0].mxu0
  %v3625 = vadd.f32 0.0, %v3624
  %v3626 = vpop.f32.mrb[0].mxu0
  %3627 = vmatprep.mubr.f32.mxu0 0.0
  %3628 = vmatmul.mubr.f32.gmra.mrb[0].mxu0 %v1340
  %v3629 = vpop.f32.mrb[0].mxu0
  %v3630 = vadd.f32 0.0, %v3629
  %v3631 = vpop.f32.mrb[0].mxu0
  %3632 = vmatprep.mubr.f32.mxu0 0.0
  %3633 = vmatmul.mubr.f32.gmra.mrb[0].mxu0 %v1343
  %v3634 = vpop.f32.mrb[0].mxu0
  %v3635 = vadd.f32 0.0, %v3634
  %v3636 = vpop.f32.mrb[0].mxu0
  %3637 = vmatprep.mubr.f32.mxu0 0.0
  %3638 = vmatmul.mubr.f32.gmra.mrb[0].mxu0 %v1346
  %v3639 = vpop.f32.mrb[0].mxu0
  %v3640 = vadd.f32 0.0, %v3639
  %v3641 = vpop.f32.mrb[0].mxu0
  %3642 = vmatprep.mubr.f32.mxu0 0.0
  %3643 = vmatmul.mubr.f32.gmra.mrb[0].mxu0 %v1349
  %v3644 = vpop.f32.mrb[0].mxu0
  %v3645 = vadd.f32 0.0, %v3644
  %v3646 = vpop.f32.mrb[0].mxu0
  %3647 = vmatprep.mubr.f32.mxu0 0.0
  %3648 = vmatmul.mubr.f32.gmra.mrb[0].mxu0 %v1352
  %v3649 = vpop.f32.mrb[0].mxu0
  %v3650 = vadd.f32 0.0, %v3649
  %v3651 = vpop.f32.mrb[0].mxu0
  %3652 = vmatprep.mubr.f32.mxu0 0.0
  %3653 = vmatmul.mubr.f32.gmra.mrb[0].mxu0 %v1355
  %v3654 = vpop.f32.mrb[0].mxu0
  %v3655 = vadd.f32 0.0, %v3654
  %v3656 = vpop.f32.mrb[0].mxu0
  %3657 = vmatprep.mubr.f32.mxu0 0.0
  %3658 = vmatmul.mubr.f32.gmra.mrb[0].mxu0 %v1358
  %v3659 = vpop.f32.mrb[0].mxu0
  %v3660 = vadd.f32 0.0, %v3659
  %v3661 = vpop.f32.mrb[0].mxu0
  %3662 = vmatprep.mubr.f32.mxu0 0.0
  %3663 = vmatmul.mubr.f32.gmra.mrb[0].mxu0 %v1361
  %v3664 = vpop.f32.mrb[0].mxu0
  %v3665 = vadd.f32 0.0, %v3664
  %v3666 = vpop.f32.mrb[0].mxu0
  %3667 = vmatprep.mubr.f32.mxu0 0.0
  %3668 = vmatmul.mubr.f32.gmra.mrb[0].mxu0 %v1364
  %v3669 = vpop.f32.mrb[0].mxu0
  %v3670 = vadd.f32 0.0, %v3669
  %v3671 = vpop.f32.mrb[0].mxu0
  %3672 = vmatprep.mubr.f32.mxu0 0.0
  %3673 = vmatmul.mubr.f32.gmra.mrb[0].mxu0 %v1367
  %v3674 = vpop.f32.mrb[0].mxu0
  %v3675 = vadd.f32 0.0, %v3674
  %v3676 = vpop.f32.mrb[0].mxu0
  %3677 = vmatprep.mubr.f32.mxu0 0.0
  %3678 = vmatmul.mubr.f32.gmra.mrb[0].mxu0 %v1370
  %v3679 = vpop.f32.mrb[0].mxu0
  %v3680 = vadd.f32 0.0, %v3679
  %v3681 = vpop.f32.mrb[0].mxu0
  %3682 = vmatprep.mubr.f32.mxu0 0.0
  %3683 = vmatmul.mubr.f32.gmra.mrb[0].mxu0 %v1373
  %v3684 = vpop.f32.mrb[0].mxu0
  %v3685 = vadd.f32 0.0, %v3684
  %v3686 = vpop.f32.mrb[0].mxu0
  %3687 = vmatprep.mubr.f32.mxu0 0.0
  %3688 = vmatmul.mubr.f32.gmra.mrb[0].mxu0 %v1376
  %v3689 = vpop.f32.mrb[0].mxu0
  %v3690 = vadd.f32 0.0, %v3689
  %v3691 = vpop.f32.mrb[0].mxu0
  %3692 = vmatprep.mubr.f32.mxu0 0.0
  %3693 = vmatmul.mubr.f32.gmra.mrb[0].mxu0 %v1379
  %v3694 = vpop.f32.mrb[0].mxu0
  %v3695 = vadd.f32 0.0, %v3694
  %v3696 = vpop.f32.mrb[0].mxu0
  %3697 = vmatprep.mubr.f32.mxu0 0.0
  %3698 = vmatmul.mubr.f32.gmra.mrb[0].mxu0 %v1382
  %v3699 = vpop.f32.mrb[0].mxu0
  %v3700 = vadd.f32 0.0, %v3699
  %v3701 = vpop.f32.mrb[0].mxu0
  %3702 = vmatprep.mubr.f32.mxu0 0.0
  %3703 = vmatmul.mubr.f32.gmra.mrb[0].mxu0 %v1385
  %v3704 = vpop.f32.mrb[0].mxu0
  %v3705 = vadd.f32 0.0, %v3704
  %v3706 = vpop.f32.mrb[0].mxu0
  %3707 = vmatprep.mubr.f32.mxu0 0.0
  %3708 = vmatmul.mubr.f32.gmra.mrb[0].mxu0 %v1388
  %v3709 = vpop.f32.mrb[0].mxu0
  %v3710 = vadd.f32 0.0, %v3709
  %v3711 = vpop.f32.mrb[0].mxu0
  %3712 = vmatprep.mubr.f32.mxu0 0.0
  %3713 = vmatmul.mubr.f32.gmra.mrb[0].mxu0 %v1391
  %v3714 = vpop.f32.mrb[0].mxu0
  %v3715 = vadd.f32 0.0, %v3714
  %v3716 = vpop.f32.mrb[0].mxu0
  %3717 = vmatprep.mubr.f32.mxu0 0.0
  %3718 = vmatmul.mubr.f32.gmra.mrb[0].mxu0 %v1394
  %v3719 = vpop.f32.mrb[0].mxu0
  %v3720 = vadd.f32 0.0, %v3719
  %v3721 = vpop.f32.mrb[0].mxu0
  %3722 = vmatprep.mubr.f32.mxu0 0.0
  %3723 = vmatmul.mubr.f32.gmra.mrb[0].mxu0 %v1397
  %v3724 = vpop.f32.mrb[0].mxu0
  %v3725 = vadd.f32 0.0, %v3724
  %v3726 = vpop.f32.mrb[0].mxu0
  %3727 = vmatprep.mubr.f32.mxu0 0.0
  %3728 = vmatmul.mubr.f32.gmra.mrb[0].mxu0 %v1400
  %v3729 = vpop.f32.mrb[0].mxu0
  %v3730 = vadd.f32 0.0, %v3729
  %v3731 = vpop.f32.mrb[0].mxu0
  %3732 = vmatprep.mubr.f32.mxu0 0.0
  %3733 = vmatmul.mubr.f32.gmra.mrb[0].mxu0 %v1403
  %v3734 = vpop.f32.mrb[0].mxu0
  %v3735 = vadd.f32 0.0, %v3734
  %v3736 = vpop.f32.mrb[0].mxu0
  %3737 = vmatprep.mubr.f32.mxu0 0.0
  %3738 = vmatmul.mubr.f32.gmra.mrb[0].mxu0 %v1406
  %v3739 = vpop.f32.mrb[0].mxu0
  %v3740 = vadd.f32 0.0, %v3739
  %v3741 = vpop.f32.mrb[0].mxu0
  %3742 = vmatprep.mubr.f32.mxu0 0.0
  %3743 = vmatmul.mubr.f32.gmra.mrb[0].mxu0 %v1409
  %v3744 = vpop.f32.mrb[0].mxu0
  %v3745 = vadd.f32 0.0, %v3744
  %v3746 = vpop.f32.mrb[0].mxu0
  %3747 = vmatprep.mubr.f32.mxu0 0.0
  %3748 = vmatmul.mubr.f32.gmra.mrb[0].mxu0 %v1412
  %v3749 = vpop.f32.mrb[0].mxu0
  %v3750 = vadd.f32 0.0, %v3749
  %v3751 = vpop.f32.mrb[0].mxu0
  %3752 = vmatprep.mubr.f32.mxu0 0.0
  %3753 = vmatmul.mubr.f32.gmra.mrb[0].mxu0 %v1415
  %v3754 = vpop.f32.mrb[0].mxu0
  %v3755 = vadd.f32 0.0, %v3754
  %v3756 = vpop.f32.mrb[0].mxu0
  %3757 = vmatprep.mubr.f32.mxu0 0.0
  %3758 = vmatmul.mubr.f32.gmra.mrb[0].mxu0 %v1418
  %v3759 = vpop.f32.mrb[0].mxu0
  %v3760 = vadd.f32 0.0, %v3759
  %v3761 = vpop.f32.mrb[0].mxu0
  %3762 = vmatprep.mubr.f32.mxu0 0.0
  %3763 = vmatmul.mubr.f32.gmra.mrb[0].mxu0 %v1421
  %v3764 = vpop.f32.mrb[0].mxu0
  %v3765 = vadd.f32 0.0, %v3764
  %v3766 = vpop.f32.mrb[0].mxu0
  %3767 = vmatprep.mubr.f32.mxu0 0.0
  %3768 = vmatmul.mubr.f32.gmra.mrb[0].mxu0 %v1424
  %v3769 = vpop.f32.mrb[0].mxu0
  %v3770 = vadd.f32 0.0, %v3769
  %v3771 = vpop.f32.mrb[0].mxu0
  %3772 = vmatprep.mubr.f32.mxu0 0.0
  %3773 = vmatmul.mubr.f32.gmra.mrb[0].mxu0 %v1427
  %v3774 = vpop.f32.mrb[0].mxu0
  %v3775 = vadd.f32 0.0, %v3774
  %v3776 = vpop.f32.mrb[0].mxu0
  %3777 = vmatprep.mubr.f32.mxu0 0.0
  %3778 = vmatmul.mubr.f32.gmra.mrb[0].mxu0 %v1430
  %v3779 = vpop.f32.mrb[0].mxu0
  %v3780 = vadd.f32 0.0, %v3779
  %v3781 = vpop.f32.mrb[0].mxu0
  %3782 = vmatprep.mubr.f32.mxu0 0.0
  %3783 = vmatmul.mubr.f32.gmra.mrb[0].mxu0 %v1433
  %v3784 = vpop.f32.mrb[0].mxu0
  %v3785 = vadd.f32 0.0, %v3784
  %v3786 = vpop.f32.mrb[0].mxu0
  %3787 = vmatprep.mubr.f32.mxu0 0.0
  %3788 = vmatmul.mubr.f32.gmra.mrb[0].mxu0 %v1436
  %v3789 = vpop.f32.mrb[0].mxu0
  %v3790 = vadd.f32 0.0, %v3789
  %v3791 = vpop.f32.mrb[0].mxu0
  %3792 = vmatprep.mubr.f32.mxu0 0.0
  %3793 = vmatmul.mubr.f32.gmra.mrb[0].mxu0 %v1439
  %v3794 = vpop.f32.mrb[0].mxu0
  %v3795 = vadd.f32 0.0, %v3794
  %v3796 = vpop.f32.mrb[0].mxu0
  %3797 = vmatprep.mubr.f32.mxu0 0.0
  %3798 = vmatmul.mubr.f32.gmra.mrb[0].mxu0 %v1442
  %v3799 = vpop.f32.mrb[0].mxu0
  %v3800 = vadd.f32 0.0, %v3799
  %v3801 = vpop.f32.mrb[0].mxu0
  %3802 = vmatprep.mubr.f32.mxu0 0.0
  %3803 = vmatmul.mubr.f32.gmra.mrb[0].mxu0 %v1445
  %v3804 = vpop.f32.mrb[0].mxu0
  %v3805 = vadd.f32 0.0, %v3804
  %v3806 = vpop.f32.mrb[0].mxu0
  %3807 = vmatprep.mubr.f32.mxu0 0.0
  %3808 = vmatmul.mubr.f32.gmra.mrb[0].mxu0 %v1448
  %v3809 = vpop.f32.mrb[0].mxu0
  %v3810 = vadd.f32 0.0, %v3809
  %v3811 = vpop.f32.mrb[0].mxu0
  %3812 = vmatprep.mubr.f32.mxu0 0.0
  %3813 = vmatmul.mubr.f32.gmra.mrb[0].mxu0 %v1451
  %v3814 = vpop.f32.mrb[0].mxu0
  %v3815 = vadd.f32 0.0, %v3814
  %v3816 = vpop.f32.mrb[0].mxu0
  %3817 = vmatprep.mubr.f32.mxu0 0.0
  %3818 = vmatmul.mubr.f32.gmra.mrb[0].mxu0 %v1454
  %v3819 = vpop.f32.mrb[0].mxu0
  %v3820 = vadd.f32 0.0, %v3819
  %v3821 = vpop.f32.mrb[0].mxu0
  %3822 = vmatprep.mubr.f32.mxu0 0.0
  %3823 = vmatmul.mubr.f32.gmra.mrb[0].mxu0 %v1457
  %v3824 = vpop.f32.mrb[0].mxu0
  %v3825 = vadd.f32 0.0, %v3824
  %v3826 = vpop.f32.mrb[0].mxu0
  %3827 = vmatprep.mubr.f32.mxu0 0.0
  %3828 = vmatmul.mubr.f32.gmra.mrb[0].mxu0 %v1460
  %v3829 = vpop.f32.mrb[0].mxu0
  %v3830 = vadd.f32 0.0, %v3829
  %v3831 = vpop.f32.mrb[0].mxu0
  %3832 = vmatprep.mubr.f32.mxu0 0.0
  %3833 = vmatmul.mubr.f32.gmra.mrb[0].mxu0 %v1463
  %v3834 = vpop.f32.mrb[0].mxu0
  %v3835 = vadd.f32 0.0, %v3834
  %v3836 = vpop.f32.mrb[0].mxu0
  %3837 = vmatprep.mubr.f32.mxu0 0.0
  %3838 = vmatmul.mubr.f32.gmra.mrb[0].mxu0 %v1466
  %v3839 = vpop.f32.mrb[0].mxu0
  %v3840 = vadd.f32 0.0, %v3839
  %v3841 = vpop.f32.mrb[0].mxu0
  %3842 = vmatprep.mubr.f32.mxu0 0.0
  %3843 = vmatmul.mubr.f32.gmra.mrb[0].mxu0 %v1469
  %v3844 = vpop.f32.mrb[0].mxu0
  %v3845 = vadd.f32 0.0, %v3844
  %v3846 = vpop.f32.mrb[0].mxu0
  %3847 = vmatprep.mubr.f32.mxu0 0.0
  %3848 = vmatmul.mubr.f32.gmra.mrb[0].mxu0 %v1472
  %v3849 = vpop.f32.mrb[0].mxu0
  %v3850 = vadd.f32 0.0, %v3849
  %v3851 = vpop.f32.mrb[0].mxu0
  %3852 = vmatprep.mubr.f32.mxu0 0.0
  %3853 = vmatmul.mubr.f32.gmra.mrb[0].mxu0 %v1475
  %v3854 = vpop.f32.mrb[0].mxu0
  %v3855 = vadd.f32 0.0, %v3854
  %v3856 = vpop.f32.mrb[0].mxu0
  %3857 = vmatprep.mubr.f32.mxu0 0.0
  %3858 = vmatmul.mubr.f32.gmra.mrb[0].mxu0 %v1478
  %v3859 = vpop.f32.mrb[0].mxu0
  %v3860 = vadd.f32 0.0, %v3859
  %v3861 = vpop.f32.mrb[0].mxu0
  %3862 = vmatprep.mubr.f32.mxu0 0.0
  %3863 = vmatmul.mubr.f32.gmra.mrb[0].mxu0 %v1481
  %v3864 = vpop.f32.mrb[0].mxu0
  %v3865 = vadd.f32 0.0, %v3864
  %v3866 = vpop.f32.mrb[0].mxu0
  %3867 = vmatprep.mubr.f32.mxu0 0.0
  %3868 = vmatmul.mubr.f32.gmra.mrb[0].mxu0 %v1484
  %v3869 = vpop.f32.mrb[0].mxu0
  %v3870 = vadd.f32 0.0, %v3869
  %v3871 = vpop.f32.mrb[0].mxu0
  %3872 = vmatprep.mubr.f32.mxu0 0.0
  %3873 = vmatmul.mubr.f32.gmra.mrb[0].mxu0 %v1487
  %v3874 = vpop.f32.mrb[0].mxu0
  %v3875 = vadd.f32 0.0, %v3874
  %v3876 = vpop.f32.mrb[0].mxu0
  %3877 = vmatprep.mubr.f32.mxu0 0.0
  %3878 = vmatmul.mubr.f32.gmra.mrb[0].mxu0 %v1490
  %v3879 = vpop.f32.mrb[0].mxu0
  %v3880 = vadd.f32 0.0, %v3879
  %v3881 = vpop.f32.mrb[0].mxu0
  %3882 = vmatprep.mubr.f32.mxu0 0.0
  %3883 = vmatmul.mubr.f32.gmra.mrb[0].mxu0 %v1493
  %v3884 = vpop.f32.mrb[0].mxu0
  %v3885 = vadd.f32 0.0, %v3884
  %v3886 = vpop.f32.mrb[0].mxu0
  %3887 = vmatprep.mubr.f32.mxu0 0.0
  %3888 = vmatmul.mubr.f32.gmra.mrb[0].mxu0 %v1496
  %v3889 = vpop.f32.mrb[0].mxu0
  %v3890 = vadd.f32 0.0, %v3889
  %v3891 = vpop.f32.mrb[0].mxu0
  %3892 = vmatprep.mubr.f32.mxu0 0.0
  %3893 = vmatmul.mubr.f32.gmra.mrb[0].mxu0 %v1499
  %v3894 = vpop.f32.mrb[0].mxu0
  %v3895 = vadd.f32 0.0, %v3894
  %v3896 = vpop.f32.mrb[0].mxu0
  %3897 = vmatprep.mubr.f32.mxu0 0.0
  %3898 = vmatmul.mubr.f32.gmra.mrb[0].mxu0 %v1502
  %v3899 = vpop.f32.mrb[0].mxu0
  %v3900 = vadd.f32 0.0, %v3899
  %v3901 = vpop.f32.mrb[0].mxu0
  %3902 = vmatprep.mubr.f32.mxu0 0.0
  %3903 = vmatmul.mubr.f32.gmra.mrb[0].mxu0 %v1505
  %v3904 = vpop.f32.mrb[0].mxu0
  %v3905 = vadd.f32 0.0, %v3904
  %v3906 = vpop.f32.mrb[0].mxu0
  %3907 = vmatprep.mubr.f32.mxu0 0.0
  %3908 = vmatmul.mubr.f32.gmra.mrb[0].mxu0 %v1508
  %v3909 = vpop.f32.mrb[0].mxu0
  %v3910 = vadd.f32 0.0, %v3909
  %v3911 = vpop.f32.mrb[0].mxu0
  %3912 = vmatprep.mubr.f32.mxu0 0.0
  %3913 = vmatmul.mubr.f32.gmra.mrb[0].mxu0 %v1511
  %v3914 = vpop.f32.mrb[0].mxu0
  %v3915 = vadd.f32 0.0, %v3914
  %v3916 = vpop.f32.mrb[0].mxu0
  %3917 = vmatprep.mubr.f32.mxu0 0.0
  %3918 = vmatmul.mubr.f32.gmra.mrb[0].mxu0 %v1514
  %v3919 = vpop.f32.mrb[0].mxu0
  %v3920 = vadd.f32 0.0, %v3919
  %v3921 = vpop.f32.mrb[0].mxu0
  %3922 = vmatprep.mubr.f32.mxu0 0.0
  %3923 = vmatmul.mubr.f32.gmra.mrb[0].mxu0 %v1517
  %v3924 = vpop.f32.mrb[0].mxu0
  %v3925 = vadd.f32 0.0, %v3924
  %v3926 = vpop.f32.mrb[0].mxu0
  %3927 = vmatprep.mubr.f32.mxu0 0.0
  %3928 = vmatmul.mubr.f32.gmra.mrb[0].mxu0 %v1520
  %v3929 = vpop.f32.mrb[0].mxu0
  %v3930 = vadd.f32 0.0, %v3929
  %v3931 = vpop.f32.mrb[0].mxu0
  %3932 = vmatprep.mubr.f32.mxu0 0.0
  %3933 = vmatmul.mubr.f32.gmra.mrb[0].mxu0 %v1523
  %v3934 = vpop.f32.mrb[0].mxu0
  %v3935 = vadd.f32 0.0, %v3934
  %v3936 = vpop.f32.mrb[0].mxu0
  %3937 = vmatprep.mubr.f32.mxu0 0.0
  %3938 = vmatmul.mubr.f32.gmra.mrb[0].mxu0 %v1526
  %v3939 = vpop.f32.mrb[0].mxu0
  %v3940 = vadd.f32 0.0, %v3939
  %v3941 = vpop.f32.mrb[0].mxu0
  %3942 = vmatprep.mubr.f32.mxu0 0.0
  %3943 = vmatmul.mubr.f32.gmra.mrb[0].mxu0 %v1529
  %v3944 = vpop.f32.mrb[0].mxu0
  %v3945 = vadd.f32 0.0, %v3944
  %v3946 = vpop.f32.mrb[0].mxu0
  %3947 = vmatprep.mubr.f32.mxu0 0.0
  %3948 = vmatmul.mubr.f32.gmra.mrb[0].mxu0 %v1532
  %v3949 = vpop.f32.mrb[0].mxu0
  %v3950 = vadd.f32 0.0, %v3949
  %v3951 = vpop.f32.mrb[0].mxu0
  %3952 = vmatprep.mubr.f32.mxu0 0.0
  %3953 = vmatmul.mubr.f32.gmra.mrb[0].mxu0 %v1535
  %v3954 = vpop.f32.mrb[0].mxu0
  %v3955 = vadd.f32 0.0, %v3954
  %v3956 = vpop.f32.mrb[0].mxu0
  %3957 = vmatprep.mubr.f32.mxu0 0.0
  %3958 = vmatmul.mubr.f32.gmra.mrb[0].mxu0 %v1538
  %v3959 = vpop.f32.mrb[0].mxu0
  %v3960 = vadd.f32 0.0, %v3959
  %v3961 = vpop.f32.mrb[0].mxu0
  %3962 = vmatprep.mubr.f32.mxu0 0.0
  %3963 = vmatmul.mubr.f32.gmra.mrb[0].mxu0 %v1541
  %v3964 = vpop.f32.mrb[0].mxu0
  %v3965 = vadd.f32 0.0, %v3964
  %v3966 = vpop.f32.mrb[0].mxu0
  %3967 = vmatprep.mubr.f32.mxu0 0.0
  %3968 = vmatmul.mubr.f32.gmra.mrb[0].mxu0 %v1544
  %v3969 = vpop.f32.mrb[0].mxu0
  %v3970 = vadd.f32 0.0, %v3969
  %v3971 = vpop.f32.mrb[0].mxu0
  %3972 = vmatprep.mubr.f32.mxu0 0.0
  %3973 = vmatmul.mubr.f32.gmra.mrb[0].mxu0 %v1547
  %v3974 = vpop.f32.mrb[0].mxu0
  %v3975 = vadd.f32 0.0, %v3974
  %v3976 = vpop.f32.mrb[0].mxu0
  %3977 = vmatprep.mubr.f32.mxu0 0.0
  %3978 = vmatmul.mubr.f32.gmra.mrb[0].mxu0 %v1550
  %v3979 = vpop.f32.mrb[0].mxu0
  %v3980 = vadd.f32 0.0, %v3979
  %v3981 = vpop.f32.mrb[0].mxu0
  %3982 = vmatprep.mubr.f32.mxu0 0.0
  %3983 = vmatmul.mubr.f32.gmra.mrb[0].mxu0 %v1553
  %v3984 = vpop.f32.mrb[0].mxu0
  %v3985 = vadd.f32 0.0, %v3984
  %v3986 = vpop.f32.mrb[0].mxu0
  %3987 = vmatprep.mubr.f32.mxu0 0.0
  %3988 = vmatmul.mubr.f32.gmra.mrb[0].mxu0 %v1556
  %v3989 = vpop.f32.mrb[0].mxu0
  %v3990 = vadd.f32 0.0, %v3989
  %v3991 = vpop.f32.mrb[0].mxu0
  %3992 = vmatprep.mubr.f32.mxu0 0.0
  %3993 = vmatmul.mubr.f32.gmra.mrb[0].mxu0 %v1559
  %v3994 = vpop.f32.mrb[0].mxu0
  %v3995 = vadd.f32 0.0, %v3994
  %v3996 = vpop.f32.mrb[0].mxu0
  %3997 = vmatprep.mubr.f32.mxu0 0.0
  %3998 = vmatmul.mubr.f32.gmra.mrb[0].mxu0 %v1562
  %v3999 = vpop.f32.mrb[0].mxu0
  %v4000 = vadd.f32 0.0, %v3999
  %v4001 = vpop.f32.mrb[0].mxu0
  %4002 = vmatprep.mubr.f32.mxu0 0.0
  %4003 = vmatmul.mubr.f32.gmra.mrb[0].mxu0 %v1565
  %v4004 = vpop.f32.mrb[0].mxu0
  %v4005 = vadd.f32 0.0, %v4004
  %v4006 = vpop.f32.mrb[0].mxu0
  %4007 = vmatprep.mubr.f32.mxu0 0.0
  %4008 = vmatmul.mubr.f32.gmra.mrb[0].mxu0 %v1568
  %v4009 = vpop.f32.mrb[0].mxu0
  %v4010 = vadd.f32 0.0, %v4009
  %v4011 = vpop.f32.mrb[0].mxu0
  %4012 = vmatprep.mubr.f32.mxu0 0.0
  %4013 = vmatmul.mubr.f32.gmra.mrb[0].mxu0 %v1571
  %v4014 = vpop.f32.mrb[0].mxu0
  %v4015 = vadd.f32 0.0, %v4014
  %v4016 = vpop.f32.mrb[0].mxu0
  %4017 = vmatprep.mubr.f32.mxu0 0.0
  %4018 = vmatmul.mubr.f32.gmra.mrb[0].mxu0 %v1574
  %v4019 = vpop.f32.mrb[0].mxu0
  %v4020 = vadd.f32 0.0, %v4019
  %v4021 = vpop.f32.mrb[0].mxu0
  %4022 = vmatprep.mubr.f32.mxu0 0.0
  %4023 = vmatmul.mubr.f32.gmra.mrb[0].mxu0 %v1577
  %v4024 = vpop.f32.mrb[0].mxu0
  %v4025 = vadd.f32 0.0, %v4024
  %v4026 = vpop.f32.mrb[0].mxu0
  %4027 = vmatprep.mubr.f32.mxu0 0.0
  %4028 = vmatmul.mubr.f32.gmra.mrb[0].mxu0 %v1580
  %v4029 = vpop.f32.mrb[0].mxu0
  %v4030 = vadd.f32 0.0, %v4029
  %v4031 = vpop.f32.mrb[0].mxu0
  %4032 = vmatprep.mubr.f32.mxu0 0.0
  %4033 = vmatmul.mubr.f32.gmra.mrb[0].mxu0 %v1583
  %v4034 = vpop.f32.mrb[0].mxu0
  %v4035 = vadd.f32 0.0, %v4034
  %v4036 = vpop.f32.mrb[0].mxu0
  %4037 = vmatprep.mubr.f32.mxu0 0.0
  %4038 = vmatmul.mubr.f32.gmra.mrb[0].mxu0 %v1586
  %v4039 = vpop.f32.mrb[0].mxu0
  %v4040 = vadd.f32 0.0, %v4039
  %v4041 = vpop.f32.mrb[0].mxu0
  %4042 = vmatprep.mubr.f32.mxu0 0.0
  %4043 = vmatmul.mubr.f32.gmra.mrb[0].mxu0 %v1589
  %v4044 = vpop.f32.mrb[0].mxu0
  %v4045 = vadd.f32 0.0, %v4044
  %v4046 = vpop.f32.mrb[0].mxu0
  %4047 = vmatprep.mubr.f32.mxu0 0.0
  %4048 = vmatmul.mubr.f32.gmra.mrb[0].mxu0 %v1592
  %v4049 = vpop.f32.mrb[0].mxu0
  %v4050 = vadd.f32 0.0, %v4049
  %v4051 = vpop.f32.mrb[0].mxu0
  %4052 = vmatprep.mubr.f32.mxu0 0.0
  %4053 = vmatmul.mubr.f32.gmra.mrb[0].mxu0 %v1595
  %v4054 = vpop.f32.mrb[0].mxu0
  %v4055 = vadd.f32 0.0, %v4054
  %v4056 = vpop.f32.mrb[0].mxu0
  %4057 = vmatprep.mubr.f32.mxu0 0.0
  %4058 = vmatmul.mubr.f32.gmra.mrb[0].mxu0 %v1598
  %v4059 = vpop.f32.mrb[0].mxu0
  %v4060 = vadd.f32 0.0, %v4059
  %v4061 = vpop.f32.mrb[0].mxu0
  %4062 = vmatprep.mubr.f32.mxu0 0.0
  %4063 = vmatmul.mubr.f32.gmra.mrb[0].mxu0 %v1601
  %v4064 = vpop.f32.mrb[0].mxu0
  %v4065 = vadd.f32 0.0, %v4064
  %v4066 = vpop.f32.mrb[0].mxu0
  %4067 = vmatprep.mubr.f32.mxu0 0.0
  %4068 = vmatmul.mubr.f32.gmra.mrb[0].mxu0 %v1604
  %v4069 = vpop.f32.mrb[0].mxu0
  %v4070 = vadd.f32 0.0, %v4069
  %v4071 = vpop.f32.mrb[0].mxu0
  %4072 = vmatprep.mubr.f32.mxu0 0.0
  %4073 = vmatmul.mubr.f32.gmra.mrb[0].mxu0 %v1607
  %v4074 = vpop.f32.mrb[0].mxu0
  %v4075 = vadd.f32 0.0, %v4074
  %v4076 = vpop.f32.mrb[0].mxu0
  %4077 = vmatprep.mubr.f32.mxu0 0.0
  %4078 = vmatmul.mubr.f32.gmra.mrb[0].mxu0 %v1610
  %v4079 = vpop.f32.mrb[0].mxu0
  %v4080 = vadd.f32 0.0, %v4079
  %v4081 = vpop.f32.mrb[0].mxu0
  %4082 = vmatprep.mubr.f32.mxu0 0.0
  %4083 = vmatmul.mubr.f32.gmra.mrb[0].mxu0 %v1613
  %v4084 = vpop.f32.mrb[0].mxu0
  %v4085 = vadd.f32 0.0, %v4084
  %v4086 = vpop.f32.mrb[0].mxu0
  %4087 = vmatprep.mubr.f32.mxu0 0.0
  %4088 = vmatmul.mubr.f32.gmra.mrb[0].mxu0 %v1616
  %v4089 = vpop.f32.mrb[0].mxu0
  %v4090 = vadd.f32 0.0, %v4089
  %v4091 = vpop.f32.mrb[0].mxu0
  %4092 = vmatprep.mubr.f32.mxu0 0.0
  %4093 = vmatmul.mubr.f32.gmra.mrb[0].mxu0 %v1619
  %v4094 = vpop.f32.mrb[0].mxu0
  %v4095 = vadd.f32 0.0, %v4094
  %v4096 = vpop.f32.mrb[0].mxu0
  %4097 = vmatprep.mubr.f32.mxu0 0.0
  %4098 = vmatmul.mubr.f32.gmra.mrb[0].mxu0 %v1622
  %v4099 = vpop.f32.mrb[0].mxu0
  %v4100 = vadd.f32 0.0, %v4099
  %v4101 = vpop.f32.mrb[0].mxu0
  %4102 = vmatprep.mubr.f32.mxu0 0.0
  %4103 = vmatmul.mubr.f32.gmra.mrb[0].mxu0 %v1625
  %v4104 = vpop.f32.mrb[0].mxu0
  %v4105 = vadd.f32 0.0, %v4104
  %v4106 = vpop.f32.mrb[0].mxu0
  %4107 = vmatprep.mubr.f32.mxu0 0.0
  %4108 = vmatmul.mubr.f32.gmra.mrb[0].mxu0 %v1628
  %v4109 = vpop.f32.mrb[0].mxu0
  %v4110 = vadd.f32 0.0, %v4109
  %v4111 = vpop.f32.mrb[0].mxu0
  %4112 = vmatprep.mubr.f32.mxu0 0.0
  %4113 = vmatmul.mubr.f32.gmra.mrb[0].mxu0 %v1631
  %v4114 = vpop.f32.mrb[0].mxu0
  %v4115 = vadd.f32 0.0, %v4114
  %v4116 = vpop.f32.mrb[0].mxu0
  %4117 = vmatprep.mubr.f32.mxu0 0.0
  %4118 = vmatmul.mubr.f32.gmra.mrb[0].mxu0 %v1634
  %v4119 = vpop.f32.mrb[0].mxu0
  %v4120 = vadd.f32 0.0, %v4119
  %v4121 = vpop.f32.mrb[0].mxu0
  %4122 = vmatprep.mubr.f32.mxu0 0.0
  %4123 = vmatmul.mubr.f32.gmra.mrb[0].mxu0 %v1637
  %v4124 = vpop.f32.mrb[0].mxu0
  %v4125 = vadd.f32 0.0, %v4124
  %v4126 = vpop.f32.mrb[0].mxu0
  %4127 = vmatprep.mubr.f32.mxu0 0.0
  %4128 = vmatmul.mubr.f32.gmra.mrb[0].mxu0 %v1640
  %v4129 = vpop.f32.mrb[0].mxu0
  %v4130 = vadd.f32 0.0, %v4129
  %v4131 = vpop.f32.mrb[0].mxu0
  %4132 = vmatprep.mubr.f32.mxu0 0.0
  %4133 = vmatmul.mubr.f32.gmra.mrb[0].mxu0 %v1643
  %v4134 = vpop.f32.mrb[0].mxu0
  %v4135 = vadd.f32 0.0, %v4134
  %v4136 = vpop.f32.mrb[0].mxu0
  %4137 = vmatprep.mubr.f32.mxu0 0.0
  %4138 = vmatmul.mubr.f32.gmra.mrb[0].mxu0 %v1646
  %v4139 = vpop.f32.mrb[0].mxu0
  %v4140 = vadd.f32 0.0, %v4139
  %v4141 = vpop.f32.mrb[0].mxu0
  %4142 = vmatprep.mubr.f32.mxu0 0.0
  %4143 = vmatmul.mubr.f32.gmra.mrb[0].mxu0 %v1649
  %v4144 = vpop.f32.mrb[0].mxu0
  %v4145 = vadd.f32 0.0, %v4144
  %v4146 = vpop.f32.mrb[0].mxu0
  %4147 = vmatprep.mubr.f32.mxu0 0.0
  %4148 = vmatmul.mubr.f32.gmra.mrb[0].mxu0 %v1652
  %v4149 = vpop.f32.mrb[0].mxu0
  %v4150 = vadd.f32 0.0, %v4149
  %v4151 = vpop.f32.mrb[0].mxu0
  %4152 = vmatprep.mubr.f32.mxu0 0.0
  %4153 = vmatmul.mubr.f32.gmra.mrb[0].mxu0 %v1655
  %v4154 = vpop.f32.mrb[0].mxu0
  %v4155 = vadd.f32 0.0, %v4154
  %v4156 = vpop.f32.mrb[0].mxu0
  %4157 = vmatprep.mubr.f32.mxu0 0.0
  %4158 = vmatmul.mubr.f32.gmra.mrb[0].mxu0 %v1658
  %v4159 = vpop.f32.mrb[0].mxu0
  %v4160 = vadd.f32 0.0, %v4159
  %v4161 = vpop.f32.mrb[0].mxu0
  %4162 = vmatprep.mubr.f32.mxu0 0.0
  %4163 = vmatmul.mubr.f32.gmra.mrb[0].mxu0 %v1661
  %v4164 = vpop.f32.mrb[0].mxu0
  %v4165 = vadd.f32 0.0, %v4164
  %v4166 = vpop.f32.mrb[0].mxu0
  %4167 = vmatprep.mubr.f32.mxu0 0.0
  %4168 = vmatmul.mubr.f32.gmra.mrb[0].mxu0 %v1664
  %v4169 = vpop.f32.mrb[0].mxu0
  %v4170 = vadd.f32 0.0, %v4169
  %v4171 = vpop.f32.mrb[0].mxu0
  %4172 = vmatprep.mubr.f32.mxu0 0.0
  %4173 = vmatmul.mubr.f32.gmra.mrb[0].mxu0 %v1667
  %v4174 = vpop.f32.mrb[0].mxu0
  %v4175 = vadd.f32 0.0, %v4174
  %v4176 = vpop.f32.mrb[0].mxu0
  %4177 = vmatprep.mubr.f32.mxu0 0.0
  %4178 = vmatmul.mubr.f32.gmra.mrb[0].mxu0 %v1670
  %v4179 = vpop.f32.mrb[0].mxu0
  %v4180 = vadd.f32 0.0, %v4179
  %v4181 = vpop.f32.mrb[0].mxu0
  %4182 = vmatprep.mubr.f32.mxu0 0.0
  %4183 = vmatmul.mubr.f32.gmra.mrb[0].mxu0 %v1673
  %v4184 = vpop.f32.mrb[0].mxu0
  %v4185 = vadd.f32 0.0, %v4184
  %v4186 = vpop.f32.mrb[0].mxu0
  %4187 = vmatprep.mubr.f32.mxu0 0.0
  %4188 = vmatmul.mubr.f32.gmra.mrb[0].mxu0 %v1676
  %v4189 = vpop.f32.mrb[0].mxu0
  %v4190 = vadd.f32 0.0, %v4189
  %v4191 = vpop.f32.mrb[0].mxu0
  %4192 = vmatprep.mubr.f32.mxu0 0.0
  %4193 = vmatmul.mubr.f32.gmra.mrb[0].mxu0 %v1679
  %v4194 = vpop.f32.mrb[0].mxu0
  %v4195 = vadd.f32 0.0, %v4194
  %v4196 = vpop.f32.mrb[0].mxu0
  %4197 = vmatprep.mubr.f32.mxu0 0.0
  %4198 = vmatmul.mubr.f32.gmra.mrb[0].mxu0 %v1682
  %v4199 = vpop.f32.mrb[0].mxu0
  %v4200 = vadd.f32 0.0, %v4199
  %v4201 = vpop.f32.mrb[0].mxu0
  %4202 = vmatprep.mubr.f32.mxu0 0.0
  %4203 = vmatmul.mubr.f32.gmra.mrb[0].mxu0 %v1685
  %v4204 = vpop.f32.mrb[0].mxu0
  %v4205 = vadd.f32 0.0, %v4204
  %v4206 = vpop.f32.mrb[0].mxu0
  %4207 = vmatprep.mubr.f32.mxu0 0.0
  %4208 = vmatmul.mubr.f32.gmra.mrb[0].mxu0 %v1688
  %v4209 = vpop.f32.mrb[0].mxu0
  %v4210 = vadd.f32 0.0, %v4209
  %v4211 = vpop.f32.mrb[0].mxu0
  %4212 = vmatprep.mubr.f32.mxu0 0.0
  %4213 = vmatmul.mubr.f32.gmra.mrb[0].mxu0 %v1691
  %v4214 = vpop.f32.mrb[0].mxu0
  %v4215 = vadd.f32 0.0, %v4214
  %v4216 = vpop.f32.mrb[0].mxu0
  %4217 = vmatprep.mubr.f32.mxu0 0.0
  %4218 = vmatmul.mubr.f32.gmra.mrb[0].mxu0 %v1694
  %v4219 = vpop.f32.mrb[0].mxu0
  %v4220 = vadd.f32 0.0, %v4219
  %v4221 = vpop.f32.mrb[0].mxu0
  %4222 = vmatprep.mubr.f32.mxu0 0.0
  %4223 = vmatmul.mubr.f32.gmra.mrb[0].mxu0 %v1697
  %v4224 = vpop.f32.mrb[0].mxu0
  %v4225 = vadd.f32 0.0, %v4224
  %v4226 = vpop.f32.mrb[0].mxu0
  %4227 = vmatprep.mubr.f32.mxu0 0.0
  %4228 = vmatmul.mubr.f32.gmra.mrb[0].mxu0 %v1700
  %v4229 = vpop.f32.mrb[0].mxu0
  %v4230 = vadd.f32 0.0, %v4229
  %v4231 = vpop.f32.mrb[0].mxu0
  %4232 = vmatprep.mubr.f32.mxu0 0.0
  %4233 = vmatmul.mubr.f32.gmra.mrb[0].mxu0 %v1703
  %v4234 = vpop.f32.mrb[0].mxu0
  %v4235 = vadd.f32 0.0, %v4234
  %v4236 = vpop.f32.mrb[0].mxu0
  %4237 = vmatprep.mubr.f32.mxu0 0.0
  %4238 = vmatmul.mubr.f32.gmra.mrb[0].mxu0 %v1706
  %v4239 = vpop.f32.mrb[0].mxu0
  %v4240 = vadd.f32 0.0, %v4239
  %v4241 = vpop.f32.mrb[0].mxu0
  %4242 = vmatprep.mubr.f32.mxu0 0.0
  %4243 = vmatmul.mubr.f32.gmra.mrb[0].mxu0 %v1709
  %v4244 = vpop.f32.mrb[0].mxu0
  %v4245 = vadd.f32 0.0, %v4244
  %v4246 = vpop.f32.mrb[0].mxu0
  %4247 = vmatprep.mubr.f32.mxu0 0.0
  %4248 = vmatmul.mubr.f32.gmra.mrb[0].mxu0 %v1712
  %v4249 = vpop.f32.mrb[0].mxu0
  %v4250 = vadd.f32 0.0, %v4249
  %v4251 = vpop.f32.mrb[0].mxu0
  %4252 = vmatprep.mubr.f32.mxu0 0.0
  %4253 = vmatmul.mubr.f32.gmra.mrb[0].mxu0 %v1715
  %v4254 = vpop.f32.mrb[0].mxu0
  %v4255 = vadd.f32 0.0, %v4254
  %v4256 = vpop.f32.mrb[0].mxu0
  %4257 = vmatprep.mubr.f32.mxu0 0.0
  %4258 = vmatmul.mubr.f32.gmra.mrb[0].mxu0 %v1718
  %v4259 = vpop.f32.mrb[0].mxu0
  %v4260 = vadd.f32 0.0, %v4259
  %v4261 = vpop.f32.mrb[0].mxu0
  %4262 = vmatprep.mubr.f32.mxu0 0.0
  %4263 = vmatmul.mubr.f32.gmra.mrb[0].mxu0 %v1721
  %v4264 = vpop.f32.mrb[0].mxu0
  %v4265 = vadd.f32 0.0, %v4264
  %v4266 = vpop.f32.mrb[0].mxu0
  %4267 = vmatprep.mubr.f32.mxu0 0.0
  %4268 = vmatmul.mubr.f32.gmra.mrb[0].mxu0 %v1724
  %v4269 = vpop.f32.mrb[0].mxu0
  %v4270 = vadd.f32 0.0, %v4269
  %v4271 = vpop.f32.mrb[0].mxu0
  %4272 = vmatprep.mubr.f32.mxu0 0.0
  %4273 = vmatmul.mubr.f32.gmra.mrb[0].mxu0 %v1727
  %v4274 = vpop.f32.mrb[0].mxu0
  %v4275 = vadd.f32 0.0, %v4274
  %v4276 = vpop.f32.mrb[0].mxu0
  %4277 = vmatprep.mubr.f32.mxu0 0.0
  %4278 = vmatmul.mubr.f32.gmra.mrb[0].mxu0 %v1730
  %v4279 = vpop.f32.mrb[0].mxu0
  %v4280 = vadd.f32 0.0, %v4279
  %v4281 = vpop.f32.mrb[0].mxu0
  %4282 = vmatprep.mubr.f32.mxu0 0.0
  %4283 = vmatmul.mubr.f32.gmra.mrb[0].mxu0 %v1733
  %v4284 = vpop.f32.mrb[0].mxu0
  %v4285 = vadd.f32 0.0, %v4284
  %v4286 = vpop.f32.mrb[0].mxu0
  %4287 = vmatprep.mubr.f32.mxu0 0.0
  %4288 = vmatmul.mubr.f32.gmra.mrb[0].mxu0 %v1736
  %v4289 = vpop.f32.mrb[0].mxu0
  %v4290 = vadd.f32 0.0, %v4289
  %v4291 = vpop.f32.mrb[0].mxu0
  %4292 = vmatprep.mubr.f32.mxu0 0.0
  %4293 = vmatmul.mubr.f32.gmra.mrb[0].mxu0 %v1739
  %v4294 = vpop.f32.mrb[0].mxu0
  %v4295 = vadd.f32 0.0, %v4294
  %v4296 = vpop.f32.mrb[0].mxu0
  %4297 = vmatprep.mubr.f32.mxu0 0.0
  %4298 = vmatmul.mubr.f32.gmra.mrb[0].mxu0 %v1742
  %v4299 = vpop.f32.mrb[0].mxu0
  %v4300 = vadd.f32 0.0, %v4299
  %v4301 = vpop.f32.mrb[0].mxu0
  %4302 = vmatprep.mubr.f32.mxu0 0.0
  %4303 = vmatmul.mubr.f32.gmra.mrb[0].mxu0 %v1745
  %v4304 = vpop.f32.mrb[0].mxu0
  %v4305 = vadd.f32 0.0, %v4304
  %v4306 = vpop.f32.mrb[0].mxu0
  %4307 = vmatprep.mubr.f32.mxu0 0.0
  %4308 = vmatmul.mubr.f32.gmra.mrb[0].mxu0 %v1748
  %v4309 = vpop.f32.mrb[0].mxu0
  %v4310 = vadd.f32 0.0, %v4309
  %v4311 = vpop.f32.mrb[0].mxu0
  %4312 = vmatprep.mubr.f32.mxu0 0.0
  %4313 = vmatmul.mubr.f32.gmra.mrb[0].mxu0 %v1751
  %v4314 = vpop.f32.mrb[0].mxu0
  %v4315 = vadd.f32 0.0, %v4314
  %v4316 = vpop.f32.mrb[0].mxu0
  %4317 = vmatprep.mubr.f32.mxu0 0.0
  %4318 = vmatmul.mubr.f32.gmra.mrb[0].mxu0 %v1754
  %v4319 = vpop.f32.mrb[0].mxu0
  %v4320 = vadd.f32 0.0, %v4319
  %v4321 = vpop.f32.mrb[0].mxu0
  %4322 = vmatprep.mubr.f32.mxu0 0.0
  %4323 = vmatmul.mubr.f32.gmra.mrb[0].mxu0 %v1757
  %v4324 = vpop.f32.mrb[0].mxu0
  %v4325 = vadd.f32 0.0, %v4324
  %v4326 = vpop.f32.mrb[0].mxu0
  %4327 = vmatprep.mubr.f32.mxu0 0.0
  %4328 = vmatmul.mubr.f32.gmra.mrb[0].mxu0 %v1760
  %v4329 = vpop.f32.mrb[0].mxu0
  %v4330 = vadd.f32 0.0, %v4329
  %v4331 = vpop.f32.mrb[0].mxu0
  %4332 = vmatprep.mubr.f32.mxu0 0.0
  %4333 = vmatmul.mubr.f32.gmra.mrb[0].mxu0 %v1763
  %v4334 = vpop.f32.mrb[0].mxu0
  %v4335 = vadd.f32 0.0, %v4334
  %v4336 = vpop.f32.mrb[0].mxu0
  %4337 = vmatprep.mubr.f32.mxu0 0.0
  %4338 = vmatmul.mubr.f32.gmra.mrb[0].mxu0 %v1766
  %v4339 = vpop.f32.mrb[0].mxu0
  %v4340 = vadd.f32 0.0, %v4339
  %v4341 = vpop.f32.mrb[0].mxu0
  %4342 = vmatprep.mubr.f32.mxu0 0.0
  %4343 = vmatmul.mubr.f32.gmra.mrb[0].mxu0 %v1769
  %v4344 = vpop.f32.mrb[0].mxu0
  %v4345 = vadd.f32 0.0, %v4344
  %v4346 = vpop.f32.mrb[0].mxu0
  %4347 = vmatprep.mubr.f32.mxu0 0.0
  %4348 = vmatmul.mubr.f32.gmra.mrb[0].mxu0 %v1772
  %v4349 = vpop.f32.mrb[0].mxu0
  %v4350 = vadd.f32 0.0, %v4349
  %v4351 = vpop.f32.mrb[0].mxu0
  %4352 = vmatprep.mubr.f32.mxu0 0.0
  %4353 = vmatmul.mubr.f32.gmra.mrb[0].mxu0 %v1775
  %v4354 = vpop.f32.mrb[0].mxu0
  %v4355 = vadd.f32 0.0, %v4354
  %v4356 = vpop.f32.mrb[0].mxu0
  %4357 = vmatprep.mubr.f32.mxu0 0.0
  %4358 = vmatmul.mubr.f32.gmra.mrb[0].mxu0 %v1778
  %v4359 = vpop.f32.mrb[0].mxu0
  %v4360 = vadd.f32 0.0, %v4359
  %v4361 = vpop.f32.mrb[0].mxu0
  %4362 = vmatprep.mubr.f32.mxu0 0.0
  %4363 = vmatmul.mubr.f32.gmra.mrb[0].mxu0 %v1781
  %v4364 = vpop.f32.mrb[0].mxu0
  %v4365 = vadd.f32 0.0, %v4364
  %v4366 = vpop.f32.mrb[0].mxu0
  %4367 = vmatprep.mubr.f32.mxu0 0.0
  %4368 = vmatmul.mubr.f32.gmra.mrb[0].mxu0 %v1784
  %v4369 = vpop.f32.mrb[0].mxu0
  %v4370 = vadd.f32 0.0, %v4369
  %v4371 = vpop.f32.mrb[0].mxu0
  %4372 = vmatprep.mubr.f32.mxu0 0.0
  %4373 = vmatmul.mubr.f32.gmra.mrb[0].mxu0 %v1787
  %v4374 = vpop.f32.mrb[0].mxu0
  %v4375 = vadd.f32 0.0, %v4374
  %v4376 = vpop.f32.mrb[0].mxu0
  %4377 = vmatprep.mubr.f32.mxu0 0.0
  %4378 = vmatmul.mubr.f32.gmra.mrb[0].mxu0 %v1790
  %v4379 = vpop.f32.mrb[0].mxu0
  %v4380 = vadd.f32 0.0, %v4379
  %v4381 = vpop.f32.mrb[0].mxu0
  %4382 = vmatprep.mubr.f32.mxu0 0.0
  %4383 = vmatmul.mubr.f32.gmra.mrb[0].mxu0 %v1793
  %v4384 = vpop.f32.mrb[0].mxu0
  %v4385 = vadd.f32 0.0, %v4384
  %v4386 = vpop.f32.mrb[0].mxu0
  %4387 = vmatprep.mubr.f32.mxu0 0.0
  %4388 = vmatmul.mubr.f32.gmra.mrb[0].mxu0 %v1796
  %v4389 = vpop.f32.mrb[0].mxu0
  %v4390 = vadd.f32 0.0, %v4389
  %v4391 = vpop.f32.mrb[0].mxu0
  %4392 = vmatprep.mubr.f32.mxu0 0.0
  %4393 = vmatmul.mubr.f32.gmra.mrb[0].mxu0 %v1799
  %v4394 = vpop.f32.mrb[0].mxu0
  %v4395 = vadd.f32 0.0, %v4394
  %v4396 = vpop.f32.mrb[0].mxu0
  %4397 = vmatprep.mubr.f32.mxu0 0.0
  %4398 = vmatmul.mubr.f32.gmra.mrb[0].mxu0 %v1802
  %v4399 = vpop.f32.mrb[0].mxu0
  %v4400 = vadd.f32 0.0, %v4399
  %v4401 = vpop.f32.mrb[0].mxu0
  %4402 = vmatprep.mubr.f32.mxu0 0.0
  %4403 = vmatmul.mubr.f32.gmra.mrb[0].mxu0 %v1805
  %v4404 = vpop.f32.mrb[0].mxu0
  %v4405 = vadd.f32 0.0, %v4404
  %v4406 = vpop.f32.mrb[0].mxu0
  %4407 = vmatprep.mubr.f32.mxu0 0.0
  %4408 = vmatmul.mubr.f32.gmra.mrb[0].mxu0 %v1808
  %v4409 = vpop.f32.mrb[0].mxu0
  %v4410 = vadd.f32 0.0, %v4409
  %v4411 = vpop.f32.mrb[0].mxu0
  %4412 = vmatprep.mubr.f32.mxu0 0.0
  %4413 = vmatmul.mubr.f32.gmra.mrb[0].mxu0 %v1811
  %v4414 = vpop.f32.mrb[0].mxu0
  %v4415 = vadd.f32 0.0, %v4414
  %v4416 = vpop.f32.mrb[0].mxu0
  %4417 = vmatprep.mubr.f32.mxu0 0.0
  %4418 = vmatmul.mubr.f32.gmra.mrb[0].mxu0 %v1814
  %v4419 = vpop.f32.mrb[0].mxu0
  %v4420 = vadd.f32 0.0, %v4419
  %v4421 = vpop.f32.mrb[0].mxu0
  %4422 = vmatprep.mubr.f32.mxu0 0.0
  %4423 = vmatmul.mubr.f32.gmra.mrb[0].mxu0 %v1817
  %v4424 = vpop.f32.mrb[0].mxu0
  %v4425 = vadd.f32 0.0, %v4424
  %v4426 = vpop.f32.mrb[0].mxu0
  %4427 = vmatprep.mubr.f32.mxu0 0.0
  %4428 = vmatmul.mubr.f32.gmra.mrb[0].mxu0 %v1820
  %v4429 = vpop.f32.mrb[0].mxu0
  %v4430 = vadd.f32 0.0, %v4429
  %v4431 = vpop.f32.mrb[0].mxu0
  %4432 = vmatprep.mubr.f32.mxu0 0.0
  %4433 = vmatmul.mubr.f32.gmra.mrb[0].mxu0 %v1823
  %v4434 = vpop.f32.mrb[0].mxu0
  %v4435 = vadd.f32 0.0, %v4434
  %v4436 = vpop.f32.mrb[0].mxu0
  %4437 = vmatprep.mubr.f32.mxu0 0.0
  %4438 = vmatmul.mubr.f32.gmra.mrb[0].mxu0 %v1826
  %v4439 = vpop.f32.mrb[0].mxu0
  %v4440 = vadd.f32 0.0, %v4439
  %v4441 = vpop.f32.mrb[0].mxu0
  %4442 = vmatprep.mubr.f32.mxu0 0.0
  %4443 = vmatmul.mubr.f32.gmra.mrb[0].mxu0 %v1829
  %v4444 = vpop.f32.mrb[0].mxu0
  %v4445 = vadd.f32 0.0, %v4444
  %v4446 = vpop.f32.mrb[0].mxu0
  %4447 = vmatprep.mubr.f32.mxu0 0.0
  %4448 = vmatmul.mubr.f32.gmra.mrb[0].mxu0 %v1832
  %v4449 = vpop.f32.mrb[0].mxu0
  %v4450 = vadd.f32 0.0, %v4449
  %v4451 = vpop.f32.mrb[0].mxu0
  %4452 = vmatprep.mubr.f32.mxu0 0.0
  %4453 = vmatmul.mubr.f32.gmra.mrb[0].mxu0 %v1835
  %v4454 = vpop.f32.mrb[0].mxu0
  %v4455 = vadd.f32 0.0, %v4454
  %v4456 = vpop.f32.mrb[0].mxu0
  %4457 = vmatprep.mubr.f32.mxu0 0.0
  %4458 = vmatmul.mubr.f32.gmra.mrb[0].mxu0 %v1838
  %v4459 = vpop.f32.mrb[0].mxu0
  %v4460 = vadd.f32 0.0, %v4459
  %v4461 = vpop.f32.mrb[0].mxu0
  %4462 = vmatprep.mubr.f32.mxu0 0.0
  %4463 = vmatmul.mubr.f32.gmra.mrb[0].mxu0 %v1841
  %v4464 = vpop.f32.mrb[0].mxu0
  %v4465 = vadd.f32 0.0, %v4464
  %v4466 = vpop.f32.mrb[0].mxu0
  %4467 = vmatprep.mubr.f32.mxu0 0.0
  %4468 = vmatmul.mubr.f32.gmra.mrb[0].mxu0 %v1844
  %v4469 = vpop.f32.mrb[0].mxu0
  %v4470 = vadd.f32 0.0, %v4469
  %v4471 = vpop.f32.mrb[0].mxu0
  %4472 = vmatprep.mubr.f32.mxu0 0.0
  %4473 = vmatmul.mubr.f32.gmra.mrb[0].mxu0 %v1847
  %v4474 = vpop.f32.mrb[0].mxu0
  %v4475 = vadd.f32 0.0, %v4474
  %v4476 = vpop.f32.mrb[0].mxu0
  %4477 = vmatprep.mubr.f32.mxu0 0.0
  %4478 = vmatmul.mubr.f32.gmra.mrb[0].mxu0 %v1850
  %v4479 = vpop.f32.mrb[0].mxu0
  %v4480 = vadd.f32 0.0, %v4479
  %v4481 = vpop.f32.mrb[0].mxu0
  %4482 = vmatprep.mubr.f32.mxu0 0.0
  %4483 = vmatmul.mubr.f32.gmra.mrb[0].mxu0 %v1853
  %v4484 = vpop.f32.mrb[0].mxu0
  %v4485 = vadd.f32 0.0, %v4484
  %v4486 = vpop.f32.mrb[0].mxu0
  %4487 = vmatprep.mubr.f32.mxu0 0.0
  %4488 = vmatmul.mubr.f32.gmra.mrb[0].mxu0 %v1856
  %v4489 = vpop.f32.mrb[0].mxu0
  %v4490 = vadd.f32 0.0, %v4489
  %v4491 = vpop.f32.mrb[0].mxu0
  %4492 = vmatprep.mubr.f32.mxu0 0.0
  %4493 = vmatmul.mubr.f32.gmra.mrb[0].mxu0 %v1859
  %v4494 = vpop.f32.mrb[0].mxu0
  %v4495 = vadd.f32 0.0, %v4494
  %v4496 = vpop.f32.mrb[0].mxu0
  %4497 = vmatprep.mubr.f32.mxu0 0.0
  %4498 = vmatmul.mubr.f32.gmra.mrb[0].mxu0 %v1862
  %v4499 = vpop.f32.mrb[0].mxu0
  %v4500 = vadd.f32 0.0, %v4499
  %v4501 = vpop.f32.mrb[0].mxu0
  %4502 = vmatprep.mubr.f32.mxu0 0.0
  %4503 = vmatmul.mubr.f32.gmra.mrb[0].mxu0 %v1865
  %v4504 = vpop.f32.mrb[0].mxu0
  %v4505 = vadd.f32 0.0, %v4504
  %v4506 = vpop.f32.mrb[0].mxu0
  %4507 = vmatprep.mubr.f32.mxu0 0.0
  %4508 = vmatmul.mubr.f32.gmra.mrb[0].mxu0 %v1868
  %v4509 = vpop.f32.mrb[0].mxu0
  %v4510 = vadd.f32 0.0, %v4509
  %v4511 = vpop.f32.mrb[0].mxu0
  %4512 = vmatprep.mubr.f32.mxu0 0.0
  %4513 = vmatmul.mubr.f32.gmra.mrb[0].mxu0 %v1871
  %v4514 = vpop.f32.mrb[0].mxu0
  %v4515 = vadd.f32 0.0, %v4514
  %v4516 = vpop.f32.mrb[0].mxu0
  %4517 = vmatprep.mubr.f32.mxu0 0.0
  %4518 = vmatmul.mubr.f32.gmra.mrb[0].mxu0 %v1874
  %v4519 = vpop.f32.mrb[0].mxu0
  %v4520 = vadd.f32 0.0, %v4519
  %v4521 = vpop.f32.mrb[0].mxu0
  %4522 = vmatprep.mubr.f32.mxu0 0.0
  %4523 = vmatmul.mubr.f32.gmra.mrb[0].mxu0 %v1877
  %v4524 = vpop.f32.mrb[0].mxu0
  %v4525 = vadd.f32 0.0, %v4524
  %v4526 = vpop.f32.mrb[0].mxu0
  %4527 = vmatprep.mubr.f32.mxu0 0.0
  %4528 = vmatmul.mubr.f32.gmra.mrb[0].mxu0 %v1880
  %v4529 = vpop.f32.mrb[0].mxu0
  %v4530 = vadd.f32 0.0, %v4529
  %v4531 = vpop.f32.mrb[0].mxu0
  %4532 = vmatprep.mubr.f32.mxu0 0.0
  %4533 = vmatmul.mubr.f32.gmra.mrb[0].mxu0 %v1883
  %v4534 = vpop.f32.mrb[0].mxu0
  %v4535 = vadd.f32 0.0, %v4534
  %v4536 = vpop.f32.mrb[0].mxu0
  %4537 = vmatprep.mubr.f32.mxu0 0.0
  %4538 = vmatmul.mubr.f32.gmra.mrb[0].mxu0 %v1886
  %v4539 = vpop.f32.mrb[0].mxu0
  %v4540 = vadd.f32 0.0, %v4539
  %v4541 = vpop.f32.mrb[0].mxu0
  %4542 = vmatprep.mubr.f32.mxu0 0.0
  %4543 = vmatmul.mubr.f32.gmra.mrb[0].mxu0 %v1889
  %v4544 = vpop.f32.mrb[0].mxu0
  %v4545 = vadd.f32 0.0, %v4544
  %v4546 = vpop.f32.mrb[0].mxu0
  %4547 = vmatprep.mubr.f32.mxu0 0.0
  %4548 = vmatmul.mubr.f32.gmra.mrb[0].mxu0 %v1892
  %v4549 = vpop.f32.mrb[0].mxu0
  %v4550 = vadd.f32 0.0, %v4549
  %v4551 = vpop.f32.mrb[0].mxu0
  %4552 = vmatprep.mubr.f32.mxu0 0.0
  %4553 = vmatmul.mubr.f32.gmra.mrb[0].mxu0 %v1895
  %v4554 = vpop.f32.mrb[0].mxu0
  %v4555 = vadd.f32 0.0, %v4554
  %v4556 = vpop.f32.mrb[0].mxu0
  %4557 = vmatprep.mubr.f32.mxu0 0.0
  %4558 = vmatmul.mubr.f32.gmra.mrb[0].mxu0 %v1898
  %v4559 = vpop.f32.mrb[0].mxu0
  %v4560 = vadd.f32 0.0, %v4559
  %v4561 = vpop.f32.mrb[0].mxu0
  %4562 = vmatprep.mubr.f32.mxu0 0.0
  %4563 = vmatmul.mubr.f32.gmra.mrb[0].mxu0 %v1901
  %v4564 = vpop.f32.mrb[0].mxu0
  %v4565 = vadd.f32 0.0, %v4564
  %v4566 = vpop.f32.mrb[0].mxu0
  %4567 = vmatprep.mubr.f32.mxu0 0.0
  %4568 = vmatmul.mubr.f32.gmra.mrb[0].mxu0 %v1904
  %v4569 = vpop.f32.mrb[0].mxu0
  %v4570 = vadd.f32 0.0, %v4569
  %v4571 = vpop.f32.mrb[0].mxu0
  %4572 = vmatprep.mubr.f32.mxu0 0.0
  %4573 = vmatmul.mubr.f32.gmra.mrb[0].mxu0 %v1907
  %v4574 = vpop.f32.mrb[0].mxu0
  %v4575 = vadd.f32 0.0, %v4574
  %v4576 = vpop.f32.mrb[0].mxu0
  %4577 = vmatprep.mubr.f32.mxu0 0.0
  %4578 = vmatmul.mubr.f32.gmra.mrb[0].mxu0 %v1910
  %v4579 = vpop.f32.mrb[0].mxu0
  %v4580 = vadd.f32 0.0, %v4579
  %v4581 = vpop.f32.mrb[0].mxu0
  %4582 = vmatprep.mubr.f32.mxu0 0.0
  %4583 = vmatmul.mubr.f32.gmra.mrb[0].mxu0 %v1913
  %v4584 = vpop.f32.mrb[0].mxu0
  %v4585 = vadd.f32 0.0, %v4584
  %v4586 = vpop.f32.mrb[0].mxu0
  %4587 = vmatprep.mubr.f32.mxu0 0.0
  %4588 = vmatmul.mubr.f32.gmra.mrb[0].mxu0 %v1916
  %v4589 = vpop.f32.mrb[0].mxu0
  %v4590 = vadd.f32 0.0, %v4589
  %v4591 = vpop.f32.mrb[0].mxu0
  %4592 = vmatprep.mubr.f32.mxu0 0.0
  %4593 = vmatmul.mubr.f32.gmra.mrb[0].mxu0 %v1919
  %v4594 = vpop.f32.mrb[0].mxu0
  %v4595 = vadd.f32 0.0, %v4594
  %v4596 = vpop.f32.mrb[0].mxu0
  %4597 = vmatprep.mubr.f32.mxu0 0.0
  %4598 = vmatmul.mubr.f32.gmra.mrb[0].mxu0 %v1922
  %v4599 = vpop.f32.mrb[0].mxu0
  %v4600 = vadd.f32 0.0, %v4599
  %v4601 = vpop.f32.mrb[0].mxu0
  %4602 = vmatprep.mubr.f32.mxu0 0.0
  %4603 = vmatmul.mubr.f32.gmra.mrb[0].mxu0 %v1925
  %v4604 = vpop.f32.mrb[0].mxu0
  %v4605 = vadd.f32 0.0, %v4604
  %v4606 = vpop.f32.mrb[0].mxu0
  %4607 = vmatprep.mubr.f32.mxu0 0.0
  %4608 = vmatmul.mubr.f32.gmra.mrb[0].mxu0 %v1928
  %v4609 = vpop.f32.mrb[0].mxu0
  %v4610 = vadd.f32 0.0, %v4609
  %v4611 = vpop.f32.mrb[0].mxu0
  %4612 = vmatprep.mubr.f32.mxu0 0.0
  %4613 = vmatmul.mubr.f32.gmra.mrb[0].mxu0 %v1931
  %v4614 = vpop.f32.mrb[0].mxu0
  %v4615 = vadd.f32 0.0, %v4614
  %v4616 = vpop.f32.mrb[0].mxu0
  %4617 = vmatprep.mubr.f32.mxu0 0.0
  %4618 = vmatmul.mubr.f32.gmra.mrb[0].mxu0 %v1934
  %v4619 = vpop.f32.mrb[0].mxu0
  %v4620 = vadd.f32 0.0, %v4619
  %v4621 = vpop.f32.mrb[0].mxu0
  %4622 = vmatprep.mubr.f32.mxu0 0.0
  %4623 = vmatmul.mubr.f32.gmra.mrb[0].mxu0 %v1937
  %v4624 = vpop.f32.mrb[0].mxu0
  %v4625 = vadd.f32 0.0, %v4624
  %v4626 = vpop.f32.mrb[0].mxu0
  %4627 = vmatprep.mubr.f32.mxu0 0.0
  %4628 = vmatmul.mubr.f32.gmra.mrb[0].mxu0 %v1940
  %v4629 = vpop.f32.mrb[0].mxu0
  %v4630 = vadd.f32 0.0, %v4629
  %v4631 = vpop.f32.mrb[0].mxu0
  %4632 = vmatprep.mubr.f32.mxu0 0.0
  %4633 = vmatmul.mubr.f32.gmra.mrb[0].mxu0 %v1943
  %v4634 = vpop.f32.mrb[0].mxu0
  %v4635 = vadd.f32 0.0, %v4634
  %v4636 = vpop.f32.mrb[0].mxu0
  %4637 = vmatprep.mubr.f32.mxu0 0.0
  %4638 = vmatmul.mubr.f32.gmra.mrb[0].mxu0 %v1946
  %v4639 = vpop.f32.mrb[0].mxu0
  %v4640 = vadd.f32 0.0, %v4639
  %v4641 = vpop.f32.mrb[0].mxu0
  %4642 = vmatprep.mubr.f32.mxu0 0.0
  %4643 = vmatmul.mubr.f32.gmra.mrb[0].mxu0 %v1949
  %v4644 = vpop.f32.mrb[0].mxu0
  %v4645 = vadd.f32 0.0, %v4644
  %v4646 = vpop.f32.mrb[0].mxu0
  %4647 = vmatprep.mubr.f32.mxu0 0.0
  %4648 = vmatmul.mubr.f32.gmra.mrb[0].mxu0 %v1952
  %v4649 = vpop.f32.mrb[0].mxu0
  %v4650 = vadd.f32 0.0, %v4649
  %v4651 = vpop.f32.mrb[0].mxu0
  %4652 = vmatprep.mubr.f32.mxu0 0.0
  %4653 = vmatmul.mubr.f32.gmra.mrb[0].mxu0 %v1955
  %v4654 = vpop.f32.mrb[0].mxu0
  %v4655 = vadd.f32 0.0, %v4654
  %v4656 = vpop.f32.mrb[0].mxu0
  %4657 = vmatprep.mubr.f32.mxu0 0.0
  %4658 = vmatmul.mubr.f32.gmra.mrb[0].mxu0 %v1958
  %v4659 = vpop.f32.mrb[0].mxu0
  %v4660 = vadd.f32 0.0, %v4659
  %v4661 = vpop.f32.mrb[0].mxu0
  %4662 = vmatprep.mubr.f32.mxu0 0.0
  %4663 = vmatmul.mubr.f32.gmra.mrb[0].mxu0 %v1961
  %v4664 = vpop.f32.mrb[0].mxu0
  %v4665 = vadd.f32 0.0, %v4664
  %v4666 = vpop.f32.mrb[0].mxu0
  %4667 = vmatprep.mubr.f32.mxu0 0.0
  %4668 = vmatmul.mubr.f32.gmra.mrb[0].mxu0 %v1964
  %v4669 = vpop.f32.mrb[0].mxu0
  %v4670 = vadd.f32 0.0, %v4669
  %v4671 = vpop.f32.mrb[0].mxu0
  %4672 = vmatprep.mubr.f32.mxu0 0.0
  %4673 = vmatmul.mubr.f32.gmra.mrb[0].mxu0 %v1967
  %v4674 = vpop.f32.mrb[0].mxu0
  %v4675 = vadd.f32 0.0, %v4674
  %v4676 = vpop.f32.mrb[0].mxu0
  %4677 = vmatprep.mubr.f32.mxu0 0.0
  %4678 = vmatmul.mubr.f32.gmra.mrb[0].mxu0 %v1970
  %v4679 = vpop.f32.mrb[0].mxu0
  %v4680 = vadd.f32 0.0, %v4679
  %v4681 = vpop.f32.mrb[0].mxu0
  %4682 = vmatprep.mubr.f32.mxu0 0.0
  %4683 = vmatmul.mubr.f32.gmra.mrb[0].mxu0 %v1973
  %v4684 = vpop.f32.mrb[0].mxu0
  %v4685 = vadd.f32 0.0, %v4684
  %v4686 = vpop.f32.mrb[0].mxu0
  %4687 = vmatprep.mubr.f32.mxu0 0.0
  %4688 = vmatmul.mubr.f32.gmra.mrb[0].mxu0 %v1976
  %v4689 = vpop.f32.mrb[0].mxu0
  %v4690 = vadd.f32 0.0, %v4689
  %v4691 = vpop.f32.mrb[0].mxu0
  %4692 = vmatprep.mubr.f32.mxu0 0.0
  %4693 = vmatmul.mubr.f32.gmra.mrb[0].mxu0 %v1979
  %v4694 = vpop.f32.mrb[0].mxu0
  %v4695 = vadd.f32 0.0, %v4694
  %v4696 = vpop.f32.mrb[0].mxu0
  %4697 = vmatprep.mubr.f32.mxu0 0.0
  %4698 = vmatmul.mubr.f32.gmra.mrb[0].mxu0 %v1982
  %v4699 = vpop.f32.mrb[0].mxu0
  %v4700 = vadd.f32 0.0, %v4699
  %v4701 = vpop.f32.mrb[0].mxu0
  %4702 = vmatprep.mubr.f32.mxu0 0.0
  %4703 = vmatmul.mubr.f32.gmra.mrb[0].mxu0 %v1985
  %v4704 = vpop.f32.mrb[0].mxu0
  %v4705 = vadd.f32 0.0, %v4704
  %v4706 = vpop.f32.mrb[0].mxu0
  %4707 = vmatprep.mubr.f32.mxu0 0.0
  %4708 = vmatmul.mubr.f32.gmra.mrb[0].mxu0 %v1988
  %v4709 = vpop.f32.mrb[0].mxu0
  %v4710 = vadd.f32 0.0, %v4709
  %v4711 = vpop.f32.mrb[0].mxu0
  %4712 = vmatprep.mubr.f32.mxu0 0.0
  %4713 = vmatmul.mubr.f32.gmra.mrb[0].mxu0 %v1991
  %v4714 = vpop.f32.mrb[0].mxu0
  %v4715 = vadd.f32 0.0, %v4714
  %v4716 = vpop.f32.mrb[0].mxu0
  %4717 = vmatprep.mubr.f32.mxu0 0.0
  %4718 = vmatmul.mubr.f32.gmra.mrb[0].mxu0 %v1994
  %v4719 = vpop.f32.mrb[0].mxu0
  %v4720 = vadd.f32 0.0, %v4719
  %v4721 = vpop.f32.mrb[0].mxu0
  %4722 = vmatprep.mubr.f32.mxu0 0.0
  %4723 = vmatmul.mubr.f32.gmra.mrb[0].mxu0 %v1997
  %v4724 = vpop.f32.mrb[0].mxu0
  %v4725 = vadd.f32 0.0, %v4724
  %v4726 = vpop.f32.mrb[0].mxu0
  %4727 = vmatprep.mubr.f32.mxu0 0.0
  %4728 = vmatmul.mubr.f32.gmra.mrb[0].mxu0 %v2000
  %v4729 = vpop.f32.mrb[0].mxu0
  %v4730 = vadd.f32 0.0, %v4729
  %v4731 = vpop.f32.mrb[0].mxu0
  %4732 = vmatprep.mubr.f32.mxu0 0.0
  %4733 = vmatmul.mubr.f32.gmra.mrb[0].mxu0 %v2003
  %v4734 = vpop.f32.mrb[0].mxu0
  %v4735 = vadd.f32 0.0, %v4734
  %v4736 = vpop.f32.mrb[0].mxu0
  %4737 = vmatprep.mubr.f32.mxu0 0.0
  %4738 = vmatmul.mubr.f32.gmra.mrb[0].mxu0 %v2006
  %v4739 = vpop.f32.mrb[0].mxu0
  %v4740 = vadd.f32 0.0, %v4739
  %v4741 = vpop.f32.mrb[0].mxu0
  %4742 = vmatprep.mubr.f32.mxu0 0.0
  %4743 = vmatmul.mubr.f32.gmra.mrb[0].mxu0 %v2009
  %v4744 = vpop.f32.mrb[0].mxu0
  %v4745 = vadd.f32 0.0, %v4744
  %v4746 = vpop.f32.mrb[0].mxu0
  %4747 = vmatprep.mubr.f32.mxu0 0.0
  %4748 = vmatmul.mubr.f32.gmra.mrb[0].mxu0 %v2012
  %v4749 = vpop.f32.mrb[0].mxu0
  %v4750 = vadd.f32 0.0, %v4749
  %v4751 = vpop.f32.mrb[0].mxu0
  %4752 = vmatprep.mubr.f32.mxu0 0.0
  %4753 = vmatmul.mubr.f32.gmra.mrb[0].mxu0 %v2015
  %v4754 = vpop.f32.mrb[0].mxu0
  %v4755 = vadd.f32 0.0, %v4754
  %v4756 = vpop.f32.mrb[0].mxu0
  %4757 = vmatprep.mubr.f32.mxu0 0.0
  %4758 = vmatmul.mubr.f32.gmra.mrb[0].mxu0 %v2018
  %v4759 = vpop.f32.mrb[0].mxu0
  %v4760 = vadd.f32 0.0, %v4759
  %v4761 = vpop.f32.mrb[0].mxu0
  %4762 = vmatprep.mubr.f32.mxu0 0.0
  %4763 = vmatmul.mubr.f32.gmra.mrb[0].mxu0 %v2021
  %v4764 = vpop.f32.mrb[0].mxu0
  %v4765 = vadd.f32 0.0, %v4764
  %v4766 = vpop.f32.mrb[0].mxu0
  %4767 = vmatprep.mubr.f32.mxu0 0.0
  %4768 = vmatmul.mubr.f32.gmra.mrb[0].mxu0 %v2024
  %v4769 = vpop.f32.mrb[0].mxu0
  %v4770 = vadd.f32 0.0, %v4769
  %v4771 = vpop.f32.mrb[0].mxu0
  %4772 = vmatprep.mubr.f32.mxu0 0.0
  %4773 = vmatmul.mubr.f32.gmra.mrb[0].mxu0 %v2027
  %v4774 = vpop.f32.mrb[0].mxu0
  %v4775 = vadd.f32 0.0, %v4774
  %v4776 = vpop.f32.mrb[0].mxu0
  %4777 = vmatprep.mubr.f32.mxu0 0.0
  %4778 = vmatmul.mubr.f32.gmra.mrb[0].mxu0 %v2030
  %v4779 = vpop.f32.mrb[0].mxu0
  %v4780 = vadd.f32 0.0, %v4779
  %v4781 = vpop.f32.mrb[0].mxu0
  %4782 = vmatprep.mubr.f32.mxu0 0.0
  %4783 = vmatmul.mubr.f32.gmra.mrb[0].mxu0 %v2033
  %v4784 = vpop.f32.mrb[0].mxu0
  %v4785 = vadd.f32 0.0, %v4784
  %v4786 = vpop.f32.mrb[0].mxu0
  %4787 = vmatprep.mubr.f32.mxu0 0.0
  %4788 = vmatmul.mubr.f32.gmra.mrb[0].mxu0 %v2036
  %v4789 = vpop.f32.mrb[0].mxu0
  %v4790 = vadd.f32 0.0, %v4789
  %v4791 = vpop.f32.mrb[0].mxu0
  %4792 = vmatprep.mubr.f32.mxu0 0.0
  %4793 = vmatmul.mubr.f32.gmra.mrb[0].mxu0 %v2039
  %v4794 = vpop.f32.mrb[0].mxu0
  %v4795 = vadd.f32 0.0, %v4794
  %v4796 = vpop.f32.mrb[0].mxu0
  %4797 = vmatprep.mubr.f32.mxu0 0.0
  %4798 = vmatmul.mubr.f32.gmra.mrb[0].mxu0 %v2042
  %v4799 = vpop.f32.mrb[0].mxu0
  %v4800 = vadd.f32 0.0, %v4799
  %v4801 = vpop.f32.mrb[0].mxu0
  %4802 = vmatprep.mubr.f32.mxu0 0.0
  %4803 = vmatmul.mubr.f32.gmra.mrb[0].mxu0 %v2045
  %v4804 = vpop.f32.mrb[0].mxu0
  %v4805 = vadd.f32 0.0, %v4804
  %v4806 = vpop.f32.mrb[0].mxu0
  %4807 = vmatprep.mubr.f32.mxu0 0.0
  %4808 = vmatmul.mubr.f32.gmra.mrb[0].mxu0 %v2048
  %v4809 = vpop.f32.mrb[0].mxu0
  %v4810 = vadd.f32 0.0, %v4809
  %v4811 = vpop.f32.mrb[0].mxu0
  %4812 = vmatprep.mubr.f32.mxu0 0.0
  %4813 = vmatmul.mubr.f32.gmra.mrb[0].mxu0 %v2051
  %v4814 = vpop.f32.mrb[0].mxu0
  %v4815 = vadd.f32 0.0, %v4814
  %v4816 = vpop.f32.mrb[0].mxu0
  %4817 = vmatprep.mubr.f32.mxu0 0.0
  %4818 = vmatmul.mubr.f32.gmra.mrb[0].mxu0 %v2054
  %v4819 = vpop.f32.mrb[0].mxu0
  %v4820 = vadd.f32 0.0, %v4819
  %v4821 = vpop.f32.mrb[0].mxu0
  %4822 = vmatprep.mubr.f32.mxu0 0.0
  %4823 = vmatmul.mubr.f32.gmra.mrb[0].mxu0 %v2057
  %v4824 = vpop.f32.mrb[0].mxu0
  %v4825 = vadd.f32 0.0, %v4824
  %v4826 = vpop.f32.mrb[0].mxu0
  %4827 = vmatprep.mubr.f32.mxu0 0.0
  %4828 = vmatmul.mubr.f32.gmra.mrb[0].mxu0 %v2060
  %v4829 = vpop.f32.mrb[0].mxu0
  %v4830 = vadd.f32 0.0, %v4829
  %v4831 = vpop.f32.mrb[0].mxu0
  %4832 = vmatprep.mubr.f32.mxu0 0.0
  %4833 = vmatmul.mubr.f32.gmra.mrb[0].mxu0 %v2063
  %v4834 = vpop.f32.mrb[0].mxu0
  %v4835 = vadd.f32 0.0, %v4834
  %v4836 = vpop.f32.mrb[0].mxu0
  %4837 = vmatprep.mubr.f32.mxu0 0.0
  %4838 = vmatmul.mubr.f32.gmra.mrb[0].mxu0 %v2066
  %v4839 = vpop.f32.mrb[0].mxu0
  %v4840 = vadd.f32 0.0, %v4839
  %v4841 = vpop.f32.mrb[0].mxu0
  %4842 = vmatprep.mubr.f32.mxu0 0.0
  %4843 = vmatmul.mubr.f32.gmra.mrb[0].mxu0 %v2069
  %v4844 = vpop.f32.mrb[0].mxu0
  %v4845 = vadd.f32 0.0, %v4844
  %v4846 = vpop.f32.mrb[0].mxu0
  %4847 = vmatprep.mubr.f32.mxu0 0.0
  %4848 = vmatmul.mubr.f32.gmra.mrb[0].mxu0 %v2072
  %v4849 = vpop.f32.mrb[0].mxu0
  %v4850 = vadd.f32 0.0, %v4849
  %v4851 = vpop.f32.mrb[0].mxu0
  %4852 = vmatprep.mubr.f32.mxu0 0.0
  %4853 = vmatmul.mubr.f32.gmra.mrb[0].mxu0 %v2075
  %v4854 = vpop.f32.mrb[0].mxu0
  %v4855 = vadd.f32 0.0, %v4854
  %v4856 = vpop.f32.mrb[0].mxu0
  %4857 = vmatprep.mubr.f32.mxu0 0.0
  %4858 = vmatmul.mubr.f32.gmra.mrb[0].mxu0 %v2078
  %v4859 = vpop.f32.mrb[0].mxu0
  %v4860 = vadd.f32 0.0, %v4859
  %v4861 = vpop.f32.mrb[0].mxu0
  %4862 = vmatprep.mubr.f32.mxu0 0.0
  %4863 = vmatmul.mubr.f32.gmra.mrb[0].mxu0 %v2081
  %v4864 = vpop.f32.mrb[0].mxu0
  %v4865 = vadd.f32 0.0, %v4864
  %v4866 = vpop.f32.mrb[0].mxu0
  %4867 = vmatprep.mubr.f32.mxu0 0.0
  %4868 = vmatmul.mubr.f32.gmra.mrb[0].mxu0 %v2084
  %v4869 = vpop.f32.mrb[0].mxu0
  %v4870 = vadd.f32 0.0, %v4869
  %v4871 = vpop.f32.mrb[0].mxu0
  %4872 = vmatprep.mubr.f32.mxu0 0.0
  %4873 = vmatmul.mubr.f32.gmra.mrb[0].mxu0 %v2087
  %v4874 = vpop.f32.mrb[0].mxu0
  %v4875 = vadd.f32 0.0, %v4874
  %v4876 = vpop.f32.mrb[0].mxu0
  %4877 = vmatprep.mubr.f32.mxu0 0.0
  %4878 = vmatmul.mubr.f32.gmra.mrb[0].mxu0 %v2090
  %v4879 = vpop.f32.mrb[0].mxu0
  %v4880 = vadd.f32 0.0, %v4879
  %v4881 = vpop.f32.mrb[0].mxu0
  %4882 = vmatprep.mubr.f32.mxu0 0.0
  %4883 = vmatmul.mubr.f32.gmra.mrb[0].mxu0 %v2093
  %v4884 = vpop.f32.mrb[0].mxu0
  %v4885 = vadd.f32 0.0, %v4884
  %v4886 = vpop.f32.mrb[0].mxu0
  %4887 = vmatprep.mubr.f32.mxu0 0.0
  %4888 = vmatmul.mubr.f32.gmra.mrb[0].mxu0 %v2096
  %v4889 = vpop.f32.mrb[0].mxu0
  %v4890 = vadd.f32 0.0, %v4889
  %v4891 = vpop.f32.mrb[0].mxu0
  %4892 = vmatprep.mubr.f32.mxu0 0.0
  %4893 = vmatmul.mubr.f32.gmra.mrb[0].mxu0 %v2099
  %v4894 = vpop.f32.mrb[0].mxu0
  %v4895 = vadd.f32 0.0, %v4894
  %v4896 = vpop.f32.mrb[0].mxu0
  %4897 = vmatprep.mubr.f32.mxu0 0.0
  %4898 = vmatmul.mubr.f32.gmra.mrb[0].mxu0 %v2102
  %v4899 = vpop.f32.mrb[0].mxu0
  %v4900 = vadd.f32 0.0, %v4899
  %v4901 = vpop.f32.mrb[0].mxu0
  %4902 = vmatprep.mubr.f32.mxu0 0.0
  %4903 = vmatmul.mubr.f32.gmra.mrb[0].mxu0 %v2105
  %v4904 = vpop.f32.mrb[0].mxu0
  %v4905 = vadd.f32 0.0, %v4904
  %v4906 = vpop.f32.mrb[0].mxu0
  %4907 = vmatprep.mubr.f32.mxu0 0.0
  %4908 = vmatmul.mubr.f32.gmra.mrb[0].mxu0 %v2108
  %v4909 = vpop.f32.mrb[0].mxu0
  %v4910 = vadd.f32 0.0, %v4909
  %v4911 = vpop.f32.mrb[0].mxu0
  %4912 = vmatprep.mubr.f32.mxu0 0.0
  %4913 = vmatmul.mubr.f32.gmra.mrb[0].mxu0 %v2111
  %v4914 = vpop.f32.mrb[0].mxu0
  %v4915 = vadd.f32 0.0, %v4914
  %v4916 = vpop.f32.mrb[0].mxu0
  %4917 = vmatprep.mubr.f32.mxu0 0.0
  %4918 = vmatmul.mubr.f32.gmra.mrb[0].mxu0 %v2114
  %v4919 = vpop.f32.mrb[0].mxu0
  %v4920 = vadd.f32 0.0, %v4919
  %v4921 = vpop.f32.mrb[0].mxu0
  %4922 = vmatprep.mubr.f32.mxu0 0.0
  %4923 = vmatmul.mubr.f32.gmra.mrb[0].mxu0 %v2117
  %v4924 = vpop.f32.mrb[0].mxu0
  %v4925 = vadd.f32 0.0, %v4924
  %v4926 = vpop.f32.mrb[0].mxu0
  %4927 = vmatprep.mubr.f32.mxu0 0.0
  %4928 = vmatmul.mubr.f32.gmra.mrb[0].mxu0 %v2120
  %v4929 = vpop.f32.mrb[0].mxu0
  %v4930 = vadd.f32 0.0, %v4929
  %v4931 = vpop.f32.mrb[0].mxu0
  %4932 = vmatprep.mubr.f32.mxu0 0.0
  %4933 = vmatmul.mubr.f32.gmra.mrb[0].mxu0 %v2123
  %v4934 = vpop.f32.mrb[0].mxu0
  %v4935 = vadd.f32 0.0, %v4934
  %v4936 = vpop.f32.mrb[0].mxu0
  %4937 = vmatprep.mubr.f32.mxu0 0.0
  %4938 = vmatmul.mubr.f32.gmra.mrb[0].mxu0 %v2126
  %v4939 = vpop.f32.mrb[0].mxu0
  %v4940 = vadd.f32 0.0, %v4939
  %v4941 = vpop.f32.mrb[0].mxu0
  %4942 = vmatprep.mubr.f32.mxu0 0.0
  %4943 = vmatmul.mubr.f32.gmra.mrb[0].mxu0 %v2129
  %v4944 = vpop.f32.mrb[0].mxu0
  %v4945 = vadd.f32 0.0, %v4944
  %v4946 = vpop.f32.mrb[0].mxu0
  %4947 = vmatprep.mubr.f32.mxu0 0.0
  %4948 = vmatmul.mubr.f32.gmra.mrb[0].mxu0 %v2132
  %v4949 = vpop.f32.mrb[0].mxu0
  %v4950 = vadd.f32 0.0, %v4949
  %v4951 = vpop.f32.mrb[0].mxu0
  %4952 = vmatprep.mubr.f32.mxu0 0.0
  %4953 = vmatmul.mubr.f32.gmra.mrb[0].mxu0 %v2135
  %v4954 = vpop.f32.mrb[0].mxu0
  %v4955 = vadd.f32 0.0, %v4954
  %v4956 = vpop.f32.mrb[0].mxu0
  %4957 = vmatprep.mubr.f32.mxu0 0.0
  %4958 = vmatmul.mubr.f32.gmra.mrb[0].mxu0 %v2138
  %v4959 = vpop.f32.mrb[0].mxu0
  %v4960 = vadd.f32 0.0, %v4959
  %v4961 = vpop.f32.mrb[0].mxu0
  %4962 = vmatprep.mubr.f32.mxu0 0.0
  %4963 = vmatmul.mubr.f32.gmra.mrb[0].mxu0 %v2141
  %v4964 = vpop.f32.mrb[0].mxu0
  %v4965 = vadd.f32 0.0, %v4964
  %v4966 = vpop.f32.mrb[0].mxu0
  %4967 = vmatprep.mubr.f32.mxu0 0.0
  %4968 = vmatmul.mubr.f32.gmra.mrb[0].mxu0 %v2144
  %v4969 = vpop.f32.mrb[0].mxu0
  %v4970 = vadd.f32 0.0, %v4969
  %v4971 = vpop.f32.mrb[0].mxu0
  %4972 = vmatprep.mubr.f32.mxu0 0.0
  %4973 = vmatmul.mubr.f32.gmra.mrb[0].mxu0 %v2147
  %v4974 = vpop.f32.mrb[0].mxu0
  %v4975 = vadd.f32 0.0, %v4974
  %v4976 = vpop.f32.mrb[0].mxu0
  %4977 = vmatprep.mubr.f32.mxu0 0.0
  %4978 = vmatmul.mubr.f32.gmra.mrb[0].mxu0 %v2150
  %v4979 = vpop.f32.mrb[0].mxu0
  %v4980 = vadd.f32 0.0, %v4979
  %v4981 = vpop.f32.mrb[0].mxu0
  %4982 = vmatprep.mubr.f32.mxu0 0.0
  %4983 = vmatmul.mubr.f32.gmra.mrb[0].mxu0 %v2153
  %v4984 = vpop.f32.mrb[0].mxu0
  %v4985 = vadd.f32 0.0, %v4984
  %v4986 = vpop.f32.mrb[0].mxu0
  %4987 = vmatprep.mubr.f32.mxu0 0.0
  %4988 = vmatmul.mubr.f32.gmra.mrb[0].mxu0 %v2156
  %v4989 = vpop.f32.mrb[0].mxu0
  %v4990 = vadd.f32 0.0, %v4989
  %v4991 = vpop.f32.mrb[0].mxu0
  %4992 = vmatprep.mubr.f32.mxu0 0.0
  %4993 = vmatmul.mubr.f32.gmra.mrb[0].mxu0 %v2159
  %v4994 = vpop.f32.mrb[0].mxu0
  %v4995 = vadd.f32 0.0, %v4994
  %v4996 = vpop.f32.mrb[0].mxu0
  %4997 = vmatprep.mubr.f32.mxu0 0.0
  %4998 = vmatmul.mubr.f32.gmra.mrb[0].mxu0 %v2162
  %v4999 = vpop.f32.mrb[0].mxu0
  %v5000 = vadd.f32 0.0, %v4999
  %v5001 = vpop.f32.mrb[0].mxu0
  %5002 = vmatprep.mubr.f32.mxu0 0.0
  %5003 = vmatmul.mubr.f32.gmra.mrb[0].mxu0 %v2165
  %v5004 = vpop.f32.mrb[0].mxu0
  %v5005 = vadd.f32 0.0, %v5004
  %v5006 = vpop.f32.mrb[0].mxu0
  %5007 = vmatprep.mubr.f32.mxu0 0.0
  %5008 = vmatmul.mubr.f32.gmra.mrb[0].mxu0 %v2168
  %v5009 = vpop.f32.mrb[0].mxu0
  %v5010 = vadd.f32 0.0, %v5009
  %v5011 = vpop.f32.mrb[0].mxu0
  %5012 = vmatprep.mubr.f32.mxu0 0.0
  %5013 = vmatmul.mubr.f32.gmra.mrb[0].mxu0 %v2171
  %v5014 = vpop.f32.mrb[0].mxu0
  %v5015 = vadd.f32 0.0, %v5014
  %v5016 = vpop.f32.mrb[0].mxu0
  %5017 = vmatprep.mubr.f32.mxu0 0.0
  %5018 = vmatmul.mubr.f32.gmra.mrb[0].mxu0 %v2174
  %v5019 = vpop.f32.mrb[0].mxu0
  %v5020 = vadd.f32 0.0, %v5019
  %v5021 = vpop.f32.mrb[0].mxu0
  %5022 = vmatprep.mubr.f32.mxu0 0.0
  %5023 = vmatmul.mubr.f32.gmra.mrb[0].mxu0 %v2177
  %v5024 = vpop.f32.mrb[0].mxu0
  %v5025 = vadd.f32 0.0, %v5024
  %v5026 = vpop.f32.mrb[0].mxu0
  %5027 = vmatprep.mubr.f32.mxu0 0.0
  %5028 = vmatmul.mubr.f32.gmra.mrb[0].mxu0 %v2180
  %v5029 = vpop.f32.mrb[0].mxu0
  %v5030 = vadd.f32 0.0, %v5029
  %v5031 = vpop.f32.mrb[0].mxu0
  %5032 = vmatprep.mubr.f32.mxu0 0.0
  %5033 = vmatmul.mubr.f32.gmra.mrb[0].mxu0 %v2183
  %v5034 = vpop.f32.mrb[0].mxu0
  %v5035 = vadd.f32 0.0, %v5034
  %v5036 = vpop.f32.mrb[0].mxu0
  %5037 = vmatprep.mubr.f32.mxu0 0.0
  %5038 = vmatmul.mubr.f32.gmra.mrb[0].mxu0 %v2186
  %v5039 = vpop.f32.mrb[0].mxu0
  %v5040 = vadd.f32 0.0, %v5039
  %v5041 = vpop.f32.mrb[0].mxu0
  %5042 = vmatprep.mubr.f32.mxu0 0.0
  %5043 = vmatmul.mubr.f32.gmra.mrb[0].mxu0 %v2189
  %v5044 = vpop.f32.mrb[0].mxu0
  %v5045 = vadd.f32 0.0, %v5044
  %v5046 = vpop.f32.mrb[0].mxu0
  %5047 = vmatprep.mubr.f32.mxu0 0.0
  %5048 = vmatmul.mubr.f32.gmra.mrb[0].mxu0 %v2192
  %v5049 = vpop.f32.mrb[0].mxu0
  %v5050 = vadd.f32 0.0, %v5049
  %v5051 = vpop.f32.mrb[0].mxu0
  %5052 = vmatprep.mubr.f32.mxu0 0.0
  %5053 = vmatmul.mubr.f32.gmra.mrb[0].mxu0 %v2195
  %v5054 = vpop.f32.mrb[0].mxu0
  %v5055 = vadd.f32 0.0, %v5054
  %v5056 = vpop.f32.mrb[0].mxu0
  %5057 = vmatprep.mubr.f32.mxu0 0.0
  %5058 = vmatmul.mubr.f32.gmra.mrb[0].mxu0 %v2198
  %v5059 = vpop.f32.mrb[0].mxu0
  %v5060 = vadd.f32 0.0, %v5059
  %v5061 = vpop.f32.mrb[0].mxu0
  %5062 = vmatprep.mubr.f32.mxu0 0.0
  %5063 = vmatmul.mubr.f32.gmra.mrb[0].mxu0 %v2201
  %v5064 = vpop.f32.mrb[0].mxu0
  %v5065 = vadd.f32 0.0, %v5064
  %v5066 = vpop.f32.mrb[0].mxu0
  %5067 = vmatprep.mubr.f32.mxu0 0.0
  %5068 = vmatmul.mubr.f32.gmra.mrb[0].mxu0 %v2204
  %v5069 = vpop.f32.mrb[0].mxu0
  %v5070 = vadd.f32 0.0, %v5069
  %v5071 = vpop.f32.mrb[0].mxu0
  %5072 = vmatprep.mubr.f32.mxu0 0.0
  %5073 = vmatmul.mubr.f32.gmra.mrb[0].mxu0 %v2207
  %v5074 = vpop.f32.mrb[0].mxu0
  %v5075 = vadd.f32 0.0, %v5074
  %v5076 = vpop.f32.mrb[0].mxu0
  %5077 = vmatprep.mubr.f32.mxu0 0.0
  %5078 = vmatmul.mubr.f32.gmra.mrb[0].mxu0 %v2210
  %v5079 = vpop.f32.mrb[0].mxu0
  %v5080 = vadd.f32 0.0, %v5079
  %v5081 = vpop.f32.mrb[0].mxu0
  %5082 = vmatprep.mubr.f32.mxu0 0.0
  %5083 = vmatmul.mubr.f32.gmra.mrb[0].mxu0 %v2213
  %v5084 = vpop.f32.mrb[0].mxu0
  %v5085 = vadd.f32 0.0, %v5084
  %v5086 = vpop.f32.mrb[0].mxu0
  %5087 = vmatprep.mubr.f32.mxu0 0.0
  %5088 = vmatmul.mubr.f32.gmra.mrb[0].mxu0 %v2216
  %v5089 = vpop.f32.mrb[0].mxu0
  %v5090 = vadd.f32 0.0, %v5089
  %v5091 = vpop.f32.mrb[0].mxu0
  %5092 = vmatprep.mubr.f32.mxu0 0.0
  %5093 = vmatmul.mubr.f32.gmra.mrb[0].mxu0 %v2219
  %v5094 = vpop.f32.mrb[0].mxu0
  %v5095 = vadd.f32 0.0, %v5094
  %v5096 = vpop.f32.mrb[0].mxu0
  %5097 = vmatprep.mubr.f32.mxu0 0.0
  %5098 = vmatmul.mubr.f32.gmra.mrb[0].mxu0 %v2222
  %v5099 = vpop.f32.mrb[0].mxu0
  %v5100 = vadd.f32 0.0, %v5099
  %v5101 = vpop.f32.mrb[0].mxu0
  %5102 = vmatprep.mubr.f32.mxu0 0.0
  %5103 = vmatmul.mubr.f32.gmra.mrb[0].mxu0 %v2225
  %v5104 = vpop.f32.mrb[0].mxu0
  %v5105 = vadd.f32 0.0, %v5104
  %v5106 = vpop.f32.mrb[0].mxu0
  %5107 = vmatprep.mubr.f32.mxu0 0.0
  %5108 = vmatmul.mubr.f32.gmra.mrb[0].mxu0 %v2228
  %v5109 = vpop.f32.mrb[0].mxu0
  %v5110 = vadd.f32 0.0, %v5109
  %v5111 = vpop.f32.mrb[0].mxu0
  %5112 = vmatprep.mubr.f32.mxu0 0.0
  %5113 = vmatmul.mubr.f32.gmra.mrb[0].mxu0 %v2231
  %v5114 = vpop.f32.mrb[0].mxu0
  %v5115 = vadd.f32 0.0, %v5114
  %v5116 = vpop.f32.mrb[0].mxu0
  %5117 = vmatprep.mubr.f32.mxu0 0.0
  %5118 = vmatmul.mubr.f32.gmra.mrb[0].mxu0 %v2234
  %v5119 = vpop.f32.mrb[0].mxu0
  %v5120 = vadd.f32 0.0, %v5119
  %v5121 = vpop.f32.mrb[0].mxu0
  %5122 = vmatprep.mubr.f32.mxu0 0.0
  %5123 = vmatmul.mubr.f32.gmra.mrb[0].mxu0 %v2237
  %v5124 = vpop.f32.mrb[0].mxu0
  %v5125 = vadd.f32 0.0, %v5124
  %v5126 = vpop.f32.mrb[0].mxu0
  %5127 = vmatprep.mubr.f32.mxu0 0.0
  %5128 = vmatmul.mubr.f32.gmra.mrb[0].mxu0 %v2240
  %v5129 = vpop.f32.mrb[0].mxu0
  %v5130 = vadd.f32 0.0, %v5129
  %v5131 = vpop.f32.mrb[0].mxu0
  %5132 = vmatprep.mubr.f32.mxu0 0.0
  %5133 = vmatmul.mubr.f32.gmra.mrb[0].mxu0 %v2243
  %v5134 = vpop.f32.mrb[0].mxu0
  %v5135 = vadd.f32 0.0, %v5134
  %v5136 = vpop.f32.mrb[0].mxu0
  %5137 = vmatprep.mubr.f32.mxu0 0.0
  %5138 = vmatmul.mubr.f32.gmra.mrb[0].mxu0 %v2246
  %v5139 = vpop.f32.mrb[0].mxu0
  %v5140 = vadd.f32 0.0, %v5139
  %v5141 = vpop.f32.mrb[0].mxu0
  %5142 = vmatprep.mubr.f32.mxu0 0.0
  %5143 = vmatmul.mubr.f32.gmra.mrb[0].mxu0 %v2249
  %v5144 = vpop.f32.mrb[0].mxu0
  %v5145 = vadd.f32 0.0, %v5144
  %v5146 = vpop.f32.mrb[0].mxu0
  %5147 = vmatprep.mubr.f32.mxu0 0.0
  %5148 = vmatmul.mubr.f32.gmra.mrb[0].mxu0 %v2252
  %v5149 = vpop.f32.mrb[0].mxu0
  %v5150 = vadd.f32 0.0, %v5149
  %v5151 = vpop.f32.mrb[0].mxu0
  %5152 = vmatprep.mubr.f32.mxu0 0.0
  %5153 = vmatmul.mubr.f32.gmra.mrb[0].mxu0 %v2255
  %v5154 = vpop.f32.mrb[0].mxu0
  %v5155 = vadd.f32 0.0, %v5154
  %v5156 = vpop.f32.mrb[0].mxu0
  %5157 = vmatprep.mubr.f32.mxu0 0.0
  %5158 = vmatmul.mubr.f32.gmra.mrb[0].mxu0 %v2258
  %v5159 = vpop.f32.mrb[0].mxu0
  %v5160 = vadd.f32 0.0, %v5159
  %v5161 = vpop.f32.mrb[0].mxu0
  %5162 = vmatprep.mubr.f32.mxu0 0.0
  %5163 = vmatmul.mubr.f32.gmra.mrb[0].mxu0 %v2261
  %v5164 = vpop.f32.mrb[0].mxu0
  %v5165 = vadd.f32 0.0, %v5164
  %v5166 = vpop.f32.mrb[0].mxu0
  %5167 = vmatprep.mubr.f32.mxu0 0.0
  %5168 = vmatmul.mubr.f32.gmra.mrb[0].mxu0 %v2264
  %v5169 = vpop.f32.mrb[0].mxu0
  %v5170 = vadd.f32 0.0, %v5169
  %v5171 = vpop.f32.mrb[0].mxu0
  %5172 = vmatprep.mubr.f32.mxu0 0.0
  %5173 = vmatmul.mubr.f32.gmra.mrb[0].mxu0 %v2267
  %v5174 = vpop.f32.mrb[0].mxu0
  %v5175 = vadd.f32 0.0, %v5174
  %v5176 = vpop.f32.mrb[0].mxu0
  %5177 = vmatprep.mubr.f32.mxu0 0.0
  %5178 = vmatmul.mubr.f32.gmra.mrb[0].mxu0 %v2270
  %v5179 = vpop.f32.mrb[0].mxu0
  %v5180 = vadd.f32 0.0, %v5179
  %v5181 = vpop.f32.mrb[0].mxu0
  %5182 = vmatprep.mubr.f32.mxu0 0.0
  %5183 = vmatmul.mubr.f32.gmra.mrb[0].mxu0 %v2273
  %v5184 = vpop.f32.mrb[0].mxu0
  %v5185 = vadd.f32 0.0, %v5184
  %v5186 = vpop.f32.mrb[0].mxu0
  %5187 = vmatprep.mubr.f32.mxu0 0.0
  %5188 = vmatmul.mubr.f32.gmra.mrb[0].mxu0 %v2276
  %v5189 = vpop.f32.mrb[0].mxu0
  %v5190 = vadd.f32 0.0, %v5189
  %v5191 = vpop.f32.mrb[0].mxu0
  %5192 = vmatprep.mubr.f32.mxu0 0.0
  %5193 = vmatmul.mubr.f32.gmra.mrb[0].mxu0 %v2279
  %v5194 = vpop.f32.mrb[0].mxu0
  %v5195 = vadd.f32 0.0, %v5194
  %v5196 = vpop.f32.mrb[0].mxu0
  %5197 = vmatprep.mubr.f32.mxu0 0.0
  %5198 = vmatmul.mubr.f32.gmra.mrb[0].mxu0 %v2282
  %v5199 = vpop.f32.mrb[0].mxu0
  %v5200 = vadd.f32 0.0, %v5199
  %v5201 = vpop.f32.mrb[0].mxu0
  %5202 = vmatprep.mubr.f32.mxu0 0.0
  %5203 = vmatmul.mubr.f32.gmra.mrb[0].mxu0 %v2285
  %v5204 = vpop.f32.mrb[0].mxu0
  %v5205 = vadd.f32 0.0, %v5204
  %v5206 = vpop.f32.mrb[0].mxu0
  %5207 = vmatprep.mubr.f32.mxu0 0.0
  %5208 = vmatmul.mubr.f32.gmra.mrb[0].mxu0 %v2288
  %v5209 = vpop.f32.mrb[0].mxu0
  %v5210 = vadd.f32 0.0, %v5209
  %v5211 = vpop.f32.mrb[0].mxu0
  %5212 = vmatprep.mubr.f32.mxu0 0.0
  %5213 = vmatmul.mubr.f32.gmra.mrb[0].mxu0 %v2291
  %v5214 = vpop.f32.mrb[0].mxu0
  %v5215 = vadd.f32 0.0, %v5214
  %v5216 = vpop.f32.mrb[0].mxu0
  %5217 = vmatprep.mubr.f32.mxu0 0.0
  %5218 = vmatmul.mubr.f32.gmra.mrb[0].mxu0 %v2294
  %v5219 = vpop.f32.mrb[0].mxu0
  %v5220 = vadd.f32 0.0, %v5219
  %v5221 = vpop.f32.mrb[0].mxu0
  %5222 = vmatprep.mubr.f32.mxu0 0.0
  %5223 = vmatmul.mubr.f32.gmra.mrb[0].mxu0 %v2297
  %v5224 = vpop.f32.mrb[0].mxu0
  %v5225 = vadd.f32 0.0, %v5224
  %v5226 = vpop.f32.mrb[0].mxu0
  %5227 = vmatprep.mubr.f32.mxu0 0.0
  %5228 = vmatmul.mubr.f32.gmra.mrb[0].mxu0 %v2300
  %v5229 = vpop.f32.mrb[0].mxu0
  %v5230 = vadd.f32 0.0, %v5229
  %v5231 = vpop.f32.mrb[0].mxu0
  %5232 = vmatprep.mubr.f32.mxu0 0.0
  %5233 = vmatmul.mubr.f32.gmra.mrb[0].mxu0 %v2303
  %v5234 = vpop.f32.mrb[0].mxu0
  %v5235 = vadd.f32 0.0, %v5234
  %v5236 = vpop.f32.mrb[0].mxu0
  %5237 = vmatprep.mubr.f32.mxu0 0.0
  %5238 = vmatmul.mubr.f32.gmra.mrb[0].mxu0 %v2306
  %v5239 = vpop.f32.mrb[0].mxu0
  %v5240 = vadd.f32 0.0, %v5239
  %v5241 = vpop.f32.mrb[0].mxu0
  %5242 = vmatprep.mubr.f32.mxu0 0.0
  %5243 = vmatmul.mubr.f32.gmra.mrb[0].mxu0 %v2309
  %v5244 = vpop.f32.mrb[0].mxu0
  %v5245 = vadd.f32 0.0, %v5244
  %v5246 = vpop.f32.mrb[0].mxu0
  %5247 = vmatprep.mubr.f32.mxu0 0.0
  %5248 = vmatmul.mubr.f32.gmra.mrb[0].mxu0 %v2312
  %v5249 = vpop.f32.mrb[0].mxu0
  %v5250 = vadd.f32 0.0, %v5249
  %v5251 = vpop.f32.mrb[0].mxu0
  %5252 = vmatprep.mubr.f32.mxu0 0.0
  %5253 = vmatmul.mubr.f32.gmra.mrb[0].mxu0 %v2315
  %v5254 = vpop.f32.mrb[0].mxu0
  %v5255 = vadd.f32 0.0, %v5254
  %v5256 = vpop.f32.mrb[0].mxu0
  %5257 = vmatprep.mubr.f32.mxu0 0.0
  %5258 = vmatmul.mubr.f32.gmra.mrb[0].mxu0 %v2318
  %v5259 = vpop.f32.mrb[0].mxu0
  %v5260 = vadd.f32 0.0, %v5259
  %v5261 = vpop.f32.mrb[0].mxu0
  %5262 = vmatprep.mubr.f32.mxu0 0.0
  %5263 = vmatmul.mubr.f32.gmra.mrb[0].mxu0 %v2321
  %v5264 = vpop.f32.mrb[0].mxu0
  %v5265 = vadd.f32 0.0, %v5264
  %v5266 = vpop.f32.mrb[0].mxu0
  %5267 = vdwg.mxu0
  %v5268 = vmax.f32 %v2390, %v2480
  %v5269 = vmax.f32 %v2395, %v2485
  %v5270 = vmax.f32 %v2400, %v2490
  %v5271 = vmax.f32 %v2405, %v2495
  %v5272 = vmax.f32 %v2410, %v2500
  %v5273 = vmax.f32 %v2415, %v2505
  %v5274 = vmax.f32 %v2420, %v2510
  %v5275 = vmax.f32 %v2425, %v2515
  %v5276 = vmax.f32 %v2430, %v2520
  %v5277 = vmax.f32 %v2435, %v2525
  %v5278 = vmax.f32 %v2440, %v2530
  %v5279 = vmax.f32 %v2445, %v2535
  %v5280 = vmax.f32 %v2450, %v2540
  %v5281 = vmax.f32 %v2455, %v2545
  %v5282 = vmax.f32 %v2460, %v2550
  %v5283 = vmax.f32 %v2465, %v2555
  %v5284 = vmax.f32 %v2470, %v2560
  %v5285 = vmax.f32 %v2475, %v2565
  %v5286 = vmax.f32 %v2750, %v2840
  %v5287 = vmax.f32 %v2755, %v2845
  %v5288 = vmax.f32 %v2760, %v2850
  %v5289 = vmax.f32 %v2765, %v2855
  %v5290 = vmax.f32 %v2770, %v2860
  %v5291 = vmax.f32 %v2775, %v2865
  %v5292 = vmax.f32 %v2780, %v2870
  %v5293 = vmax.f32 %v2785, %v2875
  %v5294 = vmax.f32 %v2790, %v2880
  %v5295 = vmax.f32 %v2795, %v2885
  %v5296 = vmax.f32 %v2800, %v2890
  %v5297 = vmax.f32 %v2805, %v2895
  %v5298 = vmax.f32 %v2810, %v2900
  %v5299 = vmax.f32 %v2815, %v2905
  %v5300 = vmax.f32 %v2820, %v2910
  %v5301 = vmax.f32 %v2825, %v2915
  %v5302 = vmax.f32 %v2830, %v2920
  %v5303 = vmax.f32 %v2835, %v2925
  %v5304 = vmax.f32 %v3110, %v3200
  %v5305 = vmax.f32 %v3115, %v3205
  %v5306 = vmax.f32 %v3120, %v3210
  %v5307 = vmax.f32 %v3125, %v3215
  %v5308 = vmax.f32 %v3130, %v3220
  %v5309 = vmax.f32 %v3135, %v3225
  %v5310 = vmax.f32 %v3140, %v3230
  %v5311 = vmax.f32 %v3145, %v3235
  %v5312 = vmax.f32 %v3150, %v3240
  %v5313 = vmax.f32 %v3155, %v3245
  %v5314 = vmax.f32 %v3160, %v3250
  %v5315 = vmax.f32 %v3165, %v3255
  %v5316 = vmax.f32 %v3170, %v3260
  %v5317 = vmax.f32 %v3175, %v3265
  %v5318 = vmax.f32 %v3180, %v3270
  %v5319 = vmax.f32 %v3185, %v3275
  %v5320 = vmax.f32 %v3190, %v3280
  %v5321 = vmax.f32 %v3195, %v3285
  %v5322 = vmax.f32 %v3470, %v3560
  %v5323 = vmax.f32 %v3475, %v3565
  %v5324 = vmax.f32 %v3480, %v3570
  %v5325 = vmax.f32 %v3485, %v3575
  %v5326 = vmax.f32 %v3490, %v3580
  %v5327 = vmax.f32 %v3495, %v3585
  %v5328 = vmax.f32 %v3500, %v3590
  %v5329 = vmax.f32 %v3505, %v3595
  %v5330 = vmax.f32 %v3510, %v3600
  %v5331 = vmax.f32 %v3515, %v3605
  %v5332 = vmax.f32 %v3520, %v3610
  %v5333 = vmax.f32 %v3525, %v3615
  %v5334 = vmax.f32 %v3530, %v3620
  %v5335 = vmax.f32 %v3535, %v3625
  %v5336 = vmax.f32 %v3540, %v3630
  %v5337 = vmax.f32 %v3545, %v3635
  %v5338 = vmax.f32 %v3550, %v3640
  %v5339 = vmax.f32 %v3555, %v3645
  %v5340 = vmax.f32 %v3830, %v3920
  %v5341 = vmax.f32 %v3835, %v3925
  %v5342 = vmax.f32 %v3840, %v3930
  %v5343 = vmax.f32 %v3845, %v3935
  %v5344 = vmax.f32 %v3850, %v3940
  %v5345 = vmax.f32 %v3855, %v3945
  %v5346 = vmax.f32 %v3860, %v3950
  %v5347 = vmax.f32 %v3865, %v3955
  %v5348 = vmax.f32 %v3870, %v3960
  %v5349 = vmax.f32 %v3875, %v3965
  %v5350 = vmax.f32 %v3880, %v3970
  %v5351 = vmax.f32 %v3885, %v3975
  %v5352 = vmax.f32 %v3890, %v3980
  %v5353 = vmax.f32 %v3895, %v3985
  %v5354 = vmax.f32 %v3900, %v3990
  %v5355 = vmax.f32 %v3905, %v3995
  %v5356 = vmax.f32 %v3910, %v4000
  %v5357 = vmax.f32 %v3915, %v4005
  %v5358 = vmax.f32 %v4190, %v4280
  %v5359 = vmax.f32 %v4195, %v4285
  %v5360 = vmax.f32 %v4200, %v4290
  %v5361 = vmax.f32 %v4205, %v4295
  %v5362 = vmax.f32 %v4210, %v4300
  %v5363 = vmax.f32 %v4215, %v4305
  %v5364 = vmax.f32 %v4220, %v4310
  %v5365 = vmax.f32 %v4225, %v4315
  %v5366 = vmax.f32 %v4230, %v4320
  %v5367 = vmax.f32 %v4235, %v4325
  %v5368 = vmax.f32 %v4240, %v4330
  %v5369 = vmax.f32 %v4245, %v4335
  %v5370 = vmax.f32 %v4250, %v4340
  %v5371 = vmax.f32 %v4255, %v4345
  %v5372 = vmax.f32 %v4260, %v4350
  %v5373 = vmax.f32 %v4265, %v4355
  %v5374 = vmax.f32 %v4270, %v4360
  %v5375 = vmax.f32 %v4275, %v4365
  %v5376 = vmax.f32 %v4550, %v4640
  %v5377 = vmax.f32 %v4555, %v4645
  %v5378 = vmax.f32 %v4560, %v4650
  %v5379 = vmax.f32 %v4565, %v4655
  %v5380 = vmax.f32 %v4570, %v4660
  %v5381 = vmax.f32 %v4575, %v4665
  %v5382 = vmax.f32 %v4580, %v4670
  %v5383 = vmax.f32 %v4585, %v4675
  %v5384 = vmax.f32 %v4590, %v4680
  %v5385 = vmax.f32 %v4595, %v4685
  %v5386 = vmax.f32 %v4600, %v4690
  %v5387 = vmax.f32 %v4605, %v4695
  %v5388 = vmax.f32 %v4610, %v4700
  %v5389 = vmax.f32 %v4615, %v4705
  %v5390 = vmax.f32 %v4620, %v4710
  %v5391 = vmax.f32 %v4625, %v4715
  %v5392 = vmax.f32 %v4630, %v4720
  %v5393 = vmax.f32 %v4635, %v4725
  %v5394 = vmax.f32 %v4910, %v5000
  %v5395 = vmax.f32 %v4915, %v5005
  %v5396 = vmax.f32 %v4920, %v5010
  %v5397 = vmax.f32 %v4925, %v5015
  %v5398 = vmax.f32 %v4930, %v5020
  %v5399 = vmax.f32 %v4935, %v5025
  %v5400 = vmax.f32 %v4940, %v5030
  %v5401 = vmax.f32 %v4945, %v5035
  %v5402 = vmax.f32 %v4950, %v5040
  %v5403 = vmax.f32 %v4955, %v5045
  %v5404 = vmax.f32 %v4960, %v5050
  %v5405 = vmax.f32 %v4965, %v5055
  %v5406 = vmax.f32 %v4970, %v5060
  %v5407 = vmax.f32 %v4975, %v5065
  %v5408 = vmax.f32 %v4980, %v5070
  %v5409 = vmax.f32 %v4985, %v5075
  %v5410 = vmax.f32 %v4990, %v5080
  %v5411 = vmax.f32 %v4995, %v5085
  %v5412 = vmax.f32 %v2570, %v2660
  %v5413 = vmax.f32 %v2575, %v2665
  %v5414 = vmax.f32 %v2580, %v2670
  %v5415 = vmax.f32 %v2585, %v2675
  %v5416 = vmax.f32 %v2590, %v2680
  %v5417 = vmax.f32 %v2595, %v2685
  %v5418 = vmax.f32 %v2600, %v2690
  %v5419 = vmax.f32 %v2605, %v2695
  %v5420 = vmax.f32 %v2610, %v2700
  %v5421 = vmax.f32 %v2615, %v2705
  %v5422 = vmax.f32 %v2620, %v2710
  %v5423 = vmax.f32 %v2625, %v2715
  %v5424 = vmax.f32 %v2630, %v2720
  %v5425 = vmax.f32 %v2635, %v2725
  %v5426 = vmax.f32 %v2640, %v2730
  %v5427 = vmax.f32 %v2645, %v2735
  %v5428 = vmax.f32 %v2650, %v2740
  %v5429 = vmax.f32 %v2655, %v2745
  %v5430 = vmax.f32 %v2930, %v3020
  %v5431 = vmax.f32 %v2935, %v3025
  %v5432 = vmax.f32 %v2940, %v3030
  %v5433 = vmax.f32 %v2945, %v3035
  %v5434 = vmax.f32 %v2950, %v3040
  %v5435 = vmax.f32 %v2955, %v3045
  %v5436 = vmax.f32 %v2960, %v3050
  %v5437 = vmax.f32 %v2965, %v3055
  %v5438 = vmax.f32 %v2970, %v3060
  %v5439 = vmax.f32 %v2975, %v3065
  %v5440 = vmax.f32 %v2980, %v3070
  %v5441 = vmax.f32 %v2985, %v3075
  %v5442 = vmax.f32 %v2990, %v3080
  %v5443 = vmax.f32 %v2995, %v3085
  %v5444 = vmax.f32 %v3000, %v3090
  %v5445 = vmax.f32 %v3005, %v3095
  %v5446 = vmax.f32 %v3010, %v3100
  %v5447 = vmax.f32 %v3015, %v3105
  %v5448 = vmax.f32 %v3290, %v3380
  %v5449 = vmax.f32 %v3295, %v3385
  %v5450 = vmax.f32 %v3300, %v3390
  %v5451 = vmax.f32 %v3305, %v3395
  %v5452 = vmax.f32 %v3310, %v3400
  %v5453 = vmax.f32 %v3315, %v3405
  %v5454 = vmax.f32 %v3320, %v3410
  %v5455 = vmax.f32 %v3325, %v3415
  %v5456 = vmax.f32 %v3330, %v3420
  %v5457 = vmax.f32 %v3335, %v3425
  %v5458 = vmax.f32 %v3340, %v3430
  %v5459 = vmax.f32 %v3345, %v3435
  %v5460 = vmax.f32 %v3350, %v3440
  %v5461 = vmax.f32 %v3355, %v3445
  %v5462 = vmax.f32 %v3360, %v3450
  %v5463 = vmax.f32 %v3365, %v3455
  %v5464 = vmax.f32 %v3370, %v3460
  %v5465 = vmax.f32 %v3375, %v3465
  %v5466 = vmax.f32 %v3650, %v3740
  %v5467 = vmax.f32 %v3655, %v3745
  %v5468 = vmax.f32 %v3660, %v3750
  %v5469 = vmax.f32 %v3665, %v3755
  %v5470 = vmax.f32 %v3670, %v3760
  %v5471 = vmax.f32 %v3675, %v3765
  %v5472 = vmax.f32 %v3680, %v3770
  %v5473 = vmax.f32 %v3685, %v3775
  %v5474 = vmax.f32 %v3690, %v3780
  %v5475 = vmax.f32 %v3695, %v3785
  %v5476 = vmax.f32 %v3700, %v3790
  %v5477 = vmax.f32 %v3705, %v3795
  %v5478 = vmax.f32 %v3710, %v3800
  %v5479 = vmax.f32 %v3715, %v3805
  %v5480 = vmax.f32 %v3720, %v3810
  %v5481 = vmax.f32 %v3725, %v3815
  %v5482 = vmax.f32 %v3730, %v3820
  %v5483 = vmax.f32 %v3735, %v3825
  %v5484 = vmax.f32 %v4010, %v4100
  %v5485 = vmax.f32 %v4015, %v4105
  %v5486 = vmax.f32 %v4020, %v4110
  %v5487 = vmax.f32 %v4025, %v4115
  %v5488 = vmax.f32 %v4030, %v4120
  %v5489 = vmax.f32 %v4035, %v4125
  %v5490 = vmax.f32 %v4040, %v4130
  %v5491 = vmax.f32 %v4045, %v4135
  %v5492 = vmax.f32 %v4050, %v4140
  %v5493 = vmax.f32 %v4055, %v4145
  %v5494 = vmax.f32 %v4060, %v4150
  %v5495 = vmax.f32 %v4065, %v4155
  %v5496 = vmax.f32 %v4070, %v4160
  %v5497 = vmax.f32 %v4075, %v4165
  %v5498 = vmax.f32 %v4080, %v4170
  %v5499 = vmax.f32 %v4085, %v4175
  %v5500 = vmax.f32 %v4090, %v4180
  %v5501 = vmax.f32 %v4095, %v4185
  %v5502 = vmax.f32 %v4370, %v4460
  %v5503 = vmax.f32 %v4375, %v4465
  %v5504 = vmax.f32 %v4380, %v4470
  %v5505 = vmax.f32 %v4385, %v4475
  %v5506 = vmax.f32 %v4390, %v4480
  %v5507 = vmax.f32 %v4395, %v4485
  %v5508 = vmax.f32 %v4400, %v4490
  %v5509 = vmax.f32 %v4405, %v4495
  %v5510 = vmax.f32 %v4410, %v4500
  %v5511 = vmax.f32 %v4415, %v4505
  %v5512 = vmax.f32 %v4420, %v4510
  %v5513 = vmax.f32 %v4425, %v4515
  %v5514 = vmax.f32 %v4430, %v4520
  %v5515 = vmax.f32 %v4435, %v4525
  %v5516 = vmax.f32 %v4440, %v4530
  %v5517 = vmax.f32 %v4445, %v4535
  %v5518 = vmax.f32 %v4450, %v4540
  %v5519 = vmax.f32 %v4455, %v4545
  %v5520 = vmax.f32 %v4730, %v4820
  %v5521 = vmax.f32 %v4735, %v4825
  %v5522 = vmax.f32 %v4740, %v4830
  %v5523 = vmax.f32 %v4745, %v4835
  %v5524 = vmax.f32 %v4750, %v4840
  %v5525 = vmax.f32 %v4755, %v4845
  %v5526 = vmax.f32 %v4760, %v4850
  %v5527 = vmax.f32 %v4765, %v4855
  %v5528 = vmax.f32 %v4770, %v4860
  %v5529 = vmax.f32 %v4775, %v4865
  %v5530 = vmax.f32 %v4780, %v4870
  %v5531 = vmax.f32 %v4785, %v4875
  %v5532 = vmax.f32 %v4790, %v4880
  %v5533 = vmax.f32 %v4795, %v4885
  %v5534 = vmax.f32 %v4800, %v4890
  %v5535 = vmax.f32 %v4805, %v4895
  %v5536 = vmax.f32 %v4810, %v4900
  %v5537 = vmax.f32 %v4815, %v4905
  %v5538 = vmax.f32 %v5090, %v5180
  %v5539 = vmax.f32 %v5095, %v5185
  %v5540 = vmax.f32 %v5100, %v5190
  %v5541 = vmax.f32 %v5105, %v5195
  %v5542 = vmax.f32 %v5110, %v5200
  %v5543 = vmax.f32 %v5115, %v5205
  %v5544 = vmax.f32 %v5120, %v5210
  %v5545 = vmax.f32 %v5125, %v5215
  %v5546 = vmax.f32 %v5130, %v5220
  %v5547 = vmax.f32 %v5135, %v5225
  %v5548 = vmax.f32 %v5140, %v5230
  %v5549 = vmax.f32 %v5145, %v5235
  %v5550 = vmax.f32 %v5150, %v5240
  %v5551 = vmax.f32 %v5155, %v5245
  %v5552 = vmax.f32 %v5160, %v5250
  %v5553 = vmax.f32 %v5165, %v5255
  %v5554 = vmax.f32 %v5170, %v5260
  %v5555 = vmax.f32 %v5175, %v5265
  %v5556 = vmax.f32 %v5268, %v5412
  %v5557 = vmax.f32 %v5269, %v5413
  %v5558 = vmax.f32 %v5270, %v5414
  %v5559 = vmax.f32 %v5271, %v5415
  %v5560 = vmax.f32 %v5272, %v5416
  %v5561 = vmax.f32 %v5273, %v5417
  %v5562 = vmax.f32 %v5274, %v5418
  %v5563 = vmax.f32 %v5275, %v5419
  %v5564 = vmax.f32 %v5276, %v5420
  %v5565 = vmax.f32 %v5277, %v5421
  %v5566 = vmax.f32 %v5278, %v5422
  %v5567 = vmax.f32 %v5279, %v5423
  %v5568 = vmax.f32 %v5280, %v5424
  %v5569 = vmax.f32 %v5281, %v5425
  %v5570 = vmax.f32 %v5282, %v5426
  %v5571 = vmax.f32 %v5283, %v5427
  %v5572 = vmax.f32 %v5284, %v5428
  %v5573 = vmax.f32 %v5285, %v5429
  %v5574 = vmax.f32 %v5286, %v5430
  %v5575 = vmax.f32 %v5287, %v5431
  %v5576 = vmax.f32 %v5288, %v5432
  %v5577 = vmax.f32 %v5289, %v5433
  %v5578 = vmax.f32 %v5290, %v5434
  %v5579 = vmax.f32 %v5291, %v5435
  %v5580 = vmax.f32 %v5292, %v5436
  %v5581 = vmax.f32 %v5293, %v5437
  %v5582 = vmax.f32 %v5294, %v5438
  %v5583 = vmax.f32 %v5295, %v5439
  %v5584 = vmax.f32 %v5296, %v5440
  %v5585 = vmax.f32 %v5297, %v5441
  %v5586 = vmax.f32 %v5298, %v5442
  %v5587 = vmax.f32 %v5299, %v5443
  %v5588 = vmax.f32 %v5300, %v5444
  %v5589 = vmax.f32 %v5301, %v5445
  %v5590 = vmax.f32 %v5302, %v5446
  %v5591 = vmax.f32 %v5303, %v5447
  %v5592 = vmax.f32 %v5304, %v5448
  %v5593 = vmax.f32 %v5305, %v5449
  %v5594 = vmax.f32 %v5306, %v5450
  %v5595 = vmax.f32 %v5307, %v5451
  %v5596 = vmax.f32 %v5308, %v5452
  %v5597 = vmax.f32 %v5309, %v5453
  %v5598 = vmax.f32 %v5310, %v5454
  %v5599 = vmax.f32 %v5311, %v5455
  %v5600 = vmax.f32 %v5312, %v5456
  %v5601 = vmax.f32 %v5313, %v5457
  %v5602 = vmax.f32 %v5314, %v5458
  %v5603 = vmax.f32 %v5315, %v5459
  %v5604 = vmax.f32 %v5316, %v5460
  %v5605 = vmax.f32 %v5317, %v5461
  %v5606 = vmax.f32 %v5318, %v5462
  %v5607 = vmax.f32 %v5319, %v5463
  %v5608 = vmax.f32 %v5320, %v5464
  %v5609 = vmax.f32 %v5321, %v5465
  %v5610 = vmax.f32 %v5322, %v5466
  %v5611 = vmax.f32 %v5323, %v5467
  %v5612 = vmax.f32 %v5324, %v5468
  %v5613 = vmax.f32 %v5325, %v5469
  %v5614 = vmax.f32 %v5326, %v5470
  %v5615 = vmax.f32 %v5327, %v5471
  %v5616 = vmax.f32 %v5328, %v5472
  %v5617 = vmax.f32 %v5329, %v5473
  %v5618 = vmax.f32 %v5330, %v5474
  %v5619 = vmax.f32 %v5331, %v5475
  %v5620 = vmax.f32 %v5332, %v5476
  %v5621 = vmax.f32 %v5333, %v5477
  %v5622 = vmax.f32 %v5334, %v5478
  %v5623 = vmax.f32 %v5335, %v5479
  %v5624 = vmax.f32 %v5336, %v5480
  %v5625 = vmax.f32 %v5337, %v5481
  %v5626 = vmax.f32 %v5338, %v5482
  %v5627 = vmax.f32 %v5339, %v5483
  %v5628 = vmax.f32 %v5340, %v5484
  %v5629 = vmax.f32 %v5341, %v5485
  %v5630 = vmax.f32 %v5342, %v5486
  %v5631 = vmax.f32 %v5343, %v5487
  %v5632 = vmax.f32 %v5344, %v5488
  %v5633 = vmax.f32 %v5345, %v5489
  %v5634 = vmax.f32 %v5346, %v5490
  %v5635 = vmax.f32 %v5347, %v5491
  %v5636 = vmax.f32 %v5348, %v5492
  %v5637 = vmax.f32 %v5349, %v5493
  %v5638 = vmax.f32 %v5350, %v5494
  %v5639 = vmax.f32 %v5351, %v5495
  %v5640 = vmax.f32 %v5352, %v5496
  %v5641 = vmax.f32 %v5353, %v5497
  %v5642 = vmax.f32 %v5354, %v5498
  %v5643 = vmax.f32 %v5355, %v5499
  %v5644 = vmax.f32 %v5356, %v5500
  %v5645 = vmax.f32 %v5357, %v5501
  %v5646 = vmax.f32 %v5358, %v5502
  %v5647 = vmax.f32 %v5359, %v5503
  %v5648 = vmax.f32 %v5360, %v5504
  %v5649 = vmax.f32 %v5361, %v5505
  %v5650 = vmax.f32 %v5362, %v5506
  %v5651 = vmax.f32 %v5363, %v5507
  %v5652 = vmax.f32 %v5364, %v5508
  %v5653 = vmax.f32 %v5365, %v5509
  %v5654 = vmax.f32 %v5366, %v5510
  %v5655 = vmax.f32 %v5367, %v5511
  %v5656 = vmax.f32 %v5368, %v5512
  %v5657 = vmax.f32 %v5369, %v5513
  %v5658 = vmax.f32 %v5370, %v5514
  %v5659 = vmax.f32 %v5371, %v5515
  %v5660 = vmax.f32 %v5372, %v5516
  %v5661 = vmax.f32 %v5373, %v5517
  %v5662 = vmax.f32 %v5374, %v5518
  %v5663 = vmax.f32 %v5375, %v5519
  %v5664 = vmax.f32 %v5376, %v5520
  %v5665 = vmax.f32 %v5377, %v5521
  %v5666 = vmax.f32 %v5378, %v5522
  %v5667 = vmax.f32 %v5379, %v5523
  %v5668 = vmax.f32 %v5380, %v5524
  %v5669 = vmax.f32 %v5381, %v5525
  %v5670 = vmax.f32 %v5382, %v5526
  %v5671 = vmax.f32 %v5383, %v5527
  %v5672 = vmax.f32 %v5384, %v5528
  %v5673 = vmax.f32 %v5385, %v5529
  %v5674 = vmax.f32 %v5386, %v5530
  %v5675 = vmax.f32 %v5387, %v5531
  %v5676 = vmax.f32 %v5388, %v5532
  %v5677 = vmax.f32 %v5389, %v5533
  %v5678 = vmax.f32 %v5390, %v5534
  %v5679 = vmax.f32 %v5391, %v5535
  %v5680 = vmax.f32 %v5392, %v5536
  %v5681 = vmax.f32 %v5393, %v5537
  %v5682 = vmax.f32 %v5394, %v5538
  %v5683 = vmax.f32 %v5395, %v5539
  %v5684 = vmax.f32 %v5396, %v5540
  %v5685 = vmax.f32 %v5397, %v5541
  %v5686 = vmax.f32 %v5398, %v5542
  %v5687 = vmax.f32 %v5399, %v5543
  %v5688 = vmax.f32 %v5400, %v5544
  %v5689 = vmax.f32 %v5401, %v5545
  %v5690 = vmax.f32 %v5402, %v5546
  %v5691 = vmax.f32 %v5403, %v5547
  %v5692 = vmax.f32 %v5404, %v5548
  %v5693 = vmax.f32 %v5405, %v5549
  %v5694 = vmax.f32 %v5406, %v5550
  %v5695 = vmax.f32 %v5407, %v5551
  %v5696 = vmax.f32 %v5408, %v5552
  %v5697 = vmax.f32 %v5409, %v5553
  %v5698 = vmax.f32 %v5410, %v5554
  %v5699 = vmax.f32 %v5411, %v5555
  %v5700 = vld [vmem:[%s2] sm:$0x1]
  %v5702 = vlaneseq
  %v5703 = vshrl.u32 %v5702, 7
  %v5704 = vsub.s32 0, %v5703
  %v5705 = vrot.slane %v5700, %v5704
  %v5707 = vadd.f32 %v5556, %v5705
  %v5708 = vadd.f32 %v5557, %v5705
  %v5709 = vadd.f32 %v5558, %v5705
  %v5710 = vadd.f32 %v5559, %v5705
  %v5711 = vadd.f32 %v5560, %v5705
  %v5712 = vadd.f32 %v5561, %v5705
  %v5713 = vadd.f32 %v5562, %v5705
  %v5714 = vadd.f32 %v5563, %v5705
  %v5715 = vadd.f32 %v5564, %v5705
  %v5716 = vadd.f32 %v5565, %v5705
  %v5717 = vadd.f32 %v5566, %v5705
  %v5718 = vadd.f32 %v5567, %v5705
  %v5719 = vadd.f32 %v5568, %v5705
  %v5720 = vadd.f32 %v5569, %v5705
  %v5721 = vadd.f32 %v5570, %v5705
  %v5722 = vadd.f32 %v5571, %v5705
  %v5723 = vadd.f32 %v5572, %v5705
  %v5724 = vadd.f32 %v5573, %v5705
  %v5725 = vadd.f32 %v5574, %v5705
  %v5726 = vadd.f32 %v5575, %v5705
  %v5727 = vadd.f32 %v5576, %v5705
  %v5728 = vadd.f32 %v5577, %v5705
  %v5729 = vadd.f32 %v5578, %v5705
  %v5730 = vadd.f32 %v5579, %v5705
  %v5731 = vadd.f32 %v5580, %v5705
  %v5732 = vadd.f32 %v5581, %v5705
  %v5733 = vadd.f32 %v5582, %v5705
  %v5734 = vadd.f32 %v5583, %v5705
  %v5735 = vadd.f32 %v5584, %v5705
  %v5736 = vadd.f32 %v5585, %v5705
  %v5737 = vadd.f32 %v5586, %v5705
  %v5738 = vadd.f32 %v5587, %v5705
  %v5739 = vadd.f32 %v5588, %v5705
  %v5740 = vadd.f32 %v5589, %v5705
  %v5741 = vadd.f32 %v5590, %v5705
  %v5742 = vadd.f32 %v5591, %v5705
  %v5743 = vadd.f32 %v5592, %v5705
  %v5744 = vadd.f32 %v5593, %v5705
  %v5745 = vadd.f32 %v5594, %v5705
  %v5746 = vadd.f32 %v5595, %v5705
  %v5747 = vadd.f32 %v5596, %v5705
  %v5748 = vadd.f32 %v5597, %v5705
  %v5749 = vadd.f32 %v5598, %v5705
  %v5750 = vadd.f32 %v5599, %v5705
  %v5751 = vadd.f32 %v5600, %v5705
  %v5752 = vadd.f32 %v5601, %v5705
  %v5753 = vadd.f32 %v5602, %v5705
  %v5754 = vadd.f32 %v5603, %v5705
  %v5755 = vadd.f32 %v5604, %v5705
  %v5756 = vadd.f32 %v5605, %v5705
  %v5757 = vadd.f32 %v5606, %v5705
  %v5758 = vadd.f32 %v5607, %v5705
  %v5759 = vadd.f32 %v5608, %v5705
  %v5760 = vadd.f32 %v5609, %v5705
  %v5761 = vadd.f32 %v5610, %v5705
  %v5762 = vadd.f32 %v5611, %v5705
  %v5763 = vadd.f32 %v5612, %v5705
  %v5764 = vadd.f32 %v5613, %v5705
  %v5765 = vadd.f32 %v5614, %v5705
  %v5766 = vadd.f32 %v5615, %v5705
  %v5767 = vadd.f32 %v5616, %v5705
  %v5768 = vadd.f32 %v5617, %v5705
  %v5769 = vadd.f32 %v5618, %v5705
  %v5770 = vadd.f32 %v5619, %v5705
  %v5771 = vadd.f32 %v5620, %v5705
  %v5772 = vadd.f32 %v5621, %v5705
  %v5773 = vadd.f32 %v5622, %v5705
  %v5774 = vadd.f32 %v5623, %v5705
  %v5775 = vadd.f32 %v5624, %v5705
  %v5776 = vadd.f32 %v5625, %v5705
  %v5777 = vadd.f32 %v5626, %v5705
  %v5778 = vadd.f32 %v5627, %v5705
  %v5779 = vadd.f32 %v5628, %v5705
  %v5780 = vadd.f32 %v5629, %v5705
  %v5781 = vadd.f32 %v5630, %v5705
  %v5782 = vadd.f32 %v5631, %v5705
  %v5783 = vadd.f32 %v5632, %v5705
  %v5784 = vadd.f32 %v5633, %v5705
  %v5785 = vadd.f32 %v5634, %v5705
  %v5786 = vadd.f32 %v5635, %v5705
  %v5787 = vadd.f32 %v5636, %v5705
  %v5788 = vadd.f32 %v5637, %v5705
  %v5789 = vadd.f32 %v5638, %v5705
  %v5790 = vadd.f32 %v5639, %v5705
  %v5791 = vadd.f32 %v5640, %v5705
  %v5792 = vadd.f32 %v5641, %v5705
  %v5793 = vadd.f32 %v5642, %v5705
  %v5794 = vadd.f32 %v5643, %v5705
  %v5795 = vadd.f32 %v5644, %v5705
  %v5796 = vadd.f32 %v5645, %v5705
  %v5797 = vadd.f32 %v5646, %v5705
  %v5798 = vadd.f32 %v5647, %v5705
  %v5799 = vadd.f32 %v5648, %v5705
  %v5800 = vadd.f32 %v5649, %v5705
  %v5801 = vadd.f32 %v5650, %v5705
  %v5802 = vadd.f32 %v5651, %v5705
  %v5803 = vadd.f32 %v5652, %v5705
  %v5804 = vadd.f32 %v5653, %v5705
  %v5805 = vadd.f32 %v5654, %v5705
  %v5806 = vadd.f32 %v5655, %v5705
  %v5807 = vadd.f32 %v5656, %v5705
  %v5808 = vadd.f32 %v5657, %v5705
  %v5809 = vadd.f32 %v5658, %v5705
  %v5810 = vadd.f32 %v5659, %v5705
  %v5811 = vadd.f32 %v5660, %v5705
  %v5812 = vadd.f32 %v5661, %v5705
  %v5813 = vadd.f32 %v5662, %v5705
  %v5814 = vadd.f32 %v5663, %v5705
  %v5815 = vadd.f32 %v5664, %v5705
  %v5816 = vadd.f32 %v5665, %v5705
  %v5817 = vadd.f32 %v5666, %v5705
  %v5818 = vadd.f32 %v5667, %v5705
  %v5819 = vadd.f32 %v5668, %v5705
  %v5820 = vadd.f32 %v5669, %v5705
  %v5821 = vadd.f32 %v5670, %v5705
  %v5822 = vadd.f32 %v5671, %v5705
  %v5823 = vadd.f32 %v5672, %v5705
  %v5824 = vadd.f32 %v5673, %v5705
  %v5825 = vadd.f32 %v5674, %v5705
  %v5826 = vadd.f32 %v5675, %v5705
  %v5827 = vadd.f32 %v5676, %v5705
  %v5828 = vadd.f32 %v5677, %v5705
  %v5829 = vadd.f32 %v5678, %v5705
  %v5830 = vadd.f32 %v5679, %v5705
  %v5831 = vadd.f32 %v5680, %v5705
  %v5832 = vadd.f32 %v5681, %v5705
  %v5833 = vadd.f32 %v5682, %v5705
  %v5834 = vadd.f32 %v5683, %v5705
  %v5835 = vadd.f32 %v5684, %v5705
  %v5836 = vadd.f32 %v5685, %v5705
  %v5837 = vadd.f32 %v5686, %v5705
  %v5838 = vadd.f32 %v5687, %v5705
  %v5839 = vadd.f32 %v5688, %v5705
  %v5840 = vadd.f32 %v5689, %v5705
  %v5841 = vadd.f32 %v5690, %v5705
  %v5842 = vadd.f32 %v5691, %v5705
  %v5843 = vadd.f32 %v5692, %v5705
  %v5844 = vadd.f32 %v5693, %v5705
  %v5845 = vadd.f32 %v5694, %v5705
  %v5846 = vadd.f32 %v5695, %v5705
  %v5847 = vadd.f32 %v5696, %v5705
  %v5848 = vadd.f32 %v5697, %v5705
  %v5849 = vadd.f32 %v5698, %v5705
  %v5850 = vadd.f32 %v5699, %v5705
  %v5851 = vmax.f32 %v5707, 0.0
  %v5852 = vmax.f32 %v5708, 0.0
  %v5853 = vmax.f32 %v5709, 0.0
  %v5854 = vmax.f32 %v5710, 0.0
  %v5855 = vmax.f32 %v5711, 0.0
  %v5856 = vmax.f32 %v5712, 0.0
  %v5857 = vmax.f32 %v5713, 0.0
  %v5858 = vmax.f32 %v5714, 0.0
  %v5859 = vmax.f32 %v5715, 0.0
  %v5860 = vmax.f32 %v5716, 0.0
  %v5861 = vmax.f32 %v5717, 0.0
  %v5862 = vmax.f32 %v5718, 0.0
  %v5863 = vmax.f32 %v5719, 0.0
  %v5864 = vmax.f32 %v5720, 0.0
  %v5865 = vmax.f32 %v5721, 0.0
  %v5866 = vmax.f32 %v5722, 0.0
  %v5867 = vmax.f32 %v5723, 0.0
  %v5868 = vmax.f32 %v5724, 0.0
  %v5869 = vmax.f32 %v5725, 0.0
  %v5870 = vmax.f32 %v5726, 0.0
  %v5871 = vmax.f32 %v5727, 0.0
  %v5872 = vmax.f32 %v5728, 0.0
  %v5873 = vmax.f32 %v5729, 0.0
  %v5874 = vmax.f32 %v5730, 0.0
  %v5875 = vmax.f32 %v5731, 0.0
  %v5876 = vmax.f32 %v5732, 0.0
  %v5877 = vmax.f32 %v5733, 0.0
  %v5878 = vmax.f32 %v5734, 0.0
  %v5879 = vmax.f32 %v5735, 0.0
  %v5880 = vmax.f32 %v5736, 0.0
  %v5881 = vmax.f32 %v5737, 0.0
  %v5882 = vmax.f32 %v5738, 0.0
  %v5883 = vmax.f32 %v5739, 0.0
  %v5884 = vmax.f32 %v5740, 0.0
  %v5885 = vmax.f32 %v5741, 0.0
  %v5886 = vmax.f32 %v5742, 0.0
  %v5887 = vmax.f32 %v5743, 0.0
  %v5888 = vmax.f32 %v5744, 0.0
  %v5889 = vmax.f32 %v5745, 0.0
  %v5890 = vmax.f32 %v5746, 0.0
  %v5891 = vmax.f32 %v5747, 0.0
  %v5892 = vmax.f32 %v5748, 0.0
  %v5893 = vmax.f32 %v5749, 0.0
  %v5894 = vmax.f32 %v5750, 0.0
  %v5895 = vmax.f32 %v5751, 0.0
  %v5896 = vmax.f32 %v5752, 0.0
  %v5897 = vmax.f32 %v5753, 0.0
  %v5898 = vmax.f32 %v5754, 0.0
  %v5899 = vmax.f32 %v5755, 0.0
  %v5900 = vmax.f32 %v5756, 0.0
  %v5901 = vmax.f32 %v5757, 0.0
  %v5902 = vmax.f32 %v5758, 0.0
  %v5903 = vmax.f32 %v5759, 0.0
  %v5904 = vmax.f32 %v5760, 0.0
  %v5905 = vmax.f32 %v5761, 0.0
  %v5906 = vmax.f32 %v5762, 0.0
  %v5907 = vmax.f32 %v5763, 0.0
  %v5908 = vmax.f32 %v5764, 0.0
  %v5909 = vmax.f32 %v5765, 0.0
  %v5910 = vmax.f32 %v5766, 0.0
  %v5911 = vmax.f32 %v5767, 0.0
  %v5912 = vmax.f32 %v5768, 0.0
  %v5913 = vmax.f32 %v5769, 0.0
  %v5914 = vmax.f32 %v5770, 0.0
  %v5915 = vmax.f32 %v5771, 0.0
  %v5916 = vmax.f32 %v5772, 0.0
  %v5917 = vmax.f32 %v5773, 0.0
  %v5918 = vmax.f32 %v5774, 0.0
  %v5919 = vmax.f32 %v5775, 0.0
  %v5920 = vmax.f32 %v5776, 0.0
  %v5921 = vmax.f32 %v5777, 0.0
  %v5922 = vmax.f32 %v5778, 0.0
  %v5923 = vmax.f32 %v5779, 0.0
  %v5924 = vmax.f32 %v5780, 0.0
  %v5925 = vmax.f32 %v5781, 0.0
  %v5926 = vmax.f32 %v5782, 0.0
  %v5927 = vmax.f32 %v5783, 0.0
  %v5928 = vmax.f32 %v5784, 0.0
  %v5929 = vmax.f32 %v5785, 0.0
  %v5930 = vmax.f32 %v5786, 0.0
  %v5931 = vmax.f32 %v5787, 0.0
  %v5932 = vmax.f32 %v5788, 0.0
  %v5933 = vmax.f32 %v5789, 0.0
  %v5934 = vmax.f32 %v5790, 0.0
  %v5935 = vmax.f32 %v5791, 0.0
  %v5936 = vmax.f32 %v5792, 0.0
  %v5937 = vmax.f32 %v5793, 0.0
  %v5938 = vmax.f32 %v5794, 0.0
  %v5939 = vmax.f32 %v5795, 0.0
  %v5940 = vmax.f32 %v5796, 0.0
  %v5941 = vmax.f32 %v5797, 0.0
  %v5942 = vmax.f32 %v5798, 0.0
  %v5943 = vmax.f32 %v5799, 0.0
  %v5944 = vmax.f32 %v5800, 0.0
  %v5945 = vmax.f32 %v5801, 0.0
  %v5946 = vmax.f32 %v5802, 0.0
  %v5947 = vmax.f32 %v5803, 0.0
  %v5948 = vmax.f32 %v5804, 0.0
  %v5949 = vmax.f32 %v5805, 0.0
  %v5950 = vmax.f32 %v5806, 0.0
  %v5951 = vmax.f32 %v5807, 0.0
  %v5952 = vmax.f32 %v5808, 0.0
  %v5953 = vmax.f32 %v5809, 0.0
  %v5954 = vmax.f32 %v5810, 0.0
  %v5955 = vmax.f32 %v5811, 0.0
  %v5956 = vmax.f32 %v5812, 0.0
  %v5957 = vmax.f32 %v5813, 0.0
  %v5958 = vmax.f32 %v5814, 0.0
  %v5959 = vmax.f32 %v5815, 0.0
  %v5960 = vmax.f32 %v5816, 0.0
  %v5961 = vmax.f32 %v5817, 0.0
  %v5962 = vmax.f32 %v5818, 0.0
  %v5963 = vmax.f32 %v5819, 0.0
  %v5964 = vmax.f32 %v5820, 0.0
  %v5965 = vmax.f32 %v5821, 0.0
  %v5966 = vmax.f32 %v5822, 0.0
  %v5967 = vmax.f32 %v5823, 0.0
  %v5968 = vmax.f32 %v5824, 0.0
  %v5969 = vmax.f32 %v5825, 0.0
  %v5970 = vmax.f32 %v5826, 0.0
  %v5971 = vmax.f32 %v5827, 0.0
  %v5972 = vmax.f32 %v5828, 0.0
  %v5973 = vmax.f32 %v5829, 0.0
  %v5974 = vmax.f32 %v5830, 0.0
  %v5975 = vmax.f32 %v5831, 0.0
  %v5976 = vmax.f32 %v5832, 0.0
  %v5977 = vmax.f32 %v5833, 0.0
  %v5978 = vmax.f32 %v5834, 0.0
  %v5979 = vmax.f32 %v5835, 0.0
  %v5980 = vmax.f32 %v5836, 0.0
  %v5981 = vmax.f32 %v5837, 0.0
  %v5982 = vmax.f32 %v5838, 0.0
  %v5983 = vmax.f32 %v5839, 0.0
  %v5984 = vmax.f32 %v5840, 0.0
  %v5985 = vmax.f32 %v5841, 0.0
  %v5986 = vmax.f32 %v5842, 0.0
  %v5987 = vmax.f32 %v5843, 0.0
  %v5988 = vmax.f32 %v5844, 0.0
  %v5989 = vmax.f32 %v5845, 0.0
  %v5990 = vmax.f32 %v5846, 0.0
  %v5991 = vmax.f32 %v5847, 0.0
  %v5992 = vmax.f32 %v5848, 0.0
  %v5993 = vmax.f32 %v5849, 0.0
  %v5994 = vmax.f32 %v5850, 0.0
  %vm5995 = vcmask 80896
  %5996 = vst.msk [vmem:[%s3] sm:$0xff] %vm5995, %v5851
  %5997 = vst.msk [vmem:[%s3 + $0x8] sm:$0xff] %vm5995, %v5852
  %5998 = vst.msk [vmem:[%s3 + $0x10] sm:$0xff] %vm5995, %v5853
  %5999 = vst.msk [vmem:[%s3 + $0x18] sm:$0xff] %vm5995, %v5854
  %6000 = vst.msk [vmem:[%s3 + $0x20] sm:$0xff] %vm5995, %v5855
  %6001 = vst.msk [vmem:[%s3 + $0x28] sm:$0xff] %vm5995, %v5856
  %6002 = vst.msk [vmem:[%s3 + $0x30] sm:$0xff] %vm5995, %v5857
  %6003 = vst.msk [vmem:[%s3 + $0x38] sm:$0xff] %vm5995, %v5858
  %6004 = vst.msk [vmem:[%s3 + $0x40] sm:$0xff] %vm5995, %v5859
  %6005 = vst.msk [vmem:[%s3 + $0x48] sm:$0xff] %vm5995, %v5860
  %6006 = vst.msk [vmem:[%s3 + $0x50] sm:$0xff] %vm5995, %v5861
  %6007 = vst.msk [vmem:[%s3 + $0x58] sm:$0xff] %vm5995, %v5862
  %6008 = vst.msk [vmem:[%s3 + $0x60] sm:$0xff] %vm5995, %v5863
  %6009 = vst.msk [vmem:[%s3 + $0x68] sm:$0xff] %vm5995, %v5864
  %6010 = vst.msk [vmem:[%s3 + $0x70] sm:$0xff] %vm5995, %v5865
  %6011 = vst.msk [vmem:[%s3 + $0x78] sm:$0xff] %vm5995, %v5866
  %6012 = vst.msk [vmem:[%s3 + $0x80] sm:$0xff] %vm5995, %v5867
  %6013 = vst.msk [vmem:[%s3 + $0x88] sm:$0xff] %vm5995, %v5868
  %6014 = vst.msk [vmem:[%s3 + $0x90] sm:$0xff] %vm5995, %v5869
  %6015 = vst.msk [vmem:[%s3 + $0x98] sm:$0xff] %vm5995, %v5870
  %6016 = vst.msk [vmem:[%s3 + $0xa0] sm:$0xff] %vm5995, %v5871
  %6017 = vst.msk [vmem:[%s3 + $0xa8] sm:$0xff] %vm5995, %v5872
  %6018 = vst.msk [vmem:[%s3 + $0xb0] sm:$0xff] %vm5995, %v5873
  %6019 = vst.msk [vmem:[%s3 + $0xb8] sm:$0xff] %vm5995, %v5874
  %6020 = vst.msk [vmem:[%s3 + $0xc0] sm:$0xff] %vm5995, %v5875
  %6021 = vst.msk [vmem:[%s3 + $0xc8] sm:$0xff] %vm5995, %v5876
  %6022 = vst.msk [vmem:[%s3 + $0xd0] sm:$0xff] %vm5995, %v5877
  %6023 = vst.msk [vmem:[%s3 + $0xd8] sm:$0xff] %vm5995, %v5878
  %6024 = vst.msk [vmem:[%s3 + $0xe0] sm:$0xff] %vm5995, %v5879
  %6025 = vst.msk [vmem:[%s3 + $0xe8] sm:$0xff] %vm5995, %v5880
  %6026 = vst.msk [vmem:[%s3 + $0xf0] sm:$0xff] %vm5995, %v5881
  %6027 = vst.msk [vmem:[%s3 + $0xf8] sm:$0xff] %vm5995, %v5882
  %6028 = vst.msk [vmem:[%s3 + $0x100] sm:$0xff] %vm5995, %v5883
  %6029 = vst.msk [vmem:[%s3 + $0x108] sm:$0xff] %vm5995, %v5884
  %6030 = vst.msk [vmem:[%s3 + $0x110] sm:$0xff] %vm5995, %v5885
  %6031 = vst.msk [vmem:[%s3 + $0x118] sm:$0xff] %vm5995, %v5886
  %6032 = vst.msk [vmem:[%s3 + $0x120] sm:$0xff] %vm5995, %v5887
  %6033 = vst.msk [vmem:[%s3 + $0x128] sm:$0xff] %vm5995, %v5888
  %6034 = vst.msk [vmem:[%s3 + $0x130] sm:$0xff] %vm5995, %v5889
  %6035 = vst.msk [vmem:[%s3 + $0x138] sm:$0xff] %vm5995, %v5890
  %6036 = vst.msk [vmem:[%s3 + $0x140] sm:$0xff] %vm5995, %v5891
  %6037 = vst.msk [vmem:[%s3 + $0x148] sm:$0xff] %vm5995, %v5892
  %6038 = vst.msk [vmem:[%s3 + $0x150] sm:$0xff] %vm5995, %v5893
  %6039 = vst.msk [vmem:[%s3 + $0x158] sm:$0xff] %vm5995, %v5894
  %6040 = vst.msk [vmem:[%s3 + $0x160] sm:$0xff] %vm5995, %v5895
  %6041 = vst.msk [vmem:[%s3 + $0x168] sm:$0xff] %vm5995, %v5896
  %6042 = vst.msk [vmem:[%s3 + $0x170] sm:$0xff] %vm5995, %v5897
  %6043 = vst.msk [vmem:[%s3 + $0x178] sm:$0xff] %vm5995, %v5898
  %6044 = vst.msk [vmem:[%s3 + $0x180] sm:$0xff] %vm5995, %v5899
  %6045 = vst.msk [vmem:[%s3 + $0x188] sm:$0xff] %vm5995, %v5900
  %6046 = vst.msk [vmem:[%s3 + $0x190] sm:$0xff] %vm5995, %v5901
  %6047 = vst.msk [vmem:[%s3 + $0x198] sm:$0xff] %vm5995, %v5902
  %6048 = vst.msk [vmem:[%s3 + $0x1a0] sm:$0xff] %vm5995, %v5903
  %6049 = vst.msk [vmem:[%s3 + $0x1a8] sm:$0xff] %vm5995, %v5904
  %6050 = vst.msk [vmem:[%s3 + $0x1b0] sm:$0xff] %vm5995, %v5905
  %6051 = vst.msk [vmem:[%s3 + $0x1b8] sm:$0xff] %vm5995, %v5906
  %6052 = vst.msk [vmem:[%s3 + $0x1c0] sm:$0xff] %vm5995, %v5907
  %6053 = vst.msk [vmem:[%s3 + $0x1c8] sm:$0xff] %vm5995, %v5908
  %6054 = vst.msk [vmem:[%s3 + $0x1d0] sm:$0xff] %vm5995, %v5909
  %6055 = vst.msk [vmem:[%s3 + $0x1d8] sm:$0xff] %vm5995, %v5910
  %6056 = vst.msk [vmem:[%s3 + $0x1e0] sm:$0xff] %vm5995, %v5911
  %6057 = vst.msk [vmem:[%s3 + $0x1e8] sm:$0xff] %vm5995, %v5912
  %6058 = vst.msk [vmem:[%s3 + $0x1f0] sm:$0xff] %vm5995, %v5913
  %6059 = vst.msk [vmem:[%s3 + $0x1f8] sm:$0xff] %vm5995, %v5914
  %6060 = vst.msk [vmem:[%s3 + $0x200] sm:$0xff] %vm5995, %v5915
  %6061 = vst.msk [vmem:[%s3 + $0x208] sm:$0xff] %vm5995, %v5916
  %6062 = vst.msk [vmem:[%s3 + $0x210] sm:$0xff] %vm5995, %v5917
  %6063 = vst.msk [vmem:[%s3 + $0x218] sm:$0xff] %vm5995, %v5918
  %6064 = vst.msk [vmem:[%s3 + $0x220] sm:$0xff] %vm5995, %v5919
  %6065 = vst.msk [vmem:[%s3 + $0x228] sm:$0xff] %vm5995, %v5920
  %6066 = vst.msk [vmem:[%s3 + $0x230] sm:$0xff] %vm5995, %v5921
  %6067 = vst.msk [vmem:[%s3 + $0x238] sm:$0xff] %vm5995, %v5922
  %6068 = vst.msk [vmem:[%s3 + $0x240] sm:$0xff] %vm5995, %v5923
  %6069 = vst.msk [vmem:[%s3 + $0x248] sm:$0xff] %vm5995, %v5924
  %6070 = vst.msk [vmem:[%s3 + $0x250] sm:$0xff] %vm5995, %v5925
  %6071 = vst.msk [vmem:[%s3 + $0x258] sm:$0xff] %vm5995, %v5926
  %6072 = vst.msk [vmem:[%s3 + $0x260] sm:$0xff] %vm5995, %v5927
  %6073 = vst.msk [vmem:[%s3 + $0x268] sm:$0xff] %vm5995, %v5928
  %6074 = vst.msk [vmem:[%s3 + $0x270] sm:$0xff] %vm5995, %v5929
  %6075 = vst.msk [vmem:[%s3 + $0x278] sm:$0xff] %vm5995, %v5930
  %6076 = vst.msk [vmem:[%s3 + $0x280] sm:$0xff] %vm5995, %v5931
  %6077 = vst.msk [vmem:[%s3 + $0x288] sm:$0xff] %vm5995, %v5932
  %6078 = vst.msk [vmem:[%s3 + $0x290] sm:$0xff] %vm5995, %v5933
  %6079 = vst.msk [vmem:[%s3 + $0x298] sm:$0xff] %vm5995, %v5934
  %6080 = vst.msk [vmem:[%s3 + $0x2a0] sm:$0xff] %vm5995, %v5935
  %6081 = vst.msk [vmem:[%s3 + $0x2a8] sm:$0xff] %vm5995, %v5936
  %6082 = vst.msk [vmem:[%s3 + $0x2b0] sm:$0xff] %vm5995, %v5937
  %6083 = vst.msk [vmem:[%s3 + $0x2b8] sm:$0xff] %vm5995, %v5938
  %6084 = vst.msk [vmem:[%s3 + $0x2c0] sm:$0xff] %vm5995, %v5939
  %6085 = vst.msk [vmem:[%s3 + $0x2c8] sm:$0xff] %vm5995, %v5940
  %6086 = vst.msk [vmem:[%s3 + $0x2d0] sm:$0xff] %vm5995, %v5941
  %6087 = vst.msk [vmem:[%s3 + $0x2d8] sm:$0xff] %vm5995, %v5942
  %6088 = vst.msk [vmem:[%s3 + $0x2e0] sm:$0xff] %vm5995, %v5943
  %6089 = vst.msk [vmem:[%s3 + $0x2e8] sm:$0xff] %vm5995, %v5944
  %6090 = vst.msk [vmem:[%s3 + $0x2f0] sm:$0xff] %vm5995, %v5945
  %6091 = vst.msk [vmem:[%s3 + $0x2f8] sm:$0xff] %vm5995, %v5946
  %6092 = vst.msk [vmem:[%s3 + $0x300] sm:$0xff] %vm5995, %v5947
  %6093 = vst.msk [vmem:[%s3 + $0x308] sm:$0xff] %vm5995, %v5948
  %6094 = vst.msk [vmem:[%s3 + $0x310] sm:$0xff] %vm5995, %v5949
  %6095 = vst.msk [vmem:[%s3 + $0x318] sm:$0xff] %vm5995, %v5950
  %6096 = vst.msk [vmem:[%s3 + $0x320] sm:$0xff] %vm5995, %v5951
  %6097 = vst.msk [vmem:[%s3 + $0x328] sm:$0xff] %vm5995, %v5952
  %6098 = vst.msk [vmem:[%s3 + $0x330] sm:$0xff] %vm5995, %v5953
  %6099 = vst.msk [vmem:[%s3 + $0x338] sm:$0xff] %vm5995, %v5954
  %6100 = vst.msk [vmem:[%s3 + $0x340] sm:$0xff] %vm5995, %v5955
  %6101 = vst.msk [vmem:[%s3 + $0x348] sm:$0xff] %vm5995, %v5956
  %6102 = vst.msk [vmem:[%s3 + $0x350] sm:$0xff] %vm5995, %v5957
  %6103 = vst.msk [vmem:[%s3 + $0x358] sm:$0xff] %vm5995, %v5958
  %6104 = vst.msk [vmem:[%s3 + $0x360] sm:$0xff] %vm5995, %v5959
  %6105 = vst.msk [vmem:[%s3 + $0x368] sm:$0xff] %vm5995, %v5960
  %6106 = vst.msk [vmem:[%s3 + $0x370] sm:$0xff] %vm5995, %v5961
  %6107 = vst.msk [vmem:[%s3 + $0x378] sm:$0xff] %vm5995, %v5962
  %6108 = vst.msk [vmem:[%s3 + $0x380] sm:$0xff] %vm5995, %v5963
  %6109 = vst.msk [vmem:[%s3 + $0x388] sm:$0xff] %vm5995, %v5964
  %6110 = vst.msk [vmem:[%s3 + $0x390] sm:$0xff] %vm5995, %v5965
  %6111 = vst.msk [vmem:[%s3 + $0x398] sm:$0xff] %vm5995, %v5966
  %6112 = vst.msk [vmem:[%s3 + $0x3a0] sm:$0xff] %vm5995, %v5967
  %6113 = vst.msk [vmem:[%s3 + $0x3a8] sm:$0xff] %vm5995, %v5968
  %6114 = vst.msk [vmem:[%s3 + $0x3b0] sm:$0xff] %vm5995, %v5969
  %6115 = vst.msk [vmem:[%s3 + $0x3b8] sm:$0xff] %vm5995, %v5970
  %6116 = vst.msk [vmem:[%s3 + $0x3c0] sm:$0xff] %vm5995, %v5971
  %6117 = vst.msk [vmem:[%s3 + $0x3c8] sm:$0xff] %vm5995, %v5972
  %6118 = vst.msk [vmem:[%s3 + $0x3d0] sm:$0xff] %vm5995, %v5973
  %6119 = vst.msk [vmem:[%s3 + $0x3d8] sm:$0xff] %vm5995, %v5974
  %6120 = vst.msk [vmem:[%s3 + $0x3e0] sm:$0xff] %vm5995, %v5975
  %6121 = vst.msk [vmem:[%s3 + $0x3e8] sm:$0xff] %vm5995, %v5976
  %6122 = vst.msk [vmem:[%s3 + $0x3f0] sm:$0xff] %vm5995, %v5977
  %6123 = vst.msk [vmem:[%s3 + $0x3f8] sm:$0xff] %vm5995, %v5978
  %6124 = vst.msk [vmem:[%s3 + $0x400] sm:$0xff] %vm5995, %v5979
  %6125 = vst.msk [vmem:[%s3 + $0x408] sm:$0xff] %vm5995, %v5980
  %6126 = vst.msk [vmem:[%s3 + $0x410] sm:$0xff] %vm5995, %v5981
  %6127 = vst.msk [vmem:[%s3 + $0x418] sm:$0xff] %vm5995, %v5982
  %6128 = vst.msk [vmem:[%s3 + $0x420] sm:$0xff] %vm5995, %v5983
  %6129 = vst.msk [vmem:[%s3 + $0x428] sm:$0xff] %vm5995, %v5984
  %6130 = vst.msk [vmem:[%s3 + $0x430] sm:$0xff] %vm5995, %v5985
  %6131 = vst.msk [vmem:[%s3 + $0x438] sm:$0xff] %vm5995, %v5986
  %6132 = vst.msk [vmem:[%s3 + $0x440] sm:$0xff] %vm5995, %v5987
  %6133 = vst.msk [vmem:[%s3 + $0x448] sm:$0xff] %vm5995, %v5988
  %6134 = vst.msk [vmem:[%s3 + $0x450] sm:$0xff] %vm5995, %v5989
  %6135 = vst.msk [vmem:[%s3 + $0x458] sm:$0xff] %vm5995, %v5990
  %6136 = vst.msk [vmem:[%s3 + $0x460] sm:$0xff] %vm5995, %v5991
  %6137 = vst.msk [vmem:[%s3 + $0x468] sm:$0xff] %vm5995, %v5992
  %6138 = vst.msk [vmem:[%s3 + $0x470] sm:$0xff] %vm5995, %v5993
  %6139 = vst.msk [vmem:[%s3 + $0x478] sm:$0xff] %vm5995, %v5994
  // Predicated region
  $region14: #{cnn_mnist_forward.3} parent=0 // pred_check
    _
  $region15: #{cnn_mnist_forward.3} parent=0 // pred_check_branch
    %6141 = sbr.rel (0) target = $region17
  $region16: #{cnn_mnist_forward.3} parent=0 // pred_region
    _
  $region17: #{cnn_mnist_forward.3} parent=0 // pred_fallthru
    _
  // Predicated region
  $region18: #{cnn_mnist_forward.3} parent=0 // pred_check
    _
  $region19: #{cnn_mnist_forward.3} parent=0 // pred_check_branch
    %6143 = sbr.rel (0) target = $region21
  $region20: #{cnn_mnist_forward.3} parent=0 // pred_region
    _
  $region21: #{cnn_mnist_forward.3} parent=0 // pred_fallthru
    _

// kernel: cnn_mnist_forward.5
$region0: #{cnn_mnist_forward.5}
  #allocation0 [shape = 'u32[]', space=smem, size = 0x4, offset = 0x4, fixed_abs, tag = 'smem constant byte address 0x4 - core index']
  #allocation1 [shape = 'u32[144,128]{1,0:T(1,128)}', space=vmem, size = 0x12000, scoped, tag = 'internal scratch']
  %s0 = inlined_call_operand.vmem [shape: f32[8,512], index: 0, kind: input, shape index: {}]
  %s1 = inlined_call_operand.vmem [shape: f32[512,128], index: 1, kind: input, shape index: {}]
  %s2 = inlined_call_operand.vmem [shape: f32[1,128], index: 2, kind: input, shape index: {}]
  %s3 = inlined_call_operand.vmem [shape: f32[128,128], index: 3, kind: input, shape index: {}]
  %s4 = inlined_call_operand.vmem [shape: f32[1,128], index: 4, kind: input, shape index: {}]
  %s5 = inlined_call_operand.hbm [shape: f32[8,128], index: 5, kind: output, shape index: {}]
  %s6 = sld [smem:[#allocation0]]
  $region30: #{cnn_mnist_forward.5} parent=0
    _
  %s8 = ssub.s32 1, %s6
  %s9 = scalar_select 0, %s8, %s6
  $region1: #{cnn_mnist_forward.5} parent=0
    #allocation2 [shape = 'u8[4096]{0}', space=vmem, size = 0x1000, scoped, tag = 'output window, operand 0, single buffered']
    #allocation3 [shape = 's32[1]{0}', space=sflag, size = 0x4, scoped, tag = 'scoped memory for cnn_mnist_forward.5']
    %10 = vsyncpa [#allocation3], 0
    // Predicated region
    $region2: #{cnn_mnist_forward.5} parent=1 // pred_check
      _
    $region3: #{cnn_mnist_forward.5} parent=1 // pred_check_branch
      %12 = sbr.rel (0) target = $region5
    $region4: #{cnn_mnist_forward.5} parent=1 // pred_region
      _
    $region5: #{cnn_mnist_forward.5} parent=1 // pred_fallthru
      _
    // Predicated region
    $region6: #{cnn_mnist_forward.5} parent=1 // pred_check
      _
    $region7: #{cnn_mnist_forward.5} parent=1 // pred_check_branch
      %14 = sbr.rel (0) target = $region9
    $region8: #{cnn_mnist_forward.5} parent=1 // pred_region
      _
    $region9: #{cnn_mnist_forward.5} parent=1 // pred_fallthru
      _
    // Predicated region
    $region10: #{cnn_mnist_forward.5} parent=1 // pred_check
      _
    $region11: #{cnn_mnist_forward.5} parent=1 // pred_check_branch
      %16 = sbr.rel (0) target = $region13
    $region12: #{cnn_mnist_forward.5} parent=1 // pred_region
      _
    $region13: #{cnn_mnist_forward.5} parent=1 // pred_fallthru
      _
    // Predicated region
    $region14: #{cnn_mnist_forward.5} parent=1 // pred_check
      _
    $region15: #{cnn_mnist_forward.5} parent=1 // pred_check_branch
      %18 = sbr.rel (0) target = $region17
    $region16: #{cnn_mnist_forward.5} parent=1 // pred_region
      _
    $region17: #{cnn_mnist_forward.5} parent=1 // pred_fallthru
      _
    // Predicated region
    $region18: #{cnn_mnist_forward.5} parent=1 // pred_check
      _
    $region19: #{cnn_mnist_forward.5} parent=1 // pred_check_branch
      %20 = sbr.rel (0) target = $region21
    $region20: #{cnn_mnist_forward.5} parent=1 // pred_region
      _
    $region21: #{cnn_mnist_forward.5} parent=1 // pred_fallthru
      _
    %v21 = vld [vmem:[%s0] sm:$0xff]
    %v22 = vld [vmem:[%s0 + $0x8] sm:$0xff]
    %v23 = vld [vmem:[%s0 + $0x10] sm:$0xff]
    %v24 = vld [vmem:[%s0 + $0x18] sm:$0xff]
    %v25 = vld [vmem:[%s1] sm:$0xff]
    %v26 = vld [vmem:[%s1 + $0x8] sm:$0xff]
    %v27 = vld [vmem:[%s1 + $0x10] sm:$0xff]
    %v28 = vld [vmem:[%s1 + $0x18] sm:$0xff]
    %v29 = vld [vmem:[%s1 + $0x20] sm:$0xff]
    %v30 = vld [vmem:[%s1 + $0x28] sm:$0xff]
    %v31 = vld [vmem:[%s1 + $0x30] sm:$0xff]
    %v32 = vld [vmem:[%s1 + $0x38] sm:$0xff]
    %v33 = vld [vmem:[%s1 + $0x40] sm:$0xff]
    %v34 = vld [vmem:[%s1 + $0x48] sm:$0xff]
    %v35 = vld [vmem:[%s1 + $0x50] sm:$0xff]
    %v36 = vld [vmem:[%s1 + $0x58] sm:$0xff]
    %v37 = vld [vmem:[%s1 + $0x60] sm:$0xff]
    %v38 = vld [vmem:[%s1 + $0x68] sm:$0xff]
    %v39 = vld [vmem:[%s1 + $0x70] sm:$0xff]
    %v40 = vld [vmem:[%s1 + $0x78] sm:$0xff]
    %v41 = vld [vmem:[%s1 + $0x80] sm:$0xff]
    %v42 = vld [vmem:[%s1 + $0x88] sm:$0xff]
    %v43 = vld [vmem:[%s1 + $0x90] sm:$0xff]
    %v44 = vld [vmem:[%s1 + $0x98] sm:$0xff]
    %v45 = vld [vmem:[%s1 + $0xa0] sm:$0xff]
    %v46 = vld [vmem:[%s1 + $0xa8] sm:$0xff]
    %v47 = vld [vmem:[%s1 + $0xb0] sm:$0xff]
    %v48 = vld [vmem:[%s1 + $0xb8] sm:$0xff]
    %v49 = vld [vmem:[%s1 + $0xc0] sm:$0xff]
    %v50 = vld [vmem:[%s1 + $0xc8] sm:$0xff]
    %v51 = vld [vmem:[%s1 + $0xd0] sm:$0xff]
    %v52 = vld [vmem:[%s1 + $0xd8] sm:$0xff]
    %v53 = vld [vmem:[%s1 + $0xe0] sm:$0xff]
    %v54 = vld [vmem:[%s1 + $0xe8] sm:$0xff]
    %v55 = vld [vmem:[%s1 + $0xf0] sm:$0xff]
    %v56 = vld [vmem:[%s1 + $0xf8] sm:$0xff]
    %v57 = vld [vmem:[%s1 + $0x100] sm:$0xff]
    %v58 = vld [vmem:[%s1 + $0x108] sm:$0xff]
    %v59 = vld [vmem:[%s1 + $0x110] sm:$0xff]
    %v60 = vld [vmem:[%s1 + $0x118] sm:$0xff]
    %v61 = vld [vmem:[%s1 + $0x120] sm:$0xff]
    %v62 = vld [vmem:[%s1 + $0x128] sm:$0xff]
    %v63 = vld [vmem:[%s1 + $0x130] sm:$0xff]
    %v64 = vld [vmem:[%s1 + $0x138] sm:$0xff]
    %v65 = vld [vmem:[%s1 + $0x140] sm:$0xff]
    %v66 = vld [vmem:[%s1 + $0x148] sm:$0xff]
    %v67 = vld [vmem:[%s1 + $0x150] sm:$0xff]
    %v68 = vld [vmem:[%s1 + $0x158] sm:$0xff]
    %v69 = vld [vmem:[%s1 + $0x160] sm:$0xff]
    %v70 = vld [vmem:[%s1 + $0x168] sm:$0xff]
    %v71 = vld [vmem:[%s1 + $0x170] sm:$0xff]
    %v72 = vld [vmem:[%s1 + $0x178] sm:$0xff]
    %v73 = vld [vmem:[%s1 + $0x180] sm:$0xff]
    %v74 = vld [vmem:[%s1 + $0x188] sm:$0xff]
    %v75 = vld [vmem:[%s1 + $0x190] sm:$0xff]
    %v76 = vld [vmem:[%s1 + $0x198] sm:$0xff]
    %v77 = vld [vmem:[%s1 + $0x1a0] sm:$0xff]
    %v78 = vld [vmem:[%s1 + $0x1a8] sm:$0xff]
    %v79 = vld [vmem:[%s1 + $0x1b0] sm:$0xff]
    %v80 = vld [vmem:[%s1 + $0x1b8] sm:$0xff]
    %v81 = vld [vmem:[%s1 + $0x1c0] sm:$0xff]
    %v82 = vld [vmem:[%s1 + $0x1c8] sm:$0xff]
    %v83 = vld [vmem:[%s1 + $0x1d0] sm:$0xff]
    %v84 = vld [vmem:[%s1 + $0x1d8] sm:$0xff]
    %v85 = vld [vmem:[%s1 + $0x1e0] sm:$0xff]
    %v86 = vld [vmem:[%s1 + $0x1e8] sm:$0xff]
    %v87 = vld [vmem:[%s1 + $0x1f0] sm:$0xff]
    %v88 = vld [vmem:[%s1 + $0x1f8] sm:$0xff]
    %v89 = vld [vmem:[%s2] sm:$0x1]
    %v91 = vlaneseq
    %v92 = vshrl.u32 %v91, 7
    %v93 = vsub.s32 0, %v92
    %v94 = vrot.slane %v89, %v93
    %96 = vmatprep.subr.mxu0 0.0
    %97 = vmatpush1.msra.mxu0 %v25
    %98 = vmatprep.subr.mxu0 0.0
    %99 = vmatpush1.msra.mxu0 %v26
    %100 = vmatprep.subr.mxu0 0.0
    %101 = vmatpush1.msra.mxu0 %v27
    %102 = vmatprep.subr.mxu0 0.0
    %103 = vmatpush1.msra.mxu0 %v28
    %104 = vmatprep.subr.mxu0 0.0
    %105 = vmatpush1.msra.mxu0 %v29
    %106 = vmatprep.subr.mxu0 0.0
    %107 = vmatpush1.msra.mxu0 %v30
    %108 = vmatprep.subr.mxu0 0.0
    %109 = vmatpush1.msra.mxu0 %v31
    %110 = vmatprep.subr.mxu0 0.0
    %111 = vmatpush1.msra.mxu0 %v32
    %112 = vmatprep.subr.mxu0 0.0
    %113 = vmatpush1.msra.mxu0 %v33
    %114 = vmatprep.subr.mxu0 0.0
    %115 = vmatpush1.msra.mxu0 %v34
    %116 = vmatprep.subr.mxu0 0.0
    %117 = vmatpush1.msra.mxu0 %v35
    %118 = vmatprep.subr.mxu0 0.0
    %119 = vmatpush1.msra.mxu0 %v36
    %120 = vmatprep.subr.mxu0 0.0
    %121 = vmatpush1.msra.mxu0 %v37
    %122 = vmatprep.subr.mxu0 0.0
    %123 = vmatpush1.msra.mxu0 %v38
    %124 = vmatprep.subr.mxu0 0.0
    %125 = vmatpush1.msra.mxu0 %v39
    %126 = vmatprep.subr.mxu0 0.0
    %127 = vmatpush1.msra.mxu0 %v40
    %128 = vmatprep.subr.mxu0 0.0
    %129 = vmatpush1.msra.mxu0 %v41
    %130 = vmatprep.subr.mxu0 0.0
    %131 = vmatpush1.msra.mxu0 %v42
    %132 = vmatprep.subr.mxu0 0.0
    %133 = vmatpush1.msra.mxu0 %v43
    %134 = vmatprep.subr.mxu0 0.0
    %135 = vmatpush1.msra.mxu0 %v44
    %136 = vmatprep.subr.mxu0 0.0
    %137 = vmatpush1.msra.mxu0 %v45
    %138 = vmatprep.subr.mxu0 0.0
    %139 = vmatpush1.msra.mxu0 %v46
    %140 = vmatprep.subr.mxu0 0.0
    %141 = vmatpush1.msra.mxu0 %v47
    %142 = vmatprep.subr.mxu0 0.0
    %143 = vmatpush1.msra.mxu0 %v48
    %144 = vmatprep.subr.mxu0 0.0
    %145 = vmatpush1.msra.mxu0 %v49
    %146 = vmatprep.subr.mxu0 0.0
    %147 = vmatpush1.msra.mxu0 %v50
    %148 = vmatprep.subr.mxu0 0.0
    %149 = vmatpush1.msra.mxu0 %v51
    %150 = vmatprep.subr.mxu0 0.0
    %151 = vmatpush1.msra.mxu0 %v52
    %152 = vmatprep.subr.mxu0 0.0
    %153 = vmatpush1.msra.mxu0 %v53
    %154 = vmatprep.subr.mxu0 0.0
    %155 = vmatpush1.msra.mxu0 %v54
    %156 = vmatprep.subr.mxu0 0.0
    %157 = vmatpush1.msra.mxu0 %v55
    %158 = vmatprep.subr.mxu0 0.0
    %159 = vmatpush1.msra.mxu0 %v56
    %160 = vmatprep.mubr.f32.mxu0 %v22
    %161 = vmatmul.mubr.f32.gmra.mrb[0].mxu0 %v21
    %v162 = vpop.f32.mrb[0].mxu0
    %v163 = vadd.f32 %v94, %v162
    %v164 = vpop.f32.mrb[0].mxu0
    %165 = vdwg.mxu0
    %166 = vmatprep.subr.mxu0 0.0
    %167 = vmatpush1.msra.mxu0 %v57
    %168 = vmatprep.subr.mxu0 0.0
    %169 = vmatpush1.msra.mxu0 %v58
    %170 = vmatprep.subr.mxu0 0.0
    %171 = vmatpush1.msra.mxu0 %v59
    %172 = vmatprep.subr.mxu0 0.0
    %173 = vmatpush1.msra.mxu0 %v60
    %174 = vmatprep.subr.mxu0 0.0
    %175 = vmatpush1.msra.mxu0 %v61
    %176 = vmatprep.subr.mxu0 0.0
    %177 = vmatpush1.msra.mxu0 %v62
    %178 = vmatprep.subr.mxu0 0.0
    %179 = vmatpush1.msra.mxu0 %v63
    %180 = vmatprep.subr.mxu0 0.0
    %181 = vmatpush1.msra.mxu0 %v64
    %182 = vmatprep.subr.mxu0 0.0
    %183 = vmatpush1.msra.mxu0 %v65
    %184 = vmatprep.subr.mxu0 0.0
    %185 = vmatpush1.msra.mxu0 %v66
    %186 = vmatprep.subr.mxu0 0.0
    %187 = vmatpush1.msra.mxu0 %v67
    %188 = vmatprep.subr.mxu0 0.0
    %189 = vmatpush1.msra.mxu0 %v68
    %190 = vmatprep.subr.mxu0 0.0
    %191 = vmatpush1.msra.mxu0 %v69
    %192 = vmatprep.subr.mxu0 0.0
    %193 = vmatpush1.msra.mxu0 %v70
    %194 = vmatprep.subr.mxu0 0.0
    %195 = vmatpush1.msra.mxu0 %v71
    %196 = vmatprep.subr.mxu0 0.0
    %197 = vmatpush1.msra.mxu0 %v72
    %198 = vmatprep.subr.mxu0 0.0
    %199 = vmatpush1.msra.mxu0 %v73
    %200 = vmatprep.subr.mxu0 0.0
    %201 = vmatpush1.msra.mxu0 %v74
    %202 = vmatprep.subr.mxu0 0.0
    %203 = vmatpush1.msra.mxu0 %v75
    %204 = vmatprep.subr.mxu0 0.0
    %205 = vmatpush1.msra.mxu0 %v76
    %206 = vmatprep.subr.mxu0 0.0
    %207 = vmatpush1.msra.mxu0 %v77
    %208 = vmatprep.subr.mxu0 0.0
    %209 = vmatpush1.msra.mxu0 %v78
    %210 = vmatprep.subr.mxu0 0.0
    %211 = vmatpush1.msra.mxu0 %v79
    %212 = vmatprep.subr.mxu0 0.0
    %213 = vmatpush1.msra.mxu0 %v80
    %214 = vmatprep.subr.mxu0 0.0
    %215 = vmatpush1.msra.mxu0 %v81
    %216 = vmatprep.subr.mxu0 0.0
    %217 = vmatpush1.msra.mxu0 %v82
    %218 = vmatprep.subr.mxu0 0.0
    %219 = vmatpush1.msra.mxu0 %v83
    %220 = vmatprep.subr.mxu0 0.0
    %221 = vmatpush1.msra.mxu0 %v84
    %222 = vmatprep.subr.mxu0 0.0
    %223 = vmatpush1.msra.mxu0 %v85
    %224 = vmatprep.subr.mxu0 0.0
    %225 = vmatpush1.msra.mxu0 %v86
    %226 = vmatprep.subr.mxu0 0.0
    %227 = vmatpush1.msra.mxu0 %v87
    %228 = vmatprep.subr.mxu0 0.0
    %229 = vmatpush1.msra.mxu0 %v88
    %230 = vmatprep.mubr.f32.mxu0 %v24
    %231 = vmatmul.mubr.f32.gmra.mrb[0].mxu0 %v23
    %v232 = vpop.f32.mrb[0].mxu0
    %v233 = vadd.f32 %v163, %v232
    %v234 = vpop.f32.mrb[0].mxu0
    %235 = vdwg.mxu0
    %v236 = vmax.f32 %v233, 0.0
    %v237 = vld [vmem:[%s3] sm:$0xff]
    %v238 = vld [vmem:[%s3 + $0x8] sm:$0xff]
    %v239 = vld [vmem:[%s3 + $0x10] sm:$0xff]
    %v240 = vld [vmem:[%s3 + $0x18] sm:$0xff]
    %v241 = vld [vmem:[%s3 + $0x20] sm:$0xff]
    %v242 = vld [vmem:[%s3 + $0x28] sm:$0xff]
    %v243 = vld [vmem:[%s3 + $0x30] sm:$0xff]
    %v244 = vld [vmem:[%s3 + $0x38] sm:$0xff]
    %v245 = vld [vmem:[%s3 + $0x40] sm:$0xff]
    %v246 = vld [vmem:[%s3 + $0x48] sm:$0xff]
    %v247 = vld [vmem:[%s3 + $0x50] sm:$0xff]
    %v248 = vld [vmem:[%s3 + $0x58] sm:$0xff]
    %v249 = vld [vmem:[%s3 + $0x60] sm:$0xff]
    %v250 = vld [vmem:[%s3 + $0x68] sm:$0xff]
    %v251 = vld [vmem:[%s3 + $0x70] sm:$0xff]
    %v252 = vld [vmem:[%s3 + $0x78] sm:$0xff]
    %v253 = vld [vmem:[%s4] sm:$0x1]
    %v255 = vlaneseq
    %v256 = vshrl.u32 %v255, 7
    %v257 = vsub.s32 0, %v256
    %v258 = vrot.slane %v253, %v257
    %260 = vmatprep.subr.mxu0 0.0
    %261 = vmatpush1.msra.mxu0 %v237
    %262 = vmatprep.subr.mxu0 0.0
    %263 = vmatpush1.msra.mxu0 %v238
    %264 = vmatprep.subr.mxu0 0.0
    %265 = vmatpush1.msra.mxu0 %v239
    %266 = vmatprep.subr.mxu0 0.0
    %267 = vmatpush1.msra.mxu0 %v240
    %268 = vmatprep.subr.mxu0 0.0
    %269 = vmatpush1.msra.mxu0 %v241
    %270 = vmatprep.subr.mxu0 0.0
    %271 = vmatpush1.msra.mxu0 %v242
    %272 = vmatprep.subr.mxu0 0.0
    %273 = vmatpush1.msra.mxu0 %v243
    %274 = vmatprep.subr.mxu0 0.0
    %275 = vmatpush1.msra.mxu0 %v244
    %276 = vmatprep.subr.mxu0 0.0
    %277 = vmatpush1.msra.mxu0 %v245
    %278 = vmatprep.subr.mxu0 0.0
    %279 = vmatpush1.msra.mxu0 %v246
    %280 = vmatprep.subr.mxu0 0.0
    %281 = vmatpush1.msra.mxu0 %v247
    %282 = vmatprep.subr.mxu0 0.0
    %283 = vmatpush1.msra.mxu0 %v248
    %284 = vmatprep.subr.mxu0 0.0
    %285 = vmatpush1.msra.mxu0 %v249
    %286 = vmatprep.subr.mxu0 0.0
    %287 = vmatpush1.msra.mxu0 %v250
    %288 = vmatprep.subr.mxu0 0.0
    %289 = vmatpush1.msra.mxu0 %v251
    %290 = vmatprep.subr.mxu0 0.0
    %291 = vmatpush1.msra.mxu0 %v252
    %292 = vmatprep.subr.mxu0 0.0
    %293 = vmatpush1.msra.mxu0 0.0
    %294 = vmatprep.subr.mxu0 0.0
    %295 = vmatpush1.msra.mxu0 0.0
    %296 = vmatprep.subr.mxu0 0.0
    %297 = vmatpush1.msra.mxu0 0.0
    %298 = vmatprep.subr.mxu0 0.0
    %299 = vmatpush1.msra.mxu0 0.0
    %300 = vmatprep.subr.mxu0 0.0
    %301 = vmatpush1.msra.mxu0 0.0
    %302 = vmatprep.subr.mxu0 0.0
    %303 = vmatpush1.msra.mxu0 0.0
    %304 = vmatprep.subr.mxu0 0.0
    %305 = vmatpush1.msra.mxu0 0.0
    %306 = vmatprep.subr.mxu0 0.0
    %307 = vmatpush1.msra.mxu0 0.0
    %308 = vmatprep.subr.mxu0 0.0
    %309 = vmatpush1.msra.mxu0 0.0
    %310 = vmatprep.subr.mxu0 0.0
    %311 = vmatpush1.msra.mxu0 0.0
    %312 = vmatprep.subr.mxu0 0.0
    %313 = vmatpush1.msra.mxu0 0.0
    %314 = vmatprep.subr.mxu0 0.0
    %315 = vmatpush1.msra.mxu0 0.0
    %316 = vmatprep.subr.mxu0 0.0
    %317 = vmatpush1.msra.mxu0 0.0
    %318 = vmatprep.subr.mxu0 0.0
    %319 = vmatpush1.msra.mxu0 0.0
    %320 = vmatprep.subr.mxu0 0.0
    %321 = vmatpush1.msra.mxu0 0.0
    %322 = vmatprep.subr.mxu0 0.0
    %323 = vmatpush1.msra.mxu0 0.0
    %324 = vmatprep.mubr.f32.mxu0 0.0
    %325 = vmatmul.mubr.f32.gmra.mrb[0].mxu0 %v236
    %v326 = vpop.f32.mrb[0].mxu0
    %v327 = vadd.f32 %v258, %v326
    %v328 = vpop.f32.mrb[0].mxu0
    %329 = vdwg.mxu0
    %330 = vst [vmem:[#allocation2] sm:$0xff] %v327
    // Predicated region
    $region22: #{cnn_mnist_forward.5} parent=1 // pred_check
      _
    $region23: #{cnn_mnist_forward.5} parent=1 // pred_check_branch
      %332 = sbr.rel (0) target = $region25
    $region24: #{cnn_mnist_forward.5} parent=1 // pred_region
      %s334 = ssub.s32 128, 128
      %335 = vsyncadd [#allocation3], %s334
      %s337 = sshll.u32 [#allocation2], 4
      %s338 = int_to_ptr.vmem [resolvable:$true] %s337
      %340 = dma.vmem_to_hbm [thread:$0]  %s338, 128, %s5, [#allocation3]
    $region25: #{cnn_mnist_forward.5} parent=1 // pred_fallthru
      _
    // Predicated region
    $region26: #{cnn_mnist_forward.5} parent=1 // pred_check
      _
    $region27: #{cnn_mnist_forward.5} parent=1 // pred_check_branch
      %342 = sbr.rel (0) target = $region29
    $region28: #{cnn_mnist_forward.5} parent=1 // pred_region
      %343 = dma.done [#allocation3], 128
    $region29: #{cnn_mnist_forward.5} parent=1 // pred_fallthru
      _
    %344 = vsyncpa [#allocation3], 1

// kernel: cnn_mnist_forward.4
$region0: #{cnn_mnist_forward.4}
  #allocation0 [shape = 'u32[]', space=smem, size = 0x4, offset = 0x4, fixed_abs, tag = 'smem constant byte address 0x4 - core index']
  #allocation1 [shape = 'u32[144,128]{1,0:T(1,128)}', space=vmem, size = 0x12000, scoped, tag = 'internal scratch']
  %s0 = inlined_call_operand.vmem [shape: f32[8,64,256], index: 0, kind: input, shape index: {}]
  %s1 = inlined_call_operand.vmem [shape: f32[256,32], index: 1, kind: input, shape index: {}]
  %s2 = inlined_call_operand.vmem [shape: f32[1,32], index: 2, kind: input, shape index: {}]
  %s3 = inlined_call_operand.vmem [shape: f32[8,16,32], index: 3, kind: output, shape index: {}]
  %s4 = sld [smem:[#allocation0]]
  $region22: #{cnn_mnist_forward.4} parent=0
    _
  %s6 = ssub.s32 1, %s4
  %s7 = scalar_select 0, %s6, %s4
  // Predicated region
  $region2: #{cnn_mnist_forward.4} parent=0 // pred_check
    _
  $region3: #{cnn_mnist_forward.4} parent=0 // pred_check_branch
    %9 = sbr.rel (0) target = $region5
  $region4: #{cnn_mnist_forward.4} parent=0 // pred_region
    _
  $region5: #{cnn_mnist_forward.4} parent=0 // pred_fallthru
    _
  // Predicated region
  $region6: #{cnn_mnist_forward.4} parent=0 // pred_check
    _
  $region7: #{cnn_mnist_forward.4} parent=0 // pred_check_branch
    %11 = sbr.rel (0) target = $region9
  $region8: #{cnn_mnist_forward.4} parent=0 // pred_region
    _
  $region9: #{cnn_mnist_forward.4} parent=0 // pred_fallthru
    _
  // Predicated region
  $region10: #{cnn_mnist_forward.4} parent=0 // pred_check
    _
  $region11: #{cnn_mnist_forward.4} parent=0 // pred_check_branch
    %13 = sbr.rel (0) target = $region13
  $region12: #{cnn_mnist_forward.4} parent=0 // pred_region
    _
  $region13: #{cnn_mnist_forward.4} parent=0 // pred_fallthru
    _
  %v14 = vld [vmem:[%s0] sm:$0xff]
  %v15 = vld [vmem:[%s0 + $0x8] sm:$0xff]
  %v16 = vld [vmem:[%s0 + $0x10] sm:$0xff]
  %v17 = vld [vmem:[%s0 + $0x18] sm:$0xff]
  %v18 = vld [vmem:[%s0 + $0x20] sm:$0xff]
  %v19 = vld [vmem:[%s0 + $0x28] sm:$0xff]
  %v20 = vld [vmem:[%s0 + $0x30] sm:$0xff]
  %v21 = vld [vmem:[%s0 + $0x38] sm:$0xff]
  %v22 = vld [vmem:[%s0 + $0x40] sm:$0xff]
  %v23 = vld [vmem:[%s0 + $0x48] sm:$0xff]
  %v24 = vld [vmem:[%s0 + $0x50] sm:$0xff]
  %v25 = vld [vmem:[%s0 + $0x58] sm:$0xff]
  %v26 = vld [vmem:[%s0 + $0x60] sm:$0xff]
  %v27 = vld [vmem:[%s0 + $0x68] sm:$0xff]
  %v28 = vld [vmem:[%s0 + $0x70] sm:$0xff]
  %v29 = vld [vmem:[%s0 + $0x78] sm:$0xff]
  %v30 = vld [vmem:[%s0 + $0x80] sm:$0xff]
  %v31 = vld [vmem:[%s0 + $0x88] sm:$0xff]
  %v32 = vld [vmem:[%s0 + $0x90] sm:$0xff]
  %v33 = vld [vmem:[%s0 + $0x98] sm:$0xff]
  %v34 = vld [vmem:[%s0 + $0xa0] sm:$0xff]
  %v35 = vld [vmem:[%s0 + $0xa8] sm:$0xff]
  %v36 = vld [vmem:[%s0 + $0xb0] sm:$0xff]
  %v37 = vld [vmem:[%s0 + $0xb8] sm:$0xff]
  %v38 = vld [vmem:[%s0 + $0xc0] sm:$0xff]
  %v39 = vld [vmem:[%s0 + $0xc8] sm:$0xff]
  %v40 = vld [vmem:[%s0 + $0xd0] sm:$0xff]
  %v41 = vld [vmem:[%s0 + $0xd8] sm:$0xff]
  %v42 = vld [vmem:[%s0 + $0xe0] sm:$0xff]
  %v43 = vld [vmem:[%s0 + $0xe8] sm:$0xff]
  %v44 = vld [vmem:[%s0 + $0xf0] sm:$0xff]
  %v45 = vld [vmem:[%s0 + $0xf8] sm:$0xff]
  %v46 = vld [vmem:[%s0 + $0x100] sm:$0xff]
  %v47 = vld [vmem:[%s0 + $0x108] sm:$0xff]
  %v48 = vld [vmem:[%s0 + $0x110] sm:$0xff]
  %v49 = vld [vmem:[%s0 + $0x118] sm:$0xff]
  %v50 = vld [vmem:[%s0 + $0x120] sm:$0xff]
  %v51 = vld [vmem:[%s0 + $0x128] sm:$0xff]
  %v52 = vld [vmem:[%s0 + $0x130] sm:$0xff]
  %v53 = vld [vmem:[%s0 + $0x138] sm:$0xff]
  %v54 = vld [vmem:[%s0 + $0x140] sm:$0xff]
  %v55 = vld [vmem:[%s0 + $0x148] sm:$0xff]
  %v56 = vld [vmem:[%s0 + $0x150] sm:$0xff]
  %v57 = vld [vmem:[%s0 + $0x158] sm:$0xff]
  %v58 = vld [vmem:[%s0 + $0x160] sm:$0xff]
  %v59 = vld [vmem:[%s0 + $0x168] sm:$0xff]
  %v60 = vld [vmem:[%s0 + $0x170] sm:$0xff]
  %v61 = vld [vmem:[%s0 + $0x178] sm:$0xff]
  %v62 = vld [vmem:[%s0 + $0x180] sm:$0xff]
  %v63 = vld [vmem:[%s0 + $0x188] sm:$0xff]
  %v64 = vld [vmem:[%s0 + $0x190] sm:$0xff]
  %v65 = vld [vmem:[%s0 + $0x198] sm:$0xff]
  %v66 = vld [vmem:[%s0 + $0x1a0] sm:$0xff]
  %v67 = vld [vmem:[%s0 + $0x1a8] sm:$0xff]
  %v68 = vld [vmem:[%s0 + $0x1b0] sm:$0xff]
  %v69 = vld [vmem:[%s0 + $0x1b8] sm:$0xff]
  %v70 = vld [vmem:[%s0 + $0x1c0] sm:$0xff]
  %v71 = vld [vmem:[%s0 + $0x1c8] sm:$0xff]
  %v72 = vld [vmem:[%s0 + $0x1d0] sm:$0xff]
  %v73 = vld [vmem:[%s0 + $0x1d8] sm:$0xff]
  %v74 = vld [vmem:[%s0 + $0x1e0] sm:$0xff]
  %v75 = vld [vmem:[%s0 + $0x1e8] sm:$0xff]
  %v76 = vld [vmem:[%s0 + $0x1f0] sm:$0xff]
  %v77 = vld [vmem:[%s0 + $0x1f8] sm:$0xff]
  %v78 = vld [vmem:[%s0 + $0x200] sm:$0xff]
  %v79 = vld [vmem:[%s0 + $0x208] sm:$0xff]
  %v80 = vld [vmem:[%s0 + $0x210] sm:$0xff]
  %v81 = vld [vmem:[%s0 + $0x218] sm:$0xff]
  %v82 = vld [vmem:[%s0 + $0x220] sm:$0xff]
  %v83 = vld [vmem:[%s0 + $0x228] sm:$0xff]
  %v84 = vld [vmem:[%s0 + $0x230] sm:$0xff]
  %v85 = vld [vmem:[%s0 + $0x238] sm:$0xff]
  %v86 = vld [vmem:[%s0 + $0x240] sm:$0xff]
  %v87 = vld [vmem:[%s0 + $0x248] sm:$0xff]
  %v88 = vld [vmem:[%s0 + $0x250] sm:$0xff]
  %v89 = vld [vmem:[%s0 + $0x258] sm:$0xff]
  %v90 = vld [vmem:[%s0 + $0x260] sm:$0xff]
  %v91 = vld [vmem:[%s0 + $0x268] sm:$0xff]
  %v92 = vld [vmem:[%s0 + $0x270] sm:$0xff]
  %v93 = vld [vmem:[%s0 + $0x278] sm:$0xff]
  %v94 = vld [vmem:[%s0 + $0x280] sm:$0xff]
  %v95 = vld [vmem:[%s0 + $0x288] sm:$0xff]
  %v96 = vld [vmem:[%s0 + $0x290] sm:$0xff]
  %v97 = vld [vmem:[%s0 + $0x298] sm:$0xff]
  %v98 = vld [vmem:[%s0 + $0x2a0] sm:$0xff]
  %v99 = vld [vmem:[%s0 + $0x2a8] sm:$0xff]
  %v100 = vld [vmem:[%s0 + $0x2b0] sm:$0xff]
  %v101 = vld [vmem:[%s0 + $0x2b8] sm:$0xff]
  %v102 = vld [vmem:[%s0 + $0x2c0] sm:$0xff]
  %v103 = vld [vmem:[%s0 + $0x2c8] sm:$0xff]
  %v104 = vld [vmem:[%s0 + $0x2d0] sm:$0xff]
  %v105 = vld [vmem:[%s0 + $0x2d8] sm:$0xff]
  %v106 = vld [vmem:[%s0 + $0x2e0] sm:$0xff]
  %v107 = vld [vmem:[%s0 + $0x2e8] sm:$0xff]
  %v108 = vld [vmem:[%s0 + $0x2f0] sm:$0xff]
  %v109 = vld [vmem:[%s0 + $0x2f8] sm:$0xff]
  %v110 = vld [vmem:[%s0 + $0x300] sm:$0xff]
  %v111 = vld [vmem:[%s0 + $0x308] sm:$0xff]
  %v112 = vld [vmem:[%s0 + $0x310] sm:$0xff]
  %v113 = vld [vmem:[%s0 + $0x318] sm:$0xff]
  %v114 = vld [vmem:[%s0 + $0x320] sm:$0xff]
  %v115 = vld [vmem:[%s0 + $0x328] sm:$0xff]
  %v116 = vld [vmem:[%s0 + $0x330] sm:$0xff]
  %v117 = vld [vmem:[%s0 + $0x338] sm:$0xff]
  %v118 = vld [vmem:[%s0 + $0x340] sm:$0xff]
  %v119 = vld [vmem:[%s0 + $0x348] sm:$0xff]
  %v120 = vld [vmem:[%s0 + $0x350] sm:$0xff]
  %v121 = vld [vmem:[%s0 + $0x358] sm:$0xff]
  %v122 = vld [vmem:[%s0 + $0x360] sm:$0xff]
  %v123 = vld [vmem:[%s0 + $0x368] sm:$0xff]
  %v124 = vld [vmem:[%s0 + $0x370] sm:$0xff]
  %v125 = vld [vmem:[%s0 + $0x378] sm:$0xff]
  %v126 = vld [vmem:[%s0 + $0x380] sm:$0xff]
  %v127 = vld [vmem:[%s0 + $0x388] sm:$0xff]
  %v128 = vld [vmem:[%s0 + $0x390] sm:$0xff]
  %v129 = vld [vmem:[%s0 + $0x398] sm:$0xff]
  %v130 = vld [vmem:[%s0 + $0x3a0] sm:$0xff]
  %v131 = vld [vmem:[%s0 + $0x3a8] sm:$0xff]
  %v132 = vld [vmem:[%s0 + $0x3b0] sm:$0xff]
  %v133 = vld [vmem:[%s0 + $0x3b8] sm:$0xff]
  %v134 = vld [vmem:[%s0 + $0x3c0] sm:$0xff]
  %v135 = vld [vmem:[%s0 + $0x3c8] sm:$0xff]
  %v136 = vld [vmem:[%s0 + $0x3d0] sm:$0xff]
  %v137 = vld [vmem:[%s0 + $0x3d8] sm:$0xff]
  %v138 = vld [vmem:[%s0 + $0x3e0] sm:$0xff]
  %v139 = vld [vmem:[%s0 + $0x3e8] sm:$0xff]
  %v140 = vld [vmem:[%s0 + $0x3f0] sm:$0xff]
  %v141 = vld [vmem:[%s0 + $0x3f8] sm:$0xff]
  %v142 = vld [vmem:[%s1] sm:$0xff]
  %v143 = vld [vmem:[%s1 + $0x8] sm:$0xff]
  %v144 = vld [vmem:[%s1 + $0x10] sm:$0xff]
  %v145 = vld [vmem:[%s1 + $0x18] sm:$0xff]
  %v146 = vld [vmem:[%s1 + $0x20] sm:$0xff]
  %v147 = vld [vmem:[%s1 + $0x28] sm:$0xff]
  %v148 = vld [vmem:[%s1 + $0x30] sm:$0xff]
  %v149 = vld [vmem:[%s1 + $0x38] sm:$0xff]
  %v150 = vld [vmem:[%s1 + $0x40] sm:$0xff]
  %v151 = vld [vmem:[%s1 + $0x48] sm:$0xff]
  %v152 = vld [vmem:[%s1 + $0x50] sm:$0xff]
  %v153 = vld [vmem:[%s1 + $0x58] sm:$0xff]
  %v154 = vld [vmem:[%s1 + $0x60] sm:$0xff]
  %v155 = vld [vmem:[%s1 + $0x68] sm:$0xff]
  %v156 = vld [vmem:[%s1 + $0x70] sm:$0xff]
  %v157 = vld [vmem:[%s1 + $0x78] sm:$0xff]
  %v158 = vld [vmem:[%s1 + $0x80] sm:$0xff]
  %v159 = vld [vmem:[%s1 + $0x88] sm:$0xff]
  %v160 = vld [vmem:[%s1 + $0x90] sm:$0xff]
  %v161 = vld [vmem:[%s1 + $0x98] sm:$0xff]
  %v162 = vld [vmem:[%s1 + $0xa0] sm:$0xff]
  %v163 = vld [vmem:[%s1 + $0xa8] sm:$0xff]
  %v164 = vld [vmem:[%s1 + $0xb0] sm:$0xff]
  %v165 = vld [vmem:[%s1 + $0xb8] sm:$0xff]
  %v166 = vld [vmem:[%s1 + $0xc0] sm:$0xff]
  %v167 = vld [vmem:[%s1 + $0xc8] sm:$0xff]
  %v168 = vld [vmem:[%s1 + $0xd0] sm:$0xff]
  %v169 = vld [vmem:[%s1 + $0xd8] sm:$0xff]
  %v170 = vld [vmem:[%s1 + $0xe0] sm:$0xff]
  %v171 = vld [vmem:[%s1 + $0xe8] sm:$0xff]
  %v172 = vld [vmem:[%s1 + $0xf0] sm:$0xff]
  %v173 = vld [vmem:[%s1 + $0xf8] sm:$0xff]
  %174 = vmatprep.subr.mxu0 0.0
  %175 = vmatpush1.msra.mxu0 %v142
  %176 = vmatprep.subr.mxu0 0.0
  %177 = vmatpush1.msra.mxu0 %v143
  %178 = vmatprep.subr.mxu0 0.0
  %179 = vmatpush1.msra.mxu0 %v144
  %180 = vmatprep.subr.mxu0 0.0
  %181 = vmatpush1.msra.mxu0 %v145
  %182 = vmatprep.subr.mxu0 0.0
  %183 = vmatpush1.msra.mxu0 %v146
  %184 = vmatprep.subr.mxu0 0.0
  %185 = vmatpush1.msra.mxu0 %v147
  %186 = vmatprep.subr.mxu0 0.0
  %187 = vmatpush1.msra.mxu0 %v148
  %188 = vmatprep.subr.mxu0 0.0
  %189 = vmatpush1.msra.mxu0 %v149
  %190 = vmatprep.subr.mxu0 0.0
  %191 = vmatpush1.msra.mxu0 %v150
  %192 = vmatprep.subr.mxu0 0.0
  %193 = vmatpush1.msra.mxu0 %v151
  %194 = vmatprep.subr.mxu0 0.0
  %195 = vmatpush1.msra.mxu0 %v152
  %196 = vmatprep.subr.mxu0 0.0
  %197 = vmatpush1.msra.mxu0 %v153
  %198 = vmatprep.subr.mxu0 0.0
  %199 = vmatpush1.msra.mxu0 %v154
  %200 = vmatprep.subr.mxu0 0.0
  %201 = vmatpush1.msra.mxu0 %v155
  %202 = vmatprep.subr.mxu0 0.0
  %203 = vmatpush1.msra.mxu0 %v156
  %204 = vmatprep.subr.mxu0 0.0
  %205 = vmatpush1.msra.mxu0 %v157
  %206 = vmatprep.subr.mxu0 0.0
  %207 = vmatpush1.msra.mxu0 %v158
  %208 = vmatprep.subr.mxu0 0.0
  %209 = vmatpush1.msra.mxu0 %v159
  %210 = vmatprep.subr.mxu0 0.0
  %211 = vmatpush1.msra.mxu0 %v160
  %212 = vmatprep.subr.mxu0 0.0
  %213 = vmatpush1.msra.mxu0 %v161
  %214 = vmatprep.subr.mxu0 0.0
  %215 = vmatpush1.msra.mxu0 %v162
  %216 = vmatprep.subr.mxu0 0.0
  %217 = vmatpush1.msra.mxu0 %v163
  %218 = vmatprep.subr.mxu0 0.0
  %219 = vmatpush1.msra.mxu0 %v164
  %220 = vmatprep.subr.mxu0 0.0
  %221 = vmatpush1.msra.mxu0 %v165
  %222 = vmatprep.subr.mxu0 0.0
  %223 = vmatpush1.msra.mxu0 %v166
  %224 = vmatprep.subr.mxu0 0.0
  %225 = vmatpush1.msra.mxu0 %v167
  %226 = vmatprep.subr.mxu0 0.0
  %227 = vmatpush1.msra.mxu0 %v168
  %228 = vmatprep.subr.mxu0 0.0
  %229 = vmatpush1.msra.mxu0 %v169
  %230 = vmatprep.subr.mxu0 0.0
  %231 = vmatpush1.msra.mxu0 %v170
  %232 = vmatprep.subr.mxu0 0.0
  %233 = vmatpush1.msra.mxu0 %v171
  %234 = vmatprep.subr.mxu0 0.0
  %235 = vmatpush1.msra.mxu0 %v172
  %236 = vmatprep.subr.mxu0 0.0
  %237 = vmatpush1.msra.mxu0 %v173
  %238 = vmatprep.mubr.f32.mxu0 %v15
  %239 = vmatmul.mubr.f32.gmra.mrb[0].mxu0 %v14
  %v240 = vpop.f32.mrb[0].mxu0
  %v241 = vadd.f32 0.0, %v240
  %v242 = vpop.f32.mrb[0].mxu0
  %243 = vmatprep.mubr.f32.mxu0 %v17
  %244 = vmatmul.mubr.f32.gmra.mrb[0].mxu0 %v16
  %v245 = vpop.f32.mrb[0].mxu0
  %v246 = vadd.f32 0.0, %v245
  %v247 = vpop.f32.mrb[0].mxu0
  %248 = vmatprep.mubr.f32.mxu0 %v19
  %249 = vmatmul.mubr.f32.gmra.mrb[0].mxu0 %v18
  %v250 = vpop.f32.mrb[0].mxu0
  %v251 = vadd.f32 0.0, %v250
  %v252 = vpop.f32.mrb[0].mxu0
  %253 = vmatprep.mubr.f32.mxu0 %v21
  %254 = vmatmul.mubr.f32.gmra.mrb[0].mxu0 %v20
  %v255 = vpop.f32.mrb[0].mxu0
  %v256 = vadd.f32 0.0, %v255
  %v257 = vpop.f32.mrb[0].mxu0
  %258 = vmatprep.mubr.f32.mxu0 %v23
  %259 = vmatmul.mubr.f32.gmra.mrb[0].mxu0 %v22
  %v260 = vpop.f32.mrb[0].mxu0
  %v261 = vadd.f32 0.0, %v260
  %v262 = vpop.f32.mrb[0].mxu0
  %263 = vmatprep.mubr.f32.mxu0 %v25
  %264 = vmatmul.mubr.f32.gmra.mrb[0].mxu0 %v24
  %v265 = vpop.f32.mrb[0].mxu0
  %v266 = vadd.f32 0.0, %v265
  %v267 = vpop.f32.mrb[0].mxu0
  %268 = vmatprep.mubr.f32.mxu0 %v27
  %269 = vmatmul.mubr.f32.gmra.mrb[0].mxu0 %v26
  %v270 = vpop.f32.mrb[0].mxu0
  %v271 = vadd.f32 0.0, %v270
  %v272 = vpop.f32.mrb[0].mxu0
  %273 = vmatprep.mubr.f32.mxu0 %v29
  %274 = vmatmul.mubr.f32.gmra.mrb[0].mxu0 %v28
  %v275 = vpop.f32.mrb[0].mxu0
  %v276 = vadd.f32 0.0, %v275
  %v277 = vpop.f32.mrb[0].mxu0
  %278 = vmatprep.mubr.f32.mxu0 %v31
  %279 = vmatmul.mubr.f32.gmra.mrb[0].mxu0 %v30
  %v280 = vpop.f32.mrb[0].mxu0
  %v281 = vadd.f32 0.0, %v280
  %v282 = vpop.f32.mrb[0].mxu0
  %283 = vmatprep.mubr.f32.mxu0 %v33
  %284 = vmatmul.mubr.f32.gmra.mrb[0].mxu0 %v32
  %v285 = vpop.f32.mrb[0].mxu0
  %v286 = vadd.f32 0.0, %v285
  %v287 = vpop.f32.mrb[0].mxu0
  %288 = vmatprep.mubr.f32.mxu0 %v35
  %289 = vmatmul.mubr.f32.gmra.mrb[0].mxu0 %v34
  %v290 = vpop.f32.mrb[0].mxu0
  %v291 = vadd.f32 0.0, %v290
  %v292 = vpop.f32.mrb[0].mxu0
  %293 = vmatprep.mubr.f32.mxu0 %v37
  %294 = vmatmul.mubr.f32.gmra.mrb[0].mxu0 %v36
  %v295 = vpop.f32.mrb[0].mxu0
  %v296 = vadd.f32 0.0, %v295
  %v297 = vpop.f32.mrb[0].mxu0
  %298 = vmatprep.mubr.f32.mxu0 %v39
  %299 = vmatmul.mubr.f32.gmra.mrb[0].mxu0 %v38
  %v300 = vpop.f32.mrb[0].mxu0
  %v301 = vadd.f32 0.0, %v300
  %v302 = vpop.f32.mrb[0].mxu0
  %303 = vmatprep.mubr.f32.mxu0 %v41
  %304 = vmatmul.mubr.f32.gmra.mrb[0].mxu0 %v40
  %v305 = vpop.f32.mrb[0].mxu0
  %v306 = vadd.f32 0.0, %v305
  %v307 = vpop.f32.mrb[0].mxu0
  %308 = vmatprep.mubr.f32.mxu0 %v43
  %309 = vmatmul.mubr.f32.gmra.mrb[0].mxu0 %v42
  %v310 = vpop.f32.mrb[0].mxu0
  %v311 = vadd.f32 0.0, %v310
  %v312 = vpop.f32.mrb[0].mxu0
  %313 = vmatprep.mubr.f32.mxu0 %v45
  %314 = vmatmul.mubr.f32.gmra.mrb[0].mxu0 %v44
  %v315 = vpop.f32.mrb[0].mxu0
  %v316 = vadd.f32 0.0, %v315
  %v317 = vpop.f32.mrb[0].mxu0
  %318 = vmatprep.mubr.f32.mxu0 %v47
  %319 = vmatmul.mubr.f32.gmra.mrb[0].mxu0 %v46
  %v320 = vpop.f32.mrb[0].mxu0
  %v321 = vadd.f32 0.0, %v320
  %v322 = vpop.f32.mrb[0].mxu0
  %323 = vmatprep.mubr.f32.mxu0 %v49
  %324 = vmatmul.mubr.f32.gmra.mrb[0].mxu0 %v48
  %v325 = vpop.f32.mrb[0].mxu0
  %v326 = vadd.f32 0.0, %v325
  %v327 = vpop.f32.mrb[0].mxu0
  %328 = vmatprep.mubr.f32.mxu0 %v51
  %329 = vmatmul.mubr.f32.gmra.mrb[0].mxu0 %v50
  %v330 = vpop.f32.mrb[0].mxu0
  %v331 = vadd.f32 0.0, %v330
  %v332 = vpop.f32.mrb[0].mxu0
  %333 = vmatprep.mubr.f32.mxu0 %v53
  %334 = vmatmul.mubr.f32.gmra.mrb[0].mxu0 %v52
  %v335 = vpop.f32.mrb[0].mxu0
  %v336 = vadd.f32 0.0, %v335
  %v337 = vpop.f32.mrb[0].mxu0
  %338 = vmatprep.mubr.f32.mxu0 %v55
  %339 = vmatmul.mubr.f32.gmra.mrb[0].mxu0 %v54
  %v340 = vpop.f32.mrb[0].mxu0
  %v341 = vadd.f32 0.0, %v340
  %v342 = vpop.f32.mrb[0].mxu0
  %343 = vmatprep.mubr.f32.mxu0 %v57
  %344 = vmatmul.mubr.f32.gmra.mrb[0].mxu0 %v56
  %v345 = vpop.f32.mrb[0].mxu0
  %v346 = vadd.f32 0.0, %v345
  %v347 = vpop.f32.mrb[0].mxu0
  %348 = vmatprep.mubr.f32.mxu0 %v59
  %349 = vmatmul.mubr.f32.gmra.mrb[0].mxu0 %v58
  %v350 = vpop.f32.mrb[0].mxu0
  %v351 = vadd.f32 0.0, %v350
  %v352 = vpop.f32.mrb[0].mxu0
  %353 = vmatprep.mubr.f32.mxu0 %v61
  %354 = vmatmul.mubr.f32.gmra.mrb[0].mxu0 %v60
  %v355 = vpop.f32.mrb[0].mxu0
  %v356 = vadd.f32 0.0, %v355
  %v357 = vpop.f32.mrb[0].mxu0
  %358 = vmatprep.mubr.f32.mxu0 %v63
  %359 = vmatmul.mubr.f32.gmra.mrb[0].mxu0 %v62
  %v360 = vpop.f32.mrb[0].mxu0
  %v361 = vadd.f32 0.0, %v360
  %v362 = vpop.f32.mrb[0].mxu0
  %363 = vmatprep.mubr.f32.mxu0 %v65
  %364 = vmatmul.mubr.f32.gmra.mrb[0].mxu0 %v64
  %v365 = vpop.f32.mrb[0].mxu0
  %v366 = vadd.f32 0.0, %v365
  %v367 = vpop.f32.mrb[0].mxu0
  %368 = vmatprep.mubr.f32.mxu0 %v67
  %369 = vmatmul.mubr.f32.gmra.mrb[0].mxu0 %v66
  %v370 = vpop.f32.mrb[0].mxu0
  %v371 = vadd.f32 0.0, %v370
  %v372 = vpop.f32.mrb[0].mxu0
  %373 = vmatprep.mubr.f32.mxu0 %v69
  %374 = vmatmul.mubr.f32.gmra.mrb[0].mxu0 %v68
  %v375 = vpop.f32.mrb[0].mxu0
  %v376 = vadd.f32 0.0, %v375
  %v377 = vpop.f32.mrb[0].mxu0
  %378 = vmatprep.mubr.f32.mxu0 %v71
  %379 = vmatmul.mubr.f32.gmra.mrb[0].mxu0 %v70
  %v380 = vpop.f32.mrb[0].mxu0
  %v381 = vadd.f32 0.0, %v380
  %v382 = vpop.f32.mrb[0].mxu0
  %383 = vmatprep.mubr.f32.mxu0 %v73
  %384 = vmatmul.mubr.f32.gmra.mrb[0].mxu0 %v72
  %v385 = vpop.f32.mrb[0].mxu0
  %v386 = vadd.f32 0.0, %v385
  %v387 = vpop.f32.mrb[0].mxu0
  %388 = vmatprep.mubr.f32.mxu0 %v75
  %389 = vmatmul.mubr.f32.gmra.mrb[0].mxu0 %v74
  %v390 = vpop.f32.mrb[0].mxu0
  %v391 = vadd.f32 0.0, %v390
  %v392 = vpop.f32.mrb[0].mxu0
  %393 = vmatprep.mubr.f32.mxu0 %v77
  %394 = vmatmul.mubr.f32.gmra.mrb[0].mxu0 %v76
  %v395 = vpop.f32.mrb[0].mxu0
  %v396 = vadd.f32 0.0, %v395
  %v397 = vpop.f32.mrb[0].mxu0
  %398 = vmatprep.mubr.f32.mxu0 %v79
  %399 = vmatmul.mubr.f32.gmra.mrb[0].mxu0 %v78
  %v400 = vpop.f32.mrb[0].mxu0
  %v401 = vadd.f32 0.0, %v400
  %v402 = vpop.f32.mrb[0].mxu0
  %403 = vmatprep.mubr.f32.mxu0 %v81
  %404 = vmatmul.mubr.f32.gmra.mrb[0].mxu0 %v80
  %v405 = vpop.f32.mrb[0].mxu0
  %v406 = vadd.f32 0.0, %v405
  %v407 = vpop.f32.mrb[0].mxu0
  %408 = vmatprep.mubr.f32.mxu0 %v83
  %409 = vmatmul.mubr.f32.gmra.mrb[0].mxu0 %v82
  %v410 = vpop.f32.mrb[0].mxu0
  %v411 = vadd.f32 0.0, %v410
  %v412 = vpop.f32.mrb[0].mxu0
  %413 = vmatprep.mubr.f32.mxu0 %v85
  %414 = vmatmul.mubr.f32.gmra.mrb[0].mxu0 %v84
  %v415 = vpop.f32.mrb[0].mxu0
  %v416 = vadd.f32 0.0, %v415
  %v417 = vpop.f32.mrb[0].mxu0
  %418 = vmatprep.mubr.f32.mxu0 %v87
  %419 = vmatmul.mubr.f32.gmra.mrb[0].mxu0 %v86
  %v420 = vpop.f32.mrb[0].mxu0
  %v421 = vadd.f32 0.0, %v420
  %v422 = vpop.f32.mrb[0].mxu0
  %423 = vmatprep.mubr.f32.mxu0 %v89
  %424 = vmatmul.mubr.f32.gmra.mrb[0].mxu0 %v88
  %v425 = vpop.f32.mrb[0].mxu0
  %v426 = vadd.f32 0.0, %v425
  %v427 = vpop.f32.mrb[0].mxu0
  %428 = vmatprep.mubr.f32.mxu0 %v91
  %429 = vmatmul.mubr.f32.gmra.mrb[0].mxu0 %v90
  %v430 = vpop.f32.mrb[0].mxu0
  %v431 = vadd.f32 0.0, %v430
  %v432 = vpop.f32.mrb[0].mxu0
  %433 = vmatprep.mubr.f32.mxu0 %v93
  %434 = vmatmul.mubr.f32.gmra.mrb[0].mxu0 %v92
  %v435 = vpop.f32.mrb[0].mxu0
  %v436 = vadd.f32 0.0, %v435
  %v437 = vpop.f32.mrb[0].mxu0
  %438 = vmatprep.mubr.f32.mxu0 %v95
  %439 = vmatmul.mubr.f32.gmra.mrb[0].mxu0 %v94
  %v440 = vpop.f32.mrb[0].mxu0
  %v441 = vadd.f32 0.0, %v440
  %v442 = vpop.f32.mrb[0].mxu0
  %443 = vmatprep.mubr.f32.mxu0 %v97
  %444 = vmatmul.mubr.f32.gmra.mrb[0].mxu0 %v96
  %v445 = vpop.f32.mrb[0].mxu0
  %v446 = vadd.f32 0.0, %v445
  %v447 = vpop.f32.mrb[0].mxu0
  %448 = vmatprep.mubr.f32.mxu0 %v99
  %449 = vmatmul.mubr.f32.gmra.mrb[0].mxu0 %v98
  %v450 = vpop.f32.mrb[0].mxu0
  %v451 = vadd.f32 0.0, %v450
  %v452 = vpop.f32.mrb[0].mxu0
  %453 = vmatprep.mubr.f32.mxu0 %v101
  %454 = vmatmul.mubr.f32.gmra.mrb[0].mxu0 %v100
  %v455 = vpop.f32.mrb[0].mxu0
  %v456 = vadd.f32 0.0, %v455
  %v457 = vpop.f32.mrb[0].mxu0
  %458 = vmatprep.mubr.f32.mxu0 %v103
  %459 = vmatmul.mubr.f32.gmra.mrb[0].mxu0 %v102
  %v460 = vpop.f32.mrb[0].mxu0
  %v461 = vadd.f32 0.0, %v460
  %v462 = vpop.f32.mrb[0].mxu0
  %463 = vmatprep.mubr.f32.mxu0 %v105
  %464 = vmatmul.mubr.f32.gmra.mrb[0].mxu0 %v104
  %v465 = vpop.f32.mrb[0].mxu0
  %v466 = vadd.f32 0.0, %v465
  %v467 = vpop.f32.mrb[0].mxu0
  %468 = vmatprep.mubr.f32.mxu0 %v107
  %469 = vmatmul.mubr.f32.gmra.mrb[0].mxu0 %v106
  %v470 = vpop.f32.mrb[0].mxu0
  %v471 = vadd.f32 0.0, %v470
  %v472 = vpop.f32.mrb[0].mxu0
  %473 = vmatprep.mubr.f32.mxu0 %v109
  %474 = vmatmul.mubr.f32.gmra.mrb[0].mxu0 %v108
  %v475 = vpop.f32.mrb[0].mxu0
  %v476 = vadd.f32 0.0, %v475
  %v477 = vpop.f32.mrb[0].mxu0
  %478 = vmatprep.mubr.f32.mxu0 %v111
  %479 = vmatmul.mubr.f32.gmra.mrb[0].mxu0 %v110
  %v480 = vpop.f32.mrb[0].mxu0
  %v481 = vadd.f32 0.0, %v480
  %v482 = vpop.f32.mrb[0].mxu0
  %483 = vmatprep.mubr.f32.mxu0 %v113
  %484 = vmatmul.mubr.f32.gmra.mrb[0].mxu0 %v112
  %v485 = vpop.f32.mrb[0].mxu0
  %v486 = vadd.f32 0.0, %v485
  %v487 = vpop.f32.mrb[0].mxu0
  %488 = vmatprep.mubr.f32.mxu0 %v115
  %489 = vmatmul.mubr.f32.gmra.mrb[0].mxu0 %v114
  %v490 = vpop.f32.mrb[0].mxu0
  %v491 = vadd.f32 0.0, %v490
  %v492 = vpop.f32.mrb[0].mxu0
  %493 = vmatprep.mubr.f32.mxu0 %v117
  %494 = vmatmul.mubr.f32.gmra.mrb[0].mxu0 %v116
  %v495 = vpop.f32.mrb[0].mxu0
  %v496 = vadd.f32 0.0, %v495
  %v497 = vpop.f32.mrb[0].mxu0
  %498 = vmatprep.mubr.f32.mxu0 %v119
  %499 = vmatmul.mubr.f32.gmra.mrb[0].mxu0 %v118
  %v500 = vpop.f32.mrb[0].mxu0
  %v501 = vadd.f32 0.0, %v500
  %v502 = vpop.f32.mrb[0].mxu0
  %503 = vmatprep.mubr.f32.mxu0 %v121
  %504 = vmatmul.mubr.f32.gmra.mrb[0].mxu0 %v120
  %v505 = vpop.f32.mrb[0].mxu0
  %v506 = vadd.f32 0.0, %v505
  %v507 = vpop.f32.mrb[0].mxu0
  %508 = vmatprep.mubr.f32.mxu0 %v123
  %509 = vmatmul.mubr.f32.gmra.mrb[0].mxu0 %v122
  %v510 = vpop.f32.mrb[0].mxu0
  %v511 = vadd.f32 0.0, %v510
  %v512 = vpop.f32.mrb[0].mxu0
  %513 = vmatprep.mubr.f32.mxu0 %v125
  %514 = vmatmul.mubr.f32.gmra.mrb[0].mxu0 %v124
  %v515 = vpop.f32.mrb[0].mxu0
  %v516 = vadd.f32 0.0, %v515
  %v517 = vpop.f32.mrb[0].mxu0
  %518 = vmatprep.mubr.f32.mxu0 %v127
  %519 = vmatmul.mubr.f32.gmra.mrb[0].mxu0 %v126
  %v520 = vpop.f32.mrb[0].mxu0
  %v521 = vadd.f32 0.0, %v520
  %v522 = vpop.f32.mrb[0].mxu0
  %523 = vmatprep.mubr.f32.mxu0 %v129
  %524 = vmatmul.mubr.f32.gmra.mrb[0].mxu0 %v128
  %v525 = vpop.f32.mrb[0].mxu0
  %v526 = vadd.f32 0.0, %v525
  %v527 = vpop.f32.mrb[0].mxu0
  %528 = vmatprep.mubr.f32.mxu0 %v131
  %529 = vmatmul.mubr.f32.gmra.mrb[0].mxu0 %v130
  %v530 = vpop.f32.mrb[0].mxu0
  %v531 = vadd.f32 0.0, %v530
  %v532 = vpop.f32.mrb[0].mxu0
  %533 = vmatprep.mubr.f32.mxu0 %v133
  %534 = vmatmul.mubr.f32.gmra.mrb[0].mxu0 %v132
  %v535 = vpop.f32.mrb[0].mxu0
  %v536 = vadd.f32 0.0, %v535
  %v537 = vpop.f32.mrb[0].mxu0
  %538 = vmatprep.mubr.f32.mxu0 %v135
  %539 = vmatmul.mubr.f32.gmra.mrb[0].mxu0 %v134
  %v540 = vpop.f32.mrb[0].mxu0
  %v541 = vadd.f32 0.0, %v540
  %v542 = vpop.f32.mrb[0].mxu0
  %543 = vmatprep.mubr.f32.mxu0 %v137
  %544 = vmatmul.mubr.f32.gmra.mrb[0].mxu0 %v136
  %v545 = vpop.f32.mrb[0].mxu0
  %v546 = vadd.f32 0.0, %v545
  %v547 = vpop.f32.mrb[0].mxu0
  %548 = vmatprep.mubr.f32.mxu0 %v139
  %549 = vmatmul.mubr.f32.gmra.mrb[0].mxu0 %v138
  %v550 = vpop.f32.mrb[0].mxu0
  %v551 = vadd.f32 0.0, %v550
  %v552 = vpop.f32.mrb[0].mxu0
  %553 = vmatprep.mubr.f32.mxu0 %v141
  %554 = vmatmul.mubr.f32.gmra.mrb[0].mxu0 %v140
  %v555 = vpop.f32.mrb[0].mxu0
  %v556 = vadd.f32 0.0, %v555
  %v557 = vpop.f32.mrb[0].mxu0
  %558 = vdwg.mxu0
  %v559 = vmax.f32 %v241, %v251
  %v560 = vmax.f32 %v246, %v256
  %v561 = vmax.f32 %v281, %v291
  %v562 = vmax.f32 %v286, %v296
  %v563 = vmax.f32 %v321, %v331
  %v564 = vmax.f32 %v326, %v336
  %v565 = vmax.f32 %v361, %v371
  %v566 = vmax.f32 %v366, %v376
  %v567 = vmax.f32 %v401, %v411
  %v568 = vmax.f32 %v406, %v416
  %v569 = vmax.f32 %v441, %v451
  %v570 = vmax.f32 %v446, %v456
  %v571 = vmax.f32 %v481, %v491
  %v572 = vmax.f32 %v486, %v496
  %v573 = vmax.f32 %v521, %v531
  %v574 = vmax.f32 %v526, %v536
  %v575 = vmax.f32 %v261, %v271
  %v576 = vmax.f32 %v266, %v276
  %v577 = vmax.f32 %v301, %v311
  %v578 = vmax.f32 %v306, %v316
  %v579 = vmax.f32 %v341, %v351
  %v580 = vmax.f32 %v346, %v356
  %v581 = vmax.f32 %v381, %v391
  %v582 = vmax.f32 %v386, %v396
  %v583 = vmax.f32 %v421, %v431
  %v584 = vmax.f32 %v426, %v436
  %v585 = vmax.f32 %v461, %v471
  %v586 = vmax.f32 %v466, %v476
  %v587 = vmax.f32 %v501, %v511
  %v588 = vmax.f32 %v506, %v516
  %v589 = vmax.f32 %v541, %v551
  %v590 = vmax.f32 %v546, %v556
  %v591 = vmax.f32 %v559, %v575
  %v592 = vmax.f32 %v560, %v576
  %v593 = vmax.f32 %v561, %v577
  %v594 = vmax.f32 %v562, %v578
  %v595 = vmax.f32 %v563, %v579
  %v596 = vmax.f32 %v564, %v580
  %v597 = vmax.f32 %v565, %v581
  %v598 = vmax.f32 %v566, %v582
  %v599 = vmax.f32 %v567, %v583
  %v600 = vmax.f32 %v568, %v584
  %v601 = vmax.f32 %v569, %v585
  %v602 = vmax.f32 %v570, %v586
  %v603 = vmax.f32 %v571, %v587
  %v604 = vmax.f32 %v572, %v588
  %v605 = vmax.f32 %v573, %v589
  %v606 = vmax.f32 %v574, %v590
  %v607 = vld [vmem:[%s2] sm:$0x1]
  %v609 = vlaneseq
  %v610 = vshrl.u32 %v609, 7
  %v611 = vsub.s32 0, %v610
  %v612 = vrot.slane %v607, %v611
  %v614 = vadd.f32 %v591, %v612
  %v615 = vadd.f32 %v592, %v612
  %v616 = vadd.f32 %v593, %v612
  %v617 = vadd.f32 %v594, %v612
  %v618 = vadd.f32 %v595, %v612
  %v619 = vadd.f32 %v596, %v612
  %v620 = vadd.f32 %v597, %v612
  %v621 = vadd.f32 %v598, %v612
  %v622 = vadd.f32 %v599, %v612
  %v623 = vadd.f32 %v600, %v612
  %v624 = vadd.f32 %v601, %v612
  %v625 = vadd.f32 %v602, %v612
  %v626 = vadd.f32 %v603, %v612
  %v627 = vadd.f32 %v604, %v612
  %v628 = vadd.f32 %v605, %v612
  %v629 = vadd.f32 %v606, %v612
  %v630 = vmax.f32 %v614, 0.0
  %v631 = vmax.f32 %v615, 0.0
  %v632 = vmax.f32 %v616, 0.0
  %v633 = vmax.f32 %v617, 0.0
  %v634 = vmax.f32 %v618, 0.0
  %v635 = vmax.f32 %v619, 0.0
  %v636 = vmax.f32 %v620, 0.0
  %v637 = vmax.f32 %v621, 0.0
  %v638 = vmax.f32 %v622, 0.0
  %v639 = vmax.f32 %v623, 0.0
  %v640 = vmax.f32 %v624, 0.0
  %v641 = vmax.f32 %v625, 0.0
  %v642 = vmax.f32 %v626, 0.0
  %v643 = vmax.f32 %v627, 0.0
  %v644 = vmax.f32 %v628, 0.0
  %v645 = vmax.f32 %v629, 0.0
  %vm646 = vcmask 261120
  %647 = vst.msk [vmem:[%s3] sm:$0xff] %vm646, %v630
  %648 = vst.msk [vmem:[%s3 + $0x8] sm:$0xff] %vm646, %v631
  %649 = vst.msk [vmem:[%s3 + $0x10] sm:$0xff] %vm646, %v632
  %650 = vst.msk [vmem:[%s3 + $0x18] sm:$0xff] %vm646, %v633
  %651 = vst.msk [vmem:[%s3 + $0x20] sm:$0xff] %vm646, %v634
  %652 = vst.msk [vmem:[%s3 + $0x28] sm:$0xff] %vm646, %v635
  %653 = vst.msk [vmem:[%s3 + $0x30] sm:$0xff] %vm646, %v636
  %654 = vst.msk [vmem:[%s3 + $0x38] sm:$0xff] %vm646, %v637
  %655 = vst.msk [vmem:[%s3 + $0x40] sm:$0xff] %vm646, %v638
  %656 = vst.msk [vmem:[%s3 + $0x48] sm:$0xff] %vm646, %v639
  %657 = vst.msk [vmem:[%s3 + $0x50] sm:$0xff] %vm646, %v640
  %658 = vst.msk [vmem:[%s3 + $0x58] sm:$0xff] %vm646, %v641
  %659 = vst.msk [vmem:[%s3 + $0x60] sm:$0xff] %vm646, %v642
  %660 = vst.msk [vmem:[%s3 + $0x68] sm:$0xff] %vm646, %v643
  %661 = vst.msk [vmem:[%s3 + $0x70] sm:$0xff] %vm646, %v644
  %662 = vst.msk [vmem:[%s3 + $0x78] sm:$0xff] %vm646, %v645
  // Predicated region
  $region14: #{cnn_mnist_forward.4} parent=0 // pred_check
    _
  $region15: #{cnn_mnist_forward.4} parent=0 // pred_check_branch
    %664 = sbr.rel (0) target = $region17
  $region16: #{cnn_mnist_forward.4} parent=0 // pred_region
    _
  $region17: #{cnn_mnist_forward.4} parent=0 // pred_fallthru
    _
  // Predicated region
  $region18: #{cnn_mnist_forward.4} parent=0 // pred_check
    _
  $region19: #{cnn_mnist_forward.4} parent=0 // pred_check_branch
    %666 = sbr.rel (0) target = $region21
  $region20: #{cnn_mnist_forward.4} parent=0 // pred_region
    _
  $region21: #{cnn_mnist_forward.4} parent=0 // pred_fallthru
    _

</llo_original>
